<compile_context>
chip_gen: v5e
topology: v5e:2x2
jax: 0.10.0
libtpu: 0.0.40
codegen_flags: <defaults>
</compile_context>

<pallas_src>
import functools
import math

import jax
import jax.numpy as jnp
from jax.experimental import pallas as pl
from jax.experimental.pallas import tpu as pltpu

_MATMUL_DTYPE = jnp.bfloat16                   # MXU operand dtype
_PARALLEL = pltpu.CompilerParams(dimension_semantics=("parallel",))


# ----------------------------------------------------------------------------
# In-kernel helpers (operate on values, not refs)
# ----------------------------------------------------------------------------
def _ln(x, g, b, eps=1e-5):
    mean = jnp.mean(x, axis=-1, keepdims=True)
    var = jnp.mean((x - mean) ** 2, axis=-1, keepdims=True)
    return (x - mean) * jax.lax.rsqrt(var + eps) * g + b


def _matmul(x, w_ref, b_ref):
    """x @ w + b with bf16 (or f32) weights and f32 accumulation."""
    w = w_ref[...]
    return (jnp.dot(x.astype(w.dtype), w, preferred_element_type=jnp.float32)
            + b_ref[...])


def _mha(q, k, v, mask, n_heads):
    """q:(T,D) k/v:(S,D) f32; additive mask (T,S) or None -> (T,D) f32.
    Head split via static lane slices (no transposes); MXU operands bf16."""
    D = q.shape[-1]
    dh = D // n_heads
    scale = 1.0 / math.sqrt(dh)
    outs = []
    for h in range(n_heads):
        sl = slice(h * dh, (h + 1) * dh)
        qh = q[:, sl].astype(_MATMUL_DTYPE)
        kh = k[:, sl].astype(_MATMUL_DTYPE)
        vh = v[:, sl].astype(_MATMUL_DTYPE)
        s = jnp.einsum("td,sd->ts", qh, kh,
                       preferred_element_type=jnp.float32) * scale
        if mask is not None:
            s = s + mask
        s = s - jnp.max(s, axis=-1, keepdims=True)
        p = jnp.exp(s)
        p = p * pl.reciprocal(jnp.sum(p, axis=-1, keepdims=True), approx=True)
        outs.append(jnp.dot(p.astype(_MATMUL_DTYPE), vh,
                            preferred_element_type=jnp.float32))
    return jnp.concatenate(outs, axis=-1)     # (T, H*dh) = (T, D), lane-dense


# ----------------------------------------------------------------------------
# Pallas kernels (one batch element per grid step)
# ----------------------------------------------------------------------------
def _input_proj_kernel(x_ref, pe_ref, w_ref, b_ref, o_ref):
    """Input linear projection with positional-encoding add fused in."""
    o_ref[0] = _matmul(x_ref[0], w_ref, b_ref) + pe_ref[...]


def _encoder_layer_kernel(x_ref, qkv_w, qkv_b, ow, ob, n1g, n1b,
                          l1w, l1b, l2w, l2b, n2g, n2b, o_ref, *, n_heads):
    """Whole TransformerEncoderLayer (post-norm, ReLU) for one batch element."""
    x = x_ref[0]                                   # (S, D) f32
    D = x.shape[-1]
    qkv = _matmul(x, qkv_w, qkv_b)                 # (S, 3D)
    a = _mha(qkv[:, :D], qkv[:, D:2 * D], qkv[:, 2 * D:], None, n_heads)
    x1 = _ln(_matmul(a, ow, ob) + x, n1g[...], n1b[...])
    h = jnp.maximum(_matmul(x1, l1w, l1b), 0.0)    # (S, F) stays in VMEM
    o_ref[0] = _ln(_matmul(h, l2w, l2b) + x1, n2g[...], n2b[...])


def _decoder_layer_kernel(y_ref, mem_ref, *rest, n_heads,
                          has_tgt_mask, has_mem_mask):
    """Whole TransformerDecoderLayer (post-norm, ReLU) for one batch element."""
    idx = 0
    tgt_mask = None
    if has_tgt_mask:
        tgt_mask = rest[idx][...]
        idx += 1
    mem_mask = None
    if has_mem_mask:
        mem_mask = rest[idx][...]
        idx += 1
    (sa_qkv_w, sa_qkv_b, sa_ow, sa_ob, n1g, n1b,
     ca_qw, ca_qb, ca_kvw, ca_kvb, ca_ow, ca_ob, n2g, n2b,
     l1w, l1b, l2w, l2b, n3g, n3b, o_ref) = rest[idx:]

    y = y_ref[0]                                   # (T, D)
    mem = mem_ref[0]                               # (S, D)
    D = y.shape[-1]

    # masked self-attention
    qkv = _matmul(y, sa_qkv_w, sa_qkv_b)
    a = _mha(qkv[:, :D], qkv[:, D:2 * D], qkv[:, 2 * D:], tgt_mask, n_heads)
    x1 = _ln(_matmul(a, sa_ow, sa_ob) + y, n1g[...], n1b[...])

    # cross-attention: Q from decoder state, fused K/V from encoder memory
    q = _matmul(x1, ca_qw, ca_qb)
    kv = _matmul(mem, ca_kvw, ca_kvb)
    a = _mha(q, kv[:, :D], kv[:, D:], mem_mask, n_heads)
    x2 = _ln(_matmul(a, ca_ow, ca_ob) + x1, n2g[...], n2b[...])

    # feed-forward
    h = jnp.maximum(_matmul(x2, l1w, l1b), 0.0)
    o_ref[0] = _ln(_matmul(h, l2w, l2b) + x2, n3g[...], n3b[...])


def _ln3_kernel(x_ref, g_ref, b_ref, o_ref):
    o_ref[0] = _ln(x_ref[0], g_ref[...], b_ref[...])


def _ln_linear_kernel(x_ref, g_ref, b_ref, w_ref, wb_ref, o_ref):
    """Final LayerNorm + output linear mapping fused."""
    xn = _ln(x_ref[0], g_ref[...], b_ref[...])
    o_ref[0] = _matmul(xn, w_ref, wb_ref)


# ----------------------------------------------------------------------------
# pallas_call wrappers (grid over batch, "parallel" semantics)
# ----------------------------------------------------------------------------
def _rep_spec(a):
    """Whole-array block replicated across the batch grid (weights, PE, masks)."""
    return pl.BlockSpec(a.shape, lambda i, _n=a.ndim: (0,) * _n)


def _batch_spec(shape):
    """(1, *shape) block indexed by the batch grid axis."""
    return pl.BlockSpec((1,) + tuple(shape),
                        lambda i, _k=len(shape): (i,) + (0,) * _k)


def input_projection(x, pe, w, b):
    N, S, E = x.shape
    D = w.shape[1]
    return pl.pallas_call(
        _input_proj_kernel,
        out_shape=jax.ShapeDtypeStruct((N, S, D), jnp.float32),
        grid=(N,),
        in_specs=[_batch_spec((S, E)), _rep_spec(pe), _rep_spec(w), _rep_spec(b)],
        out_specs=_batch_spec((S, D)),
        compiler_params=_PARALLEL,
    )(x, pe, w, b)


_ENC_W_NAMES = ("qkv_w", "qkv_b", "out_w", "out_b", "n1_g", "n1_b",
                "l1_w", "l1_b", "l2_w", "l2_b", "n2_g", "n2_b")


def encoder_layer(x, lp, n_heads):
    N, S, D = x.shape
    ws = [lp[nm] for nm in _ENC_W_NAMES]
    return pl.pallas_call(
        functools.partial(_encoder_layer_kernel, n_heads=n_heads),
        out_shape=jax.ShapeDtypeStruct((N, S, D), jnp.float32),
        grid=(N,),
        in_specs=[_batch_spec((S, D))] + [_rep_spec(w) for w in ws],
        out_specs=_batch_spec((S, D)),
        compiler_params=_PARALLEL,
    )(x, *ws)


_DEC_W_NAMES = ("sa_qkv_w", "sa_qkv_b", "sa_out_w", "sa_out_b", "n1_g", "n1_b",
                "ca_q_w", "ca_q_b", "ca_kv_w", "ca_kv_b", "ca_out_w", "ca_out_b",
                "n2_g", "n2_b", "l1_w", "l1_b", "l2_w", "l2_b", "n3_g", "n3_b")


def decoder_layer(y, mem, lp, n_heads, tgt_mask, mem_mask):
    N, T, D = y.shape
    S = mem.shape[1]
    specs = [_batch_spec((T, D)), _batch_spec((S, D))]
    args = [y, mem]
    if tgt_mask is not None:
        specs.append(_rep_spec(tgt_mask))
        args.append(tgt_mask)
    if mem_mask is not None:
        specs.append(_rep_spec(mem_mask))
        args.append(mem_mask)
    ws = [lp[nm] for nm in _DEC_W_NAMES]
    specs += [_rep_spec(w) for w in ws]
    args += ws
    return pl.pallas_call(
        functools.partial(_decoder_layer_kernel, n_heads=n_heads,
                          has_tgt_mask=tgt_mask is not None,
                          has_mem_mask=mem_mask is not None),
        out_shape=jax.ShapeDtypeStruct((N, T, D), jnp.float32),
        grid=(N,),
        in_specs=specs,
        out_specs=_batch_spec((T, D)),
        compiler_params=_PARALLEL,
    )(*args)


def layer_norm(x, g, b):
    N, S, D = x.shape
    return pl.pallas_call(
        _ln3_kernel,
        out_shape=jax.ShapeDtypeStruct((N, S, D), jnp.float32),
        grid=(N,),
        in_specs=[_batch_spec((S, D)), _rep_spec(g), _rep_spec(b)],
        out_specs=_batch_spec((S, D)),
        compiler_params=_PARALLEL,
    )(x, g, b)


def ln_linear(x, g, b, w, wb):
    N, S, D = x.shape
    P = w.shape[1]
    return pl.pallas_call(
        _ln_linear_kernel,
        out_shape=jax.ShapeDtypeStruct((N, S, P), jnp.float32),
        grid=(N,),
        in_specs=[_batch_spec((S, D)), _rep_spec(g), _rep_spec(b),
                  _rep_spec(w), _rep_spec(wb)],
        out_specs=_batch_spec((S, P)),
        compiler_params=_PARALLEL,
    )(x, g, b, w, wb)


# ----------------------------------------------------------------------------
# Model forward (batch_first=True, eval mode)
# ----------------------------------------------------------------------------
def positional_encoding(seq_len, d_model):
    # Standard sinusoidal PE (Vaswani et al. 2017); dropout identity in eval.
    pos = jnp.arange(seq_len, dtype=jnp.float32)[:, None]
    div = jnp.exp(jnp.arange(0, d_model, 2, dtype=jnp.float32)
                  * (-math.log(10000.0) / d_model))
    pe = jnp.zeros((seq_len, d_model), jnp.float32)
    pe = pe.at[:, 0::2].set(jnp.sin(pos * div))
    pe = pe.at[:, 1::2].set(jnp.cos(pos * div)[:, : d_model // 2])
    return pe


def _prep_mask(mask):
    if mask is None:
        return None
    if mask.dtype == jnp.bool_:
        # PyTorch semantics: True = disallowed -> additive large-negative
        # (finite, to avoid NaN on fully-masked rows).
        return jnp.where(mask, -1e30, 0.0).astype(jnp.float32)
    return mask.astype(jnp.float32)


def time_series_transformer_fwd(params, src, tgt, n_heads,
                                src_mask=None, tgt_mask=None,
                                linear_decoder=False):
    N, S, E = src.shape
    T = tgt.shape[1]
    num_pred = tgt.shape[2]
    D = params["enc_in_w"].shape[1]

    # encoder_input_layer + positional encoding (fused as kernel epilogue)
    Ep = params["enc_in_w"].shape[0]
    if Ep != E:
        src = jnp.pad(src, ((0, 0), (0, 0), (0, Ep - E)))
    x = input_projection(src, positional_encoding(S, D),
                         params["enc_in_w"], params["enc_in_b"])

    # nn.TransformerEncoder (reference forward never passes an encoder mask)
    for lp in params["encoder_layers"]:
        x = encoder_layer(x, lp, n_heads)

    if linear_decoder:
        out = ln_linear(x, params["enc_norm_g"], params["enc_norm_b"],
                        params["lindec_w"], params["lindec_b"])
        return out[..., :num_pred]

    mem = layer_norm(x, params["enc_norm_g"], params["enc_norm_b"])

    # decoder_input_layer + positional encoding
    Pp = params["dec_in_w"].shape[0]
    if Pp != num_pred:
        tgt = jnp.pad(tgt, ((0, 0), (0, 0), (0, Pp - num_pred)))
    y = input_projection(tgt, positional_encoding(T, D),
                         params["dec_in_w"], params["dec_in_b"])

    # nn.TransformerDecoder
    tm = _prep_mask(tgt_mask)
    mm = _prep_mask(src_mask)
    for lp in params["decoder_layers"]:
        y = decoder_layer(y, mem, lp, n_heads, tm, mm)

    # final decoder LayerNorm + linear_mapping fused (output cols padded to 8)
    out = ln_linear(y, params["dec_norm_g"], params["dec_norm_b"],
                    params["map_w"], params["map_b"])
    return out[..., :num_pred]


forward = jax.jit(time_series_transformer_fwd,
                  static_argnames=("n_heads", "linear_decoder"))


# ----------------------------------------------------------------------------
# Deterministic parameter construction (kernel-ready layout, built once)
# ----------------------------------------------------------------------------
def init_params(key, input_size, dim_val, n_enc, n_dec, dim_ff, num_pred):
    keys = iter(jax.random.split(key, 1024))
    nk = lambda: next(keys)

    def lin(in_f, out_f, pad_in=0, pad_out=0, dtype=jnp.float32):
        # torch nn.Linear default init; stored (K, N); bias stays f32.
        s = 1.0 / math.sqrt(in_f)
        w = jax.random.uniform(nk(), (in_f, out_f), jnp.float32, -s, s)
        b = jax.random.uniform(nk(), (out_f,), jnp.float32, -s, s)
        if pad_in:
            w = jnp.pad(w, ((0, pad_in - in_f), (0, 0)))
        if pad_out:
            w = jnp.pad(w, ((0, 0), (0, pad_out - out_f)))
            b = jnp.pad(b, (0, pad_out - out_f))
        return w.astype(dtype), b.reshape(1, -1)

    def xavier(in_f, out_f):
        bound = math.sqrt(6.0 / (in_f + out_f))
        return jax.random.uniform(nk(), (in_f, out_f), jnp.float32, -bound, bound)

    ones = lambda d: jnp.ones((1, d), jnp.float32)
    zeros = lambda d: jnp.zeros((1, d), jnp.float32)
    rnd8 = lambda v: ((v + 7) // 8) * 8

    D = dim_val
    Ep = rnd8(input_size)
    Pin = rnd8(num_pred)
    Pout = rnd8(num_pred)

    p = {}
    p["enc_in_w"], p["enc_in_b"] = lin(input_size, D, pad_in=Ep)
    p["dec_in_w"], p["dec_in_b"] = lin(num_pred, D, pad_in=Pin)
    p["map_w"], p["map_b"] = lin(D, num_pred, pad_out=Pout)
    # init_weights(): lineardecoder weight ~ U(-0.1, 0.1), zero bias
    lindec_w = jax.random.uniform(nk(), (D, num_pred), jnp.float32, -0.1, 0.1)
    p["lindec_w"] = jnp.pad(lindec_w, ((0, 0), (0, Pout - num_pred)))
    p["lindec_b"] = jnp.zeros((1, Pout), jnp.float32)
    # TODO(synk): self.fcn (Conv1d, kernel_size=1) is defined in __init__ but
    # never used in forward(), so it is omitted here.

    def attn_self(prefix):
        # torch MultiheadAttention: in_proj xavier_uniform_, zero in_proj bias
        d = {prefix + "qkv_w": xavier(D, 3 * D).astype(_MATMUL_DTYPE),
             prefix + "qkv_b": jnp.zeros((1, 3 * D), jnp.float32)}
        ow, ob = lin(D, D, dtype=_MATMUL_DTYPE)
        d[prefix + "out_w"], d[prefix + "out_b"] = ow, ob
        return d

    def attn_cross(prefix):
        d = {prefix + "q_w": xavier(D, D).astype(_MATMUL_DTYPE),
             prefix + "q_b": jnp.zeros((1, D), jnp.float32),
             prefix + "kv_w": xavier(D, 2 * D).astype(_MATMUL_DTYPE),
             prefix + "kv_b": jnp.zeros((1, 2 * D), jnp.float32)}
        ow, ob = lin(D, D, dtype=_MATMUL_DTYPE)
        d[prefix + "out_w"], d[prefix + "out_b"] = ow, ob
        return d

    enc_layers = []
    for _ in range(n_enc):
        lp = {}
        lp.update(attn_self(""))
        lp["l1_w"], lp["l1_b"] = lin(D, dim_ff, dtype=_MATMUL_DTYPE)
        lp["l2_w"], lp["l2_b"] = lin(dim_ff, D, dtype=_MATMUL_DTYPE)
        lp["n1_g"], lp["n1_b"] = ones(D), zeros(D)
        lp["n2_g"], lp["n2_b"] = ones(D), zeros(D)
        enc_layers.append(lp)
    p["encoder_layers"] = enc_layers

    dec_layers = []
    for _ in range(n_dec):
        lp = {}
        lp.update(attn_self("sa_"))
        lp.update(attn_cross("ca_"))
        lp["l1_w"], lp["l1_b"] = lin(D, dim_ff, dtype=_MATMUL_DTYPE)
        lp["l2_w"], lp["l2_b"] = lin(dim_ff, D, dtype=_MATMUL_DTYPE)
        for nm in ("n1", "n2", "n3"):
            lp[nm + "_g"], lp[nm + "_b"] = ones(D), zeros(D)
        dec_layers.append(lp)
    p["decoder_layers"] = dec_layers

    p["enc_norm_g"], p["enc_norm_b"] = ones(D), zeros(D)
    p["dec_norm_g"], p["dec_norm_b"] = ones(D), zeros(D)
    return p


# ----------------------------------------------------------------------------
if __name__ == "__main__":
    # Small, module-consistent shapes.
    INPUT_SIZE = 4          # input_size (number of input variables)
    NUM_PRED = 1            # num_predicted_features
    DIM_VAL = 32            # dim_val (d_model)
    N_HEADS = 4
    N_ENC_LAYERS = 2
    N_DEC_LAYERS = 2
    DIM_FF = 64
    BATCH = 2
    SRC_LEN = 8
    TGT_LEN = 8

    key = jax.random.PRNGKey(0)
    pkey, skey, tkey = jax.random.split(key, 3)

    params = init_params(pkey, INPUT_SIZE, DIM_VAL, N_ENC_LAYERS,
                         N_DEC_LAYERS, DIM_FF, NUM_PRED)
    src = jax.random.normal(skey, (BATCH, SRC_LEN, INPUT_SIZE), jnp.float32)
    tgt = jax.random.normal(tkey, (BATCH, TGT_LEN, NUM_PRED), jnp.float32)

    # 1) default call (no masks), as in the reference module defaults
    out = forward(params, src, tgt, n_heads=N_HEADS)
    jax.block_until_ready(out)
    assert out.shape == (BATCH, TGT_LEN, NUM_PRED)
    assert bool(jnp.all(jnp.isfinite(out)))

    # 2) causal tgt_mask path (PyTorch generate_square_subsequent_mask semantics)
    causal = jnp.triu(jnp.ones((TGT_LEN, TGT_LEN), jnp.bool_), k=1)
    out_m = forward(params, src, tgt, n_heads=N_HEADS, tgt_mask=causal)
    jax.block_until_ready(out_m)
    assert out_m.shape == (BATCH, TGT_LEN, NUM_PRED)
    assert bool(jnp.all(jnp.isfinite(out_m)))

    print("KERNEL_OK")
</pallas_src>

<mosaic_0001>
module attributes {stable_mosaic.version = 11 : i64} {
  func.func @_input_proj_kernel(%arg0: i32, %arg1: memref<1x8x8xf32, #tpu.memory_space<vmem>>, %arg2: memref<8x32xf32, #tpu.memory_space<vmem>>, %arg3: memref<8x32xf32, #tpu.memory_space<vmem>>, %arg4: memref<1x32xf32, #tpu.memory_space<vmem>>, %arg5: memref<1x8x32xf32, #tpu.memory_space<vmem>>) attributes {dimension_semantics = [#tpu.dimension_semantics<parallel>], iteration_bounds = array<i64: 2>, scalar_prefetch = 0 : i64, scratch_operands = 0 : i64, tpu.core_type = #tpu.core_type<tc>, window_params = [{transform_indices = @transform_0, window_bounds = array<i64: 1, 8, 8>}, {pipeline_mode = #tpu.pipeline_mode<synchronous>, transform_indices = @transform_1, window_bounds = array<i64: 8, 32>}, {pipeline_mode = #tpu.pipeline_mode<synchronous>, transform_indices = @transform_2, window_bounds = array<i64: 8, 32>}, {pipeline_mode = #tpu.pipeline_mode<synchronous>, transform_indices = @transform_3, window_bounds = array<i64: 1, 32>}, {transform_indices = @transform_4, window_bounds = array<i64: 1, 8, 32>}]} {
    %c0 = arith.constant 0 : index
    %c0_0 = arith.constant 0 : index
    %c0_1 = arith.constant 0 : index
    %0 = vector.load %arg1[%c0, %c0_0, %c0_1] : memref<1x8x8xf32, #tpu.memory_space<vmem>>, vector<1x8x8xf32>
    %1 = vector.shape_cast %0 : vector<1x8x8xf32> to vector<8x8xf32>
    %c0_2 = arith.constant 0 : index
    %c0_3 = arith.constant 0 : index
    %2 = vector.load %arg3[%c0_2, %c0_3] : memref<8x32xf32, #tpu.memory_space<vmem>>, vector<8x32xf32>
    %cst = arith.constant dense<0.000000e+00> : vector<8x32xf32>
    %3 = tpu.matmul %1, %2, %cst {dimension_numbers = #tpu.dot_dimension_numbers<[1], [0], [0], [1], [0, 0, 1, 1], [], []>} : vector<8x8xf32>, vector<8x32xf32>, vector<8x32xf32> -> vector<8x32xf32>
    %c0_4 = arith.constant 0 : index
    %c0_5 = arith.constant 0 : index
    %4 = vector.load %arg4[%c0_4, %c0_5] : memref<1x32xf32, #tpu.memory_space<vmem>>, vector<1x32xf32>
    %5 = vector.broadcast %4 : vector<1x32xf32> to vector<8x32xf32>
    %6 = arith.addf %3, %5 : vector<8x32xf32>
    %c0_6 = arith.constant 0 : index
    %c0_7 = arith.constant 0 : index
    %7 = vector.load %arg2[%c0_6, %c0_7] : memref<8x32xf32, #tpu.memory_space<vmem>>, vector<8x32xf32>
    %8 = arith.addf %6, %7 : vector<8x32xf32>
    %c0_8 = arith.constant 0 : index
    %c0_9 = arith.constant 0 : index
    %c0_10 = arith.constant 0 : index
    %9 = vector.load %arg5[%c0_8, %c0_9, %c0_10] : memref<1x8x32xf32, #tpu.memory_space<vmem>>, vector<1x8x32xf32>
    %10 = vector.shape_cast %9 : vector<1x8x32xf32> to vector<8x32xf32>
    %11 = vector.shape_cast %8 : vector<8x32xf32> to vector<1x8x32xf32>
    tpu.vector_store %arg5[%c0_8, %c0_9, %c0_10], %11 {strides = array<i32>} : memref<1x8x32xf32, #tpu.memory_space<vmem>>, vector<1x8x32xf32>,
    return
  }
  func.func @transform_0(%arg0: i32) -> (i32, i32, i32) {
    %c0_i32 = arith.constant 0 : i32
    %c0_i32_0 = arith.constant 0 : i32
    %c0_i32_1 = arith.constant 0 : i32
    return %arg0, %c0_i32, %c0_i32_0 : i32, i32, i32
  }
  func.func @transform_1(%arg0: i32) -> (i32, i32) {
    %c0_i32 = arith.constant 0 : i32
    %c0_i32_0 = arith.constant 0 : i32
    %c0_i32_1 = arith.constant 0 : i32
    return %c0_i32, %c0_i32_0 : i32, i32
  }
  func.func @transform_2(%arg0: i32) -> (i32, i32) {
    %c0_i32 = arith.constant 0 : i32
    %c0_i32_0 = arith.constant 0 : i32
    %c0_i32_1 = arith.constant 0 : i32
    return %c0_i32, %c0_i32_0 : i32, i32
  }
  func.func @transform_3(%arg0: i32) -> (i32, i32) {
    %c0_i32 = arith.constant 0 : i32
    %c0_i32_0 = arith.constant 0 : i32
    %c0_i32_1 = arith.constant 0 : i32
    return %c0_i32, %c0_i32_0 : i32, i32
  }
  func.func @transform_4(%arg0: i32) -> (i32, i32, i32) {
    %c0_i32 = arith.constant 0 : i32
    %c0_i32_0 = arith.constant 0 : i32
    %c0_i32_1 = arith.constant 0 : i32
    return %arg0, %c0_i32, %c0_i32_0 : i32, i32, i32
  }
}

module attributes {stable_mosaic.version = 11 : i64} {
  func.func @_ln3_kernel(%arg0: i32, %arg1: memref<1x8x32xf32, #tpu.memory_space<vmem>>, %arg2: memref<1x32xf32, #tpu.memory_space<vmem>>, %arg3: memref<1x32xf32, #tpu.memory_space<vmem>>, %arg4: memref<1x8x32xf32, #tpu.memory_space<vmem>>) attributes {dimension_semantics = [#tpu.dimension_semantics<parallel>], iteration_bounds = array<i64: 2>, scalar_prefetch = 0 : i64, scratch_operands = 0 : i64, tpu.core_type = #tpu.core_type<tc>, window_params = [{transform_indices = @transform_0, window_bounds = array<i64: 1, 8, 32>}, {pipeline_mode = #tpu.pipeline_mode<synchronous>, transform_indices = @transform_1, window_bounds = array<i64: 1, 32>}, {pipeline_mode = #tpu.pipeline_mode<synchronous>, transform_indices = @transform_2, window_bounds = array<i64: 1, 32>}, {transform_indices = @transform_3, window_bounds = array<i64: 1, 8, 32>}]} {
    %c0 = arith.constant 0 : index
    %c0_0 = arith.constant 0 : index
    %c0_1 = arith.constant 0 : index
    %0 = vector.load %arg1[%c0, %c0_0, %c0_1] : memref<1x8x32xf32, #tpu.memory_space<vmem>>, vector<1x8x32xf32>
    %1 = vector.shape_cast %0 : vector<1x8x32xf32> to vector<8x32xf32>
    %c0_2 = arith.constant 0 : index
    %c0_3 = arith.constant 0 : index
    %2 = vector.load %arg2[%c0_2, %c0_3] : memref<1x32xf32, #tpu.memory_space<vmem>>, vector<1x32xf32>
    %c0_4 = arith.constant 0 : index
    %c0_5 = arith.constant 0 : index
    %3 = vector.load %arg3[%c0_4, %c0_5] : memref<1x32xf32, #tpu.memory_space<vmem>>, vector<1x32xf32>
    %cst = arith.constant dense<0.000000e+00> : vector<8xf32>
    %4 = vector.multi_reduction <add>, %1, %cst [1] : vector<8x32xf32> to vector<8xf32>
    %5 = vector.shape_cast %4 : vector<8xf32> to vector<8x1xf32>
    %cst_6 = arith.constant 3.200000e+01 : f32
    %6 = vector.broadcast %cst_6 : f32 to vector<8x1xf32>
    %7 = arith.divf %5, %6 : vector<8x1xf32>
    %8 = vector.broadcast %7 : vector<8x1xf32> to vector<8x32xf32>
    %9 = arith.subf %1, %8 : vector<8x32xf32>
    %10 = arith.mulf %9, %9 : vector<8x32xf32>
    %cst_7 = arith.constant dense<0.000000e+00> : vector<8xf32>
    %11 = vector.multi_reduction <add>, %10, %cst_7 [1] : vector<8x32xf32> to vector<8xf32>
    %12 = vector.shape_cast %11 : vector<8xf32> to vector<8x1xf32>
    %cst_8 = arith.constant 3.200000e+01 : f32
    %13 = vector.broadcast %cst_8 : f32 to vector<8x1xf32>
    %14 = arith.divf %12, %13 : vector<8x1xf32>
    %15 = vector.broadcast %7 : vector<8x1xf32> to vector<8x32xf32>
    %16 = arith.subf %1, %15 : vector<8x32xf32>
    %cst_9 = arith.constant 9.99999974E-6 : f32
    %17 = vector.broadcast %cst_9 : f32 to vector<8x1xf32>
    %18 = arith.addf %14, %17 : vector<8x1xf32>
    %19 = math.rsqrt %18 : vector<8x1xf32>
    %20 = vector.broadcast %19 : vector<8x1xf32> to vector<8x32xf32>
    %21 = arith.mulf %16, %20 : vector<8x32xf32>
    %22 = vector.broadcast %2 : vector<1x32xf32> to vector<8x32xf32>
    %23 = arith.mulf %21, %22 : vector<8x32xf32>
    %24 = vector.broadcast %3 : vector<1x32xf32> to vector<8x32xf32>
    %25 = arith.addf %23, %24 : vector<8x32xf32>
    %c0_10 = arith.constant 0 : index
    %c0_11 = arith.constant 0 : index
    %c0_12 = arith.constant 0 : index
    %26 = vector.load %arg4[%c0_10, %c0_11, %c0_12] : memref<1x8x32xf32, #tpu.memory_space<vmem>>, vector<1x8x32xf32>
    %27 = vector.shape_cast %26 : vector<1x8x32xf32> to vector<8x32xf32>
    %28 = vector.shape_cast %25 : vector<8x32xf32> to vector<1x8x32xf32>
    tpu.vector_store %arg4[%c0_10, %c0_11, %c0_12], %28 {strides = array<i32>} : memref<1x8x32xf32, #tpu.memory_space<vmem>>, vector<1x8x32xf32>,
    return
  }
  func.func @transform_0(%arg0: i32) -> (i32, i32, i32) {
    %c0_i32 = arith.constant 0 : i32
    %c0_i32_0 = arith.constant 0 : i32
    %c0_i32_1 = arith.constant 0 : i32
    return %arg0, %c0_i32, %c0_i32_0 : i32, i32, i32
  }
  func.func @transform_1(%arg0: i32) -> (i32, i32) {
    %c0_i32 = arith.constant 0 : i32
    %c0_i32_0 = arith.constant 0 : i32
    %c0_i32_1 = arith.constant 0 : i32
    return %c0_i32, %c0_i32_0 : i32, i32
  }
  func.func @transform_2(%arg0: i32) -> (i32, i32) {
    %c0_i32 = arith.constant 0 : i32
    %c0_i32_0 = arith.constant 0 : i32
    %c0_i32_1 = arith.constant 0 : i32
    return %c0_i32, %c0_i32_0 : i32, i32
  }
  func.func @transform_3(%arg0: i32) -> (i32, i32, i32) {
    %c0_i32 = arith.constant 0 : i32
    %c0_i32_0 = arith.constant 0 : i32
    %c0_i32_1 = arith.constant 0 : i32
    return %arg0, %c0_i32, %c0_i32_0 : i32, i32, i32
  }
}

module attributes {stable_mosaic.version = 11 : i64} {
  func.func @_encoder_layer_kernel(%arg0: i32, %arg1: memref<1x8x32xf32, #tpu.memory_space<vmem>>, %arg2: memref<32x96xbf16, #tpu.memory_space<vmem>>, %arg3: memref<1x96xf32, #tpu.memory_space<vmem>>, %arg4: memref<32x32xbf16, #tpu.memory_space<vmem>>, %arg5: memref<1x32xf32, #tpu.memory_space<vmem>>, %arg6: memref<1x32xf32, #tpu.memory_space<vmem>>, %arg7: memref<1x32xf32, #tpu.memory_space<vmem>>, %arg8: memref<32x64xbf16, #tpu.memory_space<vmem>>, %arg9: memref<1x64xf32, #tpu.memory_space<vmem>>, %arg10: memref<64x32xbf16, #tpu.memory_space<vmem>>, %arg11: memref<1x32xf32, #tpu.memory_space<vmem>>, %arg12: memref<1x32xf32, #tpu.memory_space<vmem>>, %arg13: memref<1x32xf32, #tpu.memory_space<vmem>>, %arg14: memref<1x8x32xf32, #tpu.memory_space<vmem>>) attributes {dimension_semantics = [#tpu.dimension_semantics<parallel>], iteration_bounds = array<i64: 2>, scalar_prefetch = 0 : i64, scratch_operands = 0 : i64, tpu.core_type = #tpu.core_type<tc>, window_params = [{transform_indices = @transform_0, window_bounds = array<i64: 1, 8, 32>}, {pipeline_mode = #tpu.pipeline_mode<synchronous>, transform_indices = @transform_1, window_bounds = array<i64: 32, 96>}, {pipeline_mode = #tpu.pipeline_mode<synchronous>, transform_indices = @transform_2, window_bounds = array<i64: 1, 96>}, {pipeline_mode = #tpu.pipeline_mode<synchronous>, transform_indices = @transform_3, window_bounds = array<i64: 32, 32>}, {pipeline_mode = #tpu.pipeline_mode<synchronous>, transform_indices = @transform_4, window_bounds = array<i64: 1, 32>}, {pipeline_mode = #tpu.pipeline_mode<synchronous>, transform_indices = @transform_5, window_bounds = array<i64: 1, 32>}, {pipeline_mode = #tpu.pipeline_mode<synchronous>, transform_indices = @transform_6, window_bounds = array<i64: 1, 32>}, {pipeline_mode = #tpu.pipeline_mode<synchronous>, transform_indices = @transform_7, window_bounds = array<i64: 32, 64>}, {pipeline_mode = #tpu.pipeline_mode<synchronous>, transform_indices = @transform_8, window_bounds = array<i64: 1, 64>}, {pipeline_mode = #tpu.pipeline_mode<synchronous>, transform_indices = @transform_9, window_bounds = array<i64: 64, 32>}, {pipeline_mode = #tpu.pipeline_mode<synchronous>, transform_indices = @transform_10, window_bounds = array<i64: 1, 32>}, {pipeline_mode = #tpu.pipeline_mode<synchronous>, transform_indices = @transform_11, window_bounds = array<i64: 1, 32>}, {pipeline_mode = #tpu.pipeline_mode<synchronous>, transform_indices = @transform_12, window_bounds = array<i64: 1, 32>}, {transform_indices = @transform_13, window_bounds = array<i64: 1, 8, 32>}]} {
    %c0 = arith.constant 0 : index
    %c0_0 = arith.constant 0 : index
    %c0_1 = arith.constant 0 : index
    %0 = vector.load %arg1[%c0, %c0_0, %c0_1] : memref<1x8x32xf32, #tpu.memory_space<vmem>>, vector<1x8x32xf32>
    %1 = vector.shape_cast %0 : vector<1x8x32xf32> to vector<8x32xf32>
    %c0_2 = arith.constant 0 : index
    %c0_3 = arith.constant 0 : index
    %2 = vector.load %arg2[%c0_2, %c0_3] : memref<32x96xbf16, #tpu.memory_space<vmem>>, vector<32x96xbf16>
    %3 = arith.truncf %1 : vector<8x32xf32> to vector<8x32xbf16>
    %cst = arith.constant dense<0.000000e+00> : vector<8x96xf32>
    %4 = tpu.matmul %3, %2, %cst {dimension_numbers = #tpu.dot_dimension_numbers<[1], [0], [0], [1], [0, 0, 1, 1], [], []>} : vector<8x32xbf16>, vector<32x96xbf16>, vector<8x96xf32> -> vector<8x96xf32>
    %c0_4 = arith.constant 0 : index
    %c0_5 = arith.constant 0 : index
    %5 = vector.load %arg3[%c0_4, %c0_5] : memref<1x96xf32, #tpu.memory_space<vmem>>, vector<1x96xf32>
    %6 = vector.broadcast %5 : vector<1x96xf32> to vector<8x96xf32>
    %7 = arith.addf %4, %6 : vector<8x96xf32>
    %8 = vector.extract_strided_slice %7 {offsets = [0, 0], sizes = [8, 32], strides = [1, 1]} : vector<8x96xf32> to vector<8x32xf32>
    %9 = vector.extract_strided_slice %7 {offsets = [0, 32], sizes = [8, 32], strides = [1, 1]} : vector<8x96xf32> to vector<8x32xf32>
    %10 = vector.extract_strided_slice %7 {offsets = [0, 64], sizes = [8, 32], strides = [1, 1]} : vector<8x96xf32> to vector<8x32xf32>
    %11 = vector.extract_strided_slice %8 {offsets = [0, 0], sizes = [8, 8], strides = [1, 1]} : vector<8x32xf32> to vector<8x8xf32>
    %12 = arith.truncf %11 : vector<8x8xf32> to vector<8x8xbf16>
    %13 = vector.extract_strided_slice %9 {offsets = [0, 0], sizes = [8, 8], strides = [1, 1]} : vector<8x32xf32> to vector<8x8xf32>
    %14 = arith.truncf %13 : vector<8x8xf32> to vector<8x8xbf16>
    %15 = vector.extract_strided_slice %10 {offsets = [0, 0], sizes = [8, 8], strides = [1, 1]} : vector<8x32xf32> to vector<8x8xf32>
    %16 = arith.truncf %15 : vector<8x8xf32> to vector<8x8xbf16>
    "tpu.trace_start"() <{level = 10 : i32, message = "td,sd->ts"}> : () -> ()
    %cst_6 = arith.constant dense<0.000000e+00> : vector<8x8xf32>
    %17 = tpu.matmul %12, %14, %cst_6 {dimension_numbers = #tpu.dot_dimension_numbers<[1], [1], [0], [0], [0, 0, 1, 0], [], []>} : vector<8x8xbf16>, vector<8x8xbf16>, vector<8x8xf32> -> vector<8x8xf32>
    "tpu.trace_stop"() : () -> ()
    %cst_7 = arith.constant 0.353553385 : f32
    %18 = vector.broadcast %cst_7 : f32 to vector<8x8xf32>
    %19 = arith.mulf %17, %18 : vector<8x8xf32>
    %cst_8 = arith.constant dense<0xFF800000> : vector<8xf32>
    %20 = vector.multi_reduction <maximumf>, %19, %cst_8 [1] : vector<8x8xf32> to vector<8xf32>
    %21 = vector.shape_cast %20 : vector<8xf32> to vector<8x1xf32>
    %22 = vector.broadcast %21 : vector<8x1xf32> to vector<8x8xf32>
    %23 = arith.subf %19, %22 : vector<8x8xf32>
    %24 = math.exp %23 : vector<8x8xf32>
    %cst_9 = arith.constant dense<0.000000e+00> : vector<8xf32>
    %25 = vector.multi_reduction <add>, %24, %cst_9 [1] : vector<8x8xf32> to vector<8xf32>
    %26 = vector.shape_cast %25 : vector<8xf32> to vector<8x1xf32>
    %27 = tpu.reciprocal %26 {approx = true} : vector<8x1xf32> -> vector<8x1xf32>
    %28 = vector.broadcast %27 : vector<8x1xf32> to vector<8x8xf32>
    %29 = arith.mulf %24, %28 : vector<8x8xf32>
    %30 = arith.truncf %29 : vector<8x8xf32> to vector<8x8xbf16>
    %cst_10 = arith.constant dense<0.000000e+00> : vector<8x8xf32>
    %31 = tpu.matmul %30, %16, %cst_10 {dimension_numbers = #tpu.dot_dimension_numbers<[1], [0], [0], [1], [0, 0, 1, 1], [], []>} : vector<8x8xbf16>, vector<8x8xbf16>, vector<8x8xf32> -> vector<8x8xf32>
    %32 = vector.extract_strided_slice %8 {offsets = [0, 8], sizes = [8, 8], strides = [1, 1]} : vector<8x32xf32> to vector<8x8xf32>
    %33 = arith.truncf %32 : vector<8x8xf32> to vector<8x8xbf16>
    %34 = vector.extract_strided_slice %9 {offsets = [0, 8], sizes = [8, 8], strides = [1, 1]} : vector<8x32xf32> to vector<8x8xf32>
    %35 = arith.truncf %34 : vector<8x8xf32> to vector<8x8xbf16>
    %36 = vector.extract_strided_slice %10 {offsets = [0, 8], sizes = [8, 8], strides = [1, 1]} : vector<8x32xf32> to vector<8x8xf32>
    %37 = arith.truncf %36 : vector<8x8xf32> to vector<8x8xbf16>
    "tpu.trace_start"() <{level = 10 : i32, message = "td,sd->ts"}> : () -> ()
    %cst_11 = arith.constant dense<0.000000e+00> : vector<8x8xf32>
    %38 = tpu.matmul %33, %35, %cst_11 {dimension_numbers = #tpu.dot_dimension_numbers<[1], [1], [0], [0], [0, 0, 1, 0], [], []>} : vector<8x8xbf16>, vector<8x8xbf16>, vector<8x8xf32> -> vector<8x8xf32>
    "tpu.trace_stop"() : () -> ()
    %cst_12 = arith.constant 0.353553385 : f32
    %39 = vector.broadcast %cst_12 : f32 to vector<8x8xf32>
    %40 = arith.mulf %38, %39 : vector<8x8xf32>
    %cst_13 = arith.constant dense<0xFF800000> : vector<8xf32>
    %41 = vector.multi_reduction <maximumf>, %40, %cst_13 [1] : vector<8x8xf32> to vector<8xf32>
    %42 = vector.shape_cast %41 : vector<8xf32> to vector<8x1xf32>
    %43 = vector.broadcast %42 : vector<8x1xf32> to vector<8x8xf32>
    %44 = arith.subf %40, %43 : vector<8x8xf32>
    %45 = math.exp %44 : vector<8x8xf32>
    %cst_14 = arith.constant dense<0.000000e+00> : vector<8xf32>
    %46 = vector.multi_reduction <add>, %45, %cst_14 [1] : vector<8x8xf32> to vector<8xf32>
    %47 = vector.shape_cast %46 : vector<8xf32> to vector<8x1xf32>
    %48 = tpu.reciprocal %47 {approx = true} : vector<8x1xf32> -> vector<8x1xf32>
    %49 = vector.broadcast %48 : vector<8x1xf32> to vector<8x8xf32>
    %50 = arith.mulf %45, %49 : vector<8x8xf32>
    %51 = arith.truncf %50 : vector<8x8xf32> to vector<8x8xbf16>
    %cst_15 = arith.constant dense<0.000000e+00> : vector<8x8xf32>
    %52 = tpu.matmul %51, %37, %cst_15 {dimension_numbers = #tpu.dot_dimension_numbers<[1], [0], [0], [1], [0, 0, 1, 1], [], []>} : vector<8x8xbf16>, vector<8x8xbf16>, vector<8x8xf32> -> vector<8x8xf32>
    %53 = vector.extract_strided_slice %8 {offsets = [0, 16], sizes = [8, 8], strides = [1, 1]} : vector<8x32xf32> to vector<8x8xf32>
    %54 = arith.truncf %53 : vector<8x8xf32> to vector<8x8xbf16>
    %55 = vector.extract_strided_slice %9 {offsets = [0, 16], sizes = [8, 8], strides = [1, 1]} : vector<8x32xf32> to vector<8x8xf32>
    %56 = arith.truncf %55 : vector<8x8xf32> to vector<8x8xbf16>
    %57 = vector.extract_strided_slice %10 {offsets = [0, 16], sizes = [8, 8], strides = [1, 1]} : vector<8x32xf32> to vector<8x8xf32>
    %58 = arith.truncf %57 : vector<8x8xf32> to vector<8x8xbf16>
    "tpu.trace_start"() <{level = 10 : i32, message = "td,sd->ts"}> : () -> ()
    %cst_16 = arith.constant dense<0.000000e+00> : vector<8x8xf32>
    %59 = tpu.matmul %54, %56, %cst_16 {dimension_numbers = #tpu.dot_dimension_numbers<[1], [1], [0], [0], [0, 0, 1, 0], [], []>} : vector<8x8xbf16>, vector<8x8xbf16>, vector<8x8xf32> -> vector<8x8xf32>
    "tpu.trace_stop"() : () -> ()
    %cst_17 = arith.constant 0.353553385 : f32
    %60 = vector.broadcast %cst_17 : f32 to vector<8x8xf32>
    %61 = arith.mulf %59, %60 : vector<8x8xf32>
    %cst_18 = arith.constant dense<0xFF800000> : vector<8xf32>
    %62 = vector.multi_reduction <maximumf>, %61, %cst_18 [1] : vector<8x8xf32> to vector<8xf32>
    %63 = vector.shape_cast %62 : vector<8xf32> to vector<8x1xf32>
    %64 = vector.broadcast %63 : vector<8x1xf32> to vector<8x8xf32>
    %65 = arith.subf %61, %64 : vector<8x8xf32>
    %66 = math.exp %65 : vector<8x8xf32>
    %cst_19 = arith.constant dense<0.000000e+00> : vector<8xf32>
    %67 = vector.multi_reduction <add>, %66, %cst_19 [1] : vector<8x8xf32> to vector<8xf32>
    %68 = vector.shape_cast %67 : vector<8xf32> to vector<8x1xf32>
    %69 = tpu.reciprocal %68 {approx = true} : vector<8x1xf32> -> vector<8x1xf32>
    %70 = vector.broadcast %69 : vector<8x1xf32> to vector<8x8xf32>
    %71 = arith.mulf %66, %70 : vector<8x8xf32>
    %72 = arith.truncf %71 : vector<8x8xf32> to vector<8x8xbf16>
    %cst_20 = arith.constant dense<0.000000e+00> : vector<8x8xf32>
    %73 = tpu.matmul %72, %58, %cst_20 {dimension_numbers = #tpu.dot_dimension_numbers<[1], [0], [0], [1], [0, 0, 1, 1], [], []>} : vector<8x8xbf16>, vector<8x8xbf16>, vector<8x8xf32> -> vector<8x8xf32>
    %74 = vector.extract_strided_slice %8 {offsets = [0, 24], sizes = [8, 8], strides = [1, 1]} : vector<8x32xf32> to vector<8x8xf32>
    %75 = arith.truncf %74 : vector<8x8xf32> to vector<8x8xbf16>
    %76 = vector.extract_strided_slice %9 {offsets = [0, 24], sizes = [8, 8], strides = [1, 1]} : vector<8x32xf32> to vector<8x8xf32>
    %77 = arith.truncf %76 : vector<8x8xf32> to vector<8x8xbf16>
    %78 = vector.extract_strided_slice %10 {offsets = [0, 24], sizes = [8, 8], strides = [1, 1]} : vector<8x32xf32> to vector<8x8xf32>
    %79 = arith.truncf %78 : vector<8x8xf32> to vector<8x8xbf16>
    "tpu.trace_start"() <{level = 10 : i32, message = "td,sd->ts"}> : () -> ()
    %cst_21 = arith.constant dense<0.000000e+00> : vector<8x8xf32>
    %80 = tpu.matmul %75, %77, %cst_21 {dimension_numbers = #tpu.dot_dimension_numbers<[1], [1], [0], [0], [0, 0, 1, 0], [], []>} : vector<8x8xbf16>, vector<8x8xbf16>, vector<8x8xf32> -> vector<8x8xf32>
    "tpu.trace_stop"() : () -> ()
    %cst_22 = arith.constant 0.353553385 : f32
    %81 = vector.broadcast %cst_22 : f32 to vector<8x8xf32>
    %82 = arith.mulf %80, %81 : vector<8x8xf32>
    %cst_23 = arith.constant dense<0xFF800000> : vector<8xf32>
    %83 = vector.multi_reduction <maximumf>, %82, %cst_23 [1] : vector<8x8xf32> to vector<8xf32>
    %84 = vector.shape_cast %83 : vector<8xf32> to vector<8x1xf32>
    %85 = vector.broadcast %84 : vector<8x1xf32> to vector<8x8xf32>
    %86 = arith.subf %82, %85 : vector<8x8xf32>
    %87 = math.exp %86 : vector<8x8xf32>
    %cst_24 = arith.constant dense<0.000000e+00> : vector<8xf32>
    %88 = vector.multi_reduction <add>, %87, %cst_24 [1] : vector<8x8xf32> to vector<8xf32>
    %89 = vector.shape_cast %88 : vector<8xf32> to vector<8x1xf32>
    %90 = tpu.reciprocal %89 {approx = true} : vector<8x1xf32> -> vector<8x1xf32>
    %91 = vector.broadcast %90 : vector<8x1xf32> to vector<8x8xf32>
    %92 = arith.mulf %87, %91 : vector<8x8xf32>
    %93 = arith.truncf %92 : vector<8x8xf32> to vector<8x8xbf16>
    %cst_25 = arith.constant dense<0.000000e+00> : vector<8x8xf32>
    %94 = tpu.matmul %93, %79, %cst_25 {dimension_numbers = #tpu.dot_dimension_numbers<[1], [0], [0], [1], [0, 0, 1, 1], [], []>} : vector<8x8xbf16>, vector<8x8xbf16>, vector<8x8xf32> -> vector<8x8xf32>
    %95 = tpu.concatenate %31, %52, %73, %94 in 1 : vector<8x8xf32>, vector<8x8xf32>, vector<8x8xf32>, vector<8x8xf32> -> vector<8x32xf32>
    %c0_26 = arith.constant 0 : index
    %c0_27 = arith.constant 0 : index
    %96 = vector.load %arg4[%c0_26, %c0_27] : memref<32x32xbf16, #tpu.memory_space<vmem>>, vector<32x32xbf16>
    %97 = arith.truncf %95 : vector<8x32xf32> to vector<8x32xbf16>
    %cst_28 = arith.constant dense<0.000000e+00> : vector<8x32xf32>
    %98 = tpu.matmul %97, %96, %cst_28 {dimension_numbers = #tpu.dot_dimension_numbers<[1], [0], [0], [1], [0, 0, 1, 1], [], []>} : vector<8x32xbf16>, vector<32x32xbf16>, vector<8x32xf32> -> vector<8x32xf32>
    %c0_29 = arith.constant 0 : index
    %c0_30 = arith.constant 0 : index
    %99 = vector.load %arg5[%c0_29, %c0_30] : memref<1x32xf32, #tpu.memory_space<vmem>>, vector<1x32xf32>
    %100 = vector.broadcast %99 : vector<1x32xf32> to vector<8x32xf32>
    %101 = arith.addf %98, %100 : vector<8x32xf32>
    %102 = arith.addf %101, %1 : vector<8x32xf32>
    %c0_31 = arith.constant 0 : index
    %c0_32 = arith.constant 0 : index
    %103 = vector.load %arg6[%c0_31, %c0_32] : memref<1x32xf32, #tpu.memory_space<vmem>>, vector<1x32xf32>
    %c0_33 = arith.constant 0 : index
    %c0_34 = arith.constant 0 : index
    %104 = vector.load %arg7[%c0_33, %c0_34] : memref<1x32xf32, #tpu.memory_space<vmem>>, vector<1x32xf32>
    %cst_35 = arith.constant dense<0.000000e+00> : vector<8xf32>
    %105 = vector.multi_reduction <add>, %102, %cst_35 [1] : vector<8x32xf32> to vector<8xf32>
    %106 = vector.shape_cast %105 : vector<8xf32> to vector<8x1xf32>
    %cst_36 = arith.constant 3.200000e+01 : f32
    %107 = vector.broadcast %cst_36 : f32 to vector<8x1xf32>
    %108 = arith.divf %106, %107 : vector<8x1xf32>
    %109 = vector.broadcast %108 : vector<8x1xf32> to vector<8x32xf32>
    %110 = arith.subf %102, %109 : vector<8x32xf32>
    %111 = arith.mulf %110, %110 : vector<8x32xf32>
    %cst_37 = arith.constant dense<0.000000e+00> : vector<8xf32>
    %112 = vector.multi_reduction <add>, %111, %cst_37 [1] : vector<8x32xf32> to vector<8xf32>
    %113 = vector.shape_cast %112 : vector<8xf32> to vector<8x1xf32>
    %cst_38 = arith.constant 3.200000e+01 : f32
    %114 = vector.broadcast %cst_38 : f32 to vector<8x1xf32>
    %115 = arith.divf %113, %114 : vector<8x1xf32>
    %116 = vector.broadcast %108 : vector<8x1xf32> to vector<8x32xf32>
    %117 = arith.subf %102, %116 : vector<8x32xf32>
    %cst_39 = arith.constant 9.99999974E-6 : f32
    %118 = vector.broadcast %cst_39 : f32 to vector<8x1xf32>
    %119 = arith.addf %115, %118 : vector<8x1xf32>
    %120 = math.rsqrt %119 : vector<8x1xf32>
    %121 = vector.broadcast %120 : vector<8x1xf32> to vector<8x32xf32>
    %122 = arith.mulf %117, %121 : vector<8x32xf32>
    %123 = vector.broadcast %103 : vector<1x32xf32> to vector<8x32xf32>
    %124 = arith.mulf %122, %123 : vector<8x32xf32>
    %125 = vector.broadcast %104 : vector<1x32xf32> to vector<8x32xf32>
    %126 = arith.addf %124, %125 : vector<8x32xf32>
    %c0_40 = arith.constant 0 : index
    %c0_41 = arith.constant 0 : index
    %127 = vector.load %arg8[%c0_40, %c0_41] : memref<32x64xbf16, #tpu.memory_space<vmem>>, vector<32x64xbf16>
    %128 = arith.truncf %126 : vector<8x32xf32> to vector<8x32xbf16>
    %cst_42 = arith.constant dense<0.000000e+00> : vector<8x64xf32>
    %129 = tpu.matmul %128, %127, %cst_42 {dimension_numbers = #tpu.dot_dimension_numbers<[1], [0], [0], [1], [0, 0, 1, 1], [], []>} : vector<8x32xbf16>, vector<32x64xbf16>, vector<8x64xf32> -> vector<8x64xf32>
    %c0_43 = arith.constant 0 : index
    %c0_44 = arith.constant 0 : index
    %130 = vector.load %arg9[%c0_43, %c0_44] : memref<1x64xf32, #tpu.memory_space<vmem>>, vector<1x64xf32>
    %131 = vector.broadcast %130 : vector<1x64xf32> to vector<8x64xf32>
    %132 = arith.addf %129, %131 : vector<8x64xf32>
    %cst_45 = arith.constant 0.000000e+00 : f32
    %133 = vector.broadcast %cst_45 : f32 to vector<8x64xf32>
    %134 = arith.maximumf %132, %133 : vector<8x64xf32>
    %c0_46 = arith.constant 0 : index
    %c0_47 = arith.constant 0 : index
    %135 = vector.load %arg10[%c0_46, %c0_47] : memref<64x32xbf16, #tpu.memory_space<vmem>>, vector<64x32xbf16>
    %136 = arith.truncf %134 : vector<8x64xf32> to vector<8x64xbf16>
    %cst_48 = arith.constant dense<0.000000e+00> : vector<8x32xf32>
    %137 = tpu.matmul %136, %135, %cst_48 {dimension_numbers = #tpu.dot_dimension_numbers<[1], [0], [0], [1], [0, 0, 1, 1], [], []>} : vector<8x64xbf16>, vector<64x32xbf16>, vector<8x32xf32> -> vector<8x32xf32>
    %c0_49 = arith.constant 0 : index
    %c0_50 = arith.constant 0 : index
    %138 = vector.load %arg11[%c0_49, %c0_50] : memref<1x32xf32, #tpu.memory_space<vmem>>, vector<1x32xf32>
    %139 = vector.broadcast %138 : vector<1x32xf32> to vector<8x32xf32>
    %140 = arith.addf %137, %139 : vector<8x32xf32>
    %141 = arith.addf %140, %126 : vector<8x32xf32>
    %c0_51 = arith.constant 0 : index
    %c0_52 = arith.constant 0 : index
    %142 = vector.load %arg12[%c0_51, %c0_52] : memref<1x32xf32, #tpu.memory_space<vmem>>, vector<1x32xf32>
    %c0_53 = arith.constant 0 : index
    %c0_54 = arith.constant 0 : index
    %143 = vector.load %arg13[%c0_53, %c0_54] : memref<1x32xf32, #tpu.memory_space<vmem>>, vector<1x32xf32>
    %cst_55 = arith.constant dense<0.000000e+00> : vector<8xf32>
    %144 = vector.multi_reduction <add>, %141, %cst_55 [1] : vector<8x32xf32> to vector<8xf32>
    %145 = vector.shape_cast %144 : vector<8xf32> to vector<8x1xf32>
    %cst_56 = arith.constant 3.200000e+01 : f32
    %146 = vector.broadcast %cst_56 : f32 to vector<8x1xf32>
    %147 = arith.divf %145, %146 : vector<8x1xf32>
    %148 = vector.broadcast %147 : vector<8x1xf32> to vector<8x32xf32>
    %149 = arith.subf %141, %148 : vector<8x32xf32>
    %150 = arith.mulf %149, %149 : vector<8x32xf32>
    %cst_57 = arith.constant dense<0.000000e+00> : vector<8xf32>
    %151 = vector.multi_reduction <add>, %150, %cst_57 [1] : vector<8x32xf32> to vector<8xf32>
    %152 = vector.shape_cast %151 : vector<8xf32> to vector<8x1xf32>
    %cst_58 = arith.constant 3.200000e+01 : f32
    %153 = vector.broadcast %cst_58 : f32 to vector<8x1xf32>
    %154 = arith.divf %152, %153 : vector<8x1xf32>
    %155 = vector.broadcast %147 : vector<8x1xf32> to vector<8x32xf32>
    %156 = arith.subf %141, %155 : vector<8x32xf32>
    %cst_59 = arith.constant 9.99999974E-6 : f32
    %157 = vector.broadcast %cst_59 : f32 to vector<8x1xf32>
    %158 = arith.addf %154, %157 : vector<8x1xf32>
    %159 = math.rsqrt %158 : vector<8x1xf32>
    %160 = vector.broadcast %159 : vector<8x1xf32> to vector<8x32xf32>
    %161 = arith.mulf %156, %160 : vector<8x32xf32>
    %162 = vector.broadcast %142 : vector<1x32xf32> to vector<8x32xf32>
    %163 = arith.mulf %161, %162 : vector<8x32xf32>
    %164 = vector.broadcast %143 : vector<1x32xf32> to vector<8x32xf32>
    %165 = arith.addf %163, %164 : vector<8x32xf32>
    %c0_60 = arith.constant 0 : index
    %c0_61 = arith.constant 0 : index
    %c0_62 = arith.constant 0 : index
    %166 = vector.load %arg14[%c0_60, %c0_61, %c0_62] : memref<1x8x32xf32, #tpu.memory_space<vmem>>, vector<1x8x32xf32>
    %167 = vector.shape_cast %166 : vector<1x8x32xf32> to vector<8x32xf32>
    %168 = vector.shape_cast %165 : vector<8x32xf32> to vector<1x8x32xf32>
    tpu.vector_store %arg14[%c0_60, %c0_61, %c0_62], %168 {strides = array<i32>} : memref<1x8x32xf32, #tpu.memory_space<vmem>>, vector<1x8x32xf32>,
    return
  }
  func.func @transform_0(%arg0: i32) -> (i32, i32, i32) {
    %c0_i32 = arith.constant 0 : i32
    %c0_i32_0 = arith.constant 0 : i32
    %c0_i32_1 = arith.constant 0 : i32
    return %arg0, %c0_i32, %c0_i32_0 : i32, i32, i32
  }
  func.func @transform_1(%arg0: i32) -> (i32, i32) {
    %c0_i32 = arith.constant 0 : i32
    %c0_i32_0 = arith.constant 0 : i32
    %c0_i32_1 = arith.constant 0 : i32
    return %c0_i32, %c0_i32_0 : i32, i32
  }
  func.func @transform_2(%arg0: i32) -> (i32, i32) {
    %c0_i32 = arith.constant 0 : i32
    %c0_i32_0 = arith.constant 0 : i32
    %c0_i32_1 = arith.constant 0 : i32
    return %c0_i32, %c0_i32_0 : i32, i32
  }
  func.func @transform_3(%arg0: i32) -> (i32, i32) {
    %c0_i32 = arith.constant 0 : i32
    %c0_i32_0 = arith.constant 0 : i32
    %c0_i32_1 = arith.constant 0 : i32
    return %c0_i32, %c0_i32_0 : i32, i32
  }
  func.func @transform_4(%arg0: i32) -> (i32, i32) {
    %c0_i32 = arith.constant 0 : i32
    %c0_i32_0 = arith.constant 0 : i32
    %c0_i32_1 = arith.constant 0 : i32
    return %c0_i32, %c0_i32_0 : i32, i32
  }
  func.func @transform_5(%arg0: i32) -> (i32, i32) {
    %c0_i32 = arith.constant 0 : i32
    %c0_i32_0 = arith.constant 0 : i32
    %c0_i32_1 = arith.constant 0 : i32
    return %c0_i32, %c0_i32_0 : i32, i32
  }
  func.func @transform_6(%arg0: i32) -> (i32, i32) {
    %c0_i32 = arith.constant 0 : i32
    %c0_i32_0 = arith.constant 0 : i32
    %c0_i32_1 = arith.constant 0 : i32
    return %c0_i32, %c0_i32_0 : i32, i32
  }
  func.func @transform_7(%arg0: i32) -> (i32, i32) {
    %c0_i32 = arith.constant 0 : i32
    %c0_i32_0 = arith.constant 0 : i32
    %c0_i32_1 = arith.constant 0 : i32
    return %c0_i32, %c0_i32_0 : i32, i32
  }
  func.func @transform_8(%arg0: i32) -> (i32, i32) {
    %c0_i32 = arith.constant 0 : i32
    %c0_i32_0 = arith.constant 0 : i32
    %c0_i32_1 = arith.constant 0 : i32
    return %c0_i32, %c0_i32_0 : i32, i32
  }
  func.func @transform_9(%arg0: i32) -> (i32, i32) {
    %c0_i32 = arith.constant 0 : i32
    %c0_i32_0 = arith.constant 0 : i32
    %c0_i32_1 = arith.constant 0 : i32
    return %c0_i32, %c0_i32_0 : i32, i32
  }
  func.func @transform_10(%arg0: i32) -> (i32, i32) {
    %c0_i32 = arith.constant 0 : i32
    %c0_i32_0 = arith.constant 0 : i32
    %c0_i32_1 = arith.constant 0 : i32
    return %c0_i32, %c0_i32_0 : i32, i32
  }
  func.func @transform_11(%arg0: i32) -> (i32, i32) {
    %c0_i32 = arith.constant 0 : i32
    %c0_i32_0 = arith.constant 0 : i32
    %c0_i32_1 = arith.constant 0 : i32
    return %c0_i32, %c0_i32_0 : i32, i32
  }
  func.func @transform_12(%arg0: i32) -> (i32, i32) {
    %c0_i32 = arith.constant 0 : i32
    %c0_i32_0 = arith.constant 0 : i32
    %c0_i32_1 = arith.constant 0 : i32
    return %c0_i32, %c0_i32_0 : i32, i32
  }
  func.func @transform_13(%arg0: i32) -> (i32, i32, i32) {
    %c0_i32 = arith.constant 0 : i32
    %c0_i32_0 = arith.constant 0 : i32
    %c0_i32_1 = arith.constant 0 : i32
    return %arg0, %c0_i32, %c0_i32_0 : i32, i32, i32
  }
}

module attributes {stable_mosaic.version = 11 : i64} {
  func.func @_input_proj_kernel(%arg0: i32, %arg1: memref<1x8x8xf32, #tpu.memory_space<vmem>>, %arg2: memref<8x32xf32, #tpu.memory_space<vmem>>, %arg3: memref<8x32xf32, #tpu.memory_space<vmem>>, %arg4: memref<1x32xf32, #tpu.memory_space<vmem>>, %arg5: memref<1x8x32xf32, #tpu.memory_space<vmem>>) attributes {dimension_semantics = [#tpu.dimension_semantics<parallel>], iteration_bounds = array<i64: 2>, scalar_prefetch = 0 : i64, scratch_operands = 0 : i64, tpu.core_type = #tpu.core_type<tc>, window_params = [{transform_indices = @transform_0, window_bounds = array<i64: 1, 8, 8>}, {pipeline_mode = #tpu.pipeline_mode<synchronous>, transform_indices = @transform_1, window_bounds = array<i64: 8, 32>}, {pipeline_mode = #tpu.pipeline_mode<synchronous>, transform_indices = @transform_2, window_bounds = array<i64: 8, 32>}, {pipeline_mode = #tpu.pipeline_mode<synchronous>, transform_indices = @transform_3, window_bounds = array<i64: 1, 32>}, {transform_indices = @transform_4, window_bounds = array<i64: 1, 8, 32>}]} {
    %c0 = arith.constant 0 : index
    %c0_0 = arith.constant 0 : index
    %c0_1 = arith.constant 0 : index
    %0 = vector.load %arg1[%c0, %c0_0, %c0_1] : memref<1x8x8xf32, #tpu.memory_space<vmem>>, vector<1x8x8xf32>
    %1 = vector.shape_cast %0 : vector<1x8x8xf32> to vector<8x8xf32>
    %c0_2 = arith.constant 0 : index
    %c0_3 = arith.constant 0 : index
    %2 = vector.load %arg3[%c0_2, %c0_3] : memref<8x32xf32, #tpu.memory_space<vmem>>, vector<8x32xf32>
    %cst = arith.constant dense<0.000000e+00> : vector<8x32xf32>
    %3 = tpu.matmul %1, %2, %cst {dimension_numbers = #tpu.dot_dimension_numbers<[1], [0], [0], [1], [0, 0, 1, 1], [], []>} : vector<8x8xf32>, vector<8x32xf32>, vector<8x32xf32> -> vector<8x32xf32>
    %c0_4 = arith.constant 0 : index
    %c0_5 = arith.constant 0 : index
    %4 = vector.load %arg4[%c0_4, %c0_5] : memref<1x32xf32, #tpu.memory_space<vmem>>, vector<1x32xf32>
    %5 = vector.broadcast %4 : vector<1x32xf32> to vector<8x32xf32>
    %6 = arith.addf %3, %5 : vector<8x32xf32>
    %c0_6 = arith.constant 0 : index
    %c0_7 = arith.constant 0 : index
    %7 = vector.load %arg2[%c0_6, %c0_7] : memref<8x32xf32, #tpu.memory_space<vmem>>, vector<8x32xf32>
    %8 = arith.addf %6, %7 : vector<8x32xf32>
    %c0_8 = arith.constant 0 : index
    %c0_9 = arith.constant 0 : index
    %c0_10 = arith.constant 0 : index
    %9 = vector.load %arg5[%c0_8, %c0_9, %c0_10] : memref<1x8x32xf32, #tpu.memory_space<vmem>>, vector<1x8x32xf32>
    %10 = vector.shape_cast %9 : vector<1x8x32xf32> to vector<8x32xf32>
    %11 = vector.shape_cast %8 : vector<8x32xf32> to vector<1x8x32xf32>
    tpu.vector_store %arg5[%c0_8, %c0_9, %c0_10], %11 {strides = array<i32>} : memref<1x8x32xf32, #tpu.memory_space<vmem>>, vector<1x8x32xf32>,
    return
  }
  func.func @transform_0(%arg0: i32) -> (i32, i32, i32) {
    %c0_i32 = arith.constant 0 : i32
    %c0_i32_0 = arith.constant 0 : i32
    %c0_i32_1 = arith.constant 0 : i32
    return %arg0, %c0_i32, %c0_i32_0 : i32, i32, i32
  }
  func.func @transform_1(%arg0: i32) -> (i32, i32) {
    %c0_i32 = arith.constant 0 : i32
    %c0_i32_0 = arith.constant 0 : i32
    %c0_i32_1 = arith.constant 0 : i32
    return %c0_i32, %c0_i32_0 : i32, i32
  }
  func.func @transform_2(%arg0: i32) -> (i32, i32) {
    %c0_i32 = arith.constant 0 : i32
    %c0_i32_0 = arith.constant 0 : i32
    %c0_i32_1 = arith.constant 0 : i32
    return %c0_i32, %c0_i32_0 : i32, i32
  }
  func.func @transform_3(%arg0: i32) -> (i32, i32) {
    %c0_i32 = arith.constant 0 : i32
    %c0_i32_0 = arith.constant 0 : i32
    %c0_i32_1 = arith.constant 0 : i32
    return %c0_i32, %c0_i32_0 : i32, i32
  }
  func.func @transform_4(%arg0: i32) -> (i32, i32, i32) {
    %c0_i32 = arith.constant 0 : i32
    %c0_i32_0 = arith.constant 0 : i32
    %c0_i32_1 = arith.constant 0 : i32
    return %arg0, %c0_i32, %c0_i32_0 : i32, i32, i32
  }
}

module attributes {stable_mosaic.version = 11 : i64} {
  func.func @_ln_linear_kernel(%arg0: i32, %arg1: memref<1x8x32xf32, #tpu.memory_space<vmem>>, %arg2: memref<1x32xf32, #tpu.memory_space<vmem>>, %arg3: memref<1x32xf32, #tpu.memory_space<vmem>>, %arg4: memref<32x8xf32, #tpu.memory_space<vmem>>, %arg5: memref<1x8xf32, #tpu.memory_space<vmem>>, %arg6: memref<1x8x8xf32, #tpu.memory_space<vmem>>) attributes {dimension_semantics = [#tpu.dimension_semantics<parallel>], iteration_bounds = array<i64: 2>, scalar_prefetch = 0 : i64, scratch_operands = 0 : i64, tpu.core_type = #tpu.core_type<tc>, window_params = [{transform_indices = @transform_0, window_bounds = array<i64: 1, 8, 32>}, {pipeline_mode = #tpu.pipeline_mode<synchronous>, transform_indices = @transform_1, window_bounds = array<i64: 1, 32>}, {pipeline_mode = #tpu.pipeline_mode<synchronous>, transform_indices = @transform_2, window_bounds = array<i64: 1, 32>}, {pipeline_mode = #tpu.pipeline_mode<synchronous>, transform_indices = @transform_3, window_bounds = array<i64: 32, 8>}, {pipeline_mode = #tpu.pipeline_mode<synchronous>, transform_indices = @transform_4, window_bounds = array<i64: 1, 8>}, {transform_indices = @transform_5, window_bounds = array<i64: 1, 8, 8>}]} {
    %c0 = arith.constant 0 : index
    %c0_0 = arith.constant 0 : index
    %c0_1 = arith.constant 0 : index
    %0 = vector.load %arg1[%c0, %c0_0, %c0_1] : memref<1x8x32xf32, #tpu.memory_space<vmem>>, vector<1x8x32xf32>
    %1 = vector.shape_cast %0 : vector<1x8x32xf32> to vector<8x32xf32>
    %c0_2 = arith.constant 0 : index
    %c0_3 = arith.constant 0 : index
    %2 = vector.load %arg2[%c0_2, %c0_3] : memref<1x32xf32, #tpu.memory_space<vmem>>, vector<1x32xf32>
    %c0_4 = arith.constant 0 : index
    %c0_5 = arith.constant 0 : index
    %3 = vector.load %arg3[%c0_4, %c0_5] : memref<1x32xf32, #tpu.memory_space<vmem>>, vector<1x32xf32>
    %cst = arith.constant dense<0.000000e+00> : vector<8xf32>
    %4 = vector.multi_reduction <add>, %1, %cst [1] : vector<8x32xf32> to vector<8xf32>
    %5 = vector.shape_cast %4 : vector<8xf32> to vector<8x1xf32>
    %cst_6 = arith.constant 3.200000e+01 : f32
    %6 = vector.broadcast %cst_6 : f32 to vector<8x1xf32>
    %7 = arith.divf %5, %6 : vector<8x1xf32>
    %8 = vector.broadcast %7 : vector<8x1xf32> to vector<8x32xf32>
    %9 = arith.subf %1, %8 : vector<8x32xf32>
    %10 = arith.mulf %9, %9 : vector<8x32xf32>
    %cst_7 = arith.constant dense<0.000000e+00> : vector<8xf32>
    %11 = vector.multi_reduction <add>, %10, %cst_7 [1] : vector<8x32xf32> to vector<8xf32>
    %12 = vector.shape_cast %11 : vector<8xf32> to vector<8x1xf32>
    %cst_8 = arith.constant 3.200000e+01 : f32
    %13 = vector.broadcast %cst_8 : f32 to vector<8x1xf32>
    %14 = arith.divf %12, %13 : vector<8x1xf32>
    %15 = vector.broadcast %7 : vector<8x1xf32> to vector<8x32xf32>
    %16 = arith.subf %1, %15 : vector<8x32xf32>
    %cst_9 = arith.constant 9.99999974E-6 : f32
    %17 = vector.broadcast %cst_9 : f32 to vector<8x1xf32>
    %18 = arith.addf %14, %17 : vector<8x1xf32>
    %19 = math.rsqrt %18 : vector<8x1xf32>
    %20 = vector.broadcast %19 : vector<8x1xf32> to vector<8x32xf32>
    %21 = arith.mulf %16, %20 : vector<8x32xf32>
    %22 = vector.broadcast %2 : vector<1x32xf32> to vector<8x32xf32>
    %23 = arith.mulf %21, %22 : vector<8x32xf32>
    %24 = vector.broadcast %3 : vector<1x32xf32> to vector<8x32xf32>
    %25 = arith.addf %23, %24 : vector<8x32xf32>
    %c0_10 = arith.constant 0 : index
    %c0_11 = arith.constant 0 : index
    %26 = vector.load %arg4[%c0_10, %c0_11] : memref<32x8xf32, #tpu.memory_space<vmem>>, vector<32x8xf32>
    %cst_12 = arith.constant dense<0.000000e+00> : vector<8x8xf32>
    %27 = tpu.matmul %25, %26, %cst_12 {dimension_numbers = #tpu.dot_dimension_numbers<[1], [0], [0], [1], [0, 0, 1, 1], [], []>} : vector<8x32xf32>, vector<32x8xf32>, vector<8x8xf32> -> vector<8x8xf32>
    %c0_13 = arith.constant 0 : index
    %c0_14 = arith.constant 0 : index
    %28 = vector.load %arg5[%c0_13, %c0_14] : memref<1x8xf32, #tpu.memory_space<vmem>>, vector<1x8xf32>
    %29 = vector.broadcast %28 : vector<1x8xf32> to vector<8x8xf32>
    %30 = arith.addf %27, %29 : vector<8x8xf32>
    %c0_15 = arith.constant 0 : index
    %c0_16 = arith.constant 0 : index
    %c0_17 = arith.constant 0 : index
    %31 = vector.load %arg6[%c0_15, %c0_16, %c0_17] : memref<1x8x8xf32, #tpu.memory_space<vmem>>, vector<1x8x8xf32>
    %32 = vector.shape_cast %31 : vector<1x8x8xf32> to vector<8x8xf32>
    %33 = vector.shape_cast %30 : vector<8x8xf32> to vector<1x8x8xf32>
    tpu.vector_store %arg6[%c0_15, %c0_16, %c0_17], %33 {strides = array<i32>} : memref<1x8x8xf32, #tpu.memory_space<vmem>>, vector<1x8x8xf32>,
    return
  }
  func.func @transform_0(%arg0: i32) -> (i32, i32, i32) {
    %c0_i32 = arith.constant 0 : i32
    %c0_i32_0 = arith.constant 0 : i32
    %c0_i32_1 = arith.constant 0 : i32
    return %arg0, %c0_i32, %c0_i32_0 : i32, i32, i32
  }
  func.func @transform_1(%arg0: i32) -> (i32, i32) {
    %c0_i32 = arith.constant 0 : i32
    %c0_i32_0 = arith.constant 0 : i32
    %c0_i32_1 = arith.constant 0 : i32
    return %c0_i32, %c0_i32_0 : i32, i32
  }
  func.func @transform_2(%arg0: i32) -> (i32, i32) {
    %c0_i32 = arith.constant 0 : i32
    %c0_i32_0 = arith.constant 0 : i32
    %c0_i32_1 = arith.constant 0 : i32
    return %c0_i32, %c0_i32_0 : i32, i32
  }
  func.func @transform_3(%arg0: i32) -> (i32, i32) {
    %c0_i32 = arith.constant 0 : i32
    %c0_i32_0 = arith.constant 0 : i32
    %c0_i32_1 = arith.constant 0 : i32
    return %c0_i32, %c0_i32_0 : i32, i32
  }
  func.func @transform_4(%arg0: i32) -> (i32, i32) {
    %c0_i32 = arith.constant 0 : i32
    %c0_i32_0 = arith.constant 0 : i32
    %c0_i32_1 = arith.constant 0 : i32
    return %c0_i32, %c0_i32_0 : i32, i32
  }
  func.func @transform_5(%arg0: i32) -> (i32, i32, i32) {
    %c0_i32 = arith.constant 0 : i32
    %c0_i32_0 = arith.constant 0 : i32
    %c0_i32_1 = arith.constant 0 : i32
    return %arg0, %c0_i32, %c0_i32_0 : i32, i32, i32
  }
}

module attributes {stable_mosaic.version = 11 : i64} {
  func.func @_decoder_layer_kernel(%arg0: i32, %arg1: memref<1x8x32xf32, #tpu.memory_space<vmem>>, %arg2: memref<1x8x32xf32, #tpu.memory_space<vmem>>, %arg3: memref<32x96xbf16, #tpu.memory_space<vmem>>, %arg4: memref<1x96xf32, #tpu.memory_space<vmem>>, %arg5: memref<32x32xbf16, #tpu.memory_space<vmem>>, %arg6: memref<1x32xf32, #tpu.memory_space<vmem>>, %arg7: memref<1x32xf32, #tpu.memory_space<vmem>>, %arg8: memref<1x32xf32, #tpu.memory_space<vmem>>, %arg9: memref<32x32xbf16, #tpu.memory_space<vmem>>, %arg10: memref<1x32xf32, #tpu.memory_space<vmem>>, %arg11: memref<32x64xbf16, #tpu.memory_space<vmem>>, %arg12: memref<1x64xf32, #tpu.memory_space<vmem>>, %arg13: memref<32x32xbf16, #tpu.memory_space<vmem>>, %arg14: memref<1x32xf32, #tpu.memory_space<vmem>>, %arg15: memref<1x32xf32, #tpu.memory_space<vmem>>, %arg16: memref<1x32xf32, #tpu.memory_space<vmem>>, %arg17: memref<32x64xbf16, #tpu.memory_space<vmem>>, %arg18: memref<1x64xf32, #tpu.memory_space<vmem>>, %arg19: memref<64x32xbf16, #tpu.memory_space<vmem>>, %arg20: memref<1x32xf32, #tpu.memory_space<vmem>>, %arg21: memref<1x32xf32, #tpu.memory_space<vmem>>, %arg22: memref<1x32xf32, #tpu.memory_space<vmem>>, %arg23: memref<1x8x32xf32, #tpu.memory_space<vmem>>) attributes {dimension_semantics = [#tpu.dimension_semantics<parallel>], iteration_bounds = array<i64: 2>, scalar_prefetch = 0 : i64, scratch_operands = 0 : i64, tpu.core_type = #tpu.core_type<tc>, window_params = [{transform_indices = @transform_0, window_bounds = array<i64: 1, 8, 32>}, {transform_indices = @transform_1, window_bounds = array<i64: 1, 8, 32>}, {pipeline_mode = #tpu.pipeline_mode<synchronous>, transform_indices = @transform_2, window_bounds = array<i64: 32, 96>}, {pipeline_mode = #tpu.pipeline_mode<synchronous>, transform_indices = @transform_3, window_bounds = array<i64: 1, 96>}, {pipeline_mode = #tpu.pipeline_mode<synchronous>, transform_indices = @transform_4, window_bounds = array<i64: 32, 32>}, {pipeline_mode = #tpu.pipeline_mode<synchronous>, transform_indices = @transform_5, window_bounds = array<i64: 1, 32>}, {pipeline_mode = #tpu.pipeline_mode<synchronous>, transform_indices = @transform_6, window_bounds = array<i64: 1, 32>}, {pipeline_mode = #tpu.pipeline_mode<synchronous>, transform_indices = @transform_7, window_bounds = array<i64: 1, 32>}, {pipeline_mode = #tpu.pipeline_mode<synchronous>, transform_indices = @transform_8, window_bounds = array<i64: 32, 32>}, {pipeline_mode = #tpu.pipeline_mode<synchronous>, transform_indices = @transform_9, window_bounds = array<i64: 1, 32>}, {pipeline_mode = #tpu.pipeline_mode<synchronous>, transform_indices = @transform_10, window_bounds = array<i64: 32, 64>}, {pipeline_mode = #tpu.pipeline_mode<synchronous>, transform_indices = @transform_11, window_bounds = array<i64: 1, 64>}, {pipeline_mode = #tpu.pipeline_mode<synchronous>, transform_indices = @transform_12, window_bounds = array<i64: 32, 32>}, {pipeline_mode = #tpu.pipeline_mode<synchronous>, transform_indices = @transform_13, window_bounds = array<i64: 1, 32>}, {pipeline_mode = #tpu.pipeline_mode<synchronous>, transform_indices = @transform_14, window_bounds = array<i64: 1, 32>}, {pipeline_mode = #tpu.pipeline_mode<synchronous>, transform_indices = @transform_15, window_bounds = array<i64: 1, 32>}, {pipeline_mode = #tpu.pipeline_mode<synchronous>, transform_indices = @transform_16, window_bounds = array<i64: 32, 64>}, {pipeline_mode = #tpu.pipeline_mode<synchronous>, transform_indices = @transform_17, window_bounds = array<i64: 1, 64>}, {pipeline_mode = #tpu.pipeline_mode<synchronous>, transform_indices = @transform_18, window_bounds = array<i64: 64, 32>}, {pipeline_mode = #tpu.pipeline_mode<synchronous>, transform_indices = @transform_19, window_bounds = array<i64: 1, 32>}, {pipeline_mode = #tpu.pipeline_mode<synchronous>, transform_indices = @transform_20, window_bounds = array<i64: 1, 32>}, {pipeline_mode = #tpu.pipeline_mode<synchronous>, transform_indices = @transform_21, window_bounds = array<i64: 1, 32>}, {transform_indices = @transform_22, window_bounds = array<i64: 1, 8, 32>}]} {
    %c0 = arith.constant 0 : index
    %c0_0 = arith.constant 0 : index
    %c0_1 = arith.constant 0 : index
    %0 = vector.load %arg1[%c0, %c0_0, %c0_1] : memref<1x8x32xf32, #tpu.memory_space<vmem>>, vector<1x8x32xf32>
    %1 = vector.shape_cast %0 : vector<1x8x32xf32> to vector<8x32xf32>
    %c0_2 = arith.constant 0 : index
    %c0_3 = arith.constant 0 : index
    %c0_4 = arith.constant 0 : index
    %2 = vector.load %arg2[%c0_2, %c0_3, %c0_4] : memref<1x8x32xf32, #tpu.memory_space<vmem>>, vector<1x8x32xf32>
    %3 = vector.shape_cast %2 : vector<1x8x32xf32> to vector<8x32xf32>
    %c0_5 = arith.constant 0 : index
    %c0_6 = arith.constant 0 : index
    %4 = vector.load %arg3[%c0_5, %c0_6] : memref<32x96xbf16, #tpu.memory_space<vmem>>, vector<32x96xbf16>
    %5 = arith.truncf %1 : vector<8x32xf32> to vector<8x32xbf16>
    %cst = arith.constant dense<0.000000e+00> : vector<8x96xf32>
    %6 = tpu.matmul %5, %4, %cst {dimension_numbers = #tpu.dot_dimension_numbers<[1], [0], [0], [1], [0, 0, 1, 1], [], []>} : vector<8x32xbf16>, vector<32x96xbf16>, vector<8x96xf32> -> vector<8x96xf32>
    %c0_7 = arith.constant 0 : index
    %c0_8 = arith.constant 0 : index
    %7 = vector.load %arg4[%c0_7, %c0_8] : memref<1x96xf32, #tpu.memory_space<vmem>>, vector<1x96xf32>
    %8 = vector.broadcast %7 : vector<1x96xf32> to vector<8x96xf32>
    %9 = arith.addf %6, %8 : vector<8x96xf32>
    %10 = vector.extract_strided_slice %9 {offsets = [0, 0], sizes = [8, 32], strides = [1, 1]} : vector<8x96xf32> to vector<8x32xf32>
    %11 = vector.extract_strided_slice %9 {offsets = [0, 32], sizes = [8, 32], strides = [1, 1]} : vector<8x96xf32> to vector<8x32xf32>
    %12 = vector.extract_strided_slice %9 {offsets = [0, 64], sizes = [8, 32], strides = [1, 1]} : vector<8x96xf32> to vector<8x32xf32>
    %13 = vector.extract_strided_slice %10 {offsets = [0, 0], sizes = [8, 8], strides = [1, 1]} : vector<8x32xf32> to vector<8x8xf32>
    %14 = arith.truncf %13 : vector<8x8xf32> to vector<8x8xbf16>
    %15 = vector.extract_strided_slice %11 {offsets = [0, 0], sizes = [8, 8], strides = [1, 1]} : vector<8x32xf32> to vector<8x8xf32>
    %16 = arith.truncf %15 : vector<8x8xf32> to vector<8x8xbf16>
    %17 = vector.extract_strided_slice %12 {offsets = [0, 0], sizes = [8, 8], strides = [1, 1]} : vector<8x32xf32> to vector<8x8xf32>
    %18 = arith.truncf %17 : vector<8x8xf32> to vector<8x8xbf16>
    "tpu.trace_start"() <{level = 10 : i32, message = "td,sd->ts"}> : () -> ()
    %cst_9 = arith.constant dense<0.000000e+00> : vector<8x8xf32>
    %19 = tpu.matmul %14, %16, %cst_9 {dimension_numbers = #tpu.dot_dimension_numbers<[1], [1], [0], [0], [0, 0, 1, 0], [], []>} : vector<8x8xbf16>, vector<8x8xbf16>, vector<8x8xf32> -> vector<8x8xf32>
    "tpu.trace_stop"() : () -> ()
    %cst_10 = arith.constant 0.353553385 : f32
    %20 = vector.broadcast %cst_10 : f32 to vector<8x8xf32>
    %21 = arith.mulf %19, %20 : vector<8x8xf32>
    %cst_11 = arith.constant dense<0xFF800000> : vector<8xf32>
    %22 = vector.multi_reduction <maximumf>, %21, %cst_11 [1] : vector<8x8xf32> to vector<8xf32>
    %23 = vector.shape_cast %22 : vector<8xf32> to vector<8x1xf32>
    %24 = vector.broadcast %23 : vector<8x1xf32> to vector<8x8xf32>
    %25 = arith.subf %21, %24 : vector<8x8xf32>
    %26 = math.exp %25 : vector<8x8xf32>
    %cst_12 = arith.constant dense<0.000000e+00> : vector<8xf32>
    %27 = vector.multi_reduction <add>, %26, %cst_12 [1] : vector<8x8xf32> to vector<8xf32>
    %28 = vector.shape_cast %27 : vector<8xf32> to vector<8x1xf32>
    %29 = tpu.reciprocal %28 {approx = true} : vector<8x1xf32> -> vector<8x1xf32>
    %30 = vector.broadcast %29 : vector<8x1xf32> to vector<8x8xf32>
    %31 = arith.mulf %26, %30 : vector<8x8xf32>
    %32 = arith.truncf %31 : vector<8x8xf32> to vector<8x8xbf16>
    %cst_13 = arith.constant dense<0.000000e+00> : vector<8x8xf32>
    %33 = tpu.matmul %32, %18, %cst_13 {dimension_numbers = #tpu.dot_dimension_numbers<[1], [0], [0], [1], [0, 0, 1, 1], [], []>} : vector<8x8xbf16>, vector<8x8xbf16>, vector<8x8xf32> -> vector<8x8xf32>
    %34 = vector.extract_strided_slice %10 {offsets = [0, 8], sizes = [8, 8], strides = [1, 1]} : vector<8x32xf32> to vector<8x8xf32>
    %35 = arith.truncf %34 : vector<8x8xf32> to vector<8x8xbf16>
    %36 = vector.extract_strided_slice %11 {offsets = [0, 8], sizes = [8, 8], strides = [1, 1]} : vector<8x32xf32> to vector<8x8xf32>
    %37 = arith.truncf %36 : vector<8x8xf32> to vector<8x8xbf16>
    %38 = vector.extract_strided_slice %12 {offsets = [0, 8], sizes = [8, 8], strides = [1, 1]} : vector<8x32xf32> to vector<8x8xf32>
    %39 = arith.truncf %38 : vector<8x8xf32> to vector<8x8xbf16>
    "tpu.trace_start"() <{level = 10 : i32, message = "td,sd->ts"}> : () -> ()
    %cst_14 = arith.constant dense<0.000000e+00> : vector<8x8xf32>
    %40 = tpu.matmul %35, %37, %cst_14 {dimension_numbers = #tpu.dot_dimension_numbers<[1], [1], [0], [0], [0, 0, 1, 0], [], []>} : vector<8x8xbf16>, vector<8x8xbf16>, vector<8x8xf32> -> vector<8x8xf32>
    "tpu.trace_stop"() : () -> ()
    %cst_15 = arith.constant 0.353553385 : f32
    %41 = vector.broadcast %cst_15 : f32 to vector<8x8xf32>
    %42 = arith.mulf %40, %41 : vector<8x8xf32>
    %cst_16 = arith.constant dense<0xFF800000> : vector<8xf32>
    %43 = vector.multi_reduction <maximumf>, %42, %cst_16 [1] : vector<8x8xf32> to vector<8xf32>
    %44 = vector.shape_cast %43 : vector<8xf32> to vector<8x1xf32>
    %45 = vector.broadcast %44 : vector<8x1xf32> to vector<8x8xf32>
    %46 = arith.subf %42, %45 : vector<8x8xf32>
    %47 = math.exp %46 : vector<8x8xf32>
    %cst_17 = arith.constant dense<0.000000e+00> : vector<8xf32>
    %48 = vector.multi_reduction <add>, %47, %cst_17 [1] : vector<8x8xf32> to vector<8xf32>
    %49 = vector.shape_cast %48 : vector<8xf32> to vector<8x1xf32>
    %50 = tpu.reciprocal %49 {approx = true} : vector<8x1xf32> -> vector<8x1xf32>
    %51 = vector.broadcast %50 : vector<8x1xf32> to vector<8x8xf32>
    %52 = arith.mulf %47, %51 : vector<8x8xf32>
    %53 = arith.truncf %52 : vector<8x8xf32> to vector<8x8xbf16>
    %cst_18 = arith.constant dense<0.000000e+00> : vector<8x8xf32>
    %54 = tpu.matmul %53, %39, %cst_18 {dimension_numbers = #tpu.dot_dimension_numbers<[1], [0], [0], [1], [0, 0, 1, 1], [], []>} : vector<8x8xbf16>, vector<8x8xbf16>, vector<8x8xf32> -> vector<8x8xf32>
    %55 = vector.extract_strided_slice %10 {offsets = [0, 16], sizes = [8, 8], strides = [1, 1]} : vector<8x32xf32> to vector<8x8xf32>
    %56 = arith.truncf %55 : vector<8x8xf32> to vector<8x8xbf16>
    %57 = vector.extract_strided_slice %11 {offsets = [0, 16], sizes = [8, 8], strides = [1, 1]} : vector<8x32xf32> to vector<8x8xf32>
    %58 = arith.truncf %57 : vector<8x8xf32> to vector<8x8xbf16>
    %59 = vector.extract_strided_slice %12 {offsets = [0, 16], sizes = [8, 8], strides = [1, 1]} : vector<8x32xf32> to vector<8x8xf32>
    %60 = arith.truncf %59 : vector<8x8xf32> to vector<8x8xbf16>
    "tpu.trace_start"() <{level = 10 : i32, message = "td,sd->ts"}> : () -> ()
    %cst_19 = arith.constant dense<0.000000e+00> : vector<8x8xf32>
    %61 = tpu.matmul %56, %58, %cst_19 {dimension_numbers = #tpu.dot_dimension_numbers<[1], [1], [0], [0], [0, 0, 1, 0], [], []>} : vector<8x8xbf16>, vector<8x8xbf16>, vector<8x8xf32> -> vector<8x8xf32>
    "tpu.trace_stop"() : () -> ()
    %cst_20 = arith.constant 0.353553385 : f32
    %62 = vector.broadcast %cst_20 : f32 to vector<8x8xf32>
    %63 = arith.mulf %61, %62 : vector<8x8xf32>
    %cst_21 = arith.constant dense<0xFF800000> : vector<8xf32>
    %64 = vector.multi_reduction <maximumf>, %63, %cst_21 [1] : vector<8x8xf32> to vector<8xf32>
    %65 = vector.shape_cast %64 : vector<8xf32> to vector<8x1xf32>
    %66 = vector.broadcast %65 : vector<8x1xf32> to vector<8x8xf32>
    %67 = arith.subf %63, %66 : vector<8x8xf32>
    %68 = math.exp %67 : vector<8x8xf32>
    %cst_22 = arith.constant dense<0.000000e+00> : vector<8xf32>
    %69 = vector.multi_reduction <add>, %68, %cst_22 [1] : vector<8x8xf32> to vector<8xf32>
    %70 = vector.shape_cast %69 : vector<8xf32> to vector<8x1xf32>
    %71 = tpu.reciprocal %70 {approx = true} : vector<8x1xf32> -> vector<8x1xf32>
    %72 = vector.broadcast %71 : vector<8x1xf32> to vector<8x8xf32>
    %73 = arith.mulf %68, %72 : vector<8x8xf32>
    %74 = arith.truncf %73 : vector<8x8xf32> to vector<8x8xbf16>
    %cst_23 = arith.constant dense<0.000000e+00> : vector<8x8xf32>
    %75 = tpu.matmul %74, %60, %cst_23 {dimension_numbers = #tpu.dot_dimension_numbers<[1], [0], [0], [1], [0, 0, 1, 1], [], []>} : vector<8x8xbf16>, vector<8x8xbf16>, vector<8x8xf32> -> vector<8x8xf32>
    %76 = vector.extract_strided_slice %10 {offsets = [0, 24], sizes = [8, 8], strides = [1, 1]} : vector<8x32xf32> to vector<8x8xf32>
    %77 = arith.truncf %76 : vector<8x8xf32> to vector<8x8xbf16>
    %78 = vector.extract_strided_slice %11 {offsets = [0, 24], sizes = [8, 8], strides = [1, 1]} : vector<8x32xf32> to vector<8x8xf32>
    %79 = arith.truncf %78 : vector<8x8xf32> to vector<8x8xbf16>
    %80 = vector.extract_strided_slice %12 {offsets = [0, 24], sizes = [8, 8], strides = [1, 1]} : vector<8x32xf32> to vector<8x8xf32>
    %81 = arith.truncf %80 : vector<8x8xf32> to vector<8x8xbf16>
    "tpu.trace_start"() <{level = 10 : i32, message = "td,sd->ts"}> : () -> ()
    %cst_24 = arith.constant dense<0.000000e+00> : vector<8x8xf32>
    %82 = tpu.matmul %77, %79, %cst_24 {dimension_numbers = #tpu.dot_dimension_numbers<[1], [1], [0], [0], [0, 0, 1, 0], [], []>} : vector<8x8xbf16>, vector<8x8xbf16>, vector<8x8xf32> -> vector<8x8xf32>
    "tpu.trace_stop"() : () -> ()
    %cst_25 = arith.constant 0.353553385 : f32
    %83 = vector.broadcast %cst_25 : f32 to vector<8x8xf32>
    %84 = arith.mulf %82, %83 : vector<8x8xf32>
    %cst_26 = arith.constant dense<0xFF800000> : vector<8xf32>
    %85 = vector.multi_reduction <maximumf>, %84, %cst_26 [1] : vector<8x8xf32> to vector<8xf32>
    %86 = vector.shape_cast %85 : vector<8xf32> to vector<8x1xf32>
    %87 = vector.broadcast %86 : vector<8x1xf32> to vector<8x8xf32>
    %88 = arith.subf %84, %87 : vector<8x8xf32>
    %89 = math.exp %88 : vector<8x8xf32>
    %cst_27 = arith.constant dense<0.000000e+00> : vector<8xf32>
    %90 = vector.multi_reduction <add>, %89, %cst_27 [1] : vector<8x8xf32> to vector<8xf32>
    %91 = vector.shape_cast %90 : vector<8xf32> to vector<8x1xf32>
    %92 = tpu.reciprocal %91 {approx = true} : vector<8x1xf32> -> vector<8x1xf32>
    %93 = vector.broadcast %92 : vector<8x1xf32> to vector<8x8xf32>
    %94 = arith.mulf %89, %93 : vector<8x8xf32>
    %95 = arith.truncf %94 : vector<8x8xf32> to vector<8x8xbf16>
    %cst_28 = arith.constant dense<0.000000e+00> : vector<8x8xf32>
    %96 = tpu.matmul %95, %81, %cst_28 {dimension_numbers = #tpu.dot_dimension_numbers<[1], [0], [0], [1], [0, 0, 1, 1], [], []>} : vector<8x8xbf16>, vector<8x8xbf16>, vector<8x8xf32> -> vector<8x8xf32>
    %97 = tpu.concatenate %33, %54, %75, %96 in 1 : vector<8x8xf32>, vector<8x8xf32>, vector<8x8xf32>, vector<8x8xf32> -> vector<8x32xf32>
    %c0_29 = arith.constant 0 : index
    %c0_30 = arith.constant 0 : index
    %98 = vector.load %arg5[%c0_29, %c0_30] : memref<32x32xbf16, #tpu.memory_space<vmem>>, vector<32x32xbf16>
    %99 = arith.truncf %97 : vector<8x32xf32> to vector<8x32xbf16>
    %cst_31 = arith.constant dense<0.000000e+00> : vector<8x32xf32>
    %100 = tpu.matmul %99, %98, %cst_31 {dimension_numbers = #tpu.dot_dimension_numbers<[1], [0], [0], [1], [0, 0, 1, 1], [], []>} : vector<8x32xbf16>, vector<32x32xbf16>, vector<8x32xf32> -> vector<8x32xf32>
    %c0_32 = arith.constant 0 : index
    %c0_33 = arith.constant 0 : index
    %101 = vector.load %arg6[%c0_32, %c0_33] : memref<1x32xf32, #tpu.memory_space<vmem>>, vector<1x32xf32>
    %102 = vector.broadcast %101 : vector<1x32xf32> to vector<8x32xf32>
    %103 = arith.addf %100, %102 : vector<8x32xf32>
    %104 = arith.addf %103, %1 : vector<8x32xf32>
    %c0_34 = arith.constant 0 : index
    %c0_35 = arith.constant 0 : index
    %105 = vector.load %arg7[%c0_34, %c0_35] : memref<1x32xf32, #tpu.memory_space<vmem>>, vector<1x32xf32>
    %c0_36 = arith.constant 0 : index
    %c0_37 = arith.constant 0 : index
    %106 = vector.load %arg8[%c0_36, %c0_37] : memref<1x32xf32, #tpu.memory_space<vmem>>, vector<1x32xf32>
    %cst_38 = arith.constant dense<0.000000e+00> : vector<8xf32>
    %107 = vector.multi_reduction <add>, %104, %cst_38 [1] : vector<8x32xf32> to vector<8xf32>
    %108 = vector.shape_cast %107 : vector<8xf32> to vector<8x1xf32>
    %cst_39 = arith.constant 3.200000e+01 : f32
    %109 = vector.broadcast %cst_39 : f32 to vector<8x1xf32>
    %110 = arith.divf %108, %109 : vector<8x1xf32>
    %111 = vector.broadcast %110 : vector<8x1xf32> to vector<8x32xf32>
    %112 = arith.subf %104, %111 : vector<8x32xf32>
    %113 = arith.mulf %112, %112 : vector<8x32xf32>
    %cst_40 = arith.constant dense<0.000000e+00> : vector<8xf32>
    %114 = vector.multi_reduction <add>, %113, %cst_40 [1] : vector<8x32xf32> to vector<8xf32>
    %115 = vector.shape_cast %114 : vector<8xf32> to vector<8x1xf32>
    %cst_41 = arith.constant 3.200000e+01 : f32
    %116 = vector.broadcast %cst_41 : f32 to vector<8x1xf32>
    %117 = arith.divf %115, %116 : vector<8x1xf32>
    %118 = vector.broadcast %110 : vector<8x1xf32> to vector<8x32xf32>
    %119 = arith.subf %104, %118 : vector<8x32xf32>
    %cst_42 = arith.constant 9.99999974E-6 : f32
    %120 = vector.broadcast %cst_42 : f32 to vector<8x1xf32>
    %121 = arith.addf %117, %120 : vector<8x1xf32>
    %122 = math.rsqrt %121 : vector<8x1xf32>
    %123 = vector.broadcast %122 : vector<8x1xf32> to vector<8x32xf32>
    %124 = arith.mulf %119, %123 : vector<8x32xf32>
    %125 = vector.broadcast %105 : vector<1x32xf32> to vector<8x32xf32>
    %126 = arith.mulf %124, %125 : vector<8x32xf32>
    %127 = vector.broadcast %106 : vector<1x32xf32> to vector<8x32xf32>
    %128 = arith.addf %126, %127 : vector<8x32xf32>
    %c0_43 = arith.constant 0 : index
    %c0_44 = arith.constant 0 : index
    %129 = vector.load %arg9[%c0_43, %c0_44] : memref<32x32xbf16, #tpu.memory_space<vmem>>, vector<32x32xbf16>
    %130 = arith.truncf %128 : vector<8x32xf32> to vector<8x32xbf16>
    %cst_45 = arith.constant dense<0.000000e+00> : vector<8x32xf32>
    %131 = tpu.matmul %130, %129, %cst_45 {dimension_numbers = #tpu.dot_dimension_numbers<[1], [0], [0], [1], [0, 0, 1, 1], [], []>} : vector<8x32xbf16>, vector<32x32xbf16>, vector<8x32xf32> -> vector<8x32xf32>
    %c0_46 = arith.constant 0 : index
    %c0_47 = arith.constant 0 : index
    %132 = vector.load %arg10[%c0_46, %c0_47] : memref<1x32xf32, #tpu.memory_space<vmem>>, vector<1x32xf32>
    %133 = vector.broadcast %132 : vector<1x32xf32> to vector<8x32xf32>
    %134 = arith.addf %131, %133 : vector<8x32xf32>
    %c0_48 = arith.constant 0 : index
    %c0_49 = arith.constant 0 : index
    %135 = vector.load %arg11[%c0_48, %c0_49] : memref<32x64xbf16, #tpu.memory_space<vmem>>, vector<32x64xbf16>
    %136 = arith.truncf %3 : vector<8x32xf32> to vector<8x32xbf16>
    %cst_50 = arith.constant dense<0.000000e+00> : vector<8x64xf32>
    %137 = tpu.matmul %136, %135, %cst_50 {dimension_numbers = #tpu.dot_dimension_numbers<[1], [0], [0], [1], [0, 0, 1, 1], [], []>} : vector<8x32xbf16>, vector<32x64xbf16>, vector<8x64xf32> -> vector<8x64xf32>
    %c0_51 = arith.constant 0 : index
    %c0_52 = arith.constant 0 : index
    %138 = vector.load %arg12[%c0_51, %c0_52] : memref<1x64xf32, #tpu.memory_space<vmem>>, vector<1x64xf32>
    %139 = vector.broadcast %138 : vector<1x64xf32> to vector<8x64xf32>
    %140 = arith.addf %137, %139 : vector<8x64xf32>
    %141 = vector.extract_strided_slice %140 {offsets = [0, 0], sizes = [8, 32], strides = [1, 1]} : vector<8x64xf32> to vector<8x32xf32>
    %142 = vector.extract_strided_slice %140 {offsets = [0, 32], sizes = [8, 32], strides = [1, 1]} : vector<8x64xf32> to vector<8x32xf32>
    %143 = vector.extract_strided_slice %134 {offsets = [0, 0], sizes = [8, 8], strides = [1, 1]} : vector<8x32xf32> to vector<8x8xf32>
    %144 = arith.truncf %143 : vector<8x8xf32> to vector<8x8xbf16>
    %145 = vector.extract_strided_slice %141 {offsets = [0, 0], sizes = [8, 8], strides = [1, 1]} : vector<8x32xf32> to vector<8x8xf32>
    %146 = arith.truncf %145 : vector<8x8xf32> to vector<8x8xbf16>
    %147 = vector.extract_strided_slice %142 {offsets = [0, 0], sizes = [8, 8], strides = [1, 1]} : vector<8x32xf32> to vector<8x8xf32>
    %148 = arith.truncf %147 : vector<8x8xf32> to vector<8x8xbf16>
    "tpu.trace_start"() <{level = 10 : i32, message = "td,sd->ts"}> : () -> ()
    %cst_53 = arith.constant dense<0.000000e+00> : vector<8x8xf32>
    %149 = tpu.matmul %144, %146, %cst_53 {dimension_numbers = #tpu.dot_dimension_numbers<[1], [1], [0], [0], [0, 0, 1, 0], [], []>} : vector<8x8xbf16>, vector<8x8xbf16>, vector<8x8xf32> -> vector<8x8xf32>
    "tpu.trace_stop"() : () -> ()
    %cst_54 = arith.constant 0.353553385 : f32
    %150 = vector.broadcast %cst_54 : f32 to vector<8x8xf32>
    %151 = arith.mulf %149, %150 : vector<8x8xf32>
    %cst_55 = arith.constant dense<0xFF800000> : vector<8xf32>
    %152 = vector.multi_reduction <maximumf>, %151, %cst_55 [1] : vector<8x8xf32> to vector<8xf32>
    %153 = vector.shape_cast %152 : vector<8xf32> to vector<8x1xf32>
    %154 = vector.broadcast %153 : vector<8x1xf32> to vector<8x8xf32>
    %155 = arith.subf %151, %154 : vector<8x8xf32>
    %156 = math.exp %155 : vector<8x8xf32>
    %cst_56 = arith.constant dense<0.000000e+00> : vector<8xf32>
    %157 = vector.multi_reduction <add>, %156, %cst_56 [1] : vector<8x8xf32> to vector<8xf32>
    %158 = vector.shape_cast %157 : vector<8xf32> to vector<8x1xf32>
    %159 = tpu.reciprocal %158 {approx = true} : vector<8x1xf32> -> vector<8x1xf32>
    %160 = vector.broadcast %159 : vector<8x1xf32> to vector<8x8xf32>
    %161 = arith.mulf %156, %160 : vector<8x8xf32>
    %162 = arith.truncf %161 : vector<8x8xf32> to vector<8x8xbf16>
    %cst_57 = arith.constant dense<0.000000e+00> : vector<8x8xf32>
    %163 = tpu.matmul %162, %148, %cst_57 {dimension_numbers = #tpu.dot_dimension_numbers<[1], [0], [0], [1], [0, 0, 1, 1], [], []>} : vector<8x8xbf16>, vector<8x8xbf16>, vector<8x8xf32> -> vector<8x8xf32>
    %164 = vector.extract_strided_slice %134 {offsets = [0, 8], sizes = [8, 8], strides = [1, 1]} : vector<8x32xf32> to vector<8x8xf32>
    %165 = arith.truncf %164 : vector<8x8xf32> to vector<8x8xbf16>
    %166 = vector.extract_strided_slice %141 {offsets = [0, 8], sizes = [8, 8], strides = [1, 1]} : vector<8x32xf32> to vector<8x8xf32>
    %167 = arith.truncf %166 : vector<8x8xf32> to vector<8x8xbf16>
    %168 = vector.extract_strided_slice %142 {offsets = [0, 8], sizes = [8, 8], strides = [1, 1]} : vector<8x32xf32> to vector<8x8xf32>
    %169 = arith.truncf %168 : vector<8x8xf32> to vector<8x8xbf16>
    "tpu.trace_start"() <{level = 10 : i32, message = "td,sd->ts"}> : () -> ()
    %cst_58 = arith.constant dense<0.000000e+00> : vector<8x8xf32>
    %170 = tpu.matmul %165, %167, %cst_58 {dimension_numbers = #tpu.dot_dimension_numbers<[1], [1], [0], [0], [0, 0, 1, 0], [], []>} : vector<8x8xbf16>, vector<8x8xbf16>, vector<8x8xf32> -> vector<8x8xf32>
    "tpu.trace_stop"() : () -> ()
    %cst_59 = arith.constant 0.353553385 : f32
    %171 = vector.broadcast %cst_59 : f32 to vector<8x8xf32>
    %172 = arith.mulf %170, %171 : vector<8x8xf32>
    %cst_60 = arith.constant dense<0xFF800000> : vector<8xf32>
    %173 = vector.multi_reduction <maximumf>, %172, %cst_60 [1] : vector<8x8xf32> to vector<8xf32>
    %174 = vector.shape_cast %173 : vector<8xf32> to vector<8x1xf32>
    %175 = vector.broadcast %174 : vector<8x1xf32> to vector<8x8xf32>
    %176 = arith.subf %172, %175 : vector<8x8xf32>
    %177 = math.exp %176 : vector<8x8xf32>
    %cst_61 = arith.constant dense<0.000000e+00> : vector<8xf32>
    %178 = vector.multi_reduction <add>, %177, %cst_61 [1] : vector<8x8xf32> to vector<8xf32>
    %179 = vector.shape_cast %178 : vector<8xf32> to vector<8x1xf32>
    %180 = tpu.reciprocal %179 {approx = true} : vector<8x1xf32> -> vector<8x1xf32>
    %181 = vector.broadcast %180 : vector<8x1xf32> to vector<8x8xf32>
    %182 = arith.mulf %177, %181 : vector<8x8xf32>
    %183 = arith.truncf %182 : vector<8x8xf32> to vector<8x8xbf16>
    %cst_62 = arith.constant dense<0.000000e+00> : vector<8x8xf32>
    %184 = tpu.matmul %183, %169, %cst_62 {dimension_numbers = #tpu.dot_dimension_numbers<[1], [0], [0], [1], [0, 0, 1, 1], [], []>} : vector<8x8xbf16>, vector<8x8xbf16>, vector<8x8xf32> -> vector<8x8xf32>
    %185 = vector.extract_strided_slice %134 {offsets = [0, 16], sizes = [8, 8], strides = [1, 1]} : vector<8x32xf32> to vector<8x8xf32>
    %186 = arith.truncf %185 : vector<8x8xf32> to vector<8x8xbf16>
    %187 = vector.extract_strided_slice %141 {offsets = [0, 16], sizes = [8, 8], strides = [1, 1]} : vector<8x32xf32> to vector<8x8xf32>
    %188 = arith.truncf %187 : vector<8x8xf32> to vector<8x8xbf16>
    %189 = vector.extract_strided_slice %142 {offsets = [0, 16], sizes = [8, 8], strides = [1, 1]} : vector<8x32xf32> to vector<8x8xf32>
    %190 = arith.truncf %189 : vector<8x8xf32> to vector<8x8xbf16>
    "tpu.trace_start"() <{level = 10 : i32, message = "td,sd->ts"}> : () -> ()
    %cst_63 = arith.constant dense<0.000000e+00> : vector<8x8xf32>
    %191 = tpu.matmul %186, %188, %cst_63 {dimension_numbers = #tpu.dot_dimension_numbers<[1], [1], [0], [0], [0, 0, 1, 0], [], []>} : vector<8x8xbf16>, vector<8x8xbf16>, vector<8x8xf32> -> vector<8x8xf32>
    "tpu.trace_stop"() : () -> ()
    %cst_64 = arith.constant 0.353553385 : f32
    %192 = vector.broadcast %cst_64 : f32 to vector<8x8xf32>
    %193 = arith.mulf %191, %192 : vector<8x8xf32>
    %cst_65 = arith.constant dense<0xFF800000> : vector<8xf32>
    %194 = vector.multi_reduction <maximumf>, %193, %cst_65 [1] : vector<8x8xf32> to vector<8xf32>
    %195 = vector.shape_cast %194 : vector<8xf32> to vector<8x1xf32>
    %196 = vector.broadcast %195 : vector<8x1xf32> to vector<8x8xf32>
    %197 = arith.subf %193, %196 : vector<8x8xf32>
    %198 = math.exp %197 : vector<8x8xf32>
    %cst_66 = arith.constant dense<0.000000e+00> : vector<8xf32>
    %199 = vector.multi_reduction <add>, %198, %cst_66 [1] : vector<8x8xf32> to vector<8xf32>
    %200 = vector.shape_cast %199 : vector<8xf32> to vector<8x1xf32>
    %201 = tpu.reciprocal %200 {approx = true} : vector<8x1xf32> -> vector<8x1xf32>
    %202 = vector.broadcast %201 : vector<8x1xf32> to vector<8x8xf32>
    %203 = arith.mulf %198, %202 : vector<8x8xf32>
    %204 = arith.truncf %203 : vector<8x8xf32> to vector<8x8xbf16>
    %cst_67 = arith.constant dense<0.000000e+00> : vector<8x8xf32>
    %205 = tpu.matmul %204, %190, %cst_67 {dimension_numbers = #tpu.dot_dimension_numbers<[1], [0], [0], [1], [0, 0, 1, 1], [], []>} : vector<8x8xbf16>, vector<8x8xbf16>, vector<8x8xf32> -> vector<8x8xf32>
    %206 = vector.extract_strided_slice %134 {offsets = [0, 24], sizes = [8, 8], strides = [1, 1]} : vector<8x32xf32> to vector<8x8xf32>
    %207 = arith.truncf %206 : vector<8x8xf32> to vector<8x8xbf16>
    %208 = vector.extract_strided_slice %141 {offsets = [0, 24], sizes = [8, 8], strides = [1, 1]} : vector<8x32xf32> to vector<8x8xf32>
    %209 = arith.truncf %208 : vector<8x8xf32> to vector<8x8xbf16>
    %210 = vector.extract_strided_slice %142 {offsets = [0, 24], sizes = [8, 8], strides = [1, 1]} : vector<8x32xf32> to vector<8x8xf32>
    %211 = arith.truncf %210 : vector<8x8xf32> to vector<8x8xbf16>
    "tpu.trace_start"() <{level = 10 : i32, message = "td,sd->ts"}> : () -> ()
    %cst_68 = arith.constant dense<0.000000e+00> : vector<8x8xf32>
    %212 = tpu.matmul %207, %209, %cst_68 {dimension_numbers = #tpu.dot_dimension_numbers<[1], [1], [0], [0], [0, 0, 1, 0], [], []>} : vector<8x8xbf16>, vector<8x8xbf16>, vector<8x8xf32> -> vector<8x8xf32>
    "tpu.trace_stop"() : () -> ()
    %cst_69 = arith.constant 0.353553385 : f32
    %213 = vector.broadcast %cst_69 : f32 to vector<8x8xf32>
    %214 = arith.mulf %212, %213 : vector<8x8xf32>
    %cst_70 = arith.constant dense<0xFF800000> : vector<8xf32>
    %215 = vector.multi_reduction <maximumf>, %214, %cst_70 [1] : vector<8x8xf32> to vector<8xf32>
    %216 = vector.shape_cast %215 : vector<8xf32> to vector<8x1xf32>
    %217 = vector.broadcast %216 : vector<8x1xf32> to vector<8x8xf32>
    %218 = arith.subf %214, %217 : vector<8x8xf32>
    %219 = math.exp %218 : vector<8x8xf32>
    %cst_71 = arith.constant dense<0.000000e+00> : vector<8xf32>
    %220 = vector.multi_reduction <add>, %219, %cst_71 [1] : vector<8x8xf32> to vector<8xf32>
    %221 = vector.shape_cast %220 : vector<8xf32> to vector<8x1xf32>
    %222 = tpu.reciprocal %221 {approx = true} : vector<8x1xf32> -> vector<8x1xf32>
    %223 = vector.broadcast %222 : vector<8x1xf32> to vector<8x8xf32>
    %224 = arith.mulf %219, %223 : vector<8x8xf32>
    %225 = arith.truncf %224 : vector<8x8xf32> to vector<8x8xbf16>
    %cst_72 = arith.constant dense<0.000000e+00> : vector<8x8xf32>
    %226 = tpu.matmul %225, %211, %cst_72 {dimension_numbers = #tpu.dot_dimension_numbers<[1], [0], [0], [1], [0, 0, 1, 1], [], []>} : vector<8x8xbf16>, vector<8x8xbf16>, vector<8x8xf32> -> vector<8x8xf32>
    %227 = tpu.concatenate %163, %184, %205, %226 in 1 : vector<8x8xf32>, vector<8x8xf32>, vector<8x8xf32>, vector<8x8xf32> -> vector<8x32xf32>
    %c0_73 = arith.constant 0 : index
    %c0_74 = arith.constant 0 : index
    %228 = vector.load %arg13[%c0_73, %c0_74] : memref<32x32xbf16, #tpu.memory_space<vmem>>, vector<32x32xbf16>
    %229 = arith.truncf %227 : vector<8x32xf32> to vector<8x32xbf16>
    %cst_75 = arith.constant dense<0.000000e+00> : vector<8x32xf32>
    %230 = tpu.matmul %229, %228, %cst_75 {dimension_numbers = #tpu.dot_dimension_numbers<[1], [0], [0], [1], [0, 0, 1, 1], [], []>} : vector<8x32xbf16>, vector<32x32xbf16>, vector<8x32xf32> -> vector<8x32xf32>
    %c0_76 = arith.constant 0 : index
    %c0_77 = arith.constant 0 : index
    %231 = vector.load %arg14[%c0_76, %c0_77] : memref<1x32xf32, #tpu.memory_space<vmem>>, vector<1x32xf32>
    %232 = vector.broadcast %231 : vector<1x32xf32> to vector<8x32xf32>
    %233 = arith.addf %230, %232 : vector<8x32xf32>
    %234 = arith.addf %233, %128 : vector<8x32xf32>
    %c0_78 = arith.constant 0 : index
    %c0_79 = arith.constant 0 : index
    %235 = vector.load %arg15[%c0_78, %c0_79] : memref<1x32xf32, #tpu.memory_space<vmem>>, vector<1x32xf32>
    %c0_80 = arith.constant 0 : index
    %c0_81 = arith.constant 0 : index
    %236 = vector.load %arg16[%c0_80, %c0_81] : memref<1x32xf32, #tpu.memory_space<vmem>>, vector<1x32xf32>
    %cst_82 = arith.constant dense<0.000000e+00> : vector<8xf32>
    %237 = vector.multi_reduction <add>, %234, %cst_82 [1] : vector<8x32xf32> to vector<8xf32>
    %238 = vector.shape_cast %237 : vector<8xf32> to vector<8x1xf32>
    %cst_83 = arith.constant 3.200000e+01 : f32
    %239 = vector.broadcast %cst_83 : f32 to vector<8x1xf32>
    %240 = arith.divf %238, %239 : vector<8x1xf32>
    %241 = vector.broadcast %240 : vector<8x1xf32> to vector<8x32xf32>
    %242 = arith.subf %234, %241 : vector<8x32xf32>
    %243 = arith.mulf %242, %242 : vector<8x32xf32>
    %cst_84 = arith.constant dense<0.000000e+00> : vector<8xf32>
    %244 = vector.multi_reduction <add>, %243, %cst_84 [1] : vector<8x32xf32> to vector<8xf32>
    %245 = vector.shape_cast %244 : vector<8xf32> to vector<8x1xf32>
    %cst_85 = arith.constant 3.200000e+01 : f32
    %246 = vector.broadcast %cst_85 : f32 to vector<8x1xf32>
    %247 = arith.divf %245, %246 : vector<8x1xf32>
    %248 = vector.broadcast %240 : vector<8x1xf32> to vector<8x32xf32>
    %249 = arith.subf %234, %248 : vector<8x32xf32>
    %cst_86 = arith.constant 9.99999974E-6 : f32
    %250 = vector.broadcast %cst_86 : f32 to vector<8x1xf32>
    %251 = arith.addf %247, %250 : vector<8x1xf32>
    %252 = math.rsqrt %251 : vector<8x1xf32>
    %253 = vector.broadcast %252 : vector<8x1xf32> to vector<8x32xf32>
    %254 = arith.mulf %249, %253 : vector<8x32xf32>
    %255 = vector.broadcast %235 : vector<1x32xf32> to vector<8x32xf32>
    %256 = arith.mulf %254, %255 : vector<8x32xf32>
    %257 = vector.broadcast %236 : vector<1x32xf32> to vector<8x32xf32>
    %258 = arith.addf %256, %257 : vector<8x32xf32>
    %c0_87 = arith.constant 0 : index
    %c0_88 = arith.constant 0 : index
    %259 = vector.load %arg17[%c0_87, %c0_88] : memref<32x64xbf16, #tpu.memory_space<vmem>>, vector<32x64xbf16>
    %260 = arith.truncf %258 : vector<8x32xf32> to vector<8x32xbf16>
    %cst_89 = arith.constant dense<0.000000e+00> : vector<8x64xf32>
    %261 = tpu.matmul %260, %259, %cst_89 {dimension_numbers = #tpu.dot_dimension_numbers<[1], [0], [0], [1], [0, 0, 1, 1], [], []>} : vector<8x32xbf16>, vector<32x64xbf16>, vector<8x64xf32> -> vector<8x64xf32>
    %c0_90 = arith.constant 0 : index
    %c0_91 = arith.constant 0 : index
    %262 = vector.load %arg18[%c0_90, %c0_91] : memref<1x64xf32, #tpu.memory_space<vmem>>, vector<1x64xf32>
    %263 = vector.broadcast %262 : vector<1x64xf32> to vector<8x64xf32>
    %264 = arith.addf %261, %263 : vector<8x64xf32>
    %cst_92 = arith.constant 0.000000e+00 : f32
    %265 = vector.broadcast %cst_92 : f32 to vector<8x64xf32>
    %266 = arith.maximumf %264, %265 : vector<8x64xf32>
    %c0_93 = arith.constant 0 : index
    %c0_94 = arith.constant 0 : index
    %267 = vector.load %arg19[%c0_93, %c0_94] : memref<64x32xbf16, #tpu.memory_space<vmem>>, vector<64x32xbf16>
    %268 = arith.truncf %266 : vector<8x64xf32> to vector<8x64xbf16>
    %cst_95 = arith.constant dense<0.000000e+00> : vector<8x32xf32>
    %269 = tpu.matmul %268, %267, %cst_95 {dimension_numbers = #tpu.dot_dimension_numbers<[1], [0], [0], [1], [0, 0, 1, 1], [], []>} : vector<8x64xbf16>, vector<64x32xbf16>, vector<8x32xf32> -> vector<8x32xf32>
    %c0_96 = arith.constant 0 : index
    %c0_97 = arith.constant 0 : index
    %270 = vector.load %arg20[%c0_96, %c0_97] : memref<1x32xf32, #tpu.memory_space<vmem>>, vector<1x32xf32>
    %271 = vector.broadcast %270 : vector<1x32xf32> to vector<8x32xf32>
    %272 = arith.addf %269, %271 : vector<8x32xf32>
    %273 = arith.addf %272, %258 : vector<8x32xf32>
    %c0_98 = arith.constant 0 : index
    %c0_99 = arith.constant 0 : index
    %274 = vector.load %arg21[%c0_98, %c0_99] : memref<1x32xf32, #tpu.memory_space<vmem>>, vector<1x32xf32>
    %c0_100 = arith.constant 0 : index
    %c0_101 = arith.constant 0 : index
    %275 = vector.load %arg22[%c0_100, %c0_101] : memref<1x32xf32, #tpu.memory_space<vmem>>, vector<1x32xf32>
    %cst_102 = arith.constant dense<0.000000e+00> : vector<8xf32>
    %276 = vector.multi_reduction <add>, %273, %cst_102 [1] : vector<8x32xf32> to vector<8xf32>
    %277 = vector.shape_cast %276 : vector<8xf32> to vector<8x1xf32>
    %cst_103 = arith.constant 3.200000e+01 : f32
    %278 = vector.broadcast %cst_103 : f32 to vector<8x1xf32>
    %279 = arith.divf %277, %278 : vector<8x1xf32>
    %280 = vector.broadcast %279 : vector<8x1xf32> to vector<8x32xf32>
    %281 = arith.subf %273, %280 : vector<8x32xf32>
    %282 = arith.mulf %281, %281 : vector<8x32xf32>
    %cst_104 = arith.constant dense<0.000000e+00> : vector<8xf32>
    %283 = vector.multi_reduction <add>, %282, %cst_104 [1] : vector<8x32xf32> to vector<8xf32>
    %284 = vector.shape_cast %283 : vector<8xf32> to vector<8x1xf32>
    %cst_105 = arith.constant 3.200000e+01 : f32
    %285 = vector.broadcast %cst_105 : f32 to vector<8x1xf32>
    %286 = arith.divf %284, %285 : vector<8x1xf32>
    %287 = vector.broadcast %279 : vector<8x1xf32> to vector<8x32xf32>
    %288 = arith.subf %273, %287 : vector<8x32xf32>
    %cst_106 = arith.constant 9.99999974E-6 : f32
    %289 = vector.broadcast %cst_106 : f32 to vector<8x1xf32>
    %290 = arith.addf %286, %289 : vector<8x1xf32>
    %291 = math.rsqrt %290 : vector<8x1xf32>
    %292 = vector.broadcast %291 : vector<8x1xf32> to vector<8x32xf32>
    %293 = arith.mulf %288, %292 : vector<8x32xf32>
    %294 = vector.broadcast %274 : vector<1x32xf32> to vector<8x32xf32>
    %295 = arith.mulf %293, %294 : vector<8x32xf32>
    %296 = vector.broadcast %275 : vector<1x32xf32> to vector<8x32xf32>
    %297 = arith.addf %295, %296 : vector<8x32xf32>
    %c0_107 = arith.constant 0 : index
    %c0_108 = arith.constant 0 : index
    %c0_109 = arith.constant 0 : index
    %298 = vector.load %arg23[%c0_107, %c0_108, %c0_109] : memref<1x8x32xf32, #tpu.memory_space<vmem>>, vector<1x8x32xf32>
    %299 = vector.shape_cast %298 : vector<1x8x32xf32> to vector<8x32xf32>
    %300 = vector.shape_cast %297 : vector<8x32xf32> to vector<1x8x32xf32>
    tpu.vector_store %arg23[%c0_107, %c0_108, %c0_109], %300 {strides = array<i32>} : memref<1x8x32xf32, #tpu.memory_space<vmem>>, vector<1x8x32xf32>,
    return
  }
  func.func @transform_0(%arg0: i32) -> (i32, i32, i32) {
    %c0_i32 = arith.constant 0 : i32
    %c0_i32_0 = arith.constant 0 : i32
    %c0_i32_1 = arith.constant 0 : i32
    return %arg0, %c0_i32, %c0_i32_0 : i32, i32, i32
  }
  func.func @transform_1(%arg0: i32) -> (i32, i32, i32) {
    %c0_i32 = arith.constant 0 : i32
    %c0_i32_0 = arith.constant 0 : i32
    %c0_i32_1 = arith.constant 0 : i32
    return %arg0, %c0_i32, %c0_i32_0 : i32, i32, i32
  }
  func.func @transform_2(%arg0: i32) -> (i32, i32) {
    %c0_i32 = arith.constant 0 : i32
    %c0_i32_0 = arith.constant 0 : i32
    %c0_i32_1 = arith.constant 0 : i32
    return %c0_i32, %c0_i32_0 : i32, i32
  }
  func.func @transform_3(%arg0: i32) -> (i32, i32) {
    %c0_i32 = arith.constant 0 : i32
    %c0_i32_0 = arith.constant 0 : i32
    %c0_i32_1 = arith.constant 0 : i32
    return %c0_i32, %c0_i32_0 : i32, i32
  }
  func.func @transform_4(%arg0: i32) -> (i32, i32) {
    %c0_i32 = arith.constant 0 : i32
    %c0_i32_0 = arith.constant 0 : i32
    %c0_i32_1 = arith.constant 0 : i32
    return %c0_i32, %c0_i32_0 : i32, i32
  }
  func.func @transform_5(%arg0: i32) -> (i32, i32) {
    %c0_i32 = arith.constant 0 : i32
    %c0_i32_0 = arith.constant 0 : i32
    %c0_i32_1 = arith.constant 0 : i32
    return %c0_i32, %c0_i32_0 : i32, i32
  }
  func.func @transform_6(%arg0: i32) -> (i32, i32) {
    %c0_i32 = arith.constant 0 : i32
    %c0_i32_0 = arith.constant 0 : i32
    %c0_i32_1 = arith.constant 0 : i32
    return %c0_i32, %c0_i32_0 : i32, i32
  }
  func.func @transform_7(%arg0: i32) -> (i32, i32) {
    %c0_i32 = arith.constant 0 : i32
    %c0_i32_0 = arith.constant 0 : i32
    %c0_i32_1 = arith.constant 0 : i32
    return %c0_i32, %c0_i32_0 : i32, i32
  }
  func.func @transform_8(%arg0: i32) -> (i32, i32) {
    %c0_i32 = arith.constant 0 : i32
    %c0_i32_0 = arith.constant 0 : i32
    %c0_i32_1 = arith.constant 0 : i32
    return %c0_i32, %c0_i32_0 : i32, i32
  }
  func.func @transform_9(%arg0: i32) -> (i32, i32) {
    %c0_i32 = arith.constant 0 : i32
    %c0_i32_0 = arith.constant 0 : i32
    %c0_i32_1 = arith.constant 0 : i32
    return %c0_i32, %c0_i32_0 : i32, i32
  }
  func.func @transform_10(%arg0: i32) -> (i32, i32) {
    %c0_i32 = arith.constant 0 : i32
    %c0_i32_0 = arith.constant 0 : i32
    %c0_i32_1 = arith.constant 0 : i32
    return %c0_i32, %c0_i32_0 : i32, i32
  }
  func.func @transform_11(%arg0: i32) -> (i32, i32) {
    %c0_i32 = arith.constant 0 : i32
    %c0_i32_0 = arith.constant 0 : i32
    %c0_i32_1 = arith.constant 0 : i32
    return %c0_i32, %c0_i32_0 : i32, i32
  }
  func.func @transform_12(%arg0: i32) -> (i32, i32) {
    %c0_i32 = arith.constant 0 : i32
    %c0_i32_0 = arith.constant 0 : i32
    %c0_i32_1 = arith.constant 0 : i32
    return %c0_i32, %c0_i32_0 : i32, i32
  }
  func.func @transform_13(%arg0: i32) -> (i32, i32) {
    %c0_i32 = arith.constant 0 : i32
    %c0_i32_0 = arith.constant 0 : i32
    %c0_i32_1 = arith.constant 0 : i32
    return %c0_i32, %c0_i32_0 : i32, i32
  }
  func.func @transform_14(%arg0: i32) -> (i32, i32) {
    %c0_i32 = arith.constant 0 : i32
    %c0_i32_0 = arith.constant 0 : i32
    %c0_i32_1 = arith.constant 0 : i32
    return %c0_i32, %c0_i32_0 : i32, i32
  }
  func.func @transform_15(%arg0: i32) -> (i32, i32) {
    %c0_i32 = arith.constant 0 : i32
    %c0_i32_0 = arith.constant 0 : i32
    %c0_i32_1 = arith.constant 0 : i32
    return %c0_i32, %c0_i32_0 : i32, i32
  }
  func.func @transform_16(%arg0: i32) -> (i32, i32) {
    %c0_i32 = arith.constant 0 : i32
    %c0_i32_0 = arith.constant 0 : i32
    %c0_i32_1 = arith.constant 0 : i32
    return %c0_i32, %c0_i32_0 : i32, i32
  }
  func.func @transform_17(%arg0: i32) -> (i32, i32) {
    %c0_i32 = arith.constant 0 : i32
    %c0_i32_0 = arith.constant 0 : i32
    %c0_i32_1 = arith.constant 0 : i32
    return %c0_i32, %c0_i32_0 : i32, i32
  }
  func.func @transform_18(%arg0: i32) -> (i32, i32) {
    %c0_i32 = arith.constant 0 : i32
    %c0_i32_0 = arith.constant 0 : i32
    %c0_i32_1 = arith.constant 0 : i32
    return %c0_i32, %c0_i32_0 : i32, i32
  }
  func.func @transform_19(%arg0: i32) -> (i32, i32) {
    %c0_i32 = arith.constant 0 : i32
    %c0_i32_0 = arith.constant 0 : i32
    %c0_i32_1 = arith.constant 0 : i32
    return %c0_i32, %c0_i32_0 : i32, i32
  }
  func.func @transform_20(%arg0: i32) -> (i32, i32) {
    %c0_i32 = arith.constant 0 : i32
    %c0_i32_0 = arith.constant 0 : i32
    %c0_i32_1 = arith.constant 0 : i32
    return %c0_i32, %c0_i32_0 : i32, i32
  }
  func.func @transform_21(%arg0: i32) -> (i32, i32) {
    %c0_i32 = arith.constant 0 : i32
    %c0_i32_0 = arith.constant 0 : i32
    %c0_i32_1 = arith.constant 0 : i32
    return %c0_i32, %c0_i32_0 : i32, i32
  }
  func.func @transform_22(%arg0: i32) -> (i32, i32, i32) {
    %c0_i32 = arith.constant 0 : i32
    %c0_i32_0 = arith.constant 0 : i32
    %c0_i32_1 = arith.constant 0 : i32
    return %arg0, %c0_i32, %c0_i32_0 : i32, i32, i32
  }
}

module attributes {stable_mosaic.version = 11 : i64} {
  func.func @_decoder_layer_kernel(%arg0: i32, %arg1: memref<1x8x32xf32, #tpu.memory_space<vmem>>, %arg2: memref<1x8x32xf32, #tpu.memory_space<vmem>>, %arg3: memref<32x96xbf16, #tpu.memory_space<vmem>>, %arg4: memref<1x96xf32, #tpu.memory_space<vmem>>, %arg5: memref<32x32xbf16, #tpu.memory_space<vmem>>, %arg6: memref<1x32xf32, #tpu.memory_space<vmem>>, %arg7: memref<1x32xf32, #tpu.memory_space<vmem>>, %arg8: memref<1x32xf32, #tpu.memory_space<vmem>>, %arg9: memref<32x32xbf16, #tpu.memory_space<vmem>>, %arg10: memref<1x32xf32, #tpu.memory_space<vmem>>, %arg11: memref<32x64xbf16, #tpu.memory_space<vmem>>, %arg12: memref<1x64xf32, #tpu.memory_space<vmem>>, %arg13: memref<32x32xbf16, #tpu.memory_space<vmem>>, %arg14: memref<1x32xf32, #tpu.memory_space<vmem>>, %arg15: memref<1x32xf32, #tpu.memory_space<vmem>>, %arg16: memref<1x32xf32, #tpu.memory_space<vmem>>, %arg17: memref<32x64xbf16, #tpu.memory_space<vmem>>, %arg18: memref<1x64xf32, #tpu.memory_space<vmem>>, %arg19: memref<64x32xbf16, #tpu.memory_space<vmem>>, %arg20: memref<1x32xf32, #tpu.memory_space<vmem>>, %arg21: memref<1x32xf32, #tpu.memory_space<vmem>>, %arg22: memref<1x32xf32, #tpu.memory_space<vmem>>, %arg23: memref<1x8x32xf32, #tpu.memory_space<vmem>>) attributes {dimension_semantics = [#tpu.dimension_semantics<parallel>], iteration_bounds = array<i64: 2>, scalar_prefetch = 0 : i64, scratch_operands = 0 : i64, tpu.core_type = #tpu.core_type<tc>, window_params = [{transform_indices = @transform_0, window_bounds = array<i64: 1, 8, 32>}, {transform_indices = @transform_1, window_bounds = array<i64: 1, 8, 32>}, {pipeline_mode = #tpu.pipeline_mode<synchronous>, transform_indices = @transform_2, window_bounds = array<i64: 32, 96>}, {pipeline_mode = #tpu.pipeline_mode<synchronous>, transform_indices = @transform_3, window_bounds = array<i64: 1, 96>}, {pipeline_mode = #tpu.pipeline_mode<synchronous>, transform_indices = @transform_4, window_bounds = array<i64: 32, 32>}, {pipeline_mode = #tpu.pipeline_mode<synchronous>, transform_indices = @transform_5, window_bounds = array<i64: 1, 32>}, {pipeline_mode = #tpu.pipeline_mode<synchronous>, transform_indices = @transform_6, window_bounds = array<i64: 1, 32>}, {pipeline_mode = #tpu.pipeline_mode<synchronous>, transform_indices = @transform_7, window_bounds = array<i64: 1, 32>}, {pipeline_mode = #tpu.pipeline_mode<synchronous>, transform_indices = @transform_8, window_bounds = array<i64: 32, 32>}, {pipeline_mode = #tpu.pipeline_mode<synchronous>, transform_indices = @transform_9, window_bounds = array<i64: 1, 32>}, {pipeline_mode = #tpu.pipeline_mode<synchronous>, transform_indices = @transform_10, window_bounds = array<i64: 32, 64>}, {pipeline_mode = #tpu.pipeline_mode<synchronous>, transform_indices = @transform_11, window_bounds = array<i64: 1, 64>}, {pipeline_mode = #tpu.pipeline_mode<synchronous>, transform_indices = @transform_12, window_bounds = array<i64: 32, 32>}, {pipeline_mode = #tpu.pipeline_mode<synchronous>, transform_indices = @transform_13, window_bounds = array<i64: 1, 32>}, {pipeline_mode = #tpu.pipeline_mode<synchronous>, transform_indices = @transform_14, window_bounds = array<i64: 1, 32>}, {pipeline_mode = #tpu.pipeline_mode<synchronous>, transform_indices = @transform_15, window_bounds = array<i64: 1, 32>}, {pipeline_mode = #tpu.pipeline_mode<synchronous>, transform_indices = @transform_16, window_bounds = array<i64: 32, 64>}, {pipeline_mode = #tpu.pipeline_mode<synchronous>, transform_indices = @transform_17, window_bounds = array<i64: 1, 64>}, {pipeline_mode = #tpu.pipeline_mode<synchronous>, transform_indices = @transform_18, window_bounds = array<i64: 64, 32>}, {pipeline_mode = #tpu.pipeline_mode<synchronous>, transform_indices = @transform_19, window_bounds = array<i64: 1, 32>}, {pipeline_mode = #tpu.pipeline_mode<synchronous>, transform_indices = @transform_20, window_bounds = array<i64: 1, 32>}, {pipeline_mode = #tpu.pipeline_mode<synchronous>, transform_indices = @transform_21, window_bounds = array<i64: 1, 32>}, {transform_indices = @transform_22, window_bounds = array<i64: 1, 8, 32>}]} {
    %c0 = arith.constant 0 : index
    %c0_0 = arith.constant 0 : index
    %c0_1 = arith.constant 0 : index
    %0 = vector.load %arg1[%c0, %c0_0, %c0_1] : memref<1x8x32xf32, #tpu.memory_space<vmem>>, vector<1x8x32xf32>
    %1 = vector.shape_cast %0 : vector<1x8x32xf32> to vector<8x32xf32>
    %c0_2 = arith.constant 0 : index
    %c0_3 = arith.constant 0 : index
    %c0_4 = arith.constant 0 : index
    %2 = vector.load %arg2[%c0_2, %c0_3, %c0_4] : memref<1x8x32xf32, #tpu.memory_space<vmem>>, vector<1x8x32xf32>
    %3 = vector.shape_cast %2 : vector<1x8x32xf32> to vector<8x32xf32>
    %c0_5 = arith.constant 0 : index
    %c0_6 = arith.constant 0 : index
    %4 = vector.load %arg3[%c0_5, %c0_6] : memref<32x96xbf16, #tpu.memory_space<vmem>>, vector<32x96xbf16>
    %5 = arith.truncf %1 : vector<8x32xf32> to vector<8x32xbf16>
    %cst = arith.constant dense<0.000000e+00> : vector<8x96xf32>
    %6 = tpu.matmul %5, %4, %cst {dimension_numbers = #tpu.dot_dimension_numbers<[1], [0], [0], [1], [0, 0, 1, 1], [], []>} : vector<8x32xbf16>, vector<32x96xbf16>, vector<8x96xf32> -> vector<8x96xf32>
    %c0_7 = arith.constant 0 : index
    %c0_8 = arith.constant 0 : index
    %7 = vector.load %arg4[%c0_7, %c0_8] : memref<1x96xf32, #tpu.memory_space<vmem>>, vector<1x96xf32>
    %8 = vector.broadcast %7 : vector<1x96xf32> to vector<8x96xf32>
    %9 = arith.addf %6, %8 : vector<8x96xf32>
    %10 = vector.extract_strided_slice %9 {offsets = [0, 0], sizes = [8, 32], strides = [1, 1]} : vector<8x96xf32> to vector<8x32xf32>
    %11 = vector.extract_strided_slice %9 {offsets = [0, 32], sizes = [8, 32], strides = [1, 1]} : vector<8x96xf32> to vector<8x32xf32>
    %12 = vector.extract_strided_slice %9 {offsets = [0, 64], sizes = [8, 32], strides = [1, 1]} : vector<8x96xf32> to vector<8x32xf32>
    %13 = vector.extract_strided_slice %10 {offsets = [0, 0], sizes = [8, 8], strides = [1, 1]} : vector<8x32xf32> to vector<8x8xf32>
    %14 = arith.truncf %13 : vector<8x8xf32> to vector<8x8xbf16>
    %15 = vector.extract_strided_slice %11 {offsets = [0, 0], sizes = [8, 8], strides = [1, 1]} : vector<8x32xf32> to vector<8x8xf32>
    %16 = arith.truncf %15 : vector<8x8xf32> to vector<8x8xbf16>
    %17 = vector.extract_strided_slice %12 {offsets = [0, 0], sizes = [8, 8], strides = [1, 1]} : vector<8x32xf32> to vector<8x8xf32>
    %18 = arith.truncf %17 : vector<8x8xf32> to vector<8x8xbf16>
    "tpu.trace_start"() <{level = 10 : i32, message = "td,sd->ts"}> : () -> ()
    %cst_9 = arith.constant dense<0.000000e+00> : vector<8x8xf32>
    %19 = tpu.matmul %14, %16, %cst_9 {dimension_numbers = #tpu.dot_dimension_numbers<[1], [1], [0], [0], [0, 0, 1, 0], [], []>} : vector<8x8xbf16>, vector<8x8xbf16>, vector<8x8xf32> -> vector<8x8xf32>
    "tpu.trace_stop"() : () -> ()
    %cst_10 = arith.constant 0.353553385 : f32
    %20 = vector.broadcast %cst_10 : f32 to vector<8x8xf32>
    %21 = arith.mulf %19, %20 : vector<8x8xf32>
    %cst_11 = arith.constant dense<0xFF800000> : vector<8xf32>
    %22 = vector.multi_reduction <maximumf>, %21, %cst_11 [1] : vector<8x8xf32> to vector<8xf32>
    %23 = vector.shape_cast %22 : vector<8xf32> to vector<8x1xf32>
    %24 = vector.broadcast %23 : vector<8x1xf32> to vector<8x8xf32>
    %25 = arith.subf %21, %24 : vector<8x8xf32>
    %26 = math.exp %25 : vector<8x8xf32>
    %cst_12 = arith.constant dense<0.000000e+00> : vector<8xf32>
    %27 = vector.multi_reduction <add>, %26, %cst_12 [1] : vector<8x8xf32> to vector<8xf32>
    %28 = vector.shape_cast %27 : vector<8xf32> to vector<8x1xf32>
    %29 = tpu.reciprocal %28 {approx = true} : vector<8x1xf32> -> vector<8x1xf32>
    %30 = vector.broadcast %29 : vector<8x1xf32> to vector<8x8xf32>
    %31 = arith.mulf %26, %30 : vector<8x8xf32>
    %32 = arith.truncf %31 : vector<8x8xf32> to vector<8x8xbf16>
    %cst_13 = arith.constant dense<0.000000e+00> : vector<8x8xf32>
    %33 = tpu.matmul %32, %18, %cst_13 {dimension_numbers = #tpu.dot_dimension_numbers<[1], [0], [0], [1], [0, 0, 1, 1], [], []>} : vector<8x8xbf16>, vector<8x8xbf16>, vector<8x8xf32> -> vector<8x8xf32>
    %34 = vector.extract_strided_slice %10 {offsets = [0, 8], sizes = [8, 8], strides = [1, 1]} : vector<8x32xf32> to vector<8x8xf32>
    %35 = arith.truncf %34 : vector<8x8xf32> to vector<8x8xbf16>
    %36 = vector.extract_strided_slice %11 {offsets = [0, 8], sizes = [8, 8], strides = [1, 1]} : vector<8x32xf32> to vector<8x8xf32>
    %37 = arith.truncf %36 : vector<8x8xf32> to vector<8x8xbf16>
    %38 = vector.extract_strided_slice %12 {offsets = [0, 8], sizes = [8, 8], strides = [1, 1]} : vector<8x32xf32> to vector<8x8xf32>
    %39 = arith.truncf %38 : vector<8x8xf32> to vector<8x8xbf16>
    "tpu.trace_start"() <{level = 10 : i32, message = "td,sd->ts"}> : () -> ()
    %cst_14 = arith.constant dense<0.000000e+00> : vector<8x8xf32>
    %40 = tpu.matmul %35, %37, %cst_14 {dimension_numbers = #tpu.dot_dimension_numbers<[1], [1], [0], [0], [0, 0, 1, 0], [], []>} : vector<8x8xbf16>, vector<8x8xbf16>, vector<8x8xf32> -> vector<8x8xf32>
    "tpu.trace_stop"() : () -> ()
    %cst_15 = arith.constant 0.353553385 : f32
    %41 = vector.broadcast %cst_15 : f32 to vector<8x8xf32>
    %42 = arith.mulf %40, %41 : vector<8x8xf32>
    %cst_16 = arith.constant dense<0xFF800000> : vector<8xf32>
    %43 = vector.multi_reduction <maximumf>, %42, %cst_16 [1] : vector<8x8xf32> to vector<8xf32>
    %44 = vector.shape_cast %43 : vector<8xf32> to vector<8x1xf32>
    %45 = vector.broadcast %44 : vector<8x1xf32> to vector<8x8xf32>
    %46 = arith.subf %42, %45 : vector<8x8xf32>
    %47 = math.exp %46 : vector<8x8xf32>
    %cst_17 = arith.constant dense<0.000000e+00> : vector<8xf32>
    %48 = vector.multi_reduction <add>, %47, %cst_17 [1] : vector<8x8xf32> to vector<8xf32>
    %49 = vector.shape_cast %48 : vector<8xf32> to vector<8x1xf32>
    %50 = tpu.reciprocal %49 {approx = true} : vector<8x1xf32> -> vector<8x1xf32>
    %51 = vector.broadcast %50 : vector<8x1xf32> to vector<8x8xf32>
    %52 = arith.mulf %47, %51 : vector<8x8xf32>
    %53 = arith.truncf %52 : vector<8x8xf32> to vector<8x8xbf16>
    %cst_18 = arith.constant dense<0.000000e+00> : vector<8x8xf32>
    %54 = tpu.matmul %53, %39, %cst_18 {dimension_numbers = #tpu.dot_dimension_numbers<[1], [0], [0], [1], [0, 0, 1, 1], [], []>} : vector<8x8xbf16>, vector<8x8xbf16>, vector<8x8xf32> -> vector<8x8xf32>
    %55 = vector.extract_strided_slice %10 {offsets = [0, 16], sizes = [8, 8], strides = [1, 1]} : vector<8x32xf32> to vector<8x8xf32>
    %56 = arith.truncf %55 : vector<8x8xf32> to vector<8x8xbf16>
    %57 = vector.extract_strided_slice %11 {offsets = [0, 16], sizes = [8, 8], strides = [1, 1]} : vector<8x32xf32> to vector<8x8xf32>
    %58 = arith.truncf %57 : vector<8x8xf32> to vector<8x8xbf16>
    %59 = vector.extract_strided_slice %12 {offsets = [0, 16], sizes = [8, 8], strides = [1, 1]} : vector<8x32xf32> to vector<8x8xf32>
    %60 = arith.truncf %59 : vector<8x8xf32> to vector<8x8xbf16>
    "tpu.trace_start"() <{level = 10 : i32, message = "td,sd->ts"}> : () -> ()
    %cst_19 = arith.constant dense<0.000000e+00> : vector<8x8xf32>
    %61 = tpu.matmul %56, %58, %cst_19 {dimension_numbers = #tpu.dot_dimension_numbers<[1], [1], [0], [0], [0, 0, 1, 0], [], []>} : vector<8x8xbf16>, vector<8x8xbf16>, vector<8x8xf32> -> vector<8x8xf32>
    "tpu.trace_stop"() : () -> ()
    %cst_20 = arith.constant 0.353553385 : f32
    %62 = vector.broadcast %cst_20 : f32 to vector<8x8xf32>
    %63 = arith.mulf %61, %62 : vector<8x8xf32>
    %cst_21 = arith.constant dense<0xFF800000> : vector<8xf32>
    %64 = vector.multi_reduction <maximumf>, %63, %cst_21 [1] : vector<8x8xf32> to vector<8xf32>
    %65 = vector.shape_cast %64 : vector<8xf32> to vector<8x1xf32>
    %66 = vector.broadcast %65 : vector<8x1xf32> to vector<8x8xf32>
    %67 = arith.subf %63, %66 : vector<8x8xf32>
    %68 = math.exp %67 : vector<8x8xf32>
    %cst_22 = arith.constant dense<0.000000e+00> : vector<8xf32>
    %69 = vector.multi_reduction <add>, %68, %cst_22 [1] : vector<8x8xf32> to vector<8xf32>
    %70 = vector.shape_cast %69 : vector<8xf32> to vector<8x1xf32>
    %71 = tpu.reciprocal %70 {approx = true} : vector<8x1xf32> -> vector<8x1xf32>
    %72 = vector.broadcast %71 : vector<8x1xf32> to vector<8x8xf32>
    %73 = arith.mulf %68, %72 : vector<8x8xf32>
    %74 = arith.truncf %73 : vector<8x8xf32> to vector<8x8xbf16>
    %cst_23 = arith.constant dense<0.000000e+00> : vector<8x8xf32>
    %75 = tpu.matmul %74, %60, %cst_23 {dimension_numbers = #tpu.dot_dimension_numbers<[1], [0], [0], [1], [0, 0, 1, 1], [], []>} : vector<8x8xbf16>, vector<8x8xbf16>, vector<8x8xf32> -> vector<8x8xf32>
    %76 = vector.extract_strided_slice %10 {offsets = [0, 24], sizes = [8, 8], strides = [1, 1]} : vector<8x32xf32> to vector<8x8xf32>
    %77 = arith.truncf %76 : vector<8x8xf32> to vector<8x8xbf16>
    %78 = vector.extract_strided_slice %11 {offsets = [0, 24], sizes = [8, 8], strides = [1, 1]} : vector<8x32xf32> to vector<8x8xf32>
    %79 = arith.truncf %78 : vector<8x8xf32> to vector<8x8xbf16>
    %80 = vector.extract_strided_slice %12 {offsets = [0, 24], sizes = [8, 8], strides = [1, 1]} : vector<8x32xf32> to vector<8x8xf32>
    %81 = arith.truncf %80 : vector<8x8xf32> to vector<8x8xbf16>
    "tpu.trace_start"() <{level = 10 : i32, message = "td,sd->ts"}> : () -> ()
    %cst_24 = arith.constant dense<0.000000e+00> : vector<8x8xf32>
    %82 = tpu.matmul %77, %79, %cst_24 {dimension_numbers = #tpu.dot_dimension_numbers<[1], [1], [0], [0], [0, 0, 1, 0], [], []>} : vector<8x8xbf16>, vector<8x8xbf16>, vector<8x8xf32> -> vector<8x8xf32>
    "tpu.trace_stop"() : () -> ()
    %cst_25 = arith.constant 0.353553385 : f32
    %83 = vector.broadcast %cst_25 : f32 to vector<8x8xf32>
    %84 = arith.mulf %82, %83 : vector<8x8xf32>
    %cst_26 = arith.constant dense<0xFF800000> : vector<8xf32>
    %85 = vector.multi_reduction <maximumf>, %84, %cst_26 [1] : vector<8x8xf32> to vector<8xf32>
    %86 = vector.shape_cast %85 : vector<8xf32> to vector<8x1xf32>
    %87 = vector.broadcast %86 : vector<8x1xf32> to vector<8x8xf32>
    %88 = arith.subf %84, %87 : vector<8x8xf32>
    %89 = math.exp %88 : vector<8x8xf32>
    %cst_27 = arith.constant dense<0.000000e+00> : vector<8xf32>
    %90 = vector.multi_reduction <add>, %89, %cst_27 [1] : vector<8x8xf32> to vector<8xf32>
    %91 = vector.shape_cast %90 : vector<8xf32> to vector<8x1xf32>
    %92 = tpu.reciprocal %91 {approx = true} : vector<8x1xf32> -> vector<8x1xf32>
    %93 = vector.broadcast %92 : vector<8x1xf32> to vector<8x8xf32>
    %94 = arith.mulf %89, %93 : vector<8x8xf32>
    %95 = arith.truncf %94 : vector<8x8xf32> to vector<8x8xbf16>
    %cst_28 = arith.constant dense<0.000000e+00> : vector<8x8xf32>
    %96 = tpu.matmul %95, %81, %cst_28 {dimension_numbers = #tpu.dot_dimension_numbers<[1], [0], [0], [1], [0, 0, 1, 1], [], []>} : vector<8x8xbf16>, vector<8x8xbf16>, vector<8x8xf32> -> vector<8x8xf32>
    %97 = tpu.concatenate %33, %54, %75, %96 in 1 : vector<8x8xf32>, vector<8x8xf32>, vector<8x8xf32>, vector<8x8xf32> -> vector<8x32xf32>
    %c0_29 = arith.constant 0 : index
    %c0_30 = arith.constant 0 : index
    %98 = vector.load %arg5[%c0_29, %c0_30] : memref<32x32xbf16, #tpu.memory_space<vmem>>, vector<32x32xbf16>
    %99 = arith.truncf %97 : vector<8x32xf32> to vector<8x32xbf16>
    %cst_31 = arith.constant dense<0.000000e+00> : vector<8x32xf32>
    %100 = tpu.matmul %99, %98, %cst_31 {dimension_numbers = #tpu.dot_dimension_numbers<[1], [0], [0], [1], [0, 0, 1, 1], [], []>} : vector<8x32xbf16>, vector<32x32xbf16>, vector<8x32xf32> -> vector<8x32xf32>
    %c0_32 = arith.constant 0 : index
    %c0_33 = arith.constant 0 : index
    %101 = vector.load %arg6[%c0_32, %c0_33] : memref<1x32xf32, #tpu.memory_space<vmem>>, vector<1x32xf32>
    %102 = vector.broadcast %101 : vector<1x32xf32> to vector<8x32xf32>
    %103 = arith.addf %100, %102 : vector<8x32xf32>
    %104 = arith.addf %103, %1 : vector<8x32xf32>
    %c0_34 = arith.constant 0 : index
    %c0_35 = arith.constant 0 : index
    %105 = vector.load %arg7[%c0_34, %c0_35] : memref<1x32xf32, #tpu.memory_space<vmem>>, vector<1x32xf32>
    %c0_36 = arith.constant 0 : index
    %c0_37 = arith.constant 0 : index
    %106 = vector.load %arg8[%c0_36, %c0_37] : memref<1x32xf32, #tpu.memory_space<vmem>>, vector<1x32xf32>
    %cst_38 = arith.constant dense<0.000000e+00> : vector<8xf32>
    %107 = vector.multi_reduction <add>, %104, %cst_38 [1] : vector<8x32xf32> to vector<8xf32>
    %108 = vector.shape_cast %107 : vector<8xf32> to vector<8x1xf32>
    %cst_39 = arith.constant 3.200000e+01 : f32
    %109 = vector.broadcast %cst_39 : f32 to vector<8x1xf32>
    %110 = arith.divf %108, %109 : vector<8x1xf32>
    %111 = vector.broadcast %110 : vector<8x1xf32> to vector<8x32xf32>
    %112 = arith.subf %104, %111 : vector<8x32xf32>
    %113 = arith.mulf %112, %112 : vector<8x32xf32>
    %cst_40 = arith.constant dense<0.000000e+00> : vector<8xf32>
    %114 = vector.multi_reduction <add>, %113, %cst_40 [1] : vector<8x32xf32> to vector<8xf32>
    %115 = vector.shape_cast %114 : vector<8xf32> to vector<8x1xf32>
    %cst_41 = arith.constant 3.200000e+01 : f32
    %116 = vector.broadcast %cst_41 : f32 to vector<8x1xf32>
    %117 = arith.divf %115, %116 : vector<8x1xf32>
    %118 = vector.broadcast %110 : vector<8x1xf32> to vector<8x32xf32>
    %119 = arith.subf %104, %118 : vector<8x32xf32>
    %cst_42 = arith.constant 9.99999974E-6 : f32
    %120 = vector.broadcast %cst_42 : f32 to vector<8x1xf32>
    %121 = arith.addf %117, %120 : vector<8x1xf32>
    %122 = math.rsqrt %121 : vector<8x1xf32>
    %123 = vector.broadcast %122 : vector<8x1xf32> to vector<8x32xf32>
    %124 = arith.mulf %119, %123 : vector<8x32xf32>
    %125 = vector.broadcast %105 : vector<1x32xf32> to vector<8x32xf32>
    %126 = arith.mulf %124, %125 : vector<8x32xf32>
    %127 = vector.broadcast %106 : vector<1x32xf32> to vector<8x32xf32>
    %128 = arith.addf %126, %127 : vector<8x32xf32>
    %c0_43 = arith.constant 0 : index
    %c0_44 = arith.constant 0 : index
    %129 = vector.load %arg9[%c0_43, %c0_44] : memref<32x32xbf16, #tpu.memory_space<vmem>>, vector<32x32xbf16>
    %130 = arith.truncf %128 : vector<8x32xf32> to vector<8x32xbf16>
    %cst_45 = arith.constant dense<0.000000e+00> : vector<8x32xf32>
    %131 = tpu.matmul %130, %129, %cst_45 {dimension_numbers = #tpu.dot_dimension_numbers<[1], [0], [0], [1], [0, 0, 1, 1], [], []>} : vector<8x32xbf16>, vector<32x32xbf16>, vector<8x32xf32> -> vector<8x32xf32>
    %c0_46 = arith.constant 0 : index
    %c0_47 = arith.constant 0 : index
    %132 = vector.load %arg10[%c0_46, %c0_47] : memref<1x32xf32, #tpu.memory_space<vmem>>, vector<1x32xf32>
    %133 = vector.broadcast %132 : vector<1x32xf32> to vector<8x32xf32>
    %134 = arith.addf %131, %133 : vector<8x32xf32>
    %c0_48 = arith.constant 0 : index
    %c0_49 = arith.constant 0 : index
    %135 = vector.load %arg11[%c0_48, %c0_49] : memref<32x64xbf16, #tpu.memory_space<vmem>>, vector<32x64xbf16>
    %136 = arith.truncf %3 : vector<8x32xf32> to vector<8x32xbf16>
    %cst_50 = arith.constant dense<0.000000e+00> : vector<8x64xf32>
    %137 = tpu.matmul %136, %135, %cst_50 {dimension_numbers = #tpu.dot_dimension_numbers<[1], [0], [0], [1], [0, 0, 1, 1], [], []>} : vector<8x32xbf16>, vector<32x64xbf16>, vector<8x64xf32> -> vector<8x64xf32>
    %c0_51 = arith.constant 0 : index
    %c0_52 = arith.constant 0 : index
    %138 = vector.load %arg12[%c0_51, %c0_52] : memref<1x64xf32, #tpu.memory_space<vmem>>, vector<1x64xf32>
    %139 = vector.broadcast %138 : vector<1x64xf32> to vector<8x64xf32>
    %140 = arith.addf %137, %139 : vector<8x64xf32>
    %141 = vector.extract_strided_slice %140 {offsets = [0, 0], sizes = [8, 32], strides = [1, 1]} : vector<8x64xf32> to vector<8x32xf32>
    %142 = vector.extract_strided_slice %140 {offsets = [0, 32], sizes = [8, 32], strides = [1, 1]} : vector<8x64xf32> to vector<8x32xf32>
    %143 = vector.extract_strided_slice %134 {offsets = [0, 0], sizes = [8, 8], strides = [1, 1]} : vector<8x32xf32> to vector<8x8xf32>
    %144 = arith.truncf %143 : vector<8x8xf32> to vector<8x8xbf16>
    %145 = vector.extract_strided_slice %141 {offsets = [0, 0], sizes = [8, 8], strides = [1, 1]} : vector<8x32xf32> to vector<8x8xf32>
    %146 = arith.truncf %145 : vector<8x8xf32> to vector<8x8xbf16>
    %147 = vector.extract_strided_slice %142 {offsets = [0, 0], sizes = [8, 8], strides = [1, 1]} : vector<8x32xf32> to vector<8x8xf32>
    %148 = arith.truncf %147 : vector<8x8xf32> to vector<8x8xbf16>
    "tpu.trace_start"() <{level = 10 : i32, message = "td,sd->ts"}> : () -> ()
    %cst_53 = arith.constant dense<0.000000e+00> : vector<8x8xf32>
    %149 = tpu.matmul %144, %146, %cst_53 {dimension_numbers = #tpu.dot_dimension_numbers<[1], [1], [0], [0], [0, 0, 1, 0], [], []>} : vector<8x8xbf16>, vector<8x8xbf16>, vector<8x8xf32> -> vector<8x8xf32>
    "tpu.trace_stop"() : () -> ()
    %cst_54 = arith.constant 0.353553385 : f32
    %150 = vector.broadcast %cst_54 : f32 to vector<8x8xf32>
    %151 = arith.mulf %149, %150 : vector<8x8xf32>
    %cst_55 = arith.constant dense<0xFF800000> : vector<8xf32>
    %152 = vector.multi_reduction <maximumf>, %151, %cst_55 [1] : vector<8x8xf32> to vector<8xf32>
    %153 = vector.shape_cast %152 : vector<8xf32> to vector<8x1xf32>
    %154 = vector.broadcast %153 : vector<8x1xf32> to vector<8x8xf32>
    %155 = arith.subf %151, %154 : vector<8x8xf32>
    %156 = math.exp %155 : vector<8x8xf32>
    %cst_56 = arith.constant dense<0.000000e+00> : vector<8xf32>
    %157 = vector.multi_reduction <add>, %156, %cst_56 [1] : vector<8x8xf32> to vector<8xf32>
    %158 = vector.shape_cast %157 : vector<8xf32> to vector<8x1xf32>
    %159 = tpu.reciprocal %158 {approx = true} : vector<8x1xf32> -> vector<8x1xf32>
    %160 = vector.broadcast %159 : vector<8x1xf32> to vector<8x8xf32>
    %161 = arith.mulf %156, %160 : vector<8x8xf32>
    %162 = arith.truncf %161 : vector<8x8xf32> to vector<8x8xbf16>
    %cst_57 = arith.constant dense<0.000000e+00> : vector<8x8xf32>
    %163 = tpu.matmul %162, %148, %cst_57 {dimension_numbers = #tpu.dot_dimension_numbers<[1], [0], [0], [1], [0, 0, 1, 1], [], []>} : vector<8x8xbf16>, vector<8x8xbf16>, vector<8x8xf32> -> vector<8x8xf32>
    %164 = vector.extract_strided_slice %134 {offsets = [0, 8], sizes = [8, 8], strides = [1, 1]} : vector<8x32xf32> to vector<8x8xf32>
    %165 = arith.truncf %164 : vector<8x8xf32> to vector<8x8xbf16>
    %166 = vector.extract_strided_slice %141 {offsets = [0, 8], sizes = [8, 8], strides = [1, 1]} : vector<8x32xf32> to vector<8x8xf32>
    %167 = arith.truncf %166 : vector<8x8xf32> to vector<8x8xbf16>
    %168 = vector.extract_strided_slice %142 {offsets = [0, 8], sizes = [8, 8], strides = [1, 1]} : vector<8x32xf32> to vector<8x8xf32>
    %169 = arith.truncf %168 : vector<8x8xf32> to vector<8x8xbf16>
    "tpu.trace_start"() <{level = 10 : i32, message = "td,sd->ts"}> : () -> ()
    %cst_58 = arith.constant dense<0.000000e+00> : vector<8x8xf32>
    %170 = tpu.matmul %165, %167, %cst_58 {dimension_numbers = #tpu.dot_dimension_numbers<[1], [1], [0], [0], [0, 0, 1, 0], [], []>} : vector<8x8xbf16>, vector<8x8xbf16>, vector<8x8xf32> -> vector<8x8xf32>
    "tpu.trace_stop"() : () -> ()
    %cst_59 = arith.constant 0.353553385 : f32
    %171 = vector.broadcast %cst_59 : f32 to vector<8x8xf32>
    %172 = arith.mulf %170, %171 : vector<8x8xf32>
    %cst_60 = arith.constant dense<0xFF800000> : vector<8xf32>
    %173 = vector.multi_reduction <maximumf>, %172, %cst_60 [1] : vector<8x8xf32> to vector<8xf32>
    %174 = vector.shape_cast %173 : vector<8xf32> to vector<8x1xf32>
    %175 = vector.broadcast %174 : vector<8x1xf32> to vector<8x8xf32>
    %176 = arith.subf %172, %175 : vector<8x8xf32>
    %177 = math.exp %176 : vector<8x8xf32>
    %cst_61 = arith.constant dense<0.000000e+00> : vector<8xf32>
    %178 = vector.multi_reduction <add>, %177, %cst_61 [1] : vector<8x8xf32> to vector<8xf32>
    %179 = vector.shape_cast %178 : vector<8xf32> to vector<8x1xf32>
    %180 = tpu.reciprocal %179 {approx = true} : vector<8x1xf32> -> vector<8x1xf32>
    %181 = vector.broadcast %180 : vector<8x1xf32> to vector<8x8xf32>
    %182 = arith.mulf %177, %181 : vector<8x8xf32>
    %183 = arith.truncf %182 : vector<8x8xf32> to vector<8x8xbf16>
    %cst_62 = arith.constant dense<0.000000e+00> : vector<8x8xf32>
    %184 = tpu.matmul %183, %169, %cst_62 {dimension_numbers = #tpu.dot_dimension_numbers<[1], [0], [0], [1], [0, 0, 1, 1], [], []>} : vector<8x8xbf16>, vector<8x8xbf16>, vector<8x8xf32> -> vector<8x8xf32>
    %185 = vector.extract_strided_slice %134 {offsets = [0, 16], sizes = [8, 8], strides = [1, 1]} : vector<8x32xf32> to vector<8x8xf32>
    %186 = arith.truncf %185 : vector<8x8xf32> to vector<8x8xbf16>
    %187 = vector.extract_strided_slice %141 {offsets = [0, 16], sizes = [8, 8], strides = [1, 1]} : vector<8x32xf32> to vector<8x8xf32>
    %188 = arith.truncf %187 : vector<8x8xf32> to vector<8x8xbf16>
    %189 = vector.extract_strided_slice %142 {offsets = [0, 16], sizes = [8, 8], strides = [1, 1]} : vector<8x32xf32> to vector<8x8xf32>
    %190 = arith.truncf %189 : vector<8x8xf32> to vector<8x8xbf16>
    "tpu.trace_start"() <{level = 10 : i32, message = "td,sd->ts"}> : () -> ()
    %cst_63 = arith.constant dense<0.000000e+00> : vector<8x8xf32>
    %191 = tpu.matmul %186, %188, %cst_63 {dimension_numbers = #tpu.dot_dimension_numbers<[1], [1], [0], [0], [0, 0, 1, 0], [], []>} : vector<8x8xbf16>, vector<8x8xbf16>, vector<8x8xf32> -> vector<8x8xf32>
    "tpu.trace_stop"() : () -> ()
    %cst_64 = arith.constant 0.353553385 : f32
    %192 = vector.broadcast %cst_64 : f32 to vector<8x8xf32>
    %193 = arith.mulf %191, %192 : vector<8x8xf32>
    %cst_65 = arith.constant dense<0xFF800000> : vector<8xf32>
    %194 = vector.multi_reduction <maximumf>, %193, %cst_65 [1] : vector<8x8xf32> to vector<8xf32>
    %195 = vector.shape_cast %194 : vector<8xf32> to vector<8x1xf32>
    %196 = vector.broadcast %195 : vector<8x1xf32> to vector<8x8xf32>
    %197 = arith.subf %193, %196 : vector<8x8xf32>
    %198 = math.exp %197 : vector<8x8xf32>
    %cst_66 = arith.constant dense<0.000000e+00> : vector<8xf32>
    %199 = vector.multi_reduction <add>, %198, %cst_66 [1] : vector<8x8xf32> to vector<8xf32>
    %200 = vector.shape_cast %199 : vector<8xf32> to vector<8x1xf32>
    %201 = tpu.reciprocal %200 {approx = true} : vector<8x1xf32> -> vector<8x1xf32>
    %202 = vector.broadcast %201 : vector<8x1xf32> to vector<8x8xf32>
    %203 = arith.mulf %198, %202 : vector<8x8xf32>
    %204 = arith.truncf %203 : vector<8x8xf32> to vector<8x8xbf16>
    %cst_67 = arith.constant dense<0.000000e+00> : vector<8x8xf32>
    %205 = tpu.matmul %204, %190, %cst_67 {dimension_numbers = #tpu.dot_dimension_numbers<[1], [0], [0], [1], [0, 0, 1, 1], [], []>} : vector<8x8xbf16>, vector<8x8xbf16>, vector<8x8xf32> -> vector<8x8xf32>
    %206 = vector.extract_strided_slice %134 {offsets = [0, 24], sizes = [8, 8], strides = [1, 1]} : vector<8x32xf32> to vector<8x8xf32>
    %207 = arith.truncf %206 : vector<8x8xf32> to vector<8x8xbf16>
    %208 = vector.extract_strided_slice %141 {offsets = [0, 24], sizes = [8, 8], strides = [1, 1]} : vector<8x32xf32> to vector<8x8xf32>
    %209 = arith.truncf %208 : vector<8x8xf32> to vector<8x8xbf16>
    %210 = vector.extract_strided_slice %142 {offsets = [0, 24], sizes = [8, 8], strides = [1, 1]} : vector<8x32xf32> to vector<8x8xf32>
    %211 = arith.truncf %210 : vector<8x8xf32> to vector<8x8xbf16>
    "tpu.trace_start"() <{level = 10 : i32, message = "td,sd->ts"}> : () -> ()
    %cst_68 = arith.constant dense<0.000000e+00> : vector<8x8xf32>
    %212 = tpu.matmul %207, %209, %cst_68 {dimension_numbers = #tpu.dot_dimension_numbers<[1], [1], [0], [0], [0, 0, 1, 0], [], []>} : vector<8x8xbf16>, vector<8x8xbf16>, vector<8x8xf32> -> vector<8x8xf32>
    "tpu.trace_stop"() : () -> ()
    %cst_69 = arith.constant 0.353553385 : f32
    %213 = vector.broadcast %cst_69 : f32 to vector<8x8xf32>
    %214 = arith.mulf %212, %213 : vector<8x8xf32>
    %cst_70 = arith.constant dense<0xFF800000> : vector<8xf32>
    %215 = vector.multi_reduction <maximumf>, %214, %cst_70 [1] : vector<8x8xf32> to vector<8xf32>
    %216 = vector.shape_cast %215 : vector<8xf32> to vector<8x1xf32>
    %217 = vector.broadcast %216 : vector<8x1xf32> to vector<8x8xf32>
    %218 = arith.subf %214, %217 : vector<8x8xf32>
    %219 = math.exp %218 : vector<8x8xf32>
    %cst_71 = arith.constant dense<0.000000e+00> : vector<8xf32>
    %220 = vector.multi_reduction <add>, %219, %cst_71 [1] : vector<8x8xf32> to vector<8xf32>
    %221 = vector.shape_cast %220 : vector<8xf32> to vector<8x1xf32>
    %222 = tpu.reciprocal %221 {approx = true} : vector<8x1xf32> -> vector<8x1xf32>
    %223 = vector.broadcast %222 : vector<8x1xf32> to vector<8x8xf32>
    %224 = arith.mulf %219, %223 : vector<8x8xf32>
    %225 = arith.truncf %224 : vector<8x8xf32> to vector<8x8xbf16>
    %cst_72 = arith.constant dense<0.000000e+00> : vector<8x8xf32>
    %226 = tpu.matmul %225, %211, %cst_72 {dimension_numbers = #tpu.dot_dimension_numbers<[1], [0], [0], [1], [0, 0, 1, 1], [], []>} : vector<8x8xbf16>, vector<8x8xbf16>, vector<8x8xf32> -> vector<8x8xf32>
    %227 = tpu.concatenate %163, %184, %205, %226 in 1 : vector<8x8xf32>, vector<8x8xf32>, vector<8x8xf32>, vector<8x8xf32> -> vector<8x32xf32>
    %c0_73 = arith.constant 0 : index
    %c0_74 = arith.constant 0 : index
    %228 = vector.load %arg13[%c0_73, %c0_74] : memref<32x32xbf16, #tpu.memory_space<vmem>>, vector<32x32xbf16>
    %229 = arith.truncf %227 : vector<8x32xf32> to vector<8x32xbf16>
    %cst_75 = arith.constant dense<0.000000e+00> : vector<8x32xf32>
    %230 = tpu.matmul %229, %228, %cst_75 {dimension_numbers = #tpu.dot_dimension_numbers<[1], [0], [0], [1], [0, 0, 1, 1], [], []>} : vector<8x32xbf16>, vector<32x32xbf16>, vector<8x32xf32> -> vector<8x32xf32>
    %c0_76 = arith.constant 0 : index
    %c0_77 = arith.constant 0 : index
    %231 = vector.load %arg14[%c0_76, %c0_77] : memref<1x32xf32, #tpu.memory_space<vmem>>, vector<1x32xf32>
    %232 = vector.broadcast %231 : vector<1x32xf32> to vector<8x32xf32>
    %233 = arith.addf %230, %232 : vector<8x32xf32>
    %234 = arith.addf %233, %128 : vector<8x32xf32>
    %c0_78 = arith.constant 0 : index
    %c0_79 = arith.constant 0 : index
    %235 = vector.load %arg15[%c0_78, %c0_79] : memref<1x32xf32, #tpu.memory_space<vmem>>, vector<1x32xf32>
    %c0_80 = arith.constant 0 : index
    %c0_81 = arith.constant 0 : index
    %236 = vector.load %arg16[%c0_80, %c0_81] : memref<1x32xf32, #tpu.memory_space<vmem>>, vector<1x32xf32>
    %cst_82 = arith.constant dense<0.000000e+00> : vector<8xf32>
    %237 = vector.multi_reduction <add>, %234, %cst_82 [1] : vector<8x32xf32> to vector<8xf32>
    %238 = vector.shape_cast %237 : vector<8xf32> to vector<8x1xf32>
    %cst_83 = arith.constant 3.200000e+01 : f32
    %239 = vector.broadcast %cst_83 : f32 to vector<8x1xf32>
    %240 = arith.divf %238, %239 : vector<8x1xf32>
    %241 = vector.broadcast %240 : vector<8x1xf32> to vector<8x32xf32>
    %242 = arith.subf %234, %241 : vector<8x32xf32>
    %243 = arith.mulf %242, %242 : vector<8x32xf32>
    %cst_84 = arith.constant dense<0.000000e+00> : vector<8xf32>
    %244 = vector.multi_reduction <add>, %243, %cst_84 [1] : vector<8x32xf32> to vector<8xf32>
    %245 = vector.shape_cast %244 : vector<8xf32> to vector<8x1xf32>
    %cst_85 = arith.constant 3.200000e+01 : f32
    %246 = vector.broadcast %cst_85 : f32 to vector<8x1xf32>
    %247 = arith.divf %245, %246 : vector<8x1xf32>
    %248 = vector.broadcast %240 : vector<8x1xf32> to vector<8x32xf32>
    %249 = arith.subf %234, %248 : vector<8x32xf32>
    %cst_86 = arith.constant 9.99999974E-6 : f32
    %250 = vector.broadcast %cst_86 : f32 to vector<8x1xf32>
    %251 = arith.addf %247, %250 : vector<8x1xf32>
    %252 = math.rsqrt %251 : vector<8x1xf32>
    %253 = vector.broadcast %252 : vector<8x1xf32> to vector<8x32xf32>
    %254 = arith.mulf %249, %253 : vector<8x32xf32>
    %255 = vector.broadcast %235 : vector<1x32xf32> to vector<8x32xf32>
    %256 = arith.mulf %254, %255 : vector<8x32xf32>
    %257 = vector.broadcast %236 : vector<1x32xf32> to vector<8x32xf32>
    %258 = arith.addf %256, %257 : vector<8x32xf32>
    %c0_87 = arith.constant 0 : index
    %c0_88 = arith.constant 0 : index
    %259 = vector.load %arg17[%c0_87, %c0_88] : memref<32x64xbf16, #tpu.memory_space<vmem>>, vector<32x64xbf16>
    %260 = arith.truncf %258 : vector<8x32xf32> to vector<8x32xbf16>
    %cst_89 = arith.constant dense<0.000000e+00> : vector<8x64xf32>
    %261 = tpu.matmul %260, %259, %cst_89 {dimension_numbers = #tpu.dot_dimension_numbers<[1], [0], [0], [1], [0, 0, 1, 1], [], []>} : vector<8x32xbf16>, vector<32x64xbf16>, vector<8x64xf32> -> vector<8x64xf32>
    %c0_90 = arith.constant 0 : index
    %c0_91 = arith.constant 0 : index
    %262 = vector.load %arg18[%c0_90, %c0_91] : memref<1x64xf32, #tpu.memory_space<vmem>>, vector<1x64xf32>
    %263 = vector.broadcast %262 : vector<1x64xf32> to vector<8x64xf32>
    %264 = arith.addf %261, %263 : vector<8x64xf32>
    %cst_92 = arith.constant 0.000000e+00 : f32
    %265 = vector.broadcast %cst_92 : f32 to vector<8x64xf32>
    %266 = arith.maximumf %264, %265 : vector<8x64xf32>
    %c0_93 = arith.constant 0 : index
    %c0_94 = arith.constant 0 : index
    %267 = vector.load %arg19[%c0_93, %c0_94] : memref<64x32xbf16, #tpu.memory_space<vmem>>, vector<64x32xbf16>
    %268 = arith.truncf %266 : vector<8x64xf32> to vector<8x64xbf16>
    %cst_95 = arith.constant dense<0.000000e+00> : vector<8x32xf32>
    %269 = tpu.matmul %268, %267, %cst_95 {dimension_numbers = #tpu.dot_dimension_numbers<[1], [0], [0], [1], [0, 0, 1, 1], [], []>} : vector<8x64xbf16>, vector<64x32xbf16>, vector<8x32xf32> -> vector<8x32xf32>
    %c0_96 = arith.constant 0 : index
    %c0_97 = arith.constant 0 : index
    %270 = vector.load %arg20[%c0_96, %c0_97] : memref<1x32xf32, #tpu.memory_space<vmem>>, vector<1x32xf32>
    %271 = vector.broadcast %270 : vector<1x32xf32> to vector<8x32xf32>
    %272 = arith.addf %269, %271 : vector<8x32xf32>
    %273 = arith.addf %272, %258 : vector<8x32xf32>
    %c0_98 = arith.constant 0 : index
    %c0_99 = arith.constant 0 : index
    %274 = vector.load %arg21[%c0_98, %c0_99] : memref<1x32xf32, #tpu.memory_space<vmem>>, vector<1x32xf32>
    %c0_100 = arith.constant 0 : index
    %c0_101 = arith.constant 0 : index
    %275 = vector.load %arg22[%c0_100, %c0_101] : memref<1x32xf32, #tpu.memory_space<vmem>>, vector<1x32xf32>
    %cst_102 = arith.constant dense<0.000000e+00> : vector<8xf32>
    %276 = vector.multi_reduction <add>, %273, %cst_102 [1] : vector<8x32xf32> to vector<8xf32>
    %277 = vector.shape_cast %276 : vector<8xf32> to vector<8x1xf32>
    %cst_103 = arith.constant 3.200000e+01 : f32
    %278 = vector.broadcast %cst_103 : f32 to vector<8x1xf32>
    %279 = arith.divf %277, %278 : vector<8x1xf32>
    %280 = vector.broadcast %279 : vector<8x1xf32> to vector<8x32xf32>
    %281 = arith.subf %273, %280 : vector<8x32xf32>
    %282 = arith.mulf %281, %281 : vector<8x32xf32>
    %cst_104 = arith.constant dense<0.000000e+00> : vector<8xf32>
    %283 = vector.multi_reduction <add>, %282, %cst_104 [1] : vector<8x32xf32> to vector<8xf32>
    %284 = vector.shape_cast %283 : vector<8xf32> to vector<8x1xf32>
    %cst_105 = arith.constant 3.200000e+01 : f32
    %285 = vector.broadcast %cst_105 : f32 to vector<8x1xf32>
    %286 = arith.divf %284, %285 : vector<8x1xf32>
    %287 = vector.broadcast %279 : vector<8x1xf32> to vector<8x32xf32>
    %288 = arith.subf %273, %287 : vector<8x32xf32>
    %cst_106 = arith.constant 9.99999974E-6 : f32
    %289 = vector.broadcast %cst_106 : f32 to vector<8x1xf32>
    %290 = arith.addf %286, %289 : vector<8x1xf32>
    %291 = math.rsqrt %290 : vector<8x1xf32>
    %292 = vector.broadcast %291 : vector<8x1xf32> to vector<8x32xf32>
    %293 = arith.mulf %288, %292 : vector<8x32xf32>
    %294 = vector.broadcast %274 : vector<1x32xf32> to vector<8x32xf32>
    %295 = arith.mulf %293, %294 : vector<8x32xf32>
    %296 = vector.broadcast %275 : vector<1x32xf32> to vector<8x32xf32>
    %297 = arith.addf %295, %296 : vector<8x32xf32>
    %c0_107 = arith.constant 0 : index
    %c0_108 = arith.constant 0 : index
    %c0_109 = arith.constant 0 : index
    %298 = vector.load %arg23[%c0_107, %c0_108, %c0_109] : memref<1x8x32xf32, #tpu.memory_space<vmem>>, vector<1x8x32xf32>
    %299 = vector.shape_cast %298 : vector<1x8x32xf32> to vector<8x32xf32>
    %300 = vector.shape_cast %297 : vector<8x32xf32> to vector<1x8x32xf32>
    tpu.vector_store %arg23[%c0_107, %c0_108, %c0_109], %300 {strides = array<i32>} : memref<1x8x32xf32, #tpu.memory_space<vmem>>, vector<1x8x32xf32>,
    return
  }
  func.func @transform_0(%arg0: i32) -> (i32, i32, i32) {
    %c0_i32 = arith.constant 0 : i32
    %c0_i32_0 = arith.constant 0 : i32
    %c0_i32_1 = arith.constant 0 : i32
    return %arg0, %c0_i32, %c0_i32_0 : i32, i32, i32
  }
  func.func @transform_1(%arg0: i32) -> (i32, i32, i32) {
    %c0_i32 = arith.constant 0 : i32
    %c0_i32_0 = arith.constant 0 : i32
    %c0_i32_1 = arith.constant 0 : i32
    return %arg0, %c0_i32, %c0_i32_0 : i32, i32, i32
  }
  func.func @transform_2(%arg0: i32) -> (i32, i32) {
    %c0_i32 = arith.constant 0 : i32
    %c0_i32_0 = arith.constant 0 : i32
    %c0_i32_1 = arith.constant 0 : i32
    return %c0_i32, %c0_i32_0 : i32, i32
  }
  func.func @transform_3(%arg0: i32) -> (i32, i32) {
    %c0_i32 = arith.constant 0 : i32
    %c0_i32_0 = arith.constant 0 : i32
    %c0_i32_1 = arith.constant 0 : i32
    return %c0_i32, %c0_i32_0 : i32, i32
  }
  func.func @transform_4(%arg0: i32) -> (i32, i32) {
    %c0_i32 = arith.constant 0 : i32
    %c0_i32_0 = arith.constant 0 : i32
    %c0_i32_1 = arith.constant 0 : i32
    return %c0_i32, %c0_i32_0 : i32, i32
  }
  func.func @transform_5(%arg0: i32) -> (i32, i32) {
    %c0_i32 = arith.constant 0 : i32
    %c0_i32_0 = arith.constant 0 : i32
    %c0_i32_1 = arith.constant 0 : i32
    return %c0_i32, %c0_i32_0 : i32, i32
  }
  func.func @transform_6(%arg0: i32) -> (i32, i32) {
    %c0_i32 = arith.constant 0 : i32
    %c0_i32_0 = arith.constant 0 : i32
    %c0_i32_1 = arith.constant 0 : i32
    return %c0_i32, %c0_i32_0 : i32, i32
  }
  func.func @transform_7(%arg0: i32) -> (i32, i32) {
    %c0_i32 = arith.constant 0 : i32
    %c0_i32_0 = arith.constant 0 : i32
    %c0_i32_1 = arith.constant 0 : i32
    return %c0_i32, %c0_i32_0 : i32, i32
  }
  func.func @transform_8(%arg0: i32) -> (i32, i32) {
    %c0_i32 = arith.constant 0 : i32
    %c0_i32_0 = arith.constant 0 : i32
    %c0_i32_1 = arith.constant 0 : i32
    return %c0_i32, %c0_i32_0 : i32, i32
  }
  func.func @transform_9(%arg0: i32) -> (i32, i32) {
    %c0_i32 = arith.constant 0 : i32
    %c0_i32_0 = arith.constant 0 : i32
    %c0_i32_1 = arith.constant 0 : i32
    return %c0_i32, %c0_i32_0 : i32, i32
  }
  func.func @transform_10(%arg0: i32) -> (i32, i32) {
    %c0_i32 = arith.constant 0 : i32
    %c0_i32_0 = arith.constant 0 : i32
    %c0_i32_1 = arith.constant 0 : i32
    return %c0_i32, %c0_i32_0 : i32, i32
  }
  func.func @transform_11(%arg0: i32) -> (i32, i32) {
    %c0_i32 = arith.constant 0 : i32
    %c0_i32_0 = arith.constant 0 : i32
    %c0_i32_1 = arith.constant 0 : i32
    return %c0_i32, %c0_i32_0 : i32, i32
  }
  func.func @transform_12(%arg0: i32) -> (i32, i32) {
    %c0_i32 = arith.constant 0 : i32
    %c0_i32_0 = arith.constant 0 : i32
    %c0_i32_1 = arith.constant 0 : i32
    return %c0_i32, %c0_i32_0 : i32, i32
  }
  func.func @transform_13(%arg0: i32) -> (i32, i32) {
    %c0_i32 = arith.constant 0 : i32
    %c0_i32_0 = arith.constant 0 : i32
    %c0_i32_1 = arith.constant 0 : i32
    return %c0_i32, %c0_i32_0 : i32, i32
  }
  func.func @transform_14(%arg0: i32) -> (i32, i32) {
    %c0_i32 = arith.constant 0 : i32
    %c0_i32_0 = arith.constant 0 : i32
    %c0_i32_1 = arith.constant 0 : i32
    return %c0_i32, %c0_i32_0 : i32, i32
  }
  func.func @transform_15(%arg0: i32) -> (i32, i32) {
    %c0_i32 = arith.constant 0 : i32
    %c0_i32_0 = arith.constant 0 : i32
    %c0_i32_1 = arith.constant 0 : i32
    return %c0_i32, %c0_i32_0 : i32, i32
  }
  func.func @transform_16(%arg0: i32) -> (i32, i32) {
    %c0_i32 = arith.constant 0 : i32
    %c0_i32_0 = arith.constant 0 : i32
    %c0_i32_1 = arith.constant 0 : i32
    return %c0_i32, %c0_i32_0 : i32, i32
  }
  func.func @transform_17(%arg0: i32) -> (i32, i32) {
    %c0_i32 = arith.constant 0 : i32
    %c0_i32_0 = arith.constant 0 : i32
    %c0_i32_1 = arith.constant 0 : i32
    return %c0_i32, %c0_i32_0 : i32, i32
  }
  func.func @transform_18(%arg0: i32) -> (i32, i32) {
    %c0_i32 = arith.constant 0 : i32
    %c0_i32_0 = arith.constant 0 : i32
    %c0_i32_1 = arith.constant 0 : i32
    return %c0_i32, %c0_i32_0 : i32, i32
  }
  func.func @transform_19(%arg0: i32) -> (i32, i32) {
    %c0_i32 = arith.constant 0 : i32
    %c0_i32_0 = arith.constant 0 : i32
    %c0_i32_1 = arith.constant 0 : i32
    return %c0_i32, %c0_i32_0 : i32, i32
  }
  func.func @transform_20(%arg0: i32) -> (i32, i32) {
    %c0_i32 = arith.constant 0 : i32
    %c0_i32_0 = arith.constant 0 : i32
    %c0_i32_1 = arith.constant 0 : i32
    return %c0_i32, %c0_i32_0 : i32, i32
  }
  func.func @transform_21(%arg0: i32) -> (i32, i32) {
    %c0_i32 = arith.constant 0 : i32
    %c0_i32_0 = arith.constant 0 : i32
    %c0_i32_1 = arith.constant 0 : i32
    return %c0_i32, %c0_i32_0 : i32, i32
  }
  func.func @transform_22(%arg0: i32) -> (i32, i32, i32) {
    %c0_i32 = arith.constant 0 : i32
    %c0_i32_0 = arith.constant 0 : i32
    %c0_i32_1 = arith.constant 0 : i32
    return %arg0, %c0_i32, %c0_i32_0 : i32, i32, i32
  }
}

</mosaic_0001>

<llo_original>
// kernel: time_series_transformer_fwd.12
$region0: #{time_series_transformer_fwd.12}
  #allocation0 [shape = 'u32[]', space=smem, size = 0x4, offset = 0x4, fixed_abs, tag = 'smem constant byte address 0x4 - core index']
  #allocation1 [shape = 'u32[72,128]{1,0:T(1,128)}', space=vmem, size = 0x9000, scoped, tag = 'internal scratch']
  %s0 = inlined_call_operand.vmem [shape: f32[2,8,8], index: 0, kind: input, shape index: {}]
  %s1 = inlined_call_operand.vmem [shape: f32[8,32], index: 1, kind: input, shape index: {}]
  %s2 = inlined_call_operand.vmem [shape: f32[8,32], index: 2, kind: input, shape index: {}]
  %s3 = inlined_call_operand.hbm [shape: f32[1,32], index: 3, kind: input, shape index: {}]
  %s4 = inlined_call_operand.vmem [shape: f32[2,8,32], index: 4, kind: output, shape index: {}]
  %s5 = sld [smem:[#allocation0]]
  $region53: #{time_series_transformer_fwd.12} parent=0
    _
  %s7 = ssub.s32 1, %s5
  %s8 = scalar_select 0, %s7, %s5
  $region1: #{time_series_transformer_fwd.12} parent=0
    #allocation2 [shape = 'u8[512]{0}', space=vmem, size = 0x400, scoped, tag = 'input window, operand 3, single buffered']
    #allocation3 [shape = 's32[2]{0}', space=sflag, size = 0x8, scoped, tag = 'scoped memory for time_series_transformer_fwd.12']
    %9 = vsyncpa [#allocation3], 0
    loop: start=0, step=1, limit=4
    $region2: #{time_series_transformer_fwd.12} parent=1 // loop_pre_header
      _
    $region3: #{time_series_transformer_fwd.12} parent=1 // loop_header
      %s11 = sphi 0, %s15
      %p12 = scmp.ge.s32.totalorder %s11, 4
      %s21 = sphi 0, %s23
      %s24 = sphi 0, %s21
      %s25 = sphi 0, %s24
      %s41 = sphi 0, %s25
      %s45 = sphi 0, %s45
      %s47 = sphi 0, %s45
      %s48 = sphi 0, %s47
      %s62 = sphi 0, %s48
      %s66 = sphi 0, %s66
      %s68 = sphi 0, %s66
      %s69 = sphi 0, %s68
      %s83 = sphi 0, %s69
      %s87 = sphi 0, %s87
      %s89 = sphi 0, %s87
      %s90 = sphi 0, %s89
      %s104 = sphi 0, %s90
      %s110 = sphi 0, %s112
      %s113 = sphi 0, %s110
      %s114 = sphi 0, %s113
      %s130 = sphi 0, %s114
    $region4: #{time_series_transformer_fwd.12} parent=1 // loop_header_branch
      %14 = sbr.rel (%p12) target = $region8
    $region5: #{time_series_transformer_fwd.12} parent=1 // loop_body
      %s16 = ssub.s32 %s11, 1
      %s17 = ssub.s32 %s11, 2
      %s18 = sadd.s32 %s11, 1
      %s19 = ssub.s32 %s11, %s18
      %p20 = scmp.eq.s32.totalorder %s19, 0
      %s22 = sadd.s32 %s21, 1
      %s23 = scalar_select %p20, %s21, %s22
      %p26 = pneg %p20
      %p27 = scmp.eq.s32.totalorder %s11, 1
      %p28 = por %p26, %p27
      %p29 = scmp.ne.s32.totalorder %s21, %s24
      %p30 = scmp.eq.s32.totalorder %s11, 0
      %p31 = por %p29, %p30
      %p32 = scmp.ne.s32.totalorder %s21, %s24
      %p33 = scmp.eq.s32.totalorder %s16, 1
      %p34 = por %p32, %p33
      %p35 = scmp.ne.s32.totalorder %s24, %s25
      %p36 = scmp.eq.s32.totalorder %s16, 0
      %p37 = por %p35, %p36
      %p38 = scmp.ne.s32.totalorder %s24, %s25
      %p39 = scmp.eq.s32.totalorder %s17, 1
      %p40 = por %p38, %p39
      %p42 = scmp.ne.s32.totalorder %s25, %s41
      %p43 = scmp.eq.s32.totalorder %s17, 0
      %p44 = por %p42, %p43
      %s46 = sadd.s32 %s45, 1
      %p49 = scmp.eq.s32.totalorder %s11, 1
      %p50 = scmp.ne.s32.totalorder %s45, %s47
      %p51 = scmp.eq.s32.totalorder %s11, 0
      %p52 = por %p50, %p51
      %p53 = scmp.ne.s32.totalorder %s45, %s47
      %p54 = scmp.eq.s32.totalorder %s16, 1
      %p55 = por %p53, %p54
      %p56 = scmp.ne.s32.totalorder %s47, %s48
      %p57 = scmp.eq.s32.totalorder %s16, 0
      %p58 = por %p56, %p57
      %p59 = scmp.ne.s32.totalorder %s47, %s48
      %p60 = scmp.eq.s32.totalorder %s17, 1
      %p61 = por %p59, %p60
      %p63 = scmp.ne.s32.totalorder %s48, %s62
      %p64 = scmp.eq.s32.totalorder %s17, 0
      %p65 = por %p63, %p64
      %s67 = sadd.s32 %s66, 1
      %p70 = scmp.eq.s32.totalorder %s11, 1
      %p71 = scmp.ne.s32.totalorder %s66, %s68
      %p72 = scmp.eq.s32.totalorder %s11, 0
      %p73 = por %p71, %p72
      %p74 = scmp.ne.s32.totalorder %s66, %s68
      %p75 = scmp.eq.s32.totalorder %s16, 1
      %p76 = por %p74, %p75
      %p77 = scmp.ne.s32.totalorder %s68, %s69
      %p78 = scmp.eq.s32.totalorder %s16, 0
      %p79 = por %p77, %p78
      %p80 = scmp.ne.s32.totalorder %s68, %s69
      %p81 = scmp.eq.s32.totalorder %s17, 1
      %p82 = por %p80, %p81
      %p84 = scmp.ne.s32.totalorder %s69, %s83
      %p85 = scmp.eq.s32.totalorder %s17, 0
      %p86 = por %p84, %p85
      %s88 = sadd.s32 %s87, 1
      %p91 = scmp.eq.s32.totalorder %s11, 1
      %p92 = scmp.ne.s32.totalorder %s87, %s89
      %p93 = scmp.eq.s32.totalorder %s11, 0
      %p94 = por %p92, %p93
      %p95 = scmp.ne.s32.totalorder %s87, %s89
      %p96 = scmp.eq.s32.totalorder %s16, 1
      %p97 = por %p95, %p96
      %p98 = scmp.ne.s32.totalorder %s89, %s90
      %p99 = scmp.eq.s32.totalorder %s16, 0
      %p100 = por %p98, %p99
      %p101 = scmp.ne.s32.totalorder %s89, %s90
      %p102 = scmp.eq.s32.totalorder %s17, 1
      %p103 = por %p101, %p102
      %p105 = scmp.ne.s32.totalorder %s90, %s104
      %p106 = scmp.eq.s32.totalorder %s17, 0
      %p107 = por %p105, %p106
      %s108 = ssub.s32 %s11, %s18
      %p109 = scmp.eq.s32.totalorder %s108, 0
      %s111 = sadd.s32 %s110, 1
      %s112 = scalar_select %p109, %s110, %s111
      %p115 = pneg %p109
      %p116 = scmp.eq.s32.totalorder %s11, 1
      %p117 = por %p115, %p116
      %p118 = scmp.ne.s32.totalorder %s110, %s113
      %p119 = scmp.eq.s32.totalorder %s11, 0
      %p120 = por %p118, %p119
      %p121 = scmp.ne.s32.totalorder %s110, %s113
      %p122 = scmp.eq.s32.totalorder %s16, 1
      %p123 = por %p121, %p122
      %p124 = scmp.ne.s32.totalorder %s113, %s114
      %p125 = scmp.eq.s32.totalorder %s16, 0
      %p126 = por %p124, %p125
      %p127 = scmp.ne.s32.totalorder %s113, %s114
      %p128 = scmp.eq.s32.totalorder %s17, 1
      %p129 = por %p127, %p128
      %p131 = scmp.ne.s32.totalorder %s114, %s130
      %p132 = scmp.eq.s32.totalorder %s17, 0
      %p133 = por %p131, %p132
      %p134 = scmp.le.s32.totalorder 1, %s11
      %p135 = scmp.lt.s32.totalorder %s11, 3
      %p136 = pnand %p134, %p135
      %p137 = pneg %p136
      // Predicated region
      $region9: #{time_series_transformer_fwd.12} parent=5 // pred_check
        _
      $region10: #{time_series_transformer_fwd.12} parent=5 // pred_check_branch
        %139 = sbr.rel (%p136) target = $region12
      $region11: #{time_series_transformer_fwd.12} parent=5 // pred_region
        %s140 = ssub.s32 %s11, 1
        // Predicated region
        $region13: #{time_series_transformer_fwd.12} parent=11 // pred_check
          %p141 = pneg %p58
        $region14: #{time_series_transformer_fwd.12} parent=11 // pred_check_branch
          %143 = sbr.rel (%p141) target = $region16
        $region15: #{time_series_transformer_fwd.12} parent=11 // pred_region
          _
        $region16: #{time_series_transformer_fwd.12} parent=11 // pred_fallthru
          _
        // Predicated region
        $region17: #{time_series_transformer_fwd.12} parent=11 // pred_check
          %p144 = pneg %p79
        $region18: #{time_series_transformer_fwd.12} parent=11 // pred_check_branch
          %146 = sbr.rel (%p144) target = $region20
        $region19: #{time_series_transformer_fwd.12} parent=11 // pred_region
          _
        $region20: #{time_series_transformer_fwd.12} parent=11 // pred_fallthru
          _
        // Predicated region
        $region21: #{time_series_transformer_fwd.12} parent=11 // pred_check
          %p147 = pneg %p100
        $region22: #{time_series_transformer_fwd.12} parent=11 // pred_check_branch
          %149 = sbr.rel (%p147) target = $region24
        $region23: #{time_series_transformer_fwd.12} parent=11 // pred_region
          %151 = vsyncadd [#allocation3], 0
          %s153 = sshll.u32 %s3, 4
          %s154 = int_to_ptr.hbm [resolvable:$true] %s153
          %s155 = sshll.u32 [#allocation2], 4
          %s156 = int_to_ptr.vmem [resolvable:$true] %s155
          %158 = dma.hbm_to_vmem [thread:$0]  %s154, 16, %s156, [#allocation3]
        $region24: #{time_series_transformer_fwd.12} parent=11 // pred_fallthru
          _
      $region12: #{time_series_transformer_fwd.12} parent=5 // pred_fallthru
        _
      %p159 = scmp.lt.s32.totalorder %s11, 2
      // Predicated region
      $region25: #{time_series_transformer_fwd.12} parent=5 // pred_check
        %p160 = pneg %p159
      $region26: #{time_series_transformer_fwd.12} parent=5 // pred_check_branch
        %162 = sbr.rel (%p160) target = $region28
      $region27: #{time_series_transformer_fwd.12} parent=5 // pred_region
        // Predicated region
        $region29: #{time_series_transformer_fwd.12} parent=27 // pred_check
          %p163 = pneg %p31
        $region30: #{time_series_transformer_fwd.12} parent=27 // pred_check_branch
          %165 = sbr.rel (%p163) target = $region32
        $region31: #{time_series_transformer_fwd.12} parent=27 // pred_region
          %p166 = scmp.lt.s32.totalorder %s11, 1
          %s167 = scalar_select %p166, %s11, 1
          %s168 = smul.addr %s167, 8
          %s169 = scalar_lea.vmem %s0, %s168
        $region32: #{time_series_transformer_fwd.12} parent=27 // pred_fallthru
          _
      $region28: #{time_series_transformer_fwd.12} parent=5 // pred_fallthru
        _
      %p170 = scmp.le.s32.totalorder 1, %s11
      %p171 = scmp.lt.s32.totalorder %s11, 3
      %p172 = pnand %p170, %p171
      %p173 = pneg %p172
      // Predicated region
      $region33: #{time_series_transformer_fwd.12} parent=5 // pred_check
        _
      $region34: #{time_series_transformer_fwd.12} parent=5 // pred_check_branch
        %175 = sbr.rel (%p172) target = $region36
      $region35: #{time_series_transformer_fwd.12} parent=5 // pred_region
        %s176 = ssub.s32 %s11, 1
        // Predicated region
        $region37: #{time_series_transformer_fwd.12} parent=35 // pred_check
          %p177 = pneg %p100
        $region38: #{time_series_transformer_fwd.12} parent=35 // pred_check_branch
          %179 = sbr.rel (%p177) target = $region40
        $region39: #{time_series_transformer_fwd.12} parent=35 // pred_region
          %181 = dma.done [#allocation3], 16
        $region40: #{time_series_transformer_fwd.12} parent=35 // pred_fallthru
          _
        %p182 = scmp.lt.s32.totalorder %s16, 1
        %s183 = scalar_select %p182, %s16, 1
        %s184 = smul.addr %s183, 8
        %s185 = scalar_lea.vmem %s0, %s184
        %p186 = pneg %p37
        %p187 = pneg %p34
        %p188 = pneg %p58
        %p189 = pneg %p55
        %p190 = pneg %p79
        %p191 = pneg %p76
        %p192 = pneg %p100
        %p193 = pneg %p97
        %p194 = pneg %p126
        %p195 = pneg %p123
        %p196 = scmp.lt.s32.totalorder %s16, 1
        %s197 = scalar_select %p196, %s16, 1
        %s198 = smul.addr %s197, 8
        %s199 = scalar_lea.vmem %s4, %s198
        %p200 = scmp.lt.s32.totalorder %s16, 1
        %s201 = scalar_select %p200, %s16, 1
        %s202 = smul.addr %s201, 8
        %s203 = scalar_lea.vmem %s0, %s202
        %p204 = scmp.lt.s32.totalorder %s16, 1
        %s205 = scalar_select %p204, %s16, 1
        %s206 = smul.addr %s205, 8
        %s207 = scalar_lea.vmem %s4, %s206
        %v208 = vld [vmem:[%s203] sm:$0xff]
        %v209 = vld [vmem:[%s2] sm:$0xff]
        %v210 = vld [vmem:[#allocation2] sm:$0x1]
        %v212 = vperm.slane %v210, 0
        %vm214 = vcmask 64512
        %v216 = vsel %vm214, %v208, 0
        %218 = vmatpush.msra.mxu0 0.0
        %219 = vmatpush.msra.mxu0 0.0
        %220 = vmatpush.msra.mxu0 0.0
        %221 = vmatpush.msra.mxu0 0.0
        %222 = vmatpush.msra.mxu0 0.0
        %223 = vmatpush.msra.mxu0 0.0
        %224 = vmatpush.msra.mxu0 0.0
        %225 = vmatpush.msra.mxu0 0.0
        %226 = vmatpush.msra.mxu0 0.0
        %227 = vmatpush.msra.mxu0 0.0
        %228 = vmatpush.msra.mxu0 0.0
        %229 = vmatpush.msra.mxu0 0.0
        %230 = vmatpush.msra.mxu0 0.0
        %231 = vmatpush.msra.mxu0 0.0
        %232 = vmatpush.msra.mxu0 0.0
        %233 = vmatpush.msra.mxu0 %v209
        %234 = vmatmul.f32.gmra.mxu0 %v216
        %v235 = vpop.f32.mrf.mxu0
        %v236 = vadd.f32 %v212, %v235
        %237 = vdwg.mxu0
        %v238 = vld [vmem:[%s1] sm:$0xff]
        %v239 = vadd.f32 %v236, %v238
        %vm240 = vcmask 261120
        %241 = vst.msk [vmem:[%s207] sm:$0xff] %vm240, %v239
        %p242 = scmp.lt.s32.totalorder %s16, 1
        %s243 = scalar_select %p242, %s16, 1
        %s244 = smul.addr %s243, 8
        %s245 = scalar_lea.vmem %s4, %s244
        // Predicated region
        $region41: #{time_series_transformer_fwd.12} parent=35 // pred_check
          %p246 = pneg %p123
        $region42: #{time_series_transformer_fwd.12} parent=35 // pred_check_branch
          %248 = sbr.rel (%p246) target = $region44
        $region43: #{time_series_transformer_fwd.12} parent=35 // pred_region
          _
        $region44: #{time_series_transformer_fwd.12} parent=35 // pred_fallthru
          _
      $region36: #{time_series_transformer_fwd.12} parent=5 // pred_fallthru
        _
      %p249 = scmp.le.s32.totalorder 2, %s11
      // Predicated region
      $region45: #{time_series_transformer_fwd.12} parent=5 // pred_check
        %p250 = pneg %p249
      $region46: #{time_series_transformer_fwd.12} parent=5 // pred_check_branch
        %252 = sbr.rel (%p250) target = $region48
      $region47: #{time_series_transformer_fwd.12} parent=5 // pred_region
        %s253 = ssub.s32 %s11, 2
        // Predicated region
        $region49: #{time_series_transformer_fwd.12} parent=47 // pred_check
          %p254 = pneg %p129
        $region50: #{time_series_transformer_fwd.12} parent=47 // pred_check_branch
          %256 = sbr.rel (%p254) target = $region52
        $region51: #{time_series_transformer_fwd.12} parent=47 // pred_region
          %p257 = scmp.lt.s32.totalorder %s17, 1
          %s258 = scalar_select %p257, %s17, 1
          %s259 = smul.addr %s258, 8
          %s260 = scalar_lea.vmem %s4, %s259
        $region52: #{time_series_transformer_fwd.12} parent=47 // pred_fallthru
          _
      $region48: #{time_series_transformer_fwd.12} parent=5 // pred_fallthru
        _
    $region6: #{time_series_transformer_fwd.12} parent=1 // loop_footer
      %s15 = sadd.s32 1, %s11
    $region7: #{time_series_transformer_fwd.12} parent=1 // loop_footer_branch
      %10 = sbr.rel target = $region3
    $region8: #{time_series_transformer_fwd.12} parent=1 // loop_exit
      _
    %261 = vsyncpa [#allocation3], 1
    %s262 = scalar_lea.sflag [#allocation3], 1
    %263 = vsyncpa %s262, 1

// kernel: time_series_transformer_fwd.11
$region0: #{time_series_transformer_fwd.11}
  #allocation0 [shape = 'u32[]', space=smem, size = 0x4, offset = 0x4, fixed_abs, tag = 'smem constant byte address 0x4 - core index']
  #allocation1 [shape = 'u32[72,128]{1,0:T(1,128)}', space=vmem, size = 0x9000, scoped, tag = 'internal scratch']
  %s0 = inlined_call_operand.vmem [shape: f32[2,8,32], index: 0, kind: input, shape index: {}]
  %s1 = inlined_call_operand.vmem [shape: f32[1,32], index: 1, kind: input, shape index: {}]
  %s2 = inlined_call_operand.vmem [shape: f32[1,32], index: 2, kind: input, shape index: {}]
  %s3 = inlined_call_operand.vmem [shape: f32[2,8,32], index: 3, kind: output, shape index: {}]
  %s4 = sld [smem:[#allocation0]]
  $region45: #{time_series_transformer_fwd.11} parent=0
    _
  %s6 = ssub.s32 1, %s4
  %s7 = scalar_select 0, %s6, %s4
  loop: start=0, step=1, limit=4
  $region2: #{time_series_transformer_fwd.11} parent=0 // loop_pre_header
    _
  $region3: #{time_series_transformer_fwd.11} parent=0 // loop_header
    %s9 = sphi 0, %s13
    %p10 = scmp.ge.s32.totalorder %s9, 4
    %s19 = sphi 0, %s21
    %s22 = sphi 0, %s19
    %s23 = sphi 0, %s22
    %s39 = sphi 0, %s23
    %s43 = sphi 0, %s43
    %s45 = sphi 0, %s43
    %s46 = sphi 0, %s45
    %s60 = sphi 0, %s46
    %s64 = sphi 0, %s64
    %s66 = sphi 0, %s64
    %s67 = sphi 0, %s66
    %s81 = sphi 0, %s67
    %s87 = sphi 0, %s89
    %s90 = sphi 0, %s87
    %s91 = sphi 0, %s90
    %s107 = sphi 0, %s91
  $region4: #{time_series_transformer_fwd.11} parent=0 // loop_header_branch
    %12 = sbr.rel (%p10) target = $region8
  $region5: #{time_series_transformer_fwd.11} parent=0 // loop_body
    %s14 = ssub.s32 %s9, 1
    %s15 = ssub.s32 %s9, 2
    %s16 = sadd.s32 %s9, 1
    %s17 = ssub.s32 %s9, %s16
    %p18 = scmp.eq.s32.totalorder %s17, 0
    %s20 = sadd.s32 %s19, 1
    %s21 = scalar_select %p18, %s19, %s20
    %p24 = pneg %p18
    %p25 = scmp.eq.s32.totalorder %s9, 1
    %p26 = por %p24, %p25
    %p27 = scmp.ne.s32.totalorder %s19, %s22
    %p28 = scmp.eq.s32.totalorder %s9, 0
    %p29 = por %p27, %p28
    %p30 = scmp.ne.s32.totalorder %s19, %s22
    %p31 = scmp.eq.s32.totalorder %s14, 1
    %p32 = por %p30, %p31
    %p33 = scmp.ne.s32.totalorder %s22, %s23
    %p34 = scmp.eq.s32.totalorder %s14, 0
    %p35 = por %p33, %p34
    %p36 = scmp.ne.s32.totalorder %s22, %s23
    %p37 = scmp.eq.s32.totalorder %s15, 1
    %p38 = por %p36, %p37
    %p40 = scmp.ne.s32.totalorder %s23, %s39
    %p41 = scmp.eq.s32.totalorder %s15, 0
    %p42 = por %p40, %p41
    %s44 = sadd.s32 %s43, 1
    %p47 = scmp.eq.s32.totalorder %s9, 1
    %p48 = scmp.ne.s32.totalorder %s43, %s45
    %p49 = scmp.eq.s32.totalorder %s9, 0
    %p50 = por %p48, %p49
    %p51 = scmp.ne.s32.totalorder %s43, %s45
    %p52 = scmp.eq.s32.totalorder %s14, 1
    %p53 = por %p51, %p52
    %p54 = scmp.ne.s32.totalorder %s45, %s46
    %p55 = scmp.eq.s32.totalorder %s14, 0
    %p56 = por %p54, %p55
    %p57 = scmp.ne.s32.totalorder %s45, %s46
    %p58 = scmp.eq.s32.totalorder %s15, 1
    %p59 = por %p57, %p58
    %p61 = scmp.ne.s32.totalorder %s46, %s60
    %p62 = scmp.eq.s32.totalorder %s15, 0
    %p63 = por %p61, %p62
    %s65 = sadd.s32 %s64, 1
    %p68 = scmp.eq.s32.totalorder %s9, 1
    %p69 = scmp.ne.s32.totalorder %s64, %s66
    %p70 = scmp.eq.s32.totalorder %s9, 0
    %p71 = por %p69, %p70
    %p72 = scmp.ne.s32.totalorder %s64, %s66
    %p73 = scmp.eq.s32.totalorder %s14, 1
    %p74 = por %p72, %p73
    %p75 = scmp.ne.s32.totalorder %s66, %s67
    %p76 = scmp.eq.s32.totalorder %s14, 0
    %p77 = por %p75, %p76
    %p78 = scmp.ne.s32.totalorder %s66, %s67
    %p79 = scmp.eq.s32.totalorder %s15, 1
    %p80 = por %p78, %p79
    %p82 = scmp.ne.s32.totalorder %s67, %s81
    %p83 = scmp.eq.s32.totalorder %s15, 0
    %p84 = por %p82, %p83
    %s85 = ssub.s32 %s9, %s16
    %p86 = scmp.eq.s32.totalorder %s85, 0
    %s88 = sadd.s32 %s87, 1
    %s89 = scalar_select %p86, %s87, %s88
    %p92 = pneg %p86
    %p93 = scmp.eq.s32.totalorder %s9, 1
    %p94 = por %p92, %p93
    %p95 = scmp.ne.s32.totalorder %s87, %s90
    %p96 = scmp.eq.s32.totalorder %s9, 0
    %p97 = por %p95, %p96
    %p98 = scmp.ne.s32.totalorder %s87, %s90
    %p99 = scmp.eq.s32.totalorder %s14, 1
    %p100 = por %p98, %p99
    %p101 = scmp.ne.s32.totalorder %s90, %s91
    %p102 = scmp.eq.s32.totalorder %s14, 0
    %p103 = por %p101, %p102
    %p104 = scmp.ne.s32.totalorder %s90, %s91
    %p105 = scmp.eq.s32.totalorder %s15, 1
    %p106 = por %p104, %p105
    %p108 = scmp.ne.s32.totalorder %s91, %s107
    %p109 = scmp.eq.s32.totalorder %s15, 0
    %p110 = por %p108, %p109
    %p111 = scmp.le.s32.totalorder 1, %s9
    %p112 = scmp.lt.s32.totalorder %s9, 3
    %p113 = pnand %p111, %p112
    %p114 = pneg %p113
    // Predicated region
    $region9: #{time_series_transformer_fwd.11} parent=5 // pred_check
      _
    $region10: #{time_series_transformer_fwd.11} parent=5 // pred_check_branch
      %116 = sbr.rel (%p113) target = $region12
    $region11: #{time_series_transformer_fwd.11} parent=5 // pred_region
      %s117 = ssub.s32 %s9, 1
      // Predicated region
      $region13: #{time_series_transformer_fwd.11} parent=11 // pred_check
        %p118 = pneg %p56
      $region14: #{time_series_transformer_fwd.11} parent=11 // pred_check_branch
        %120 = sbr.rel (%p118) target = $region16
      $region15: #{time_series_transformer_fwd.11} parent=11 // pred_region
        _
      $region16: #{time_series_transformer_fwd.11} parent=11 // pred_fallthru
        _
      // Predicated region
      $region17: #{time_series_transformer_fwd.11} parent=11 // pred_check
        %p121 = pneg %p77
      $region18: #{time_series_transformer_fwd.11} parent=11 // pred_check_branch
        %123 = sbr.rel (%p121) target = $region20
      $region19: #{time_series_transformer_fwd.11} parent=11 // pred_region
        _
      $region20: #{time_series_transformer_fwd.11} parent=11 // pred_fallthru
        _
    $region12: #{time_series_transformer_fwd.11} parent=5 // pred_fallthru
      _
    %p124 = scmp.lt.s32.totalorder %s9, 2
    // Predicated region
    $region21: #{time_series_transformer_fwd.11} parent=5 // pred_check
      %p125 = pneg %p124
    $region22: #{time_series_transformer_fwd.11} parent=5 // pred_check_branch
      %127 = sbr.rel (%p125) target = $region24
    $region23: #{time_series_transformer_fwd.11} parent=5 // pred_region
      // Predicated region
      $region25: #{time_series_transformer_fwd.11} parent=23 // pred_check
        %p128 = pneg %p29
      $region26: #{time_series_transformer_fwd.11} parent=23 // pred_check_branch
        %130 = sbr.rel (%p128) target = $region28
      $region27: #{time_series_transformer_fwd.11} parent=23 // pred_region
        %p131 = scmp.lt.s32.totalorder %s9, 1
        %s132 = scalar_select %p131, %s9, 1
        %s133 = smul.addr %s132, 8
        %s134 = scalar_lea.vmem %s0, %s133
      $region28: #{time_series_transformer_fwd.11} parent=23 // pred_fallthru
        _
    $region24: #{time_series_transformer_fwd.11} parent=5 // pred_fallthru
      _
    %p135 = scmp.le.s32.totalorder 1, %s9
    %p136 = scmp.lt.s32.totalorder %s9, 3
    %p137 = pnand %p135, %p136
    %p138 = pneg %p137
    // Predicated region
    $region29: #{time_series_transformer_fwd.11} parent=5 // pred_check
      _
    $region30: #{time_series_transformer_fwd.11} parent=5 // pred_check_branch
      %140 = sbr.rel (%p137) target = $region32
    $region31: #{time_series_transformer_fwd.11} parent=5 // pred_region
      %s141 = ssub.s32 %s9, 1
      %p142 = scmp.lt.s32.totalorder %s14, 1
      %s143 = scalar_select %p142, %s14, 1
      %s144 = smul.addr %s143, 8
      %s145 = scalar_lea.vmem %s0, %s144
      %p146 = pneg %p35
      %p147 = pneg %p32
      %p148 = pneg %p56
      %p149 = pneg %p53
      %p150 = pneg %p77
      %p151 = pneg %p74
      %p152 = pneg %p103
      %p153 = pneg %p100
      %p154 = scmp.lt.s32.totalorder %s14, 1
      %s155 = scalar_select %p154, %s14, 1
      %s156 = smul.addr %s155, 8
      %s157 = scalar_lea.vmem %s3, %s156
      %p158 = scmp.lt.s32.totalorder %s14, 1
      %s159 = scalar_select %p158, %s14, 1
      %s160 = smul.addr %s159, 8
      %s161 = scalar_lea.vmem %s0, %s160
      %p162 = scmp.lt.s32.totalorder %s14, 1
      %s163 = scalar_select %p162, %s14, 1
      %s164 = smul.addr %s163, 8
      %s165 = scalar_lea.vmem %s3, %s164
      %v166 = vld [vmem:[%s161] sm:$0xff]
      %v167 = vld [vmem:[%s1] sm:$0x1]
      %v168 = vld [vmem:[%s2] sm:$0x1]
      %vm169 = vcmask 261120
      %v170 = vsel %vm169, %v166, 0.0
      %171 = vadd.xlane.f32.xlu0 %v170
      %v172 = vpop.xlane.xlu0 %171
      %v173 = vrcp.pop 32.0
      %v174 = vmul.f32 32.0, %v173
      %v175 = vsub.f32 1.0, %v174
      %v176 = vmul.f32 %v173, %v175
      %v177 = vadd.f32 %v173, %v176
      %vm178 = vweird.f32 %v173
      %v179 = vsel %vm178, %v173, %v177
      %v180 = vmul.f32 %v172, %v179
      %v181 = vsub.f32 %v166, %v180
      %v182 = vmul.f32 %v181, %v181
      %v183 = vsel %vm169, %v182, 0.0
      %184 = vadd.xlane.f32.xlu0 %v183
      %v185 = vpop.xlane.xlu0 %184
      %v186 = vmul.f32 %v185, %v179
      %v187 = vadd.f32 %v186, 1e-05
      %v188 = vrsqrt.pop %v187
      %v189 = vmul.f32 %v188, %v187
      %v190 = vmul.f32 %v189, %v188
      %v191 = vmul.f32 0.5, %v190
      %v192 = vsub.f32 1.5, %v191
      %v193 = vmul.f32 %v188, %v192
      %vm194 = vweird.f32 %v187
      %vm195 = vweird.f32 %v188
      %vm196 = vmor %vm194, %vm195
      %v197 = vsel %vm196, %v188, %v193
      %v198 = vmul.f32 %v181, %v197
      %v200 = vperm.slane %v167, 0
      %v202 = vmul.f32 %v198, %v200
      %v204 = vperm.slane %v168, 0
      %v206 = vadd.f32 %v202, %v204
      %207 = vst.msk [vmem:[%s165] sm:$0xff] %vm169, %v206
      %p208 = scmp.lt.s32.totalorder %s14, 1
      %s209 = scalar_select %p208, %s14, 1
      %s210 = smul.addr %s209, 8
      %s211 = scalar_lea.vmem %s3, %s210
      // Predicated region
      $region33: #{time_series_transformer_fwd.11} parent=31 // pred_check
        %p212 = pneg %p100
      $region34: #{time_series_transformer_fwd.11} parent=31 // pred_check_branch
        %214 = sbr.rel (%p212) target = $region36
      $region35: #{time_series_transformer_fwd.11} parent=31 // pred_region
        _
      $region36: #{time_series_transformer_fwd.11} parent=31 // pred_fallthru
        _
    $region32: #{time_series_transformer_fwd.11} parent=5 // pred_fallthru
      _
    %p215 = scmp.le.s32.totalorder 2, %s9
    // Predicated region
    $region37: #{time_series_transformer_fwd.11} parent=5 // pred_check
      %p216 = pneg %p215
    $region38: #{time_series_transformer_fwd.11} parent=5 // pred_check_branch
      %218 = sbr.rel (%p216) target = $region40
    $region39: #{time_series_transformer_fwd.11} parent=5 // pred_region
      %s219 = ssub.s32 %s9, 2
      // Predicated region
      $region41: #{time_series_transformer_fwd.11} parent=39 // pred_check
        %p220 = pneg %p106
      $region42: #{time_series_transformer_fwd.11} parent=39 // pred_check_branch
        %222 = sbr.rel (%p220) target = $region44
      $region43: #{time_series_transformer_fwd.11} parent=39 // pred_region
        %p223 = scmp.lt.s32.totalorder %s15, 1
        %s224 = scalar_select %p223, %s15, 1
        %s225 = smul.addr %s224, 8
        %s226 = scalar_lea.vmem %s3, %s225
      $region44: #{time_series_transformer_fwd.11} parent=39 // pred_fallthru
        _
    $region40: #{time_series_transformer_fwd.11} parent=5 // pred_fallthru
      _
  $region6: #{time_series_transformer_fwd.11} parent=0 // loop_footer
    %s13 = sadd.s32 1, %s9
  $region7: #{time_series_transformer_fwd.11} parent=0 // loop_footer_branch
    %8 = sbr.rel target = $region3
  $region8: #{time_series_transformer_fwd.11} parent=0 // loop_exit
    _

// kernel: time_series_transformer_fwd.8
$region0: #{time_series_transformer_fwd.8}
  #allocation0 [shape = 'u32[]', space=smem, size = 0x4, offset = 0x4, fixed_abs, tag = 'smem constant byte address 0x4 - core index']
  #allocation1 [shape = 'u32[72,128]{1,0:T(1,128)}', space=vmem, size = 0x9000, scoped, tag = 'internal scratch']
  %s0 = inlined_call_operand.vmem [shape: f32[2,8,8], index: 0, kind: input, shape index: {}]
  %s1 = inlined_call_operand.vmem [shape: f32[8,32], index: 1, kind: input, shape index: {}]
  %s2 = inlined_call_operand.vmem [shape: f32[8,32], index: 2, kind: input, shape index: {}]
  %s3 = inlined_call_operand.vmem [shape: f32[1,32], index: 3, kind: input, shape index: {}]
  %s4 = inlined_call_operand.vmem [shape: f32[2,8,32], index: 4, kind: output, shape index: {}]
  %s5 = sld [smem:[#allocation0]]
  $region49: #{time_series_transformer_fwd.8} parent=0
    _
  %s7 = ssub.s32 1, %s5
  %s8 = scalar_select 0, %s7, %s5
  loop: start=0, step=1, limit=4
  $region2: #{time_series_transformer_fwd.8} parent=0 // loop_pre_header
    _
  $region3: #{time_series_transformer_fwd.8} parent=0 // loop_header
    %s10 = sphi 0, %s14
    %p11 = scmp.ge.s32.totalorder %s10, 4
    %s20 = sphi 0, %s22
    %s23 = sphi 0, %s20
    %s24 = sphi 0, %s23
    %s40 = sphi 0, %s24
    %s44 = sphi 0, %s44
    %s46 = sphi 0, %s44
    %s47 = sphi 0, %s46
    %s61 = sphi 0, %s47
    %s65 = sphi 0, %s65
    %s67 = sphi 0, %s65
    %s68 = sphi 0, %s67
    %s82 = sphi 0, %s68
    %s86 = sphi 0, %s86
    %s88 = sphi 0, %s86
    %s89 = sphi 0, %s88
    %s103 = sphi 0, %s89
    %s109 = sphi 0, %s111
    %s112 = sphi 0, %s109
    %s113 = sphi 0, %s112
    %s129 = sphi 0, %s113
  $region4: #{time_series_transformer_fwd.8} parent=0 // loop_header_branch
    %13 = sbr.rel (%p11) target = $region8
  $region5: #{time_series_transformer_fwd.8} parent=0 // loop_body
    %s15 = ssub.s32 %s10, 1
    %s16 = ssub.s32 %s10, 2
    %s17 = sadd.s32 %s10, 1
    %s18 = ssub.s32 %s10, %s17
    %p19 = scmp.eq.s32.totalorder %s18, 0
    %s21 = sadd.s32 %s20, 1
    %s22 = scalar_select %p19, %s20, %s21
    %p25 = pneg %p19
    %p26 = scmp.eq.s32.totalorder %s10, 1
    %p27 = por %p25, %p26
    %p28 = scmp.ne.s32.totalorder %s20, %s23
    %p29 = scmp.eq.s32.totalorder %s10, 0
    %p30 = por %p28, %p29
    %p31 = scmp.ne.s32.totalorder %s20, %s23
    %p32 = scmp.eq.s32.totalorder %s15, 1
    %p33 = por %p31, %p32
    %p34 = scmp.ne.s32.totalorder %s23, %s24
    %p35 = scmp.eq.s32.totalorder %s15, 0
    %p36 = por %p34, %p35
    %p37 = scmp.ne.s32.totalorder %s23, %s24
    %p38 = scmp.eq.s32.totalorder %s16, 1
    %p39 = por %p37, %p38
    %p41 = scmp.ne.s32.totalorder %s24, %s40
    %p42 = scmp.eq.s32.totalorder %s16, 0
    %p43 = por %p41, %p42
    %s45 = sadd.s32 %s44, 1
    %p48 = scmp.eq.s32.totalorder %s10, 1
    %p49 = scmp.ne.s32.totalorder %s44, %s46
    %p50 = scmp.eq.s32.totalorder %s10, 0
    %p51 = por %p49, %p50
    %p52 = scmp.ne.s32.totalorder %s44, %s46
    %p53 = scmp.eq.s32.totalorder %s15, 1
    %p54 = por %p52, %p53
    %p55 = scmp.ne.s32.totalorder %s46, %s47
    %p56 = scmp.eq.s32.totalorder %s15, 0
    %p57 = por %p55, %p56
    %p58 = scmp.ne.s32.totalorder %s46, %s47
    %p59 = scmp.eq.s32.totalorder %s16, 1
    %p60 = por %p58, %p59
    %p62 = scmp.ne.s32.totalorder %s47, %s61
    %p63 = scmp.eq.s32.totalorder %s16, 0
    %p64 = por %p62, %p63
    %s66 = sadd.s32 %s65, 1
    %p69 = scmp.eq.s32.totalorder %s10, 1
    %p70 = scmp.ne.s32.totalorder %s65, %s67
    %p71 = scmp.eq.s32.totalorder %s10, 0
    %p72 = por %p70, %p71
    %p73 = scmp.ne.s32.totalorder %s65, %s67
    %p74 = scmp.eq.s32.totalorder %s15, 1
    %p75 = por %p73, %p74
    %p76 = scmp.ne.s32.totalorder %s67, %s68
    %p77 = scmp.eq.s32.totalorder %s15, 0
    %p78 = por %p76, %p77
    %p79 = scmp.ne.s32.totalorder %s67, %s68
    %p80 = scmp.eq.s32.totalorder %s16, 1
    %p81 = por %p79, %p80
    %p83 = scmp.ne.s32.totalorder %s68, %s82
    %p84 = scmp.eq.s32.totalorder %s16, 0
    %p85 = por %p83, %p84
    %s87 = sadd.s32 %s86, 1
    %p90 = scmp.eq.s32.totalorder %s10, 1
    %p91 = scmp.ne.s32.totalorder %s86, %s88
    %p92 = scmp.eq.s32.totalorder %s10, 0
    %p93 = por %p91, %p92
    %p94 = scmp.ne.s32.totalorder %s86, %s88
    %p95 = scmp.eq.s32.totalorder %s15, 1
    %p96 = por %p94, %p95
    %p97 = scmp.ne.s32.totalorder %s88, %s89
    %p98 = scmp.eq.s32.totalorder %s15, 0
    %p99 = por %p97, %p98
    %p100 = scmp.ne.s32.totalorder %s88, %s89
    %p101 = scmp.eq.s32.totalorder %s16, 1
    %p102 = por %p100, %p101
    %p104 = scmp.ne.s32.totalorder %s89, %s103
    %p105 = scmp.eq.s32.totalorder %s16, 0
    %p106 = por %p104, %p105
    %s107 = ssub.s32 %s10, %s17
    %p108 = scmp.eq.s32.totalorder %s107, 0
    %s110 = sadd.s32 %s109, 1
    %s111 = scalar_select %p108, %s109, %s110
    %p114 = pneg %p108
    %p115 = scmp.eq.s32.totalorder %s10, 1
    %p116 = por %p114, %p115
    %p117 = scmp.ne.s32.totalorder %s109, %s112
    %p118 = scmp.eq.s32.totalorder %s10, 0
    %p119 = por %p117, %p118
    %p120 = scmp.ne.s32.totalorder %s109, %s112
    %p121 = scmp.eq.s32.totalorder %s15, 1
    %p122 = por %p120, %p121
    %p123 = scmp.ne.s32.totalorder %s112, %s113
    %p124 = scmp.eq.s32.totalorder %s15, 0
    %p125 = por %p123, %p124
    %p126 = scmp.ne.s32.totalorder %s112, %s113
    %p127 = scmp.eq.s32.totalorder %s16, 1
    %p128 = por %p126, %p127
    %p130 = scmp.ne.s32.totalorder %s113, %s129
    %p131 = scmp.eq.s32.totalorder %s16, 0
    %p132 = por %p130, %p131
    %p133 = scmp.le.s32.totalorder 1, %s10
    %p134 = scmp.lt.s32.totalorder %s10, 3
    %p135 = pnand %p133, %p134
    %p136 = pneg %p135
    // Predicated region
    $region9: #{time_series_transformer_fwd.8} parent=5 // pred_check
      _
    $region10: #{time_series_transformer_fwd.8} parent=5 // pred_check_branch
      %138 = sbr.rel (%p135) target = $region12
    $region11: #{time_series_transformer_fwd.8} parent=5 // pred_region
      %s139 = ssub.s32 %s10, 1
      // Predicated region
      $region13: #{time_series_transformer_fwd.8} parent=11 // pred_check
        %p140 = pneg %p57
      $region14: #{time_series_transformer_fwd.8} parent=11 // pred_check_branch
        %142 = sbr.rel (%p140) target = $region16
      $region15: #{time_series_transformer_fwd.8} parent=11 // pred_region
        _
      $region16: #{time_series_transformer_fwd.8} parent=11 // pred_fallthru
        _
      // Predicated region
      $region17: #{time_series_transformer_fwd.8} parent=11 // pred_check
        %p143 = pneg %p78
      $region18: #{time_series_transformer_fwd.8} parent=11 // pred_check_branch
        %145 = sbr.rel (%p143) target = $region20
      $region19: #{time_series_transformer_fwd.8} parent=11 // pred_region
        _
      $region20: #{time_series_transformer_fwd.8} parent=11 // pred_fallthru
        _
      // Predicated region
      $region21: #{time_series_transformer_fwd.8} parent=11 // pred_check
        %p146 = pneg %p99
      $region22: #{time_series_transformer_fwd.8} parent=11 // pred_check_branch
        %148 = sbr.rel (%p146) target = $region24
      $region23: #{time_series_transformer_fwd.8} parent=11 // pred_region
        _
      $region24: #{time_series_transformer_fwd.8} parent=11 // pred_fallthru
        _
    $region12: #{time_series_transformer_fwd.8} parent=5 // pred_fallthru
      _
    %p149 = scmp.lt.s32.totalorder %s10, 2
    // Predicated region
    $region25: #{time_series_transformer_fwd.8} parent=5 // pred_check
      %p150 = pneg %p149
    $region26: #{time_series_transformer_fwd.8} parent=5 // pred_check_branch
      %152 = sbr.rel (%p150) target = $region28
    $region27: #{time_series_transformer_fwd.8} parent=5 // pred_region
      // Predicated region
      $region29: #{time_series_transformer_fwd.8} parent=27 // pred_check
        %p153 = pneg %p30
      $region30: #{time_series_transformer_fwd.8} parent=27 // pred_check_branch
        %155 = sbr.rel (%p153) target = $region32
      $region31: #{time_series_transformer_fwd.8} parent=27 // pred_region
        %p156 = scmp.lt.s32.totalorder %s10, 1
        %s157 = scalar_select %p156, %s10, 1
        %s158 = smul.addr %s157, 8
        %s159 = scalar_lea.vmem %s0, %s158
      $region32: #{time_series_transformer_fwd.8} parent=27 // pred_fallthru
        _
    $region28: #{time_series_transformer_fwd.8} parent=5 // pred_fallthru
      _
    %p160 = scmp.le.s32.totalorder 1, %s10
    %p161 = scmp.lt.s32.totalorder %s10, 3
    %p162 = pnand %p160, %p161
    %p163 = pneg %p162
    // Predicated region
    $region33: #{time_series_transformer_fwd.8} parent=5 // pred_check
      _
    $region34: #{time_series_transformer_fwd.8} parent=5 // pred_check_branch
      %165 = sbr.rel (%p162) target = $region36
    $region35: #{time_series_transformer_fwd.8} parent=5 // pred_region
      %s166 = ssub.s32 %s10, 1
      %p167 = scmp.lt.s32.totalorder %s15, 1
      %s168 = scalar_select %p167, %s15, 1
      %s169 = smul.addr %s168, 8
      %s170 = scalar_lea.vmem %s0, %s169
      %p171 = pneg %p36
      %p172 = pneg %p33
      %p173 = pneg %p57
      %p174 = pneg %p54
      %p175 = pneg %p78
      %p176 = pneg %p75
      %p177 = pneg %p99
      %p178 = pneg %p96
      %p179 = pneg %p125
      %p180 = pneg %p122
      %p181 = scmp.lt.s32.totalorder %s15, 1
      %s182 = scalar_select %p181, %s15, 1
      %s183 = smul.addr %s182, 8
      %s184 = scalar_lea.vmem %s4, %s183
      %p185 = scmp.lt.s32.totalorder %s15, 1
      %s186 = scalar_select %p185, %s15, 1
      %s187 = smul.addr %s186, 8
      %s188 = scalar_lea.vmem %s0, %s187
      %p189 = scmp.lt.s32.totalorder %s15, 1
      %s190 = scalar_select %p189, %s15, 1
      %s191 = smul.addr %s190, 8
      %s192 = scalar_lea.vmem %s4, %s191
      %v193 = vld [vmem:[%s188] sm:$0xff]
      %v194 = vld [vmem:[%s2] sm:$0xff]
      %v195 = vld [vmem:[%s3] sm:$0x1]
      %v197 = vperm.slane %v195, 0
      %vm199 = vcmask 64512
      %v201 = vsel %vm199, %v193, 0
      %203 = vmatpush.msra.mxu0 0.0
      %204 = vmatpush.msra.mxu0 0.0
      %205 = vmatpush.msra.mxu0 0.0
      %206 = vmatpush.msra.mxu0 0.0
      %207 = vmatpush.msra.mxu0 0.0
      %208 = vmatpush.msra.mxu0 0.0
      %209 = vmatpush.msra.mxu0 0.0
      %210 = vmatpush.msra.mxu0 0.0
      %211 = vmatpush.msra.mxu0 0.0
      %212 = vmatpush.msra.mxu0 0.0
      %213 = vmatpush.msra.mxu0 0.0
      %214 = vmatpush.msra.mxu0 0.0
      %215 = vmatpush.msra.mxu0 0.0
      %216 = vmatpush.msra.mxu0 0.0
      %217 = vmatpush.msra.mxu0 0.0
      %218 = vmatpush.msra.mxu0 %v194
      %219 = vmatmul.f32.gmra.mxu0 %v201
      %v220 = vpop.f32.mrf.mxu0
      %v221 = vadd.f32 %v197, %v220
      %222 = vdwg.mxu0
      %v223 = vld [vmem:[%s1] sm:$0xff]
      %v224 = vadd.f32 %v221, %v223
      %vm225 = vcmask 261120
      %226 = vst.msk [vmem:[%s192] sm:$0xff] %vm225, %v224
      %p227 = scmp.lt.s32.totalorder %s15, 1
      %s228 = scalar_select %p227, %s15, 1
      %s229 = smul.addr %s228, 8
      %s230 = scalar_lea.vmem %s4, %s229
      // Predicated region
      $region37: #{time_series_transformer_fwd.8} parent=35 // pred_check
        %p231 = pneg %p122
      $region38: #{time_series_transformer_fwd.8} parent=35 // pred_check_branch
        %233 = sbr.rel (%p231) target = $region40
      $region39: #{time_series_transformer_fwd.8} parent=35 // pred_region
        _
      $region40: #{time_series_transformer_fwd.8} parent=35 // pred_fallthru
        _
    $region36: #{time_series_transformer_fwd.8} parent=5 // pred_fallthru
      _
    %p234 = scmp.le.s32.totalorder 2, %s10
    // Predicated region
    $region41: #{time_series_transformer_fwd.8} parent=5 // pred_check
      %p235 = pneg %p234
    $region42: #{time_series_transformer_fwd.8} parent=5 // pred_check_branch
      %237 = sbr.rel (%p235) target = $region44
    $region43: #{time_series_transformer_fwd.8} parent=5 // pred_region
      %s238 = ssub.s32 %s10, 2
      // Predicated region
      $region45: #{time_series_transformer_fwd.8} parent=43 // pred_check
        %p239 = pneg %p128
      $region46: #{time_series_transformer_fwd.8} parent=43 // pred_check_branch
        %241 = sbr.rel (%p239) target = $region48
      $region47: #{time_series_transformer_fwd.8} parent=43 // pred_region
        %p242 = scmp.lt.s32.totalorder %s16, 1
        %s243 = scalar_select %p242, %s16, 1
        %s244 = smul.addr %s243, 8
        %s245 = scalar_lea.vmem %s4, %s244
      $region48: #{time_series_transformer_fwd.8} parent=43 // pred_fallthru
        _
    $region44: #{time_series_transformer_fwd.8} parent=5 // pred_fallthru
      _
  $region6: #{time_series_transformer_fwd.8} parent=0 // loop_footer
    %s14 = sadd.s32 1, %s10
  $region7: #{time_series_transformer_fwd.8} parent=0 // loop_footer_branch
    %9 = sbr.rel target = $region3
  $region8: #{time_series_transformer_fwd.8} parent=0 // loop_exit
    _

// kernel: time_series_transformer_fwd.9
$region0: #{time_series_transformer_fwd.9}
  #allocation0 [shape = 'u32[]', space=smem, size = 0x4, offset = 0x4, fixed_abs, tag = 'smem constant byte address 0x4 - core index']
  #allocation1 [shape = 'u32[72,128]{1,0:T(1,128)}', space=vmem, size = 0x9000, scoped, tag = 'internal scratch']
  %s0 = inlined_call_operand.vmem [shape: f32[2,8,32], index: 0, kind: input, shape index: {}]
  %s1 = inlined_call_operand.vmem [shape: bf16[32,96], index: 1, kind: input, shape index: {}]
  %s2 = inlined_call_operand.vmem [shape: f32[1,96], index: 2, kind: input, shape index: {}]
  %s3 = inlined_call_operand.vmem [shape: bf16[32,32], index: 3, kind: input, shape index: {}]
  %s4 = inlined_call_operand.vmem [shape: f32[1,32], index: 4, kind: input, shape index: {}]
  %s5 = inlined_call_operand.vmem [shape: f32[1,32], index: 5, kind: input, shape index: {}]
  %s6 = inlined_call_operand.vmem [shape: f32[1,32], index: 6, kind: input, shape index: {}]
  %s7 = inlined_call_operand.vmem [shape: bf16[32,64], index: 7, kind: input, shape index: {}]
  %s8 = inlined_call_operand.vmem [shape: f32[1,64], index: 8, kind: input, shape index: {}]
  %s9 = inlined_call_operand.vmem [shape: bf16[64,32], index: 9, kind: input, shape index: {}]
  %s10 = inlined_call_operand.vmem [shape: f32[1,32], index: 10, kind: input, shape index: {}]
  %s11 = inlined_call_operand.vmem [shape: f32[1,32], index: 11, kind: input, shape index: {}]
  %s12 = inlined_call_operand.vmem [shape: f32[1,32], index: 12, kind: input, shape index: {}]
  %s13 = inlined_call_operand.vmem [shape: f32[2,8,32], index: 13, kind: output, shape index: {}]
  %s14 = sld [smem:[#allocation0]]
  $region85: #{time_series_transformer_fwd.9} parent=0
    _
  %s16 = ssub.s32 1, %s14
  %s17 = scalar_select 0, %s16, %s14
  loop: start=0, step=1, limit=4
  $region2: #{time_series_transformer_fwd.9} parent=0 // loop_pre_header
    _
  $region3: #{time_series_transformer_fwd.9} parent=0 // loop_header
    %s19 = sphi 0, %s23
    %p20 = scmp.ge.s32.totalorder %s19, 4
    %s29 = sphi 0, %s31
    %s32 = sphi 0, %s29
    %s33 = sphi 0, %s32
    %s49 = sphi 0, %s33
    %s53 = sphi 0, %s53
    %s55 = sphi 0, %s53
    %s56 = sphi 0, %s55
    %s70 = sphi 0, %s56
    %s74 = sphi 0, %s74
    %s76 = sphi 0, %s74
    %s77 = sphi 0, %s76
    %s91 = sphi 0, %s77
    %s95 = sphi 0, %s95
    %s97 = sphi 0, %s95
    %s98 = sphi 0, %s97
    %s112 = sphi 0, %s98
    %s116 = sphi 0, %s116
    %s118 = sphi 0, %s116
    %s119 = sphi 0, %s118
    %s133 = sphi 0, %s119
    %s137 = sphi 0, %s137
    %s139 = sphi 0, %s137
    %s140 = sphi 0, %s139
    %s154 = sphi 0, %s140
    %s158 = sphi 0, %s158
    %s160 = sphi 0, %s158
    %s161 = sphi 0, %s160
    %s175 = sphi 0, %s161
    %s179 = sphi 0, %s179
    %s181 = sphi 0, %s179
    %s182 = sphi 0, %s181
    %s196 = sphi 0, %s182
    %s200 = sphi 0, %s200
    %s202 = sphi 0, %s200
    %s203 = sphi 0, %s202
    %s217 = sphi 0, %s203
    %s221 = sphi 0, %s221
    %s223 = sphi 0, %s221
    %s224 = sphi 0, %s223
    %s238 = sphi 0, %s224
    %s242 = sphi 0, %s242
    %s244 = sphi 0, %s242
    %s245 = sphi 0, %s244
    %s259 = sphi 0, %s245
    %s263 = sphi 0, %s263
    %s265 = sphi 0, %s263
    %s266 = sphi 0, %s265
    %s280 = sphi 0, %s266
    %s284 = sphi 0, %s284
    %s286 = sphi 0, %s284
    %s287 = sphi 0, %s286
    %s301 = sphi 0, %s287
    %s307 = sphi 0, %s309
    %s310 = sphi 0, %s307
    %s311 = sphi 0, %s310
    %s327 = sphi 0, %s311
  $region4: #{time_series_transformer_fwd.9} parent=0 // loop_header_branch
    %22 = sbr.rel (%p20) target = $region8
  $region5: #{time_series_transformer_fwd.9} parent=0 // loop_body
    %s24 = ssub.s32 %s19, 1
    %s25 = ssub.s32 %s19, 2
    %s26 = sadd.s32 %s19, 1
    %s27 = ssub.s32 %s19, %s26
    %p28 = scmp.eq.s32.totalorder %s27, 0
    %s30 = sadd.s32 %s29, 1
    %s31 = scalar_select %p28, %s29, %s30
    %p34 = pneg %p28
    %p35 = scmp.eq.s32.totalorder %s19, 1
    %p36 = por %p34, %p35
    %p37 = scmp.ne.s32.totalorder %s29, %s32
    %p38 = scmp.eq.s32.totalorder %s19, 0
    %p39 = por %p37, %p38
    %p40 = scmp.ne.s32.totalorder %s29, %s32
    %p41 = scmp.eq.s32.totalorder %s24, 1
    %p42 = por %p40, %p41
    %p43 = scmp.ne.s32.totalorder %s32, %s33
    %p44 = scmp.eq.s32.totalorder %s24, 0
    %p45 = por %p43, %p44
    %p46 = scmp.ne.s32.totalorder %s32, %s33
    %p47 = scmp.eq.s32.totalorder %s25, 1
    %p48 = por %p46, %p47
    %p50 = scmp.ne.s32.totalorder %s33, %s49
    %p51 = scmp.eq.s32.totalorder %s25, 0
    %p52 = por %p50, %p51
    %s54 = sadd.s32 %s53, 1
    %p57 = scmp.eq.s32.totalorder %s19, 1
    %p58 = scmp.ne.s32.totalorder %s53, %s55
    %p59 = scmp.eq.s32.totalorder %s19, 0
    %p60 = por %p58, %p59
    %p61 = scmp.ne.s32.totalorder %s53, %s55
    %p62 = scmp.eq.s32.totalorder %s24, 1
    %p63 = por %p61, %p62
    %p64 = scmp.ne.s32.totalorder %s55, %s56
    %p65 = scmp.eq.s32.totalorder %s24, 0
    %p66 = por %p64, %p65
    %p67 = scmp.ne.s32.totalorder %s55, %s56
    %p68 = scmp.eq.s32.totalorder %s25, 1
    %p69 = por %p67, %p68
    %p71 = scmp.ne.s32.totalorder %s56, %s70
    %p72 = scmp.eq.s32.totalorder %s25, 0
    %p73 = por %p71, %p72
    %s75 = sadd.s32 %s74, 1
    %p78 = scmp.eq.s32.totalorder %s19, 1
    %p79 = scmp.ne.s32.totalorder %s74, %s76
    %p80 = scmp.eq.s32.totalorder %s19, 0
    %p81 = por %p79, %p80
    %p82 = scmp.ne.s32.totalorder %s74, %s76
    %p83 = scmp.eq.s32.totalorder %s24, 1
    %p84 = por %p82, %p83
    %p85 = scmp.ne.s32.totalorder %s76, %s77
    %p86 = scmp.eq.s32.totalorder %s24, 0
    %p87 = por %p85, %p86
    %p88 = scmp.ne.s32.totalorder %s76, %s77
    %p89 = scmp.eq.s32.totalorder %s25, 1
    %p90 = por %p88, %p89
    %p92 = scmp.ne.s32.totalorder %s77, %s91
    %p93 = scmp.eq.s32.totalorder %s25, 0
    %p94 = por %p92, %p93
    %s96 = sadd.s32 %s95, 1
    %p99 = scmp.eq.s32.totalorder %s19, 1
    %p100 = scmp.ne.s32.totalorder %s95, %s97
    %p101 = scmp.eq.s32.totalorder %s19, 0
    %p102 = por %p100, %p101
    %p103 = scmp.ne.s32.totalorder %s95, %s97
    %p104 = scmp.eq.s32.totalorder %s24, 1
    %p105 = por %p103, %p104
    %p106 = scmp.ne.s32.totalorder %s97, %s98
    %p107 = scmp.eq.s32.totalorder %s24, 0
    %p108 = por %p106, %p107
    %p109 = scmp.ne.s32.totalorder %s97, %s98
    %p110 = scmp.eq.s32.totalorder %s25, 1
    %p111 = por %p109, %p110
    %p113 = scmp.ne.s32.totalorder %s98, %s112
    %p114 = scmp.eq.s32.totalorder %s25, 0
    %p115 = por %p113, %p114
    %s117 = sadd.s32 %s116, 1
    %p120 = scmp.eq.s32.totalorder %s19, 1
    %p121 = scmp.ne.s32.totalorder %s116, %s118
    %p122 = scmp.eq.s32.totalorder %s19, 0
    %p123 = por %p121, %p122
    %p124 = scmp.ne.s32.totalorder %s116, %s118
    %p125 = scmp.eq.s32.totalorder %s24, 1
    %p126 = por %p124, %p125
    %p127 = scmp.ne.s32.totalorder %s118, %s119
    %p128 = scmp.eq.s32.totalorder %s24, 0
    %p129 = por %p127, %p128
    %p130 = scmp.ne.s32.totalorder %s118, %s119
    %p131 = scmp.eq.s32.totalorder %s25, 1
    %p132 = por %p130, %p131
    %p134 = scmp.ne.s32.totalorder %s119, %s133
    %p135 = scmp.eq.s32.totalorder %s25, 0
    %p136 = por %p134, %p135
    %s138 = sadd.s32 %s137, 1
    %p141 = scmp.eq.s32.totalorder %s19, 1
    %p142 = scmp.ne.s32.totalorder %s137, %s139
    %p143 = scmp.eq.s32.totalorder %s19, 0
    %p144 = por %p142, %p143
    %p145 = scmp.ne.s32.totalorder %s137, %s139
    %p146 = scmp.eq.s32.totalorder %s24, 1
    %p147 = por %p145, %p146
    %p148 = scmp.ne.s32.totalorder %s139, %s140
    %p149 = scmp.eq.s32.totalorder %s24, 0
    %p150 = por %p148, %p149
    %p151 = scmp.ne.s32.totalorder %s139, %s140
    %p152 = scmp.eq.s32.totalorder %s25, 1
    %p153 = por %p151, %p152
    %p155 = scmp.ne.s32.totalorder %s140, %s154
    %p156 = scmp.eq.s32.totalorder %s25, 0
    %p157 = por %p155, %p156
    %s159 = sadd.s32 %s158, 1
    %p162 = scmp.eq.s32.totalorder %s19, 1
    %p163 = scmp.ne.s32.totalorder %s158, %s160
    %p164 = scmp.eq.s32.totalorder %s19, 0
    %p165 = por %p163, %p164
    %p166 = scmp.ne.s32.totalorder %s158, %s160
    %p167 = scmp.eq.s32.totalorder %s24, 1
    %p168 = por %p166, %p167
    %p169 = scmp.ne.s32.totalorder %s160, %s161
    %p170 = scmp.eq.s32.totalorder %s24, 0
    %p171 = por %p169, %p170
    %p172 = scmp.ne.s32.totalorder %s160, %s161
    %p173 = scmp.eq.s32.totalorder %s25, 1
    %p174 = por %p172, %p173
    %p176 = scmp.ne.s32.totalorder %s161, %s175
    %p177 = scmp.eq.s32.totalorder %s25, 0
    %p178 = por %p176, %p177
    %s180 = sadd.s32 %s179, 1
    %p183 = scmp.eq.s32.totalorder %s19, 1
    %p184 = scmp.ne.s32.totalorder %s179, %s181
    %p185 = scmp.eq.s32.totalorder %s19, 0
    %p186 = por %p184, %p185
    %p187 = scmp.ne.s32.totalorder %s179, %s181
    %p188 = scmp.eq.s32.totalorder %s24, 1
    %p189 = por %p187, %p188
    %p190 = scmp.ne.s32.totalorder %s181, %s182
    %p191 = scmp.eq.s32.totalorder %s24, 0
    %p192 = por %p190, %p191
    %p193 = scmp.ne.s32.totalorder %s181, %s182
    %p194 = scmp.eq.s32.totalorder %s25, 1
    %p195 = por %p193, %p194
    %p197 = scmp.ne.s32.totalorder %s182, %s196
    %p198 = scmp.eq.s32.totalorder %s25, 0
    %p199 = por %p197, %p198
    %s201 = sadd.s32 %s200, 1
    %p204 = scmp.eq.s32.totalorder %s19, 1
    %p205 = scmp.ne.s32.totalorder %s200, %s202
    %p206 = scmp.eq.s32.totalorder %s19, 0
    %p207 = por %p205, %p206
    %p208 = scmp.ne.s32.totalorder %s200, %s202
    %p209 = scmp.eq.s32.totalorder %s24, 1
    %p210 = por %p208, %p209
    %p211 = scmp.ne.s32.totalorder %s202, %s203
    %p212 = scmp.eq.s32.totalorder %s24, 0
    %p213 = por %p211, %p212
    %p214 = scmp.ne.s32.totalorder %s202, %s203
    %p215 = scmp.eq.s32.totalorder %s25, 1
    %p216 = por %p214, %p215
    %p218 = scmp.ne.s32.totalorder %s203, %s217
    %p219 = scmp.eq.s32.totalorder %s25, 0
    %p220 = por %p218, %p219
    %s222 = sadd.s32 %s221, 1
    %p225 = scmp.eq.s32.totalorder %s19, 1
    %p226 = scmp.ne.s32.totalorder %s221, %s223
    %p227 = scmp.eq.s32.totalorder %s19, 0
    %p228 = por %p226, %p227
    %p229 = scmp.ne.s32.totalorder %s221, %s223
    %p230 = scmp.eq.s32.totalorder %s24, 1
    %p231 = por %p229, %p230
    %p232 = scmp.ne.s32.totalorder %s223, %s224
    %p233 = scmp.eq.s32.totalorder %s24, 0
    %p234 = por %p232, %p233
    %p235 = scmp.ne.s32.totalorder %s223, %s224
    %p236 = scmp.eq.s32.totalorder %s25, 1
    %p237 = por %p235, %p236
    %p239 = scmp.ne.s32.totalorder %s224, %s238
    %p240 = scmp.eq.s32.totalorder %s25, 0
    %p241 = por %p239, %p240
    %s243 = sadd.s32 %s242, 1
    %p246 = scmp.eq.s32.totalorder %s19, 1
    %p247 = scmp.ne.s32.totalorder %s242, %s244
    %p248 = scmp.eq.s32.totalorder %s19, 0
    %p249 = por %p247, %p248
    %p250 = scmp.ne.s32.totalorder %s242, %s244
    %p251 = scmp.eq.s32.totalorder %s24, 1
    %p252 = por %p250, %p251
    %p253 = scmp.ne.s32.totalorder %s244, %s245
    %p254 = scmp.eq.s32.totalorder %s24, 0
    %p255 = por %p253, %p254
    %p256 = scmp.ne.s32.totalorder %s244, %s245
    %p257 = scmp.eq.s32.totalorder %s25, 1
    %p258 = por %p256, %p257
    %p260 = scmp.ne.s32.totalorder %s245, %s259
    %p261 = scmp.eq.s32.totalorder %s25, 0
    %p262 = por %p260, %p261
    %s264 = sadd.s32 %s263, 1
    %p267 = scmp.eq.s32.totalorder %s19, 1
    %p268 = scmp.ne.s32.totalorder %s263, %s265
    %p269 = scmp.eq.s32.totalorder %s19, 0
    %p270 = por %p268, %p269
    %p271 = scmp.ne.s32.totalorder %s263, %s265
    %p272 = scmp.eq.s32.totalorder %s24, 1
    %p273 = por %p271, %p272
    %p274 = scmp.ne.s32.totalorder %s265, %s266
    %p275 = scmp.eq.s32.totalorder %s24, 0
    %p276 = por %p274, %p275
    %p277 = scmp.ne.s32.totalorder %s265, %s266
    %p278 = scmp.eq.s32.totalorder %s25, 1
    %p279 = por %p277, %p278
    %p281 = scmp.ne.s32.totalorder %s266, %s280
    %p282 = scmp.eq.s32.totalorder %s25, 0
    %p283 = por %p281, %p282
    %s285 = sadd.s32 %s284, 1
    %p288 = scmp.eq.s32.totalorder %s19, 1
    %p289 = scmp.ne.s32.totalorder %s284, %s286
    %p290 = scmp.eq.s32.totalorder %s19, 0
    %p291 = por %p289, %p290
    %p292 = scmp.ne.s32.totalorder %s284, %s286
    %p293 = scmp.eq.s32.totalorder %s24, 1
    %p294 = por %p292, %p293
    %p295 = scmp.ne.s32.totalorder %s286, %s287
    %p296 = scmp.eq.s32.totalorder %s24, 0
    %p297 = por %p295, %p296
    %p298 = scmp.ne.s32.totalorder %s286, %s287
    %p299 = scmp.eq.s32.totalorder %s25, 1
    %p300 = por %p298, %p299
    %p302 = scmp.ne.s32.totalorder %s287, %s301
    %p303 = scmp.eq.s32.totalorder %s25, 0
    %p304 = por %p302, %p303
    %s305 = ssub.s32 %s19, %s26
    %p306 = scmp.eq.s32.totalorder %s305, 0
    %s308 = sadd.s32 %s307, 1
    %s309 = scalar_select %p306, %s307, %s308
    %p312 = pneg %p306
    %p313 = scmp.eq.s32.totalorder %s19, 1
    %p314 = por %p312, %p313
    %p315 = scmp.ne.s32.totalorder %s307, %s310
    %p316 = scmp.eq.s32.totalorder %s19, 0
    %p317 = por %p315, %p316
    %p318 = scmp.ne.s32.totalorder %s307, %s310
    %p319 = scmp.eq.s32.totalorder %s24, 1
    %p320 = por %p318, %p319
    %p321 = scmp.ne.s32.totalorder %s310, %s311
    %p322 = scmp.eq.s32.totalorder %s24, 0
    %p323 = por %p321, %p322
    %p324 = scmp.ne.s32.totalorder %s310, %s311
    %p325 = scmp.eq.s32.totalorder %s25, 1
    %p326 = por %p324, %p325
    %p328 = scmp.ne.s32.totalorder %s311, %s327
    %p329 = scmp.eq.s32.totalorder %s25, 0
    %p330 = por %p328, %p329
    %p331 = scmp.le.s32.totalorder 1, %s19
    %p332 = scmp.lt.s32.totalorder %s19, 3
    %p333 = pnand %p331, %p332
    %p334 = pneg %p333
    // Predicated region
    $region9: #{time_series_transformer_fwd.9} parent=5 // pred_check
      _
    $region10: #{time_series_transformer_fwd.9} parent=5 // pred_check_branch
      %336 = sbr.rel (%p333) target = $region12
    $region11: #{time_series_transformer_fwd.9} parent=5 // pred_region
      %s337 = ssub.s32 %s19, 1
      // Predicated region
      $region13: #{time_series_transformer_fwd.9} parent=11 // pred_check
        %p338 = pneg %p66
      $region14: #{time_series_transformer_fwd.9} parent=11 // pred_check_branch
        %340 = sbr.rel (%p338) target = $region16
      $region15: #{time_series_transformer_fwd.9} parent=11 // pred_region
        _
      $region16: #{time_series_transformer_fwd.9} parent=11 // pred_fallthru
        _
      // Predicated region
      $region17: #{time_series_transformer_fwd.9} parent=11 // pred_check
        %p341 = pneg %p87
      $region18: #{time_series_transformer_fwd.9} parent=11 // pred_check_branch
        %343 = sbr.rel (%p341) target = $region20
      $region19: #{time_series_transformer_fwd.9} parent=11 // pred_region
        _
      $region20: #{time_series_transformer_fwd.9} parent=11 // pred_fallthru
        _
      // Predicated region
      $region21: #{time_series_transformer_fwd.9} parent=11 // pred_check
        %p344 = pneg %p108
      $region22: #{time_series_transformer_fwd.9} parent=11 // pred_check_branch
        %346 = sbr.rel (%p344) target = $region24
      $region23: #{time_series_transformer_fwd.9} parent=11 // pred_region
        _
      $region24: #{time_series_transformer_fwd.9} parent=11 // pred_fallthru
        _
      // Predicated region
      $region25: #{time_series_transformer_fwd.9} parent=11 // pred_check
        %p347 = pneg %p129
      $region26: #{time_series_transformer_fwd.9} parent=11 // pred_check_branch
        %349 = sbr.rel (%p347) target = $region28
      $region27: #{time_series_transformer_fwd.9} parent=11 // pred_region
        _
      $region28: #{time_series_transformer_fwd.9} parent=11 // pred_fallthru
        _
      // Predicated region
      $region29: #{time_series_transformer_fwd.9} parent=11 // pred_check
        %p350 = pneg %p150
      $region30: #{time_series_transformer_fwd.9} parent=11 // pred_check_branch
        %352 = sbr.rel (%p350) target = $region32
      $region31: #{time_series_transformer_fwd.9} parent=11 // pred_region
        _
      $region32: #{time_series_transformer_fwd.9} parent=11 // pred_fallthru
        _
      // Predicated region
      $region33: #{time_series_transformer_fwd.9} parent=11 // pred_check
        %p353 = pneg %p171
      $region34: #{time_series_transformer_fwd.9} parent=11 // pred_check_branch
        %355 = sbr.rel (%p353) target = $region36
      $region35: #{time_series_transformer_fwd.9} parent=11 // pred_region
        _
      $region36: #{time_series_transformer_fwd.9} parent=11 // pred_fallthru
        _
      // Predicated region
      $region37: #{time_series_transformer_fwd.9} parent=11 // pred_check
        %p356 = pneg %p192
      $region38: #{time_series_transformer_fwd.9} parent=11 // pred_check_branch
        %358 = sbr.rel (%p356) target = $region40
      $region39: #{time_series_transformer_fwd.9} parent=11 // pred_region
        _
      $region40: #{time_series_transformer_fwd.9} parent=11 // pred_fallthru
        _
      // Predicated region
      $region41: #{time_series_transformer_fwd.9} parent=11 // pred_check
        %p359 = pneg %p213
      $region42: #{time_series_transformer_fwd.9} parent=11 // pred_check_branch
        %361 = sbr.rel (%p359) target = $region44
      $region43: #{time_series_transformer_fwd.9} parent=11 // pred_region
        _
      $region44: #{time_series_transformer_fwd.9} parent=11 // pred_fallthru
        _
      // Predicated region
      $region45: #{time_series_transformer_fwd.9} parent=11 // pred_check
        %p362 = pneg %p234
      $region46: #{time_series_transformer_fwd.9} parent=11 // pred_check_branch
        %364 = sbr.rel (%p362) target = $region48
      $region47: #{time_series_transformer_fwd.9} parent=11 // pred_region
        _
      $region48: #{time_series_transformer_fwd.9} parent=11 // pred_fallthru
        _
      // Predicated region
      $region49: #{time_series_transformer_fwd.9} parent=11 // pred_check
        %p365 = pneg %p255
      $region50: #{time_series_transformer_fwd.9} parent=11 // pred_check_branch
        %367 = sbr.rel (%p365) target = $region52
      $region51: #{time_series_transformer_fwd.9} parent=11 // pred_region
        _
      $region52: #{time_series_transformer_fwd.9} parent=11 // pred_fallthru
        _
      // Predicated region
      $region53: #{time_series_transformer_fwd.9} parent=11 // pred_check
        %p368 = pneg %p276
      $region54: #{time_series_transformer_fwd.9} parent=11 // pred_check_branch
        %370 = sbr.rel (%p368) target = $region56
      $region55: #{time_series_transformer_fwd.9} parent=11 // pred_region
        _
      $region56: #{time_series_transformer_fwd.9} parent=11 // pred_fallthru
        _
      // Predicated region
      $region57: #{time_series_transformer_fwd.9} parent=11 // pred_check
        %p371 = pneg %p297
      $region58: #{time_series_transformer_fwd.9} parent=11 // pred_check_branch
        %373 = sbr.rel (%p371) target = $region60
      $region59: #{time_series_transformer_fwd.9} parent=11 // pred_region
        _
      $region60: #{time_series_transformer_fwd.9} parent=11 // pred_fallthru
        _
    $region12: #{time_series_transformer_fwd.9} parent=5 // pred_fallthru
      _
    %p374 = scmp.lt.s32.totalorder %s19, 2
    // Predicated region
    $region61: #{time_series_transformer_fwd.9} parent=5 // pred_check
      %p375 = pneg %p374
    $region62: #{time_series_transformer_fwd.9} parent=5 // pred_check_branch
      %377 = sbr.rel (%p375) target = $region64
    $region63: #{time_series_transformer_fwd.9} parent=5 // pred_region
      // Predicated region
      $region65: #{time_series_transformer_fwd.9} parent=63 // pred_check
        %p378 = pneg %p39
      $region66: #{time_series_transformer_fwd.9} parent=63 // pred_check_branch
        %380 = sbr.rel (%p378) target = $region68
      $region67: #{time_series_transformer_fwd.9} parent=63 // pred_region
        %p381 = scmp.lt.s32.totalorder %s19, 1
        %s382 = scalar_select %p381, %s19, 1
        %s383 = smul.addr %s382, 8
        %s384 = scalar_lea.vmem %s0, %s383
      $region68: #{time_series_transformer_fwd.9} parent=63 // pred_fallthru
        _
    $region64: #{time_series_transformer_fwd.9} parent=5 // pred_fallthru
      _
    %p385 = scmp.le.s32.totalorder 1, %s19
    %p386 = scmp.lt.s32.totalorder %s19, 3
    %p387 = pnand %p385, %p386
    %p388 = pneg %p387
    // Predicated region
    $region69: #{time_series_transformer_fwd.9} parent=5 // pred_check
      _
    $region70: #{time_series_transformer_fwd.9} parent=5 // pred_check_branch
      %390 = sbr.rel (%p387) target = $region72
    $region71: #{time_series_transformer_fwd.9} parent=5 // pred_region
      %s391 = ssub.s32 %s19, 1
      %p392 = scmp.lt.s32.totalorder %s24, 1
      %s393 = scalar_select %p392, %s24, 1
      %s394 = smul.addr %s393, 8
      %s395 = scalar_lea.vmem %s0, %s394
      %p396 = pneg %p45
      %p397 = pneg %p42
      %p398 = pneg %p66
      %p399 = pneg %p63
      %p400 = pneg %p87
      %p401 = pneg %p84
      %p402 = pneg %p108
      %p403 = pneg %p105
      %p404 = pneg %p129
      %p405 = pneg %p126
      %p406 = pneg %p150
      %p407 = pneg %p147
      %p408 = pneg %p171
      %p409 = pneg %p168
      %p410 = pneg %p192
      %p411 = pneg %p189
      %p412 = pneg %p213
      %p413 = pneg %p210
      %p414 = pneg %p234
      %p415 = pneg %p231
      %p416 = pneg %p255
      %p417 = pneg %p252
      %p418 = pneg %p276
      %p419 = pneg %p273
      %p420 = pneg %p297
      %p421 = pneg %p294
      %p422 = pneg %p323
      %p423 = pneg %p320
      %p424 = scmp.lt.s32.totalorder %s24, 1
      %s425 = scalar_select %p424, %s24, 1
      %s426 = smul.addr %s425, 8
      %s427 = scalar_lea.vmem %s13, %s426
      %p428 = scmp.lt.s32.totalorder %s24, 1
      %s429 = scalar_select %p428, %s24, 1
      %s430 = smul.addr %s429, 8
      %s431 = scalar_lea.vmem %s0, %s430
      %p432 = scmp.lt.s32.totalorder %s24, 1
      %s433 = scalar_select %p432, %s24, 1
      %s434 = smul.addr %s433, 8
      %s435 = scalar_lea.vmem %s13, %s434
      %v437 = vld [vmem:[%s431] sm:$0xff]
      %v438 = vld [vmem:[%s1] sm:$0xf]
      %v439 = vld [vmem:[%s1 + $0x4] sm:$0xf]
      %v440 = vld [vmem:[%s1 + $0x8] sm:$0xf]
      %v441 = vld [vmem:[%s1 + $0xc] sm:$0xf]
      %v442 = vpack.c.bf16 %v437, %v437
      %v443 = vld [vmem:[%s2] sm:$0x1]
      %v445 = vperm.slane %v443, 0
      %v451 = vunpack.c.l.b16 %v438
      %v452 = vunpack.c.l.b16 %v439
      %v453 = vunpack.c.l.b16 %v440
      %v454 = vunpack.c.l.b16 %v441
      %v455 = vpack.c.b16 %v452, %v451
      %v456 = vpack.c.b16 %v454, %v453
      %vm459 = vcmask 261120
      %v461 = vsel %vm459, %v442, 0
      %463 = vmatpush.bf16.msra.mxu0 0
      %464 = vmatpush.bf16.msra.mxu0 0
      %465 = vmatpush.bf16.msra.mxu0 0
      %466 = vmatpush.bf16.msra.mxu0 0
      %467 = vmatpush.bf16.msra.mxu0 0
      %468 = vmatpush.bf16.msra.mxu0 0
      %469 = vmatpush.bf16.msra.mxu0 %v456
      %470 = vmatpush.bf16.msra.mxu0 %v455
      %471 = vmatmul.bf16.gmra.mxu0 %v461
      %v472 = vpop.f32.mrf.mxu0
      %v473 = vadd.f32 %v445, %v472
      %v474 = vpop.f32.mrf.mxu0
      %475 = vdwg.mxu0
      %v476 = vpack.c.bf16 %v473, %v473
      %478 = vrot.lane.b32.xlu0 %v476, 96
      %v479 = vpop.permute.xlu0 %478
      %vm480 = vcmask 64512
      %v482 = vsel %vm480, %v476, 0
      %v485 = vsel %vm480, %v479, 0
      %487 = vmatpush.bf16.xpose.msra.mxu0 0
      %488 = vmatpush.bf16.xpose.msra.mxu0 0
      %489 = vmatpush.bf16.xpose.msra.mxu0 0
      %490 = vmatpush.bf16.xpose.msra.mxu0 0
      %491 = vmatpush.bf16.xpose.msra.mxu0 0
      %492 = vmatpush.bf16.xpose.msra.mxu0 0
      %493 = vmatpush.bf16.xpose.msra.mxu0 0
      %494 = vmatpush.bf16.xpose.msra.mxu0 %v485
      %495 = vmatmul.bf16.gmra.mxu0 %v482
      %v496 = vpop.f32.mrf.mxu0
      %v497 = vadd.f32 0.0, %v496
      %v498 = vpop.f32.mrf.mxu0
      %499 = vdwg.mxu0
      %v500 = vmul.f32 %v497, 0.35355338
      %v501 = vsel %vm480, %v500, -inf
      %502 = vmax.xlane.f32.xlu0 %v501
      %v503 = vpop.xlane.xlu0 %502
      %v504 = vsub.f32 %v500, %v503
      %v505 = vmul.f32 %v504, 1.442695
      %v506 = vpow.pop %v505
      %v507 = vsel %vm480, %v506, 0.0
      %508 = vadd.xlane.f32.xlu0 %v507
      %v509 = vpop.xlane.xlu0 %508
      %v510 = vrcp.pop %v509
      %v511 = vmul.f32 %v506, %v510
      %v512 = vpack.c.bf16 %v511, %v511
      %513 = vrot.lane.b32.xlu0 %v476, 64
      %v514 = vpop.permute.xlu0 %513
      %v516 = vsel %vm480, %v512, 0
      %vm518 = vcmask 1043456
      %v520 = vsel %vm518, %v514, 0
      %522 = vmatpush.bf16.msra.mxu0 0
      %523 = vmatpush.bf16.msra.mxu0 0
      %524 = vmatpush.bf16.msra.mxu0 0
      %525 = vmatpush.bf16.msra.mxu0 0
      %526 = vmatpush.bf16.msra.mxu0 0
      %527 = vmatpush.bf16.msra.mxu0 0
      %528 = vmatpush.bf16.msra.mxu0 0
      %529 = vmatpush.bf16.msra.mxu0 %v520
      %530 = vmatmul.bf16.gmra.mxu0 %v516
      %v531 = vpop.f32.mrf.mxu0
      %v532 = vadd.f32 0.0, %v531
      %v533 = vpop.f32.mrf.mxu0
      %534 = vdwg.mxu0
      %535 = vrot.lane.b32.xlu0 %v476, 120
      %v536 = vpop.permute.xlu0 %535
      %537 = vrot.lane.b32.xlu0 %v476, 88
      %v538 = vpop.permute.xlu0 %537
      %v540 = vsel %vm480, %v536, 0
      %v543 = vsel %vm480, %v538, 0
      %545 = vmatpush.bf16.xpose.msra.mxu0 0
      %546 = vmatpush.bf16.xpose.msra.mxu0 0
      %547 = vmatpush.bf16.xpose.msra.mxu0 0
      %548 = vmatpush.bf16.xpose.msra.mxu0 0
      %549 = vmatpush.bf16.xpose.msra.mxu0 0
      %550 = vmatpush.bf16.xpose.msra.mxu0 0
      %551 = vmatpush.bf16.xpose.msra.mxu0 0
      %552 = vmatpush.bf16.xpose.msra.mxu0 %v543
      %553 = vmatmul.bf16.gmra.mxu0 %v540
      %v554 = vpop.f32.mrf.mxu0
      %v555 = vadd.f32 0.0, %v554
      %v556 = vpop.f32.mrf.mxu0
      %557 = vdwg.mxu0
      %v558 = vmul.f32 %v555, 0.35355338
      %v559 = vsel %vm480, %v558, -inf
      %560 = vmax.xlane.f32.xlu0 %v559
      %v561 = vpop.xlane.xlu0 %560
      %v562 = vsub.f32 %v558, %v561
      %v563 = vmul.f32 %v562, 1.442695
      %v564 = vpow.pop %v563
      %v565 = vsel %vm480, %v564, 0.0
      %566 = vadd.xlane.f32.xlu0 %v565
      %v567 = vpop.xlane.xlu0 %566
      %v568 = vrcp.pop %v567
      %v569 = vmul.f32 %v564, %v568
      %v570 = vpack.c.bf16 %v569, %v569
      %571 = vrot.lane.b32.xlu0 %v476, 56
      %v572 = vpop.permute.xlu0 %571
      %v574 = vsel %vm480, %v570, 0
      %v577 = vsel %vm518, %v572, 0
      %579 = vmatpush.bf16.msra.mxu0 0
      %580 = vmatpush.bf16.msra.mxu0 0
      %581 = vmatpush.bf16.msra.mxu0 0
      %582 = vmatpush.bf16.msra.mxu0 0
      %583 = vmatpush.bf16.msra.mxu0 0
      %584 = vmatpush.bf16.msra.mxu0 0
      %585 = vmatpush.bf16.msra.mxu0 0
      %586 = vmatpush.bf16.msra.mxu0 %v577
      %587 = vmatmul.bf16.gmra.mxu0 %v574
      %v588 = vpop.f32.mrf.mxu0
      %v589 = vadd.f32 0.0, %v588
      %v590 = vpop.f32.mrf.mxu0
      %591 = vdwg.mxu0
      %592 = vrot.lane.b32.xlu0 %v476, 112
      %v593 = vpop.permute.xlu0 %592
      %594 = vrot.lane.b32.xlu0 %v476, 80
      %v595 = vpop.permute.xlu0 %594
      %v597 = vsel %vm480, %v593, 0
      %v600 = vsel %vm480, %v595, 0
      %602 = vmatpush.bf16.xpose.msra.mxu0 0
      %603 = vmatpush.bf16.xpose.msra.mxu0 0
      %604 = vmatpush.bf16.xpose.msra.mxu0 0
      %605 = vmatpush.bf16.xpose.msra.mxu0 0
      %606 = vmatpush.bf16.xpose.msra.mxu0 0
      %607 = vmatpush.bf16.xpose.msra.mxu0 0
      %608 = vmatpush.bf16.xpose.msra.mxu0 0
      %609 = vmatpush.bf16.xpose.msra.mxu0 %v600
      %610 = vmatmul.bf16.gmra.mxu0 %v597
      %v611 = vpop.f32.mrf.mxu0
      %v612 = vadd.f32 0.0, %v611
      %v613 = vpop.f32.mrf.mxu0
      %614 = vdwg.mxu0
      %v615 = vmul.f32 %v612, 0.35355338
      %v616 = vsel %vm480, %v615, -inf
      %617 = vmax.xlane.f32.xlu0 %v616
      %v618 = vpop.xlane.xlu0 %617
      %v619 = vsub.f32 %v615, %v618
      %v620 = vmul.f32 %v619, 1.442695
      %v621 = vpow.pop %v620
      %v622 = vsel %vm480, %v621, 0.0
      %623 = vadd.xlane.f32.xlu0 %v622
      %v624 = vpop.xlane.xlu0 %623
      %v625 = vrcp.pop %v624
      %v626 = vmul.f32 %v621, %v625
      %v627 = vpack.c.bf16 %v626, %v626
      %628 = vrot.lane.b32.xlu0 %v476, 48
      %v629 = vpop.permute.xlu0 %628
      %v631 = vsel %vm480, %v627, 0
      %v634 = vsel %vm518, %v629, 0
      %636 = vmatpush.bf16.msra.mxu0 0
      %637 = vmatpush.bf16.msra.mxu0 0
      %638 = vmatpush.bf16.msra.mxu0 0
      %639 = vmatpush.bf16.msra.mxu0 0
      %640 = vmatpush.bf16.msra.mxu0 0
      %641 = vmatpush.bf16.msra.mxu0 0
      %642 = vmatpush.bf16.msra.mxu0 0
      %643 = vmatpush.bf16.msra.mxu0 %v634
      %644 = vmatmul.bf16.gmra.mxu0 %v631
      %v645 = vpop.f32.mrf.mxu0
      %v646 = vadd.f32 0.0, %v645
      %v647 = vpop.f32.mrf.mxu0
      %648 = vdwg.mxu0
      %649 = vrot.lane.b32.xlu0 %v476, 104
      %v650 = vpop.permute.xlu0 %649
      %651 = vrot.lane.b32.xlu0 %v476, 72
      %v652 = vpop.permute.xlu0 %651
      %v654 = vsel %vm480, %v650, 0
      %v657 = vsel %vm480, %v652, 0
      %659 = vmatpush.bf16.xpose.msra.mxu0 0
      %660 = vmatpush.bf16.xpose.msra.mxu0 0
      %661 = vmatpush.bf16.xpose.msra.mxu0 0
      %662 = vmatpush.bf16.xpose.msra.mxu0 0
      %663 = vmatpush.bf16.xpose.msra.mxu0 0
      %664 = vmatpush.bf16.xpose.msra.mxu0 0
      %665 = vmatpush.bf16.xpose.msra.mxu0 0
      %666 = vmatpush.bf16.xpose.msra.mxu0 %v657
      %667 = vmatmul.bf16.gmra.mxu0 %v654
      %v668 = vpop.f32.mrf.mxu0
      %v669 = vadd.f32 0.0, %v668
      %v670 = vpop.f32.mrf.mxu0
      %671 = vdwg.mxu0
      %v672 = vmul.f32 %v669, 0.35355338
      %v673 = vsel %vm480, %v672, -inf
      %674 = vmax.xlane.f32.xlu0 %v673
      %v675 = vpop.xlane.xlu0 %674
      %v676 = vsub.f32 %v672, %v675
      %v677 = vmul.f32 %v676, 1.442695
      %v678 = vpow.pop %v677
      %v679 = vsel %vm480, %v678, 0.0
      %680 = vadd.xlane.f32.xlu0 %v679
      %v681 = vpop.xlane.xlu0 %680
      %v682 = vrcp.pop %v681
      %v683 = vmul.f32 %v678, %v682
      %v684 = vpack.c.bf16 %v683, %v683
      %685 = vrot.lane.b32.xlu0 %v476, 40
      %v686 = vpop.permute.xlu0 %685
      %v688 = vsel %vm480, %v684, 0
      %v691 = vsel %vm518, %v686, 0
      %693 = vmatpush.bf16.msra.mxu0 0
      %694 = vmatpush.bf16.msra.mxu0 0
      %695 = vmatpush.bf16.msra.mxu0 0
      %696 = vmatpush.bf16.msra.mxu0 0
      %697 = vmatpush.bf16.msra.mxu0 0
      %698 = vmatpush.bf16.msra.mxu0 0
      %699 = vmatpush.bf16.msra.mxu0 0
      %700 = vmatpush.bf16.msra.mxu0 %v691
      %701 = vmatmul.bf16.gmra.mxu0 %v688
      %v702 = vpop.f32.mrf.mxu0
      %v703 = vadd.f32 0.0, %v702
      %v704 = vpop.f32.mrf.mxu0
      %705 = vdwg.mxu0
      %707 = vrot.lane.b32.xlu0 %v589, 8
      %v708 = vpop.permute.xlu0 %707
      %711 = vrot.lane.b32.xlu0 %v646, 16
      %v712 = vpop.permute.xlu0 %711
      %715 = vrot.lane.b32.xlu0 %v703, 24
      %v716 = vpop.permute.xlu0 %715
      %v718 = vsel %vm480, %v532, %v708
      %vm719 = vcmask 130048
      %v720 = vsel %vm719, %v718, %v712
      %vm721 = vcmask 195584
      %v722 = vsel %vm721, %v720, %v716
      %v723 = vld [vmem:[%s3] sm:$0xf]
      %v724 = vld [vmem:[%s3 + $0x4] sm:$0xf]
      %v725 = vld [vmem:[%s3 + $0x8] sm:$0xf]
      %v726 = vld [vmem:[%s3 + $0xc] sm:$0xf]
      %v727 = vpack.c.bf16 %v722, %v722
      %v728 = vld [vmem:[%s4] sm:$0x1]
      %v730 = vperm.slane %v728, 0
      %v736 = vunpack.c.l.b16 %v723
      %v737 = vunpack.c.l.b16 %v724
      %v738 = vunpack.c.l.b16 %v725
      %v739 = vunpack.c.l.b16 %v726
      %v740 = vpack.c.b16 %v737, %v736
      %v741 = vpack.c.b16 %v739, %v738
      %v745 = vsel %vm459, %v727, 0
      %747 = vmatpush.bf16.msra.mxu0 0
      %748 = vmatpush.bf16.msra.mxu0 0
      %749 = vmatpush.bf16.msra.mxu0 0
      %750 = vmatpush.bf16.msra.mxu0 0
      %751 = vmatpush.bf16.msra.mxu0 0
      %752 = vmatpush.bf16.msra.mxu0 0
      %753 = vmatpush.bf16.msra.mxu0 %v741
      %754 = vmatpush.bf16.msra.mxu0 %v740
      %755 = vmatmul.bf16.gmra.mxu0 %v745
      %v756 = vpop.f32.mrf.mxu0
      %v757 = vadd.f32 %v730, %v756
      %v758 = vpop.f32.mrf.mxu0
      %759 = vdwg.mxu0
      %v760 = vadd.f32 %v757, %v437
      %v761 = vld [vmem:[%s5] sm:$0x1]
      %v762 = vld [vmem:[%s6] sm:$0x1]
      %v763 = vsel %vm459, %v760, 0.0
      %764 = vadd.xlane.f32.xlu0 %v763
      %v765 = vpop.xlane.xlu0 %764
      %v766 = vrcp.pop 32.0
      %v767 = vmul.f32 32.0, %v766
      %v768 = vsub.f32 1.0, %v767
      %v769 = vmul.f32 %v766, %v768
      %v770 = vadd.f32 %v766, %v769
      %vm771 = vweird.f32 %v766
      %v772 = vsel %vm771, %v766, %v770
      %v773 = vmul.f32 %v765, %v772
      %v774 = vsub.f32 %v760, %v773
      %v775 = vmul.f32 %v774, %v774
      %v776 = vsel %vm459, %v775, 0.0
      %777 = vadd.xlane.f32.xlu0 %v776
      %v778 = vpop.xlane.xlu0 %777
      %v779 = vmul.f32 %v778, %v772
      %v780 = vadd.f32 %v779, 1e-05
      %v781 = vrsqrt.pop %v780
      %v782 = vmul.f32 %v781, %v780
      %v783 = vmul.f32 %v782, %v781
      %v784 = vmul.f32 0.5, %v783
      %v785 = vsub.f32 1.5, %v784
      %v786 = vmul.f32 %v781, %v785
      %vm787 = vweird.f32 %v780
      %vm788 = vweird.f32 %v781
      %vm789 = vmor %vm787, %vm788
      %v790 = vsel %vm789, %v781, %v786
      %v791 = vmul.f32 %v774, %v790
      %v793 = vperm.slane %v761, 0
      %v795 = vmul.f32 %v791, %v793
      %v797 = vperm.slane %v762, 0
      %v799 = vadd.f32 %v795, %v797
      %v800 = vld [vmem:[%s7] sm:$0xf]
      %v801 = vld [vmem:[%s7 + $0x4] sm:$0xf]
      %v802 = vld [vmem:[%s7 + $0x8] sm:$0xf]
      %v803 = vld [vmem:[%s7 + $0xc] sm:$0xf]
      %v804 = vpack.c.bf16 %v799, %v799
      %v805 = vld [vmem:[%s8] sm:$0x1]
      %v807 = vperm.slane %v805, 0
      %v813 = vunpack.c.l.b16 %v800
      %v814 = vunpack.c.l.b16 %v801
      %v815 = vunpack.c.l.b16 %v802
      %v816 = vunpack.c.l.b16 %v803
      %v817 = vpack.c.b16 %v814, %v813
      %v818 = vpack.c.b16 %v816, %v815
      %v822 = vsel %vm459, %v804, 0
      %824 = vmatpush.bf16.msra.mxu0 0
      %825 = vmatpush.bf16.msra.mxu0 0
      %826 = vmatpush.bf16.msra.mxu0 0
      %827 = vmatpush.bf16.msra.mxu0 0
      %828 = vmatpush.bf16.msra.mxu0 0
      %829 = vmatpush.bf16.msra.mxu0 0
      %830 = vmatpush.bf16.msra.mxu0 %v818
      %831 = vmatpush.bf16.msra.mxu0 %v817
      %832 = vmatmul.bf16.gmra.mxu0 %v822
      %v833 = vpop.f32.mrf.mxu0
      %v834 = vadd.f32 %v807, %v833
      %v835 = vpop.f32.mrf.mxu0
      %836 = vdwg.mxu0
      %v837 = vmax.f32 %v834, 0.0
      %v838 = vld [vmem:[%s9] sm:$0xf]
      %v839 = vld [vmem:[%s9 + $0x4] sm:$0xf]
      %v840 = vld [vmem:[%s9 + $0x8] sm:$0xf]
      %v841 = vld [vmem:[%s9 + $0xc] sm:$0xf]
      %v842 = vld [vmem:[%s9 + $0x10] sm:$0xf]
      %v843 = vld [vmem:[%s9 + $0x14] sm:$0xf]
      %v844 = vld [vmem:[%s9 + $0x18] sm:$0xf]
      %v845 = vld [vmem:[%s9 + $0x1c] sm:$0xf]
      %v846 = vpack.c.bf16 %v837, %v837
      %v847 = vld [vmem:[%s10] sm:$0x1]
      %v849 = vperm.slane %v847, 0
      %v859 = vunpack.c.l.b16 %v838
      %v860 = vunpack.c.l.b16 %v839
      %v861 = vunpack.c.l.b16 %v840
      %v862 = vunpack.c.l.b16 %v841
      %v863 = vunpack.c.l.b16 %v842
      %v864 = vunpack.c.l.b16 %v843
      %v865 = vunpack.c.l.b16 %v844
      %v866 = vunpack.c.l.b16 %v845
      %v867 = vpack.c.b16 %v860, %v859
      %v868 = vpack.c.b16 %v862, %v861
      %v869 = vpack.c.b16 %v864, %v863
      %v870 = vpack.c.b16 %v866, %v865
      %vm875 = vcmask 523264
      %v877 = vsel %vm875, %v846, 0
      %879 = vmatpush.bf16.msra.mxu0 0
      %880 = vmatpush.bf16.msra.mxu0 0
      %881 = vmatpush.bf16.msra.mxu0 0
      %882 = vmatpush.bf16.msra.mxu0 0
      %883 = vmatpush.bf16.msra.mxu0 %v870
      %884 = vmatpush.bf16.msra.mxu0 %v869
      %885 = vmatpush.bf16.msra.mxu0 %v868
      %886 = vmatpush.bf16.msra.mxu0 %v867
      %887 = vmatmul.bf16.gmra.mxu0 %v877
      %v888 = vpop.f32.mrf.mxu0
      %v889 = vadd.f32 %v849, %v888
      %v890 = vpop.f32.mrf.mxu0
      %891 = vdwg.mxu0
      %v892 = vadd.f32 %v889, %v799
      %v893 = vld [vmem:[%s11] sm:$0x1]
      %v894 = vld [vmem:[%s12] sm:$0x1]
      %v895 = vsel %vm459, %v892, 0.0
      %896 = vadd.xlane.f32.xlu0 %v895
      %v897 = vpop.xlane.xlu0 %896
      %v898 = vmul.f32 %v897, %v772
      %v899 = vsub.f32 %v892, %v898
      %v900 = vmul.f32 %v899, %v899
      %v901 = vsel %vm459, %v900, 0.0
      %902 = vadd.xlane.f32.xlu0 %v901
      %v903 = vpop.xlane.xlu0 %902
      %v904 = vmul.f32 %v903, %v772
      %v905 = vadd.f32 %v904, 1e-05
      %v906 = vrsqrt.pop %v905
      %v907 = vmul.f32 %v906, %v905
      %v908 = vmul.f32 %v907, %v906
      %v909 = vmul.f32 0.5, %v908
      %v910 = vsub.f32 1.5, %v909
      %v911 = vmul.f32 %v906, %v910
      %vm912 = vweird.f32 %v905
      %vm913 = vweird.f32 %v906
      %vm914 = vmor %vm912, %vm913
      %v915 = vsel %vm914, %v906, %v911
      %v916 = vmul.f32 %v899, %v915
      %v918 = vperm.slane %v893, 0
      %v920 = vmul.f32 %v916, %v918
      %v922 = vperm.slane %v894, 0
      %v924 = vadd.f32 %v920, %v922
      %925 = vst.msk [vmem:[%s435] sm:$0xff] %vm459, %v924
      %p926 = scmp.lt.s32.totalorder %s24, 1
      %s927 = scalar_select %p926, %s24, 1
      %s928 = smul.addr %s927, 8
      %s929 = scalar_lea.vmem %s13, %s928
      // Predicated region
      $region73: #{time_series_transformer_fwd.9} parent=71 // pred_check
        %p930 = pneg %p320
      $region74: #{time_series_transformer_fwd.9} parent=71 // pred_check_branch
        %932 = sbr.rel (%p930) target = $region76
      $region75: #{time_series_transformer_fwd.9} parent=71 // pred_region
        _
      $region76: #{time_series_transformer_fwd.9} parent=71 // pred_fallthru
        _
    $region72: #{time_series_transformer_fwd.9} parent=5 // pred_fallthru
      _
    %p933 = scmp.le.s32.totalorder 2, %s19
    // Predicated region
    $region77: #{time_series_transformer_fwd.9} parent=5 // pred_check
      %p934 = pneg %p933
    $region78: #{time_series_transformer_fwd.9} parent=5 // pred_check_branch
      %936 = sbr.rel (%p934) target = $region80
    $region79: #{time_series_transformer_fwd.9} parent=5 // pred_region
      %s937 = ssub.s32 %s19, 2
      // Predicated region
      $region81: #{time_series_transformer_fwd.9} parent=79 // pred_check
        %p938 = pneg %p326
      $region82: #{time_series_transformer_fwd.9} parent=79 // pred_check_branch
        %940 = sbr.rel (%p938) target = $region84
      $region83: #{time_series_transformer_fwd.9} parent=79 // pred_region
        %p941 = scmp.lt.s32.totalorder %s25, 1
        %s942 = scalar_select %p941, %s25, 1
        %s943 = smul.addr %s942, 8
        %s944 = scalar_lea.vmem %s13, %s943
      $region84: #{time_series_transformer_fwd.9} parent=79 // pred_fallthru
        _
    $region80: #{time_series_transformer_fwd.9} parent=5 // pred_fallthru
      _
  $region6: #{time_series_transformer_fwd.9} parent=0 // loop_footer
    %s23 = sadd.s32 1, %s19
  $region7: #{time_series_transformer_fwd.9} parent=0 // loop_footer_branch
    %18 = sbr.rel target = $region3
  $region8: #{time_series_transformer_fwd.9} parent=0 // loop_exit
    _

// kernel: time_series_transformer_fwd.15
$region0: #{time_series_transformer_fwd.15}
  #allocation0 [shape = 'u32[]', space=smem, size = 0x4, offset = 0x4, fixed_abs, tag = 'smem constant byte address 0x4 - core index']
  #allocation1 [shape = 'u32[72,128]{1,0:T(1,128)}', space=vmem, size = 0x9000, scoped, tag = 'internal scratch']
  %s0 = inlined_call_operand.vmem [shape: f32[2,8,32], index: 0, kind: input, shape index: {}]
  %s1 = inlined_call_operand.vmem [shape: f32[1,32], index: 1, kind: input, shape index: {}]
  %s2 = inlined_call_operand.vmem [shape: f32[1,32], index: 2, kind: input, shape index: {}]
  %s3 = inlined_call_operand.vmem [shape: f32[32,8], index: 3, kind: input, shape index: {}]
  %s4 = inlined_call_operand.vmem [shape: f32[1,8], index: 4, kind: input, shape index: {}]
  %s5 = inlined_call_operand.vmem [shape: f32[2,8,8], index: 5, kind: output, shape index: {}]
  %s6 = sld [smem:[#allocation0]]
  $region53: #{time_series_transformer_fwd.15} parent=0
    _
  %s8 = ssub.s32 1, %s6
  %s9 = scalar_select 0, %s8, %s6
  loop: start=0, step=1, limit=4
  $region2: #{time_series_transformer_fwd.15} parent=0 // loop_pre_header
    _
  $region3: #{time_series_transformer_fwd.15} parent=0 // loop_header
    %s11 = sphi 0, %s15
    %p12 = scmp.ge.s32.totalorder %s11, 4
    %s21 = sphi 0, %s23
    %s24 = sphi 0, %s21
    %s25 = sphi 0, %s24
    %s41 = sphi 0, %s25
    %s45 = sphi 0, %s45
    %s47 = sphi 0, %s45
    %s48 = sphi 0, %s47
    %s62 = sphi 0, %s48
    %s66 = sphi 0, %s66
    %s68 = sphi 0, %s66
    %s69 = sphi 0, %s68
    %s83 = sphi 0, %s69
    %s87 = sphi 0, %s87
    %s89 = sphi 0, %s87
    %s90 = sphi 0, %s89
    %s104 = sphi 0, %s90
    %s108 = sphi 0, %s108
    %s110 = sphi 0, %s108
    %s111 = sphi 0, %s110
    %s125 = sphi 0, %s111
    %s131 = sphi 0, %s133
    %s134 = sphi 0, %s131
    %s135 = sphi 0, %s134
    %s151 = sphi 0, %s135
  $region4: #{time_series_transformer_fwd.15} parent=0 // loop_header_branch
    %14 = sbr.rel (%p12) target = $region8
  $region5: #{time_series_transformer_fwd.15} parent=0 // loop_body
    %s16 = ssub.s32 %s11, 1
    %s17 = ssub.s32 %s11, 2
    %s18 = sadd.s32 %s11, 1
    %s19 = ssub.s32 %s11, %s18
    %p20 = scmp.eq.s32.totalorder %s19, 0
    %s22 = sadd.s32 %s21, 1
    %s23 = scalar_select %p20, %s21, %s22
    %p26 = pneg %p20
    %p27 = scmp.eq.s32.totalorder %s11, 1
    %p28 = por %p26, %p27
    %p29 = scmp.ne.s32.totalorder %s21, %s24
    %p30 = scmp.eq.s32.totalorder %s11, 0
    %p31 = por %p29, %p30
    %p32 = scmp.ne.s32.totalorder %s21, %s24
    %p33 = scmp.eq.s32.totalorder %s16, 1
    %p34 = por %p32, %p33
    %p35 = scmp.ne.s32.totalorder %s24, %s25
    %p36 = scmp.eq.s32.totalorder %s16, 0
    %p37 = por %p35, %p36
    %p38 = scmp.ne.s32.totalorder %s24, %s25
    %p39 = scmp.eq.s32.totalorder %s17, 1
    %p40 = por %p38, %p39
    %p42 = scmp.ne.s32.totalorder %s25, %s41
    %p43 = scmp.eq.s32.totalorder %s17, 0
    %p44 = por %p42, %p43
    %s46 = sadd.s32 %s45, 1
    %p49 = scmp.eq.s32.totalorder %s11, 1
    %p50 = scmp.ne.s32.totalorder %s45, %s47
    %p51 = scmp.eq.s32.totalorder %s11, 0
    %p52 = por %p50, %p51
    %p53 = scmp.ne.s32.totalorder %s45, %s47
    %p54 = scmp.eq.s32.totalorder %s16, 1
    %p55 = por %p53, %p54
    %p56 = scmp.ne.s32.totalorder %s47, %s48
    %p57 = scmp.eq.s32.totalorder %s16, 0
    %p58 = por %p56, %p57
    %p59 = scmp.ne.s32.totalorder %s47, %s48
    %p60 = scmp.eq.s32.totalorder %s17, 1
    %p61 = por %p59, %p60
    %p63 = scmp.ne.s32.totalorder %s48, %s62
    %p64 = scmp.eq.s32.totalorder %s17, 0
    %p65 = por %p63, %p64
    %s67 = sadd.s32 %s66, 1
    %p70 = scmp.eq.s32.totalorder %s11, 1
    %p71 = scmp.ne.s32.totalorder %s66, %s68
    %p72 = scmp.eq.s32.totalorder %s11, 0
    %p73 = por %p71, %p72
    %p74 = scmp.ne.s32.totalorder %s66, %s68
    %p75 = scmp.eq.s32.totalorder %s16, 1
    %p76 = por %p74, %p75
    %p77 = scmp.ne.s32.totalorder %s68, %s69
    %p78 = scmp.eq.s32.totalorder %s16, 0
    %p79 = por %p77, %p78
    %p80 = scmp.ne.s32.totalorder %s68, %s69
    %p81 = scmp.eq.s32.totalorder %s17, 1
    %p82 = por %p80, %p81
    %p84 = scmp.ne.s32.totalorder %s69, %s83
    %p85 = scmp.eq.s32.totalorder %s17, 0
    %p86 = por %p84, %p85
    %s88 = sadd.s32 %s87, 1
    %p91 = scmp.eq.s32.totalorder %s11, 1
    %p92 = scmp.ne.s32.totalorder %s87, %s89
    %p93 = scmp.eq.s32.totalorder %s11, 0
    %p94 = por %p92, %p93
    %p95 = scmp.ne.s32.totalorder %s87, %s89
    %p96 = scmp.eq.s32.totalorder %s16, 1
    %p97 = por %p95, %p96
    %p98 = scmp.ne.s32.totalorder %s89, %s90
    %p99 = scmp.eq.s32.totalorder %s16, 0
    %p100 = por %p98, %p99
    %p101 = scmp.ne.s32.totalorder %s89, %s90
    %p102 = scmp.eq.s32.totalorder %s17, 1
    %p103 = por %p101, %p102
    %p105 = scmp.ne.s32.totalorder %s90, %s104
    %p106 = scmp.eq.s32.totalorder %s17, 0
    %p107 = por %p105, %p106
    %s109 = sadd.s32 %s108, 1
    %p112 = scmp.eq.s32.totalorder %s11, 1
    %p113 = scmp.ne.s32.totalorder %s108, %s110
    %p114 = scmp.eq.s32.totalorder %s11, 0
    %p115 = por %p113, %p114
    %p116 = scmp.ne.s32.totalorder %s108, %s110
    %p117 = scmp.eq.s32.totalorder %s16, 1
    %p118 = por %p116, %p117
    %p119 = scmp.ne.s32.totalorder %s110, %s111
    %p120 = scmp.eq.s32.totalorder %s16, 0
    %p121 = por %p119, %p120
    %p122 = scmp.ne.s32.totalorder %s110, %s111
    %p123 = scmp.eq.s32.totalorder %s17, 1
    %p124 = por %p122, %p123
    %p126 = scmp.ne.s32.totalorder %s111, %s125
    %p127 = scmp.eq.s32.totalorder %s17, 0
    %p128 = por %p126, %p127
    %s129 = ssub.s32 %s11, %s18
    %p130 = scmp.eq.s32.totalorder %s129, 0
    %s132 = sadd.s32 %s131, 1
    %s133 = scalar_select %p130, %s131, %s132
    %p136 = pneg %p130
    %p137 = scmp.eq.s32.totalorder %s11, 1
    %p138 = por %p136, %p137
    %p139 = scmp.ne.s32.totalorder %s131, %s134
    %p140 = scmp.eq.s32.totalorder %s11, 0
    %p141 = por %p139, %p140
    %p142 = scmp.ne.s32.totalorder %s131, %s134
    %p143 = scmp.eq.s32.totalorder %s16, 1
    %p144 = por %p142, %p143
    %p145 = scmp.ne.s32.totalorder %s134, %s135
    %p146 = scmp.eq.s32.totalorder %s16, 0
    %p147 = por %p145, %p146
    %p148 = scmp.ne.s32.totalorder %s134, %s135
    %p149 = scmp.eq.s32.totalorder %s17, 1
    %p150 = por %p148, %p149
    %p152 = scmp.ne.s32.totalorder %s135, %s151
    %p153 = scmp.eq.s32.totalorder %s17, 0
    %p154 = por %p152, %p153
    %p155 = scmp.le.s32.totalorder 1, %s11
    %p156 = scmp.lt.s32.totalorder %s11, 3
    %p157 = pnand %p155, %p156
    %p158 = pneg %p157
    // Predicated region
    $region9: #{time_series_transformer_fwd.15} parent=5 // pred_check
      _
    $region10: #{time_series_transformer_fwd.15} parent=5 // pred_check_branch
      %160 = sbr.rel (%p157) target = $region12
    $region11: #{time_series_transformer_fwd.15} parent=5 // pred_region
      %s161 = ssub.s32 %s11, 1
      // Predicated region
      $region13: #{time_series_transformer_fwd.15} parent=11 // pred_check
        %p162 = pneg %p58
      $region14: #{time_series_transformer_fwd.15} parent=11 // pred_check_branch
        %164 = sbr.rel (%p162) target = $region16
      $region15: #{time_series_transformer_fwd.15} parent=11 // pred_region
        _
      $region16: #{time_series_transformer_fwd.15} parent=11 // pred_fallthru
        _
      // Predicated region
      $region17: #{time_series_transformer_fwd.15} parent=11 // pred_check
        %p165 = pneg %p79
      $region18: #{time_series_transformer_fwd.15} parent=11 // pred_check_branch
        %167 = sbr.rel (%p165) target = $region20
      $region19: #{time_series_transformer_fwd.15} parent=11 // pred_region
        _
      $region20: #{time_series_transformer_fwd.15} parent=11 // pred_fallthru
        _
      // Predicated region
      $region21: #{time_series_transformer_fwd.15} parent=11 // pred_check
        %p168 = pneg %p100
      $region22: #{time_series_transformer_fwd.15} parent=11 // pred_check_branch
        %170 = sbr.rel (%p168) target = $region24
      $region23: #{time_series_transformer_fwd.15} parent=11 // pred_region
        _
      $region24: #{time_series_transformer_fwd.15} parent=11 // pred_fallthru
        _
      // Predicated region
      $region25: #{time_series_transformer_fwd.15} parent=11 // pred_check
        %p171 = pneg %p121
      $region26: #{time_series_transformer_fwd.15} parent=11 // pred_check_branch
        %173 = sbr.rel (%p171) target = $region28
      $region27: #{time_series_transformer_fwd.15} parent=11 // pred_region
        _
      $region28: #{time_series_transformer_fwd.15} parent=11 // pred_fallthru
        _
    $region12: #{time_series_transformer_fwd.15} parent=5 // pred_fallthru
      _
    %p174 = scmp.lt.s32.totalorder %s11, 2
    // Predicated region
    $region29: #{time_series_transformer_fwd.15} parent=5 // pred_check
      %p175 = pneg %p174
    $region30: #{time_series_transformer_fwd.15} parent=5 // pred_check_branch
      %177 = sbr.rel (%p175) target = $region32
    $region31: #{time_series_transformer_fwd.15} parent=5 // pred_region
      // Predicated region
      $region33: #{time_series_transformer_fwd.15} parent=31 // pred_check
        %p178 = pneg %p31
      $region34: #{time_series_transformer_fwd.15} parent=31 // pred_check_branch
        %180 = sbr.rel (%p178) target = $region36
      $region35: #{time_series_transformer_fwd.15} parent=31 // pred_region
        %p181 = scmp.lt.s32.totalorder %s11, 1
        %s182 = scalar_select %p181, %s11, 1
        %s183 = smul.addr %s182, 8
        %s184 = scalar_lea.vmem %s0, %s183
      $region36: #{time_series_transformer_fwd.15} parent=31 // pred_fallthru
        _
    $region32: #{time_series_transformer_fwd.15} parent=5 // pred_fallthru
      _
    %p185 = scmp.le.s32.totalorder 1, %s11
    %p186 = scmp.lt.s32.totalorder %s11, 3
    %p187 = pnand %p185, %p186
    %p188 = pneg %p187
    // Predicated region
    $region37: #{time_series_transformer_fwd.15} parent=5 // pred_check
      _
    $region38: #{time_series_transformer_fwd.15} parent=5 // pred_check_branch
      %190 = sbr.rel (%p187) target = $region40
    $region39: #{time_series_transformer_fwd.15} parent=5 // pred_region
      %s191 = ssub.s32 %s11, 1
      %p192 = scmp.lt.s32.totalorder %s16, 1
      %s193 = scalar_select %p192, %s16, 1
      %s194 = smul.addr %s193, 8
      %s195 = scalar_lea.vmem %s0, %s194
      %p196 = pneg %p37
      %p197 = pneg %p34
      %p198 = pneg %p58
      %p199 = pneg %p55
      %p200 = pneg %p79
      %p201 = pneg %p76
      %p202 = pneg %p100
      %p203 = pneg %p97
      %p204 = pneg %p121
      %p205 = pneg %p118
      %p206 = pneg %p147
      %p207 = pneg %p144
      %p208 = scmp.lt.s32.totalorder %s16, 1
      %s209 = scalar_select %p208, %s16, 1
      %s210 = smul.addr %s209, 8
      %s211 = scalar_lea.vmem %s5, %s210
      %p212 = scmp.lt.s32.totalorder %s16, 1
      %s213 = scalar_select %p212, %s16, 1
      %s214 = smul.addr %s213, 8
      %s215 = scalar_lea.vmem %s0, %s214
      %p216 = scmp.lt.s32.totalorder %s16, 1
      %s217 = scalar_select %p216, %s16, 1
      %s218 = smul.addr %s217, 8
      %s219 = scalar_lea.vmem %s5, %s218
      %v220 = vld [vmem:[%s215] sm:$0xff]
      %v221 = vld [vmem:[%s1] sm:$0x1]
      %v222 = vld [vmem:[%s2] sm:$0x1]
      %vm223 = vcmask 261120
      %v224 = vsel %vm223, %v220, 0.0
      %225 = vadd.xlane.f32.xlu0 %v224
      %v226 = vpop.xlane.xlu0 %225
      %v227 = vrcp.pop 32.0
      %v228 = vmul.f32 32.0, %v227
      %v229 = vsub.f32 1.0, %v228
      %v230 = vmul.f32 %v227, %v229
      %v231 = vadd.f32 %v227, %v230
      %vm232 = vweird.f32 %v227
      %v233 = vsel %vm232, %v227, %v231
      %v234 = vmul.f32 %v226, %v233
      %v235 = vsub.f32 %v220, %v234
      %v236 = vmul.f32 %v235, %v235
      %v237 = vsel %vm223, %v236, 0.0
      %238 = vadd.xlane.f32.xlu0 %v237
      %v239 = vpop.xlane.xlu0 %238
      %v240 = vmul.f32 %v239, %v233
      %v241 = vadd.f32 %v240, 1e-05
      %v242 = vrsqrt.pop %v241
      %v243 = vmul.f32 %v242, %v241
      %v244 = vmul.f32 %v243, %v242
      %v245 = vmul.f32 0.5, %v244
      %v246 = vsub.f32 1.5, %v245
      %v247 = vmul.f32 %v242, %v246
      %vm248 = vweird.f32 %v241
      %vm249 = vweird.f32 %v242
      %vm250 = vmor %vm248, %vm249
      %v251 = vsel %vm250, %v242, %v247
      %v252 = vmul.f32 %v235, %v251
      %v254 = vperm.slane %v221, 0
      %v256 = vmul.f32 %v252, %v254
      %v258 = vperm.slane %v222, 0
      %v260 = vadd.f32 %v256, %v258
      %v261 = vld [vmem:[%s3] sm:$0xff]
      %v262 = vld [vmem:[%s3 + $0x8] sm:$0xff]
      %v263 = vld [vmem:[%s3 + $0x10] sm:$0xff]
      %v264 = vld [vmem:[%s3 + $0x18] sm:$0xff]
      %v265 = vld [vmem:[%s4] sm:$0x1]
      %v267 = vperm.slane %v265, 0
      %v270 = vsel %vm223, %v260, 0
      %272 = vmatpush.msra.mxu0 0.0
      %273 = vmatpush.msra.mxu0 0.0
      %274 = vmatpush.msra.mxu0 0.0
      %275 = vmatpush.msra.mxu0 0.0
      %276 = vmatpush.msra.mxu0 0.0
      %277 = vmatpush.msra.mxu0 0.0
      %278 = vmatpush.msra.mxu0 0.0
      %279 = vmatpush.msra.mxu0 0.0
      %280 = vmatpush.msra.mxu0 0.0
      %281 = vmatpush.msra.mxu0 0.0
      %282 = vmatpush.msra.mxu0 0.0
      %283 = vmatpush.msra.mxu0 0.0
      %284 = vmatpush.msra.mxu0 %v264
      %285 = vmatpush.msra.mxu0 %v263
      %286 = vmatpush.msra.mxu0 %v262
      %287 = vmatpush.msra.mxu0 %v261
      %288 = vmatmul.f32.gmra.mxu0 %v270
      %v289 = vpop.f32.mrf.mxu0
      %v290 = vadd.f32 %v267, %v289
      %291 = vdwg.mxu0
      %vm292 = vcmask 64512
      %293 = vst.msk [vmem:[%s219] sm:$0xff] %vm292, %v290
      %p294 = scmp.lt.s32.totalorder %s16, 1
      %s295 = scalar_select %p294, %s16, 1
      %s296 = smul.addr %s295, 8
      %s297 = scalar_lea.vmem %s5, %s296
      // Predicated region
      $region41: #{time_series_transformer_fwd.15} parent=39 // pred_check
        %p298 = pneg %p144
      $region42: #{time_series_transformer_fwd.15} parent=39 // pred_check_branch
        %300 = sbr.rel (%p298) target = $region44
      $region43: #{time_series_transformer_fwd.15} parent=39 // pred_region
        _
      $region44: #{time_series_transformer_fwd.15} parent=39 // pred_fallthru
        _
    $region40: #{time_series_transformer_fwd.15} parent=5 // pred_fallthru
      _
    %p301 = scmp.le.s32.totalorder 2, %s11
    // Predicated region
    $region45: #{time_series_transformer_fwd.15} parent=5 // pred_check
      %p302 = pneg %p301
    $region46: #{time_series_transformer_fwd.15} parent=5 // pred_check_branch
      %304 = sbr.rel (%p302) target = $region48
    $region47: #{time_series_transformer_fwd.15} parent=5 // pred_region
      %s305 = ssub.s32 %s11, 2
      // Predicated region
      $region49: #{time_series_transformer_fwd.15} parent=47 // pred_check
        %p306 = pneg %p150
      $region50: #{time_series_transformer_fwd.15} parent=47 // pred_check_branch
        %308 = sbr.rel (%p306) target = $region52
      $region51: #{time_series_transformer_fwd.15} parent=47 // pred_region
        %p309 = scmp.lt.s32.totalorder %s17, 1
        %s310 = scalar_select %p309, %s17, 1
        %s311 = smul.addr %s310, 8
        %s312 = scalar_lea.vmem %s5, %s311
      $region52: #{time_series_transformer_fwd.15} parent=47 // pred_fallthru
        _
    $region48: #{time_series_transformer_fwd.15} parent=5 // pred_fallthru
      _
  $region6: #{time_series_transformer_fwd.15} parent=0 // loop_footer
    %s15 = sadd.s32 1, %s11
  $region7: #{time_series_transformer_fwd.15} parent=0 // loop_footer_branch
    %10 = sbr.rel target = $region3
  $region8: #{time_series_transformer_fwd.15} parent=0 // loop_exit
    _

// kernel: time_series_transformer_fwd.14
$region0: #{time_series_transformer_fwd.14}
  #allocation0 [shape = 'u32[]', space=smem, size = 0x4, offset = 0x4, fixed_abs, tag = 'smem constant byte address 0x4 - core index']
  #allocation1 [shape = 'u32[72,128]{1,0:T(1,128)}', space=vmem, size = 0x9000, scoped, tag = 'internal scratch']
  %s0 = inlined_call_operand.vmem [shape: f32[2,8,32], index: 0, kind: input, shape index: {}]
  %s1 = inlined_call_operand.vmem [shape: f32[2,8,32], index: 1, kind: input, shape index: {}]
  %s2 = inlined_call_operand.vmem [shape: bf16[32,96], index: 2, kind: input, shape index: {}]
  %s3 = inlined_call_operand.vmem [shape: f32[1,96], index: 3, kind: input, shape index: {}]
  %s4 = inlined_call_operand.vmem [shape: bf16[32,32], index: 4, kind: input, shape index: {}]
  %s5 = inlined_call_operand.vmem [shape: f32[1,32], index: 5, kind: input, shape index: {}]
  %s6 = inlined_call_operand.vmem [shape: f32[1,32], index: 6, kind: input, shape index: {}]
  %s7 = inlined_call_operand.vmem [shape: f32[1,32], index: 7, kind: input, shape index: {}]
  %s8 = inlined_call_operand.vmem [shape: bf16[32,32], index: 8, kind: input, shape index: {}]
  %s9 = inlined_call_operand.vmem [shape: f32[1,32], index: 9, kind: input, shape index: {}]
  %s10 = inlined_call_operand.vmem [shape: bf16[32,64], index: 10, kind: input, shape index: {}]
  %s11 = inlined_call_operand.vmem [shape: f32[1,64], index: 11, kind: input, shape index: {}]
  %s12 = inlined_call_operand.vmem [shape: bf16[32,32], index: 12, kind: input, shape index: {}]
  %s13 = inlined_call_operand.vmem [shape: f32[1,32], index: 13, kind: input, shape index: {}]
  %s14 = inlined_call_operand.vmem [shape: f32[1,32], index: 14, kind: input, shape index: {}]
  %s15 = inlined_call_operand.hbm [shape: f32[1,32], index: 15, kind: input, shape index: {}]
  %s16 = inlined_call_operand.vmem [shape: bf16[32,64], index: 16, kind: input, shape index: {}]
  %s17 = inlined_call_operand.hbm [shape: f32[1,64], index: 17, kind: input, shape index: {}]
  %s18 = inlined_call_operand.vmem [shape: bf16[64,32], index: 18, kind: input, shape index: {}]
  %s19 = inlined_call_operand.hbm [shape: f32[1,32], index: 19, kind: input, shape index: {}]
  %s20 = inlined_call_operand.hbm [shape: f32[1,32], index: 20, kind: input, shape index: {}]
  %s21 = inlined_call_operand.hbm [shape: f32[1,32], index: 21, kind: input, shape index: {}]
  %s22 = inlined_call_operand.vmem [shape: f32[2,8,32], index: 22, kind: output, shape index: {}]
  %s23 = sld [smem:[#allocation0]]
  $region141: #{time_series_transformer_fwd.14} parent=0
    _
  %s25 = ssub.s32 1, %s23
  %s26 = scalar_select 0, %s25, %s23
  $region1: #{time_series_transformer_fwd.14} parent=0
    #allocation2 [shape = 'u8[512]{0}', space=vmem, size = 0x400, scoped, tag = 'input window, operand 15, single buffered']
    #allocation3 [shape = 's32[2]{0}', space=sflag, size = 0x8, scoped, tag = 'scoped memory for time_series_transformer_fwd.14']
    #allocation4 [shape = 'u8[512]{0}', space=vmem, size = 0x400, scoped, tag = 'input window, operand 17, single buffered']
    #allocation5 [shape = 's32[1]{0}', space=sflag, size = 0x4, scoped, tag = 'scoped memory for time_series_transformer_fwd.14']
    #allocation6 [shape = 'u8[512]{0}', space=vmem, size = 0x400, scoped, tag = 'input window, operand 19, single buffered']
    #allocation7 [shape = 'u8[512]{0}', space=vmem, size = 0x400, scoped, tag = 'input window, operand 20, single buffered']
    #allocation8 [shape = 's32[1]{0}', space=sflag, size = 0x4, scoped, tag = 'scoped memory for time_series_transformer_fwd.14']
    #allocation9 [shape = 'u8[512]{0}', space=vmem, size = 0x400, scoped, tag = 'input window, operand 21, single buffered']
    %27 = vsyncpa [#allocation3], 0
    %28 = vsyncpa [#allocation5], 0
    %29 = vsyncpa [#allocation8], 0
    loop: start=0, step=1, limit=4
    $region2: #{time_series_transformer_fwd.14} parent=1 // loop_pre_header
      _
    $region3: #{time_series_transformer_fwd.14} parent=1 // loop_header
      %s31 = sphi 0, %s35
      %p32 = scmp.ge.s32.totalorder %s31, 4
      %s41 = sphi 0, %s43
      %s44 = sphi 0, %s41
      %s45 = sphi 0, %s44
      %s61 = sphi 0, %s45
      %s67 = sphi 0, %s69
      %s70 = sphi 0, %s67
      %s71 = sphi 0, %s70
      %s87 = sphi 0, %s71
      %s91 = sphi 0, %s91
      %s93 = sphi 0, %s91
      %s94 = sphi 0, %s93
      %s108 = sphi 0, %s94
      %s112 = sphi 0, %s112
      %s114 = sphi 0, %s112
      %s115 = sphi 0, %s114
      %s129 = sphi 0, %s115
      %s133 = sphi 0, %s133
      %s135 = sphi 0, %s133
      %s136 = sphi 0, %s135
      %s150 = sphi 0, %s136
      %s154 = sphi 0, %s154
      %s156 = sphi 0, %s154
      %s157 = sphi 0, %s156
      %s171 = sphi 0, %s157
      %s175 = sphi 0, %s175
      %s177 = sphi 0, %s175
      %s178 = sphi 0, %s177
      %s192 = sphi 0, %s178
      %s196 = sphi 0, %s196
      %s198 = sphi 0, %s196
      %s199 = sphi 0, %s198
      %s213 = sphi 0, %s199
      %s217 = sphi 0, %s217
      %s219 = sphi 0, %s217
      %s220 = sphi 0, %s219
      %s234 = sphi 0, %s220
      %s238 = sphi 0, %s238
      %s240 = sphi 0, %s238
      %s241 = sphi 0, %s240
      %s255 = sphi 0, %s241
      %s259 = sphi 0, %s259
      %s261 = sphi 0, %s259
      %s262 = sphi 0, %s261
      %s276 = sphi 0, %s262
      %s280 = sphi 0, %s280
      %s282 = sphi 0, %s280
      %s283 = sphi 0, %s282
      %s297 = sphi 0, %s283
      %s301 = sphi 0, %s301
      %s303 = sphi 0, %s301
      %s304 = sphi 0, %s303
      %s318 = sphi 0, %s304
      %s322 = sphi 0, %s322
      %s324 = sphi 0, %s322
      %s325 = sphi 0, %s324
      %s339 = sphi 0, %s325
      %s343 = sphi 0, %s343
      %s345 = sphi 0, %s343
      %s346 = sphi 0, %s345
      %s360 = sphi 0, %s346
      %s364 = sphi 0, %s364
      %s366 = sphi 0, %s364
      %s367 = sphi 0, %s366
      %s381 = sphi 0, %s367
      %s385 = sphi 0, %s385
      %s387 = sphi 0, %s385
      %s388 = sphi 0, %s387
      %s402 = sphi 0, %s388
      %s406 = sphi 0, %s406
      %s408 = sphi 0, %s406
      %s409 = sphi 0, %s408
      %s423 = sphi 0, %s409
      %s427 = sphi 0, %s427
      %s429 = sphi 0, %s427
      %s430 = sphi 0, %s429
      %s444 = sphi 0, %s430
      %s448 = sphi 0, %s448
      %s450 = sphi 0, %s448
      %s451 = sphi 0, %s450
      %s465 = sphi 0, %s451
      %s469 = sphi 0, %s469
      %s471 = sphi 0, %s469
      %s472 = sphi 0, %s471
      %s486 = sphi 0, %s472
      %s490 = sphi 0, %s490
      %s492 = sphi 0, %s490
      %s493 = sphi 0, %s492
      %s507 = sphi 0, %s493
      %s513 = sphi 0, %s515
      %s516 = sphi 0, %s513
      %s517 = sphi 0, %s516
      %s533 = sphi 0, %s517
    $region4: #{time_series_transformer_fwd.14} parent=1 // loop_header_branch
      %34 = sbr.rel (%p32) target = $region8
    $region5: #{time_series_transformer_fwd.14} parent=1 // loop_body
      %s36 = ssub.s32 %s31, 1
      %s37 = ssub.s32 %s31, 2
      %s38 = sadd.s32 %s31, 1
      %s39 = ssub.s32 %s31, %s38
      %p40 = scmp.eq.s32.totalorder %s39, 0
      %s42 = sadd.s32 %s41, 1
      %s43 = scalar_select %p40, %s41, %s42
      %p46 = pneg %p40
      %p47 = scmp.eq.s32.totalorder %s31, 1
      %p48 = por %p46, %p47
      %p49 = scmp.ne.s32.totalorder %s41, %s44
      %p50 = scmp.eq.s32.totalorder %s31, 0
      %p51 = por %p49, %p50
      %p52 = scmp.ne.s32.totalorder %s41, %s44
      %p53 = scmp.eq.s32.totalorder %s36, 1
      %p54 = por %p52, %p53
      %p55 = scmp.ne.s32.totalorder %s44, %s45
      %p56 = scmp.eq.s32.totalorder %s36, 0
      %p57 = por %p55, %p56
      %p58 = scmp.ne.s32.totalorder %s44, %s45
      %p59 = scmp.eq.s32.totalorder %s37, 1
      %p60 = por %p58, %p59
      %p62 = scmp.ne.s32.totalorder %s45, %s61
      %p63 = scmp.eq.s32.totalorder %s37, 0
      %p64 = por %p62, %p63
      %s65 = ssub.s32 %s31, %s38
      %p66 = scmp.eq.s32.totalorder %s65, 0
      %s68 = sadd.s32 %s67, 1
      %s69 = scalar_select %p66, %s67, %s68
      %p72 = pneg %p66
      %p73 = scmp.eq.s32.totalorder %s31, 1
      %p74 = por %p72, %p73
      %p75 = scmp.ne.s32.totalorder %s67, %s70
      %p76 = scmp.eq.s32.totalorder %s31, 0
      %p77 = por %p75, %p76
      %p78 = scmp.ne.s32.totalorder %s67, %s70
      %p79 = scmp.eq.s32.totalorder %s36, 1
      %p80 = por %p78, %p79
      %p81 = scmp.ne.s32.totalorder %s70, %s71
      %p82 = scmp.eq.s32.totalorder %s36, 0
      %p83 = por %p81, %p82
      %p84 = scmp.ne.s32.totalorder %s70, %s71
      %p85 = scmp.eq.s32.totalorder %s37, 1
      %p86 = por %p84, %p85
      %p88 = scmp.ne.s32.totalorder %s71, %s87
      %p89 = scmp.eq.s32.totalorder %s37, 0
      %p90 = por %p88, %p89
      %s92 = sadd.s32 %s91, 1
      %p95 = scmp.eq.s32.totalorder %s31, 1
      %p96 = scmp.ne.s32.totalorder %s91, %s93
      %p97 = scmp.eq.s32.totalorder %s31, 0
      %p98 = por %p96, %p97
      %p99 = scmp.ne.s32.totalorder %s91, %s93
      %p100 = scmp.eq.s32.totalorder %s36, 1
      %p101 = por %p99, %p100
      %p102 = scmp.ne.s32.totalorder %s93, %s94
      %p103 = scmp.eq.s32.totalorder %s36, 0
      %p104 = por %p102, %p103
      %p105 = scmp.ne.s32.totalorder %s93, %s94
      %p106 = scmp.eq.s32.totalorder %s37, 1
      %p107 = por %p105, %p106
      %p109 = scmp.ne.s32.totalorder %s94, %s108
      %p110 = scmp.eq.s32.totalorder %s37, 0
      %p111 = por %p109, %p110
      %s113 = sadd.s32 %s112, 1
      %p116 = scmp.eq.s32.totalorder %s31, 1
      %p117 = scmp.ne.s32.totalorder %s112, %s114
      %p118 = scmp.eq.s32.totalorder %s31, 0
      %p119 = por %p117, %p118
      %p120 = scmp.ne.s32.totalorder %s112, %s114
      %p121 = scmp.eq.s32.totalorder %s36, 1
      %p122 = por %p120, %p121
      %p123 = scmp.ne.s32.totalorder %s114, %s115
      %p124 = scmp.eq.s32.totalorder %s36, 0
      %p125 = por %p123, %p124
      %p126 = scmp.ne.s32.totalorder %s114, %s115
      %p127 = scmp.eq.s32.totalorder %s37, 1
      %p128 = por %p126, %p127
      %p130 = scmp.ne.s32.totalorder %s115, %s129
      %p131 = scmp.eq.s32.totalorder %s37, 0
      %p132 = por %p130, %p131
      %s134 = sadd.s32 %s133, 1
      %p137 = scmp.eq.s32.totalorder %s31, 1
      %p138 = scmp.ne.s32.totalorder %s133, %s135
      %p139 = scmp.eq.s32.totalorder %s31, 0
      %p140 = por %p138, %p139
      %p141 = scmp.ne.s32.totalorder %s133, %s135
      %p142 = scmp.eq.s32.totalorder %s36, 1
      %p143 = por %p141, %p142
      %p144 = scmp.ne.s32.totalorder %s135, %s136
      %p145 = scmp.eq.s32.totalorder %s36, 0
      %p146 = por %p144, %p145
      %p147 = scmp.ne.s32.totalorder %s135, %s136
      %p148 = scmp.eq.s32.totalorder %s37, 1
      %p149 = por %p147, %p148
      %p151 = scmp.ne.s32.totalorder %s136, %s150
      %p152 = scmp.eq.s32.totalorder %s37, 0
      %p153 = por %p151, %p152
      %s155 = sadd.s32 %s154, 1
      %p158 = scmp.eq.s32.totalorder %s31, 1
      %p159 = scmp.ne.s32.totalorder %s154, %s156
      %p160 = scmp.eq.s32.totalorder %s31, 0
      %p161 = por %p159, %p160
      %p162 = scmp.ne.s32.totalorder %s154, %s156
      %p163 = scmp.eq.s32.totalorder %s36, 1
      %p164 = por %p162, %p163
      %p165 = scmp.ne.s32.totalorder %s156, %s157
      %p166 = scmp.eq.s32.totalorder %s36, 0
      %p167 = por %p165, %p166
      %p168 = scmp.ne.s32.totalorder %s156, %s157
      %p169 = scmp.eq.s32.totalorder %s37, 1
      %p170 = por %p168, %p169
      %p172 = scmp.ne.s32.totalorder %s157, %s171
      %p173 = scmp.eq.s32.totalorder %s37, 0
      %p174 = por %p172, %p173
      %s176 = sadd.s32 %s175, 1
      %p179 = scmp.eq.s32.totalorder %s31, 1
      %p180 = scmp.ne.s32.totalorder %s175, %s177
      %p181 = scmp.eq.s32.totalorder %s31, 0
      %p182 = por %p180, %p181
      %p183 = scmp.ne.s32.totalorder %s175, %s177
      %p184 = scmp.eq.s32.totalorder %s36, 1
      %p185 = por %p183, %p184
      %p186 = scmp.ne.s32.totalorder %s177, %s178
      %p187 = scmp.eq.s32.totalorder %s36, 0
      %p188 = por %p186, %p187
      %p189 = scmp.ne.s32.totalorder %s177, %s178
      %p190 = scmp.eq.s32.totalorder %s37, 1
      %p191 = por %p189, %p190
      %p193 = scmp.ne.s32.totalorder %s178, %s192
      %p194 = scmp.eq.s32.totalorder %s37, 0
      %p195 = por %p193, %p194
      %s197 = sadd.s32 %s196, 1
      %p200 = scmp.eq.s32.totalorder %s31, 1
      %p201 = scmp.ne.s32.totalorder %s196, %s198
      %p202 = scmp.eq.s32.totalorder %s31, 0
      %p203 = por %p201, %p202
      %p204 = scmp.ne.s32.totalorder %s196, %s198
      %p205 = scmp.eq.s32.totalorder %s36, 1
      %p206 = por %p204, %p205
      %p207 = scmp.ne.s32.totalorder %s198, %s199
      %p208 = scmp.eq.s32.totalorder %s36, 0
      %p209 = por %p207, %p208
      %p210 = scmp.ne.s32.totalorder %s198, %s199
      %p211 = scmp.eq.s32.totalorder %s37, 1
      %p212 = por %p210, %p211
      %p214 = scmp.ne.s32.totalorder %s199, %s213
      %p215 = scmp.eq.s32.totalorder %s37, 0
      %p216 = por %p214, %p215
      %s218 = sadd.s32 %s217, 1
      %p221 = scmp.eq.s32.totalorder %s31, 1
      %p222 = scmp.ne.s32.totalorder %s217, %s219
      %p223 = scmp.eq.s32.totalorder %s31, 0
      %p224 = por %p222, %p223
      %p225 = scmp.ne.s32.totalorder %s217, %s219
      %p226 = scmp.eq.s32.totalorder %s36, 1
      %p227 = por %p225, %p226
      %p228 = scmp.ne.s32.totalorder %s219, %s220
      %p229 = scmp.eq.s32.totalorder %s36, 0
      %p230 = por %p228, %p229
      %p231 = scmp.ne.s32.totalorder %s219, %s220
      %p232 = scmp.eq.s32.totalorder %s37, 1
      %p233 = por %p231, %p232
      %p235 = scmp.ne.s32.totalorder %s220, %s234
      %p236 = scmp.eq.s32.totalorder %s37, 0
      %p237 = por %p235, %p236
      %s239 = sadd.s32 %s238, 1
      %p242 = scmp.eq.s32.totalorder %s31, 1
      %p243 = scmp.ne.s32.totalorder %s238, %s240
      %p244 = scmp.eq.s32.totalorder %s31, 0
      %p245 = por %p243, %p244
      %p246 = scmp.ne.s32.totalorder %s238, %s240
      %p247 = scmp.eq.s32.totalorder %s36, 1
      %p248 = por %p246, %p247
      %p249 = scmp.ne.s32.totalorder %s240, %s241
      %p250 = scmp.eq.s32.totalorder %s36, 0
      %p251 = por %p249, %p250
      %p252 = scmp.ne.s32.totalorder %s240, %s241
      %p253 = scmp.eq.s32.totalorder %s37, 1
      %p254 = por %p252, %p253
      %p256 = scmp.ne.s32.totalorder %s241, %s255
      %p257 = scmp.eq.s32.totalorder %s37, 0
      %p258 = por %p256, %p257
      %s260 = sadd.s32 %s259, 1
      %p263 = scmp.eq.s32.totalorder %s31, 1
      %p264 = scmp.ne.s32.totalorder %s259, %s261
      %p265 = scmp.eq.s32.totalorder %s31, 0
      %p266 = por %p264, %p265
      %p267 = scmp.ne.s32.totalorder %s259, %s261
      %p268 = scmp.eq.s32.totalorder %s36, 1
      %p269 = por %p267, %p268
      %p270 = scmp.ne.s32.totalorder %s261, %s262
      %p271 = scmp.eq.s32.totalorder %s36, 0
      %p272 = por %p270, %p271
      %p273 = scmp.ne.s32.totalorder %s261, %s262
      %p274 = scmp.eq.s32.totalorder %s37, 1
      %p275 = por %p273, %p274
      %p277 = scmp.ne.s32.totalorder %s262, %s276
      %p278 = scmp.eq.s32.totalorder %s37, 0
      %p279 = por %p277, %p278
      %s281 = sadd.s32 %s280, 1
      %p284 = scmp.eq.s32.totalorder %s31, 1
      %p285 = scmp.ne.s32.totalorder %s280, %s282
      %p286 = scmp.eq.s32.totalorder %s31, 0
      %p287 = por %p285, %p286
      %p288 = scmp.ne.s32.totalorder %s280, %s282
      %p289 = scmp.eq.s32.totalorder %s36, 1
      %p290 = por %p288, %p289
      %p291 = scmp.ne.s32.totalorder %s282, %s283
      %p292 = scmp.eq.s32.totalorder %s36, 0
      %p293 = por %p291, %p292
      %p294 = scmp.ne.s32.totalorder %s282, %s283
      %p295 = scmp.eq.s32.totalorder %s37, 1
      %p296 = por %p294, %p295
      %p298 = scmp.ne.s32.totalorder %s283, %s297
      %p299 = scmp.eq.s32.totalorder %s37, 0
      %p300 = por %p298, %p299
      %s302 = sadd.s32 %s301, 1
      %p305 = scmp.eq.s32.totalorder %s31, 1
      %p306 = scmp.ne.s32.totalorder %s301, %s303
      %p307 = scmp.eq.s32.totalorder %s31, 0
      %p308 = por %p306, %p307
      %p309 = scmp.ne.s32.totalorder %s301, %s303
      %p310 = scmp.eq.s32.totalorder %s36, 1
      %p311 = por %p309, %p310
      %p312 = scmp.ne.s32.totalorder %s303, %s304
      %p313 = scmp.eq.s32.totalorder %s36, 0
      %p314 = por %p312, %p313
      %p315 = scmp.ne.s32.totalorder %s303, %s304
      %p316 = scmp.eq.s32.totalorder %s37, 1
      %p317 = por %p315, %p316
      %p319 = scmp.ne.s32.totalorder %s304, %s318
      %p320 = scmp.eq.s32.totalorder %s37, 0
      %p321 = por %p319, %p320
      %s323 = sadd.s32 %s322, 1
      %p326 = scmp.eq.s32.totalorder %s31, 1
      %p327 = scmp.ne.s32.totalorder %s322, %s324
      %p328 = scmp.eq.s32.totalorder %s31, 0
      %p329 = por %p327, %p328
      %p330 = scmp.ne.s32.totalorder %s322, %s324
      %p331 = scmp.eq.s32.totalorder %s36, 1
      %p332 = por %p330, %p331
      %p333 = scmp.ne.s32.totalorder %s324, %s325
      %p334 = scmp.eq.s32.totalorder %s36, 0
      %p335 = por %p333, %p334
      %p336 = scmp.ne.s32.totalorder %s324, %s325
      %p337 = scmp.eq.s32.totalorder %s37, 1
      %p338 = por %p336, %p337
      %p340 = scmp.ne.s32.totalorder %s325, %s339
      %p341 = scmp.eq.s32.totalorder %s37, 0
      %p342 = por %p340, %p341
      %s344 = sadd.s32 %s343, 1
      %p347 = scmp.eq.s32.totalorder %s31, 1
      %p348 = scmp.ne.s32.totalorder %s343, %s345
      %p349 = scmp.eq.s32.totalorder %s31, 0
      %p350 = por %p348, %p349
      %p351 = scmp.ne.s32.totalorder %s343, %s345
      %p352 = scmp.eq.s32.totalorder %s36, 1
      %p353 = por %p351, %p352
      %p354 = scmp.ne.s32.totalorder %s345, %s346
      %p355 = scmp.eq.s32.totalorder %s36, 0
      %p356 = por %p354, %p355
      %p357 = scmp.ne.s32.totalorder %s345, %s346
      %p358 = scmp.eq.s32.totalorder %s37, 1
      %p359 = por %p357, %p358
      %p361 = scmp.ne.s32.totalorder %s346, %s360
      %p362 = scmp.eq.s32.totalorder %s37, 0
      %p363 = por %p361, %p362
      %s365 = sadd.s32 %s364, 1
      %p368 = scmp.eq.s32.totalorder %s31, 1
      %p369 = scmp.ne.s32.totalorder %s364, %s366
      %p370 = scmp.eq.s32.totalorder %s31, 0
      %p371 = por %p369, %p370
      %p372 = scmp.ne.s32.totalorder %s364, %s366
      %p373 = scmp.eq.s32.totalorder %s36, 1
      %p374 = por %p372, %p373
      %p375 = scmp.ne.s32.totalorder %s366, %s367
      %p376 = scmp.eq.s32.totalorder %s36, 0
      %p377 = por %p375, %p376
      %p378 = scmp.ne.s32.totalorder %s366, %s367
      %p379 = scmp.eq.s32.totalorder %s37, 1
      %p380 = por %p378, %p379
      %p382 = scmp.ne.s32.totalorder %s367, %s381
      %p383 = scmp.eq.s32.totalorder %s37, 0
      %p384 = por %p382, %p383
      %s386 = sadd.s32 %s385, 1
      %p389 = scmp.eq.s32.totalorder %s31, 1
      %p390 = scmp.ne.s32.totalorder %s385, %s387
      %p391 = scmp.eq.s32.totalorder %s31, 0
      %p392 = por %p390, %p391
      %p393 = scmp.ne.s32.totalorder %s385, %s387
      %p394 = scmp.eq.s32.totalorder %s36, 1
      %p395 = por %p393, %p394
      %p396 = scmp.ne.s32.totalorder %s387, %s388
      %p397 = scmp.eq.s32.totalorder %s36, 0
      %p398 = por %p396, %p397
      %p399 = scmp.ne.s32.totalorder %s387, %s388
      %p400 = scmp.eq.s32.totalorder %s37, 1
      %p401 = por %p399, %p400
      %p403 = scmp.ne.s32.totalorder %s388, %s402
      %p404 = scmp.eq.s32.totalorder %s37, 0
      %p405 = por %p403, %p404
      %s407 = sadd.s32 %s406, 1
      %p410 = scmp.eq.s32.totalorder %s31, 1
      %p411 = scmp.ne.s32.totalorder %s406, %s408
      %p412 = scmp.eq.s32.totalorder %s31, 0
      %p413 = por %p411, %p412
      %p414 = scmp.ne.s32.totalorder %s406, %s408
      %p415 = scmp.eq.s32.totalorder %s36, 1
      %p416 = por %p414, %p415
      %p417 = scmp.ne.s32.totalorder %s408, %s409
      %p418 = scmp.eq.s32.totalorder %s36, 0
      %p419 = por %p417, %p418
      %p420 = scmp.ne.s32.totalorder %s408, %s409
      %p421 = scmp.eq.s32.totalorder %s37, 1
      %p422 = por %p420, %p421
      %p424 = scmp.ne.s32.totalorder %s409, %s423
      %p425 = scmp.eq.s32.totalorder %s37, 0
      %p426 = por %p424, %p425
      %s428 = sadd.s32 %s427, 1
      %p431 = scmp.eq.s32.totalorder %s31, 1
      %p432 = scmp.ne.s32.totalorder %s427, %s429
      %p433 = scmp.eq.s32.totalorder %s31, 0
      %p434 = por %p432, %p433
      %p435 = scmp.ne.s32.totalorder %s427, %s429
      %p436 = scmp.eq.s32.totalorder %s36, 1
      %p437 = por %p435, %p436
      %p438 = scmp.ne.s32.totalorder %s429, %s430
      %p439 = scmp.eq.s32.totalorder %s36, 0
      %p440 = por %p438, %p439
      %p441 = scmp.ne.s32.totalorder %s429, %s430
      %p442 = scmp.eq.s32.totalorder %s37, 1
      %p443 = por %p441, %p442
      %p445 = scmp.ne.s32.totalorder %s430, %s444
      %p446 = scmp.eq.s32.totalorder %s37, 0
      %p447 = por %p445, %p446
      %s449 = sadd.s32 %s448, 1
      %p452 = scmp.eq.s32.totalorder %s31, 1
      %p453 = scmp.ne.s32.totalorder %s448, %s450
      %p454 = scmp.eq.s32.totalorder %s31, 0
      %p455 = por %p453, %p454
      %p456 = scmp.ne.s32.totalorder %s448, %s450
      %p457 = scmp.eq.s32.totalorder %s36, 1
      %p458 = por %p456, %p457
      %p459 = scmp.ne.s32.totalorder %s450, %s451
      %p460 = scmp.eq.s32.totalorder %s36, 0
      %p461 = por %p459, %p460
      %p462 = scmp.ne.s32.totalorder %s450, %s451
      %p463 = scmp.eq.s32.totalorder %s37, 1
      %p464 = por %p462, %p463
      %p466 = scmp.ne.s32.totalorder %s451, %s465
      %p467 = scmp.eq.s32.totalorder %s37, 0
      %p468 = por %p466, %p467
      %s470 = sadd.s32 %s469, 1
      %p473 = scmp.eq.s32.totalorder %s31, 1
      %p474 = scmp.ne.s32.totalorder %s469, %s471
      %p475 = scmp.eq.s32.totalorder %s31, 0
      %p476 = por %p474, %p475
      %p477 = scmp.ne.s32.totalorder %s469, %s471
      %p478 = scmp.eq.s32.totalorder %s36, 1
      %p479 = por %p477, %p478
      %p480 = scmp.ne.s32.totalorder %s471, %s472
      %p481 = scmp.eq.s32.totalorder %s36, 0
      %p482 = por %p480, %p481
      %p483 = scmp.ne.s32.totalorder %s471, %s472
      %p484 = scmp.eq.s32.totalorder %s37, 1
      %p485 = por %p483, %p484
      %p487 = scmp.ne.s32.totalorder %s472, %s486
      %p488 = scmp.eq.s32.totalorder %s37, 0
      %p489 = por %p487, %p488
      %s491 = sadd.s32 %s490, 1
      %p494 = scmp.eq.s32.totalorder %s31, 1
      %p495 = scmp.ne.s32.totalorder %s490, %s492
      %p496 = scmp.eq.s32.totalorder %s31, 0
      %p497 = por %p495, %p496
      %p498 = scmp.ne.s32.totalorder %s490, %s492
      %p499 = scmp.eq.s32.totalorder %s36, 1
      %p500 = por %p498, %p499
      %p501 = scmp.ne.s32.totalorder %s492, %s493
      %p502 = scmp.eq.s32.totalorder %s36, 0
      %p503 = por %p501, %p502
      %p504 = scmp.ne.s32.totalorder %s492, %s493
      %p505 = scmp.eq.s32.totalorder %s37, 1
      %p506 = por %p504, %p505
      %p508 = scmp.ne.s32.totalorder %s493, %s507
      %p509 = scmp.eq.s32.totalorder %s37, 0
      %p510 = por %p508, %p509
      %s511 = ssub.s32 %s31, %s38
      %p512 = scmp.eq.s32.totalorder %s511, 0
      %s514 = sadd.s32 %s513, 1
      %s515 = scalar_select %p512, %s513, %s514
      %p518 = pneg %p512
      %p519 = scmp.eq.s32.totalorder %s31, 1
      %p520 = por %p518, %p519
      %p521 = scmp.ne.s32.totalorder %s513, %s516
      %p522 = scmp.eq.s32.totalorder %s31, 0
      %p523 = por %p521, %p522
      %p524 = scmp.ne.s32.totalorder %s513, %s516
      %p525 = scmp.eq.s32.totalorder %s36, 1
      %p526 = por %p524, %p525
      %p527 = scmp.ne.s32.totalorder %s516, %s517
      %p528 = scmp.eq.s32.totalorder %s36, 0
      %p529 = por %p527, %p528
      %p530 = scmp.ne.s32.totalorder %s516, %s517
      %p531 = scmp.eq.s32.totalorder %s37, 1
      %p532 = por %p530, %p531
      %p534 = scmp.ne.s32.totalorder %s517, %s533
      %p535 = scmp.eq.s32.totalorder %s37, 0
      %p536 = por %p534, %p535
      %p537 = scmp.le.s32.totalorder 1, %s31
      %p538 = scmp.lt.s32.totalorder %s31, 3
      %p539 = pnand %p537, %p538
      %p540 = pneg %p539
      // Predicated region
      $region9: #{time_series_transformer_fwd.14} parent=5 // pred_check
        _
      $region10: #{time_series_transformer_fwd.14} parent=5 // pred_check_branch
        %542 = sbr.rel (%p539) target = $region12
      $region11: #{time_series_transformer_fwd.14} parent=5 // pred_region
        %s543 = ssub.s32 %s31, 1
        // Predicated region
        $region13: #{time_series_transformer_fwd.14} parent=11 // pred_check
          %p544 = pneg %p104
        $region14: #{time_series_transformer_fwd.14} parent=11 // pred_check_branch
          %546 = sbr.rel (%p544) target = $region16
        $region15: #{time_series_transformer_fwd.14} parent=11 // pred_region
          _
        $region16: #{time_series_transformer_fwd.14} parent=11 // pred_fallthru
          _
        // Predicated region
        $region17: #{time_series_transformer_fwd.14} parent=11 // pred_check
          %p547 = pneg %p125
        $region18: #{time_series_transformer_fwd.14} parent=11 // pred_check_branch
          %549 = sbr.rel (%p547) target = $region20
        $region19: #{time_series_transformer_fwd.14} parent=11 // pred_region
          _
        $region20: #{time_series_transformer_fwd.14} parent=11 // pred_fallthru
          _
        // Predicated region
        $region21: #{time_series_transformer_fwd.14} parent=11 // pred_check
          %p550 = pneg %p146
        $region22: #{time_series_transformer_fwd.14} parent=11 // pred_check_branch
          %552 = sbr.rel (%p550) target = $region24
        $region23: #{time_series_transformer_fwd.14} parent=11 // pred_region
          _
        $region24: #{time_series_transformer_fwd.14} parent=11 // pred_fallthru
          _
        // Predicated region
        $region25: #{time_series_transformer_fwd.14} parent=11 // pred_check
          %p553 = pneg %p167
        $region26: #{time_series_transformer_fwd.14} parent=11 // pred_check_branch
          %555 = sbr.rel (%p553) target = $region28
        $region27: #{time_series_transformer_fwd.14} parent=11 // pred_region
          _
        $region28: #{time_series_transformer_fwd.14} parent=11 // pred_fallthru
          _
        // Predicated region
        $region29: #{time_series_transformer_fwd.14} parent=11 // pred_check
          %p556 = pneg %p188
        $region30: #{time_series_transformer_fwd.14} parent=11 // pred_check_branch
          %558 = sbr.rel (%p556) target = $region32
        $region31: #{time_series_transformer_fwd.14} parent=11 // pred_region
          _
        $region32: #{time_series_transformer_fwd.14} parent=11 // pred_fallthru
          _
        // Predicated region
        $region33: #{time_series_transformer_fwd.14} parent=11 // pred_check
          %p559 = pneg %p209
        $region34: #{time_series_transformer_fwd.14} parent=11 // pred_check_branch
          %561 = sbr.rel (%p559) target = $region36
        $region35: #{time_series_transformer_fwd.14} parent=11 // pred_region
          _
        $region36: #{time_series_transformer_fwd.14} parent=11 // pred_fallthru
          _
        // Predicated region
        $region37: #{time_series_transformer_fwd.14} parent=11 // pred_check
          %p562 = pneg %p230
        $region38: #{time_series_transformer_fwd.14} parent=11 // pred_check_branch
          %564 = sbr.rel (%p562) target = $region40
        $region39: #{time_series_transformer_fwd.14} parent=11 // pred_region
          _
        $region40: #{time_series_transformer_fwd.14} parent=11 // pred_fallthru
          _
        // Predicated region
        $region41: #{time_series_transformer_fwd.14} parent=11 // pred_check
          %p565 = pneg %p251
        $region42: #{time_series_transformer_fwd.14} parent=11 // pred_check_branch
          %567 = sbr.rel (%p565) target = $region44
        $region43: #{time_series_transformer_fwd.14} parent=11 // pred_region
          _
        $region44: #{time_series_transformer_fwd.14} parent=11 // pred_fallthru
          _
        // Predicated region
        $region45: #{time_series_transformer_fwd.14} parent=11 // pred_check
          %p568 = pneg %p272
        $region46: #{time_series_transformer_fwd.14} parent=11 // pred_check_branch
          %570 = sbr.rel (%p568) target = $region48
        $region47: #{time_series_transformer_fwd.14} parent=11 // pred_region
          _
        $region48: #{time_series_transformer_fwd.14} parent=11 // pred_fallthru
          _
        // Predicated region
        $region49: #{time_series_transformer_fwd.14} parent=11 // pred_check
          %p571 = pneg %p293
        $region50: #{time_series_transformer_fwd.14} parent=11 // pred_check_branch
          %573 = sbr.rel (%p571) target = $region52
        $region51: #{time_series_transformer_fwd.14} parent=11 // pred_region
          _
        $region52: #{time_series_transformer_fwd.14} parent=11 // pred_fallthru
          _
        // Predicated region
        $region53: #{time_series_transformer_fwd.14} parent=11 // pred_check
          %p574 = pneg %p314
        $region54: #{time_series_transformer_fwd.14} parent=11 // pred_check_branch
          %576 = sbr.rel (%p574) target = $region56
        $region55: #{time_series_transformer_fwd.14} parent=11 // pred_region
          _
        $region56: #{time_series_transformer_fwd.14} parent=11 // pred_fallthru
          _
        // Predicated region
        $region57: #{time_series_transformer_fwd.14} parent=11 // pred_check
          %p577 = pneg %p335
        $region58: #{time_series_transformer_fwd.14} parent=11 // pred_check_branch
          %579 = sbr.rel (%p577) target = $region60
        $region59: #{time_series_transformer_fwd.14} parent=11 // pred_region
          _
        $region60: #{time_series_transformer_fwd.14} parent=11 // pred_fallthru
          _
        // Predicated region
        $region61: #{time_series_transformer_fwd.14} parent=11 // pred_check
          %p580 = pneg %p356
        $region62: #{time_series_transformer_fwd.14} parent=11 // pred_check_branch
          %582 = sbr.rel (%p580) target = $region64
        $region63: #{time_series_transformer_fwd.14} parent=11 // pred_region
          _
        $region64: #{time_series_transformer_fwd.14} parent=11 // pred_fallthru
          _
        // Predicated region
        $region65: #{time_series_transformer_fwd.14} parent=11 // pred_check
          %p583 = pneg %p377
        $region66: #{time_series_transformer_fwd.14} parent=11 // pred_check_branch
          %585 = sbr.rel (%p583) target = $region68
        $region67: #{time_series_transformer_fwd.14} parent=11 // pred_region
          %587 = vsyncadd [#allocation3], 0
          %s589 = sshll.u32 %s15, 4
          %s590 = int_to_ptr.hbm [resolvable:$true] %s589
          %s591 = sshll.u32 [#allocation2], 4
          %s592 = int_to_ptr.vmem [resolvable:$true] %s591
          %594 = dma.hbm_to_vmem [thread:$0]  %s590, 16, %s592, [#allocation3]
        $region68: #{time_series_transformer_fwd.14} parent=11 // pred_fallthru
          _
        // Predicated region
        $region69: #{time_series_transformer_fwd.14} parent=11 // pred_check
          %p595 = pneg %p398
        $region70: #{time_series_transformer_fwd.14} parent=11 // pred_check_branch
          %597 = sbr.rel (%p595) target = $region72
        $region71: #{time_series_transformer_fwd.14} parent=11 // pred_region
          _
        $region72: #{time_series_transformer_fwd.14} parent=11 // pred_fallthru
          _
        // Predicated region
        $region73: #{time_series_transformer_fwd.14} parent=11 // pred_check
          %p598 = pneg %p419
        $region74: #{time_series_transformer_fwd.14} parent=11 // pred_check_branch
          %600 = sbr.rel (%p598) target = $region76
        $region75: #{time_series_transformer_fwd.14} parent=11 // pred_region
          %602 = vsyncadd [#allocation5], 0
          %s604 = sshll.u32 %s17, 4
          %s605 = int_to_ptr.hbm [resolvable:$true] %s604
          %s606 = sshll.u32 [#allocation4], 4
          %s607 = int_to_ptr.vmem [resolvable:$true] %s606
          %609 = dma.hbm_to_vmem [thread:$0]  %s605, 16, %s607, [#allocation5]
        $region76: #{time_series_transformer_fwd.14} parent=11 // pred_fallthru
          _
        // Predicated region
        $region77: #{time_series_transformer_fwd.14} parent=11 // pred_check
          %p610 = pneg %p440
        $region78: #{time_series_transformer_fwd.14} parent=11 // pred_check_branch
          %612 = sbr.rel (%p610) target = $region80
        $region79: #{time_series_transformer_fwd.14} parent=11 // pred_region
          _
        $region80: #{time_series_transformer_fwd.14} parent=11 // pred_fallthru
          _
        // Predicated region
        $region81: #{time_series_transformer_fwd.14} parent=11 // pred_check
          %p613 = pneg %p461
        $region82: #{time_series_transformer_fwd.14} parent=11 // pred_check_branch
          %615 = sbr.rel (%p613) target = $region84
        $region83: #{time_series_transformer_fwd.14} parent=11 // pred_region
          %617 = vsyncadd [#allocation5], 0
          %s619 = sshll.u32 %s19, 4
          %s620 = int_to_ptr.hbm [resolvable:$true] %s619
          %s621 = sshll.u32 [#allocation6], 4
          %s622 = int_to_ptr.vmem [resolvable:$true] %s621
          %624 = dma.hbm_to_vmem [thread:$0]  %s620, 16, %s622, [#allocation5]
        $region84: #{time_series_transformer_fwd.14} parent=11 // pred_fallthru
          _
        // Predicated region
        $region85: #{time_series_transformer_fwd.14} parent=11 // pred_check
          %p625 = pneg %p482
        $region86: #{time_series_transformer_fwd.14} parent=11 // pred_check_branch
          %627 = sbr.rel (%p625) target = $region88
        $region87: #{time_series_transformer_fwd.14} parent=11 // pred_region
          %629 = vsyncadd [#allocation8], 0
          %s631 = sshll.u32 %s20, 4
          %s632 = int_to_ptr.hbm [resolvable:$true] %s631
          %s633 = sshll.u32 [#allocation7], 4
          %s634 = int_to_ptr.vmem [resolvable:$true] %s633
          %636 = dma.hbm_to_vmem [thread:$0]  %s632, 16, %s634, [#allocation8]
        $region88: #{time_series_transformer_fwd.14} parent=11 // pred_fallthru
          _
        // Predicated region
        $region89: #{time_series_transformer_fwd.14} parent=11 // pred_check
          %p637 = pneg %p503
        $region90: #{time_series_transformer_fwd.14} parent=11 // pred_check_branch
          %639 = sbr.rel (%p637) target = $region92
        $region91: #{time_series_transformer_fwd.14} parent=11 // pred_region
          %641 = vsyncadd [#allocation8], 0
          %s643 = sshll.u32 %s21, 4
          %s644 = int_to_ptr.hbm [resolvable:$true] %s643
          %s645 = sshll.u32 [#allocation9], 4
          %s646 = int_to_ptr.vmem [resolvable:$true] %s645
          %648 = dma.hbm_to_vmem [thread:$0]  %s644, 16, %s646, [#allocation8]
        $region92: #{time_series_transformer_fwd.14} parent=11 // pred_fallthru
          _
      $region12: #{time_series_transformer_fwd.14} parent=5 // pred_fallthru
        _
      %p649 = scmp.lt.s32.totalorder %s31, 2
      // Predicated region
      $region93: #{time_series_transformer_fwd.14} parent=5 // pred_check
        %p650 = pneg %p649
      $region94: #{time_series_transformer_fwd.14} parent=5 // pred_check_branch
        %652 = sbr.rel (%p650) target = $region96
      $region95: #{time_series_transformer_fwd.14} parent=5 // pred_region
        // Predicated region
        $region97: #{time_series_transformer_fwd.14} parent=95 // pred_check
          %p653 = pneg %p51
        $region98: #{time_series_transformer_fwd.14} parent=95 // pred_check_branch
          %655 = sbr.rel (%p653) target = $region100
        $region99: #{time_series_transformer_fwd.14} parent=95 // pred_region
          %p656 = scmp.lt.s32.totalorder %s31, 1
          %s657 = scalar_select %p656, %s31, 1
          %s658 = smul.addr %s657, 8
          %s659 = scalar_lea.vmem %s0, %s658
        $region100: #{time_series_transformer_fwd.14} parent=95 // pred_fallthru
          _
        // Predicated region
        $region101: #{time_series_transformer_fwd.14} parent=95 // pred_check
          %p660 = pneg %p77
        $region102: #{time_series_transformer_fwd.14} parent=95 // pred_check_branch
          %662 = sbr.rel (%p660) target = $region104
        $region103: #{time_series_transformer_fwd.14} parent=95 // pred_region
          %p663 = scmp.lt.s32.totalorder %s31, 1
          %s664 = scalar_select %p663, %s31, 1
          %s665 = smul.addr %s664, 8
          %s666 = scalar_lea.vmem %s1, %s665
        $region104: #{time_series_transformer_fwd.14} parent=95 // pred_fallthru
          _
      $region96: #{time_series_transformer_fwd.14} parent=5 // pred_fallthru
        _
      %p667 = scmp.le.s32.totalorder 1, %s31
      %p668 = scmp.lt.s32.totalorder %s31, 3
      %p669 = pnand %p667, %p668
      %p670 = pneg %p669
      // Predicated region
      $region105: #{time_series_transformer_fwd.14} parent=5 // pred_check
        _
      $region106: #{time_series_transformer_fwd.14} parent=5 // pred_check_branch
        %672 = sbr.rel (%p669) target = $region108
      $region107: #{time_series_transformer_fwd.14} parent=5 // pred_region
        %s673 = ssub.s32 %s31, 1
        // Predicated region
        $region109: #{time_series_transformer_fwd.14} parent=107 // pred_check
          %p674 = pneg %p377
        $region110: #{time_series_transformer_fwd.14} parent=107 // pred_check_branch
          %676 = sbr.rel (%p674) target = $region112
        $region111: #{time_series_transformer_fwd.14} parent=107 // pred_region
          %678 = dma.done [#allocation3], 16
        $region112: #{time_series_transformer_fwd.14} parent=107 // pred_fallthru
          _
        // Predicated region
        $region113: #{time_series_transformer_fwd.14} parent=107 // pred_check
          %p679 = pneg %p419
        $region114: #{time_series_transformer_fwd.14} parent=107 // pred_check_branch
          %681 = sbr.rel (%p679) target = $region116
        $region115: #{time_series_transformer_fwd.14} parent=107 // pred_region
          %683 = dma.done [#allocation5], 16
        $region116: #{time_series_transformer_fwd.14} parent=107 // pred_fallthru
          _
        // Predicated region
        $region117: #{time_series_transformer_fwd.14} parent=107 // pred_check
          %p684 = pneg %p461
        $region118: #{time_series_transformer_fwd.14} parent=107 // pred_check_branch
          %686 = sbr.rel (%p684) target = $region120
        $region119: #{time_series_transformer_fwd.14} parent=107 // pred_region
          %688 = dma.done [#allocation5], 16
        $region120: #{time_series_transformer_fwd.14} parent=107 // pred_fallthru
          _
        // Predicated region
        $region121: #{time_series_transformer_fwd.14} parent=107 // pred_check
          %p689 = pneg %p482
        $region122: #{time_series_transformer_fwd.14} parent=107 // pred_check_branch
          %691 = sbr.rel (%p689) target = $region124
        $region123: #{time_series_transformer_fwd.14} parent=107 // pred_region
          %693 = dma.done [#allocation8], 16
        $region124: #{time_series_transformer_fwd.14} parent=107 // pred_fallthru
          _
        // Predicated region
        $region125: #{time_series_transformer_fwd.14} parent=107 // pred_check
          %p694 = pneg %p503
        $region126: #{time_series_transformer_fwd.14} parent=107 // pred_check_branch
          %696 = sbr.rel (%p694) target = $region128
        $region127: #{time_series_transformer_fwd.14} parent=107 // pred_region
          %698 = dma.done [#allocation8], 16
        $region128: #{time_series_transformer_fwd.14} parent=107 // pred_fallthru
          _
        %p699 = scmp.lt.s32.totalorder %s36, 1
        %s700 = scalar_select %p699, %s36, 1
        %s701 = smul.addr %s700, 8
        %s702 = scalar_lea.vmem %s0, %s701
        %p703 = pneg %p57
        %p704 = pneg %p54
        %p705 = scmp.lt.s32.totalorder %s36, 1
        %s706 = scalar_select %p705, %s36, 1
        %s707 = smul.addr %s706, 8
        %s708 = scalar_lea.vmem %s1, %s707
        %p709 = pneg %p83
        %p710 = pneg %p80
        %p711 = pneg %p104
        %p712 = pneg %p101
        %p713 = pneg %p125
        %p714 = pneg %p122
        %p715 = pneg %p146
        %p716 = pneg %p143
        %p717 = pneg %p167
        %p718 = pneg %p164
        %p719 = pneg %p188
        %p720 = pneg %p185
        %p721 = pneg %p209
        %p722 = pneg %p206
        %p723 = pneg %p230
        %p724 = pneg %p227
        %p725 = pneg %p251
        %p726 = pneg %p248
        %p727 = pneg %p272
        %p728 = pneg %p269
        %p729 = pneg %p293
        %p730 = pneg %p290
        %p731 = pneg %p314
        %p732 = pneg %p311
        %p733 = pneg %p335
        %p734 = pneg %p332
        %p735 = pneg %p356
        %p736 = pneg %p353
        %p737 = pneg %p377
        %p738 = pneg %p374
        %p739 = pneg %p398
        %p740 = pneg %p395
        %p741 = pneg %p419
        %p742 = pneg %p416
        %p743 = pneg %p440
        %p744 = pneg %p437
        %p745 = pneg %p461
        %p746 = pneg %p458
        %p747 = pneg %p482
        %p748 = pneg %p479
        %p749 = pneg %p503
        %p750 = pneg %p500
        %p751 = pneg %p529
        %p752 = pneg %p526
        %p753 = scmp.lt.s32.totalorder %s36, 1
        %s754 = scalar_select %p753, %s36, 1
        %s755 = smul.addr %s754, 8
        %s756 = scalar_lea.vmem %s22, %s755
        %p757 = scmp.lt.s32.totalorder %s36, 1
        %s758 = scalar_select %p757, %s36, 1
        %s759 = smul.addr %s758, 8
        %s760 = scalar_lea.vmem %s0, %s759
        %p761 = scmp.lt.s32.totalorder %s36, 1
        %s762 = scalar_select %p761, %s36, 1
        %s763 = smul.addr %s762, 8
        %s764 = scalar_lea.vmem %s1, %s763
        %p765 = scmp.lt.s32.totalorder %s36, 1
        %s766 = scalar_select %p765, %s36, 1
        %s767 = smul.addr %s766, 8
        %s768 = scalar_lea.vmem %s22, %s767
        %v770 = vld [vmem:[%s760] sm:$0xff]
        %v771 = vld [vmem:[%s764] sm:$0xff]
        %v772 = vld [vmem:[%s2] sm:$0xf]
        %v773 = vld [vmem:[%s2 + $0x4] sm:$0xf]
        %v774 = vld [vmem:[%s2 + $0x8] sm:$0xf]
        %v775 = vld [vmem:[%s2 + $0xc] sm:$0xf]
        %v776 = vpack.c.bf16 %v770, %v770
        %v777 = vld [vmem:[%s3] sm:$0x1]
        %v779 = vperm.slane %v777, 0
        %v785 = vunpack.c.l.b16 %v772
        %v786 = vunpack.c.l.b16 %v773
        %v787 = vunpack.c.l.b16 %v774
        %v788 = vunpack.c.l.b16 %v775
        %v789 = vpack.c.b16 %v786, %v785
        %v790 = vpack.c.b16 %v788, %v787
        %vm793 = vcmask 261120
        %v795 = vsel %vm793, %v776, 0
        %797 = vmatpush.bf16.msra.mxu0 0
        %798 = vmatpush.bf16.msra.mxu0 0
        %799 = vmatpush.bf16.msra.mxu0 0
        %800 = vmatpush.bf16.msra.mxu0 0
        %801 = vmatpush.bf16.msra.mxu0 0
        %802 = vmatpush.bf16.msra.mxu0 0
        %803 = vmatpush.bf16.msra.mxu0 %v790
        %804 = vmatpush.bf16.msra.mxu0 %v789
        %805 = vmatmul.bf16.gmra.mxu0 %v795
        %v806 = vpop.f32.mrf.mxu0
        %v807 = vadd.f32 %v779, %v806
        %v808 = vpop.f32.mrf.mxu0
        %809 = vdwg.mxu0
        %v810 = vpack.c.bf16 %v807, %v807
        %812 = vrot.lane.b32.xlu0 %v810, 96
        %v813 = vpop.permute.xlu0 %812
        %vm814 = vcmask 64512
        %v816 = vsel %vm814, %v810, 0
        %v819 = vsel %vm814, %v813, 0
        %821 = vmatpush.bf16.xpose.msra.mxu0 0
        %822 = vmatpush.bf16.xpose.msra.mxu0 0
        %823 = vmatpush.bf16.xpose.msra.mxu0 0
        %824 = vmatpush.bf16.xpose.msra.mxu0 0
        %825 = vmatpush.bf16.xpose.msra.mxu0 0
        %826 = vmatpush.bf16.xpose.msra.mxu0 0
        %827 = vmatpush.bf16.xpose.msra.mxu0 0
        %828 = vmatpush.bf16.xpose.msra.mxu0 %v819
        %829 = vmatmul.bf16.gmra.mxu0 %v816
        %v830 = vpop.f32.mrf.mxu0
        %v831 = vadd.f32 0.0, %v830
        %v832 = vpop.f32.mrf.mxu0
        %833 = vdwg.mxu0
        %v834 = vmul.f32 %v831, 0.35355338
        %v835 = vsel %vm814, %v834, -inf
        %836 = vmax.xlane.f32.xlu0 %v835
        %v837 = vpop.xlane.xlu0 %836
        %v838 = vsub.f32 %v834, %v837
        %v839 = vmul.f32 %v838, 1.442695
        %v840 = vpow.pop %v839
        %v841 = vsel %vm814, %v840, 0.0
        %842 = vadd.xlane.f32.xlu0 %v841
        %v843 = vpop.xlane.xlu0 %842
        %v844 = vrcp.pop %v843
        %v845 = vmul.f32 %v840, %v844
        %v846 = vpack.c.bf16 %v845, %v845
        %847 = vrot.lane.b32.xlu0 %v810, 64
        %v848 = vpop.permute.xlu0 %847
        %v850 = vsel %vm814, %v846, 0
        %vm852 = vcmask 1043456
        %v854 = vsel %vm852, %v848, 0
        %856 = vmatpush.bf16.msra.mxu0 0
        %857 = vmatpush.bf16.msra.mxu0 0
        %858 = vmatpush.bf16.msra.mxu0 0
        %859 = vmatpush.bf16.msra.mxu0 0
        %860 = vmatpush.bf16.msra.mxu0 0
        %861 = vmatpush.bf16.msra.mxu0 0
        %862 = vmatpush.bf16.msra.mxu0 0
        %863 = vmatpush.bf16.msra.mxu0 %v854
        %864 = vmatmul.bf16.gmra.mxu0 %v850
        %v865 = vpop.f32.mrf.mxu0
        %v866 = vadd.f32 0.0, %v865
        %v867 = vpop.f32.mrf.mxu0
        %868 = vdwg.mxu0
        %869 = vrot.lane.b32.xlu0 %v810, 120
        %v870 = vpop.permute.xlu0 %869
        %871 = vrot.lane.b32.xlu0 %v810, 88
        %v872 = vpop.permute.xlu0 %871
        %v874 = vsel %vm814, %v870, 0
        %v877 = vsel %vm814, %v872, 0
        %879 = vmatpush.bf16.xpose.msra.mxu0 0
        %880 = vmatpush.bf16.xpose.msra.mxu0 0
        %881 = vmatpush.bf16.xpose.msra.mxu0 0
        %882 = vmatpush.bf16.xpose.msra.mxu0 0
        %883 = vmatpush.bf16.xpose.msra.mxu0 0
        %884 = vmatpush.bf16.xpose.msra.mxu0 0
        %885 = vmatpush.bf16.xpose.msra.mxu0 0
        %886 = vmatpush.bf16.xpose.msra.mxu0 %v877
        %887 = vmatmul.bf16.gmra.mxu0 %v874
        %v888 = vpop.f32.mrf.mxu0
        %v889 = vadd.f32 0.0, %v888
        %v890 = vpop.f32.mrf.mxu0
        %891 = vdwg.mxu0
        %v892 = vmul.f32 %v889, 0.35355338
        %v893 = vsel %vm814, %v892, -inf
        %894 = vmax.xlane.f32.xlu0 %v893
        %v895 = vpop.xlane.xlu0 %894
        %v896 = vsub.f32 %v892, %v895
        %v897 = vmul.f32 %v896, 1.442695
        %v898 = vpow.pop %v897
        %v899 = vsel %vm814, %v898, 0.0
        %900 = vadd.xlane.f32.xlu0 %v899
        %v901 = vpop.xlane.xlu0 %900
        %v902 = vrcp.pop %v901
        %v903 = vmul.f32 %v898, %v902
        %v904 = vpack.c.bf16 %v903, %v903
        %905 = vrot.lane.b32.xlu0 %v810, 56
        %v906 = vpop.permute.xlu0 %905
        %v908 = vsel %vm814, %v904, 0
        %v911 = vsel %vm852, %v906, 0
        %913 = vmatpush.bf16.msra.mxu0 0
        %914 = vmatpush.bf16.msra.mxu0 0
        %915 = vmatpush.bf16.msra.mxu0 0
        %916 = vmatpush.bf16.msra.mxu0 0
        %917 = vmatpush.bf16.msra.mxu0 0
        %918 = vmatpush.bf16.msra.mxu0 0
        %919 = vmatpush.bf16.msra.mxu0 0
        %920 = vmatpush.bf16.msra.mxu0 %v911
        %921 = vmatmul.bf16.gmra.mxu0 %v908
        %v922 = vpop.f32.mrf.mxu0
        %v923 = vadd.f32 0.0, %v922
        %v924 = vpop.f32.mrf.mxu0
        %925 = vdwg.mxu0
        %926 = vrot.lane.b32.xlu0 %v810, 112
        %v927 = vpop.permute.xlu0 %926
        %928 = vrot.lane.b32.xlu0 %v810, 80
        %v929 = vpop.permute.xlu0 %928
        %v931 = vsel %vm814, %v927, 0
        %v934 = vsel %vm814, %v929, 0
        %936 = vmatpush.bf16.xpose.msra.mxu0 0
        %937 = vmatpush.bf16.xpose.msra.mxu0 0
        %938 = vmatpush.bf16.xpose.msra.mxu0 0
        %939 = vmatpush.bf16.xpose.msra.mxu0 0
        %940 = vmatpush.bf16.xpose.msra.mxu0 0
        %941 = vmatpush.bf16.xpose.msra.mxu0 0
        %942 = vmatpush.bf16.xpose.msra.mxu0 0
        %943 = vmatpush.bf16.xpose.msra.mxu0 %v934
        %944 = vmatmul.bf16.gmra.mxu0 %v931
        %v945 = vpop.f32.mrf.mxu0
        %v946 = vadd.f32 0.0, %v945
        %v947 = vpop.f32.mrf.mxu0
        %948 = vdwg.mxu0
        %v949 = vmul.f32 %v946, 0.35355338
        %v950 = vsel %vm814, %v949, -inf
        %951 = vmax.xlane.f32.xlu0 %v950
        %v952 = vpop.xlane.xlu0 %951
        %v953 = vsub.f32 %v949, %v952
        %v954 = vmul.f32 %v953, 1.442695
        %v955 = vpow.pop %v954
        %v956 = vsel %vm814, %v955, 0.0
        %957 = vadd.xlane.f32.xlu0 %v956
        %v958 = vpop.xlane.xlu0 %957
        %v959 = vrcp.pop %v958
        %v960 = vmul.f32 %v955, %v959
        %v961 = vpack.c.bf16 %v960, %v960
        %962 = vrot.lane.b32.xlu0 %v810, 48
        %v963 = vpop.permute.xlu0 %962
        %v965 = vsel %vm814, %v961, 0
        %v968 = vsel %vm852, %v963, 0
        %970 = vmatpush.bf16.msra.mxu0 0
        %971 = vmatpush.bf16.msra.mxu0 0
        %972 = vmatpush.bf16.msra.mxu0 0
        %973 = vmatpush.bf16.msra.mxu0 0
        %974 = vmatpush.bf16.msra.mxu0 0
        %975 = vmatpush.bf16.msra.mxu0 0
        %976 = vmatpush.bf16.msra.mxu0 0
        %977 = vmatpush.bf16.msra.mxu0 %v968
        %978 = vmatmul.bf16.gmra.mxu0 %v965
        %v979 = vpop.f32.mrf.mxu0
        %v980 = vadd.f32 0.0, %v979
        %v981 = vpop.f32.mrf.mxu0
        %982 = vdwg.mxu0
        %983 = vrot.lane.b32.xlu0 %v810, 104
        %v984 = vpop.permute.xlu0 %983
        %985 = vrot.lane.b32.xlu0 %v810, 72
        %v986 = vpop.permute.xlu0 %985
        %v988 = vsel %vm814, %v984, 0
        %v991 = vsel %vm814, %v986, 0
        %993 = vmatpush.bf16.xpose.msra.mxu0 0
        %994 = vmatpush.bf16.xpose.msra.mxu0 0
        %995 = vmatpush.bf16.xpose.msra.mxu0 0
        %996 = vmatpush.bf16.xpose.msra.mxu0 0
        %997 = vmatpush.bf16.xpose.msra.mxu0 0
        %998 = vmatpush.bf16.xpose.msra.mxu0 0
        %999 = vmatpush.bf16.xpose.msra.mxu0 0
        %1000 = vmatpush.bf16.xpose.msra.mxu0 %v991
        %1001 = vmatmul.bf16.gmra.mxu0 %v988
        %v1002 = vpop.f32.mrf.mxu0
        %v1003 = vadd.f32 0.0, %v1002
        %v1004 = vpop.f32.mrf.mxu0
        %1005 = vdwg.mxu0
        %v1006 = vmul.f32 %v1003, 0.35355338
        %v1007 = vsel %vm814, %v1006, -inf
        %1008 = vmax.xlane.f32.xlu0 %v1007
        %v1009 = vpop.xlane.xlu0 %1008
        %v1010 = vsub.f32 %v1006, %v1009
        %v1011 = vmul.f32 %v1010, 1.442695
        %v1012 = vpow.pop %v1011
        %v1013 = vsel %vm814, %v1012, 0.0
        %1014 = vadd.xlane.f32.xlu0 %v1013
        %v1015 = vpop.xlane.xlu0 %1014
        %v1016 = vrcp.pop %v1015
        %v1017 = vmul.f32 %v1012, %v1016
        %v1018 = vpack.c.bf16 %v1017, %v1017
        %1019 = vrot.lane.b32.xlu0 %v810, 40
        %v1020 = vpop.permute.xlu0 %1019
        %v1022 = vsel %vm814, %v1018, 0
        %v1025 = vsel %vm852, %v1020, 0
        %1027 = vmatpush.bf16.msra.mxu0 0
        %1028 = vmatpush.bf16.msra.mxu0 0
        %1029 = vmatpush.bf16.msra.mxu0 0
        %1030 = vmatpush.bf16.msra.mxu0 0
        %1031 = vmatpush.bf16.msra.mxu0 0
        %1032 = vmatpush.bf16.msra.mxu0 0
        %1033 = vmatpush.bf16.msra.mxu0 0
        %1034 = vmatpush.bf16.msra.mxu0 %v1025
        %1035 = vmatmul.bf16.gmra.mxu0 %v1022
        %v1036 = vpop.f32.mrf.mxu0
        %v1037 = vadd.f32 0.0, %v1036
        %v1038 = vpop.f32.mrf.mxu0
        %1039 = vdwg.mxu0
        %1041 = vrot.lane.b32.xlu0 %v923, 8
        %v1042 = vpop.permute.xlu0 %1041
        %1045 = vrot.lane.b32.xlu0 %v980, 16
        %v1046 = vpop.permute.xlu0 %1045
        %1049 = vrot.lane.b32.xlu0 %v1037, 24
        %v1050 = vpop.permute.xlu0 %1049
        %v1052 = vsel %vm814, %v866, %v1042
        %vm1053 = vcmask 130048
        %v1054 = vsel %vm1053, %v1052, %v1046
        %vm1055 = vcmask 195584
        %v1056 = vsel %vm1055, %v1054, %v1050
        %v1057 = vld [vmem:[%s4] sm:$0xf]
        %v1058 = vld [vmem:[%s4 + $0x4] sm:$0xf]
        %v1059 = vld [vmem:[%s4 + $0x8] sm:$0xf]
        %v1060 = vld [vmem:[%s4 + $0xc] sm:$0xf]
        %v1061 = vpack.c.bf16 %v1056, %v1056
        %v1062 = vld [vmem:[%s5] sm:$0x1]
        %v1064 = vperm.slane %v1062, 0
        %v1070 = vunpack.c.l.b16 %v1057
        %v1071 = vunpack.c.l.b16 %v1058
        %v1072 = vunpack.c.l.b16 %v1059
        %v1073 = vunpack.c.l.b16 %v1060
        %v1074 = vpack.c.b16 %v1071, %v1070
        %v1075 = vpack.c.b16 %v1073, %v1072
        %v1079 = vsel %vm793, %v1061, 0
        %1081 = vmatpush.bf16.msra.mxu0 0
        %1082 = vmatpush.bf16.msra.mxu0 0
        %1083 = vmatpush.bf16.msra.mxu0 0
        %1084 = vmatpush.bf16.msra.mxu0 0
        %1085 = vmatpush.bf16.msra.mxu0 0
        %1086 = vmatpush.bf16.msra.mxu0 0
        %1087 = vmatpush.bf16.msra.mxu0 %v1075
        %1088 = vmatpush.bf16.msra.mxu0 %v1074
        %1089 = vmatmul.bf16.gmra.mxu0 %v1079
        %v1090 = vpop.f32.mrf.mxu0
        %v1091 = vadd.f32 %v1064, %v1090
        %v1092 = vpop.f32.mrf.mxu0
        %1093 = vdwg.mxu0
        %v1094 = vadd.f32 %v1091, %v770
        %v1095 = vld [vmem:[%s6] sm:$0x1]
        %v1096 = vld [vmem:[%s7] sm:$0x1]
        %v1097 = vsel %vm793, %v1094, 0.0
        %1098 = vadd.xlane.f32.xlu0 %v1097
        %v1099 = vpop.xlane.xlu0 %1098
        %v1100 = vrcp.pop 32.0
        %v1101 = vmul.f32 32.0, %v1100
        %v1102 = vsub.f32 1.0, %v1101
        %v1103 = vmul.f32 %v1100, %v1102
        %v1104 = vadd.f32 %v1100, %v1103
        %vm1105 = vweird.f32 %v1100
        %v1106 = vsel %vm1105, %v1100, %v1104
        %v1107 = vmul.f32 %v1099, %v1106
        %v1108 = vsub.f32 %v1094, %v1107
        %v1109 = vmul.f32 %v1108, %v1108
        %v1110 = vsel %vm793, %v1109, 0.0
        %1111 = vadd.xlane.f32.xlu0 %v1110
        %v1112 = vpop.xlane.xlu0 %1111
        %v1113 = vmul.f32 %v1112, %v1106
        %v1114 = vadd.f32 %v1113, 1e-05
        %v1115 = vrsqrt.pop %v1114
        %v1116 = vmul.f32 %v1115, %v1114
        %v1117 = vmul.f32 %v1116, %v1115
        %v1118 = vmul.f32 0.5, %v1117
        %v1119 = vsub.f32 1.5, %v1118
        %v1120 = vmul.f32 %v1115, %v1119
        %vm1121 = vweird.f32 %v1114
        %vm1122 = vweird.f32 %v1115
        %vm1123 = vmor %vm1121, %vm1122
        %v1124 = vsel %vm1123, %v1115, %v1120
        %v1125 = vmul.f32 %v1108, %v1124
        %v1127 = vperm.slane %v1095, 0
        %v1129 = vmul.f32 %v1125, %v1127
        %v1131 = vperm.slane %v1096, 0
        %v1133 = vadd.f32 %v1129, %v1131
        %v1134 = vld [vmem:[%s8] sm:$0xf]
        %v1135 = vld [vmem:[%s8 + $0x4] sm:$0xf]
        %v1136 = vld [vmem:[%s8 + $0x8] sm:$0xf]
        %v1137 = vld [vmem:[%s8 + $0xc] sm:$0xf]
        %v1138 = vpack.c.bf16 %v1133, %v1133
        %v1139 = vld [vmem:[%s9] sm:$0x1]
        %v1141 = vperm.slane %v1139, 0
        %v1147 = vunpack.c.l.b16 %v1134
        %v1148 = vunpack.c.l.b16 %v1135
        %v1149 = vunpack.c.l.b16 %v1136
        %v1150 = vunpack.c.l.b16 %v1137
        %v1151 = vpack.c.b16 %v1148, %v1147
        %v1152 = vpack.c.b16 %v1150, %v1149
        %v1156 = vsel %vm793, %v1138, 0
        %1158 = vmatpush.bf16.msra.mxu0 0
        %1159 = vmatpush.bf16.msra.mxu0 0
        %1160 = vmatpush.bf16.msra.mxu0 0
        %1161 = vmatpush.bf16.msra.mxu0 0
        %1162 = vmatpush.bf16.msra.mxu0 0
        %1163 = vmatpush.bf16.msra.mxu0 0
        %1164 = vmatpush.bf16.msra.mxu0 %v1152
        %1165 = vmatpush.bf16.msra.mxu0 %v1151
        %1166 = vmatmul.bf16.gmra.mxu0 %v1156
        %v1167 = vpop.f32.mrf.mxu0
        %v1168 = vadd.f32 %v1141, %v1167
        %v1169 = vpop.f32.mrf.mxu0
        %1170 = vdwg.mxu0
        %v1171 = vld [vmem:[%s10] sm:$0xf]
        %v1172 = vld [vmem:[%s10 + $0x4] sm:$0xf]
        %v1173 = vld [vmem:[%s10 + $0x8] sm:$0xf]
        %v1174 = vld [vmem:[%s10 + $0xc] sm:$0xf]
        %v1175 = vpack.c.bf16 %v771, %v771
        %v1176 = vld [vmem:[%s11] sm:$0x1]
        %v1178 = vperm.slane %v1176, 0
        %v1184 = vunpack.c.l.b16 %v1171
        %v1185 = vunpack.c.l.b16 %v1172
        %v1186 = vunpack.c.l.b16 %v1173
        %v1187 = vunpack.c.l.b16 %v1174
        %v1188 = vpack.c.b16 %v1185, %v1184
        %v1189 = vpack.c.b16 %v1187, %v1186
        %v1193 = vsel %vm793, %v1175, 0
        %1195 = vmatpush.bf16.msra.mxu0 0
        %1196 = vmatpush.bf16.msra.mxu0 0
        %1197 = vmatpush.bf16.msra.mxu0 0
        %1198 = vmatpush.bf16.msra.mxu0 0
        %1199 = vmatpush.bf16.msra.mxu0 0
        %1200 = vmatpush.bf16.msra.mxu0 0
        %1201 = vmatpush.bf16.msra.mxu0 %v1189
        %1202 = vmatpush.bf16.msra.mxu0 %v1188
        %1203 = vmatmul.bf16.gmra.mxu0 %v1193
        %v1204 = vpop.f32.mrf.mxu0
        %v1205 = vadd.f32 %v1178, %v1204
        %v1206 = vpop.f32.mrf.mxu0
        %1207 = vdwg.mxu0
        %v1208 = vpack.c.bf16 %v1168, %v1168
        %v1209 = vpack.c.bf16 %v1205, %v1205
        %v1211 = vsel %vm814, %v1208, 0
        %v1214 = vsel %vm814, %v1209, 0
        %1216 = vmatpush.bf16.xpose.msra.mxu0 0
        %1217 = vmatpush.bf16.xpose.msra.mxu0 0
        %1218 = vmatpush.bf16.xpose.msra.mxu0 0
        %1219 = vmatpush.bf16.xpose.msra.mxu0 0
        %1220 = vmatpush.bf16.xpose.msra.mxu0 0
        %1221 = vmatpush.bf16.xpose.msra.mxu0 0
        %1222 = vmatpush.bf16.xpose.msra.mxu0 0
        %1223 = vmatpush.bf16.xpose.msra.mxu0 %v1214
        %1224 = vmatmul.bf16.gmra.mxu0 %v1211
        %v1225 = vpop.f32.mrf.mxu0
        %v1226 = vadd.f32 0.0, %v1225
        %v1227 = vpop.f32.mrf.mxu0
        %1228 = vdwg.mxu0
        %v1229 = vmul.f32 %v1226, 0.35355338
        %v1230 = vsel %vm814, %v1229, -inf
        %1231 = vmax.xlane.f32.xlu0 %v1230
        %v1232 = vpop.xlane.xlu0 %1231
        %v1233 = vsub.f32 %v1229, %v1232
        %v1234 = vmul.f32 %v1233, 1.442695
        %v1235 = vpow.pop %v1234
        %v1236 = vsel %vm814, %v1235, 0.0
        %1237 = vadd.xlane.f32.xlu0 %v1236
        %v1238 = vpop.xlane.xlu0 %1237
        %v1239 = vrcp.pop %v1238
        %v1240 = vmul.f32 %v1235, %v1239
        %v1241 = vpack.c.bf16 %v1240, %v1240
        %1243 = vrot.lane.b32.xlu0 %v1209, 96
        %v1244 = vpop.permute.xlu0 %1243
        %v1246 = vsel %vm814, %v1241, 0
        %v1249 = vsel %vm852, %v1244, 0
        %1251 = vmatpush.bf16.msra.mxu0 0
        %1252 = vmatpush.bf16.msra.mxu0 0
        %1253 = vmatpush.bf16.msra.mxu0 0
        %1254 = vmatpush.bf16.msra.mxu0 0
        %1255 = vmatpush.bf16.msra.mxu0 0
        %1256 = vmatpush.bf16.msra.mxu0 0
        %1257 = vmatpush.bf16.msra.mxu0 0
        %1258 = vmatpush.bf16.msra.mxu0 %v1249
        %1259 = vmatmul.bf16.gmra.mxu0 %v1246
        %v1260 = vpop.f32.mrf.mxu0
        %v1261 = vadd.f32 0.0, %v1260
        %v1262 = vpop.f32.mrf.mxu0
        %1263 = vdwg.mxu0
        %1265 = vrot.lane.b32.xlu0 %v1208, 120
        %v1266 = vpop.permute.xlu0 %1265
        %1267 = vrot.lane.b32.xlu0 %v1209, 120
        %v1268 = vpop.permute.xlu0 %1267
        %v1270 = vsel %vm814, %v1266, 0
        %v1273 = vsel %vm814, %v1268, 0
        %1275 = vmatpush.bf16.xpose.msra.mxu0 0
        %1276 = vmatpush.bf16.xpose.msra.mxu0 0
        %1277 = vmatpush.bf16.xpose.msra.mxu0 0
        %1278 = vmatpush.bf16.xpose.msra.mxu0 0
        %1279 = vmatpush.bf16.xpose.msra.mxu0 0
        %1280 = vmatpush.bf16.xpose.msra.mxu0 0
        %1281 = vmatpush.bf16.xpose.msra.mxu0 0
        %1282 = vmatpush.bf16.xpose.msra.mxu0 %v1273
        %1283 = vmatmul.bf16.gmra.mxu0 %v1270
        %v1284 = vpop.f32.mrf.mxu0
        %v1285 = vadd.f32 0.0, %v1284
        %v1286 = vpop.f32.mrf.mxu0
        %1287 = vdwg.mxu0
        %v1288 = vmul.f32 %v1285, 0.35355338
        %v1289 = vsel %vm814, %v1288, -inf
        %1290 = vmax.xlane.f32.xlu0 %v1289
        %v1291 = vpop.xlane.xlu0 %1290
        %v1292 = vsub.f32 %v1288, %v1291
        %v1293 = vmul.f32 %v1292, 1.442695
        %v1294 = vpow.pop %v1293
        %v1295 = vsel %vm814, %v1294, 0.0
        %1296 = vadd.xlane.f32.xlu0 %v1295
        %v1297 = vpop.xlane.xlu0 %1296
        %v1298 = vrcp.pop %v1297
        %v1299 = vmul.f32 %v1294, %v1298
        %v1300 = vpack.c.bf16 %v1299, %v1299
        %1301 = vrot.lane.b32.xlu0 %v1209, 88
        %v1302 = vpop.permute.xlu0 %1301
        %v1304 = vsel %vm814, %v1300, 0
        %v1307 = vsel %vm852, %v1302, 0
        %1309 = vmatpush.bf16.msra.mxu0 0
        %1310 = vmatpush.bf16.msra.mxu0 0
        %1311 = vmatpush.bf16.msra.mxu0 0
        %1312 = vmatpush.bf16.msra.mxu0 0
        %1313 = vmatpush.bf16.msra.mxu0 0
        %1314 = vmatpush.bf16.msra.mxu0 0
        %1315 = vmatpush.bf16.msra.mxu0 0
        %1316 = vmatpush.bf16.msra.mxu0 %v1307
        %1317 = vmatmul.bf16.gmra.mxu0 %v1304
        %v1318 = vpop.f32.mrf.mxu0
        %v1319 = vadd.f32 0.0, %v1318
        %v1320 = vpop.f32.mrf.mxu0
        %1321 = vdwg.mxu0
        %1322 = vrot.lane.b32.xlu0 %v1208, 112
        %v1323 = vpop.permute.xlu0 %1322
        %1324 = vrot.lane.b32.xlu0 %v1209, 112
        %v1325 = vpop.permute.xlu0 %1324
        %v1327 = vsel %vm814, %v1323, 0
        %v1330 = vsel %vm814, %v1325, 0
        %1332 = vmatpush.bf16.xpose.msra.mxu0 0
        %1333 = vmatpush.bf16.xpose.msra.mxu0 0
        %1334 = vmatpush.bf16.xpose.msra.mxu0 0
        %1335 = vmatpush.bf16.xpose.msra.mxu0 0
        %1336 = vmatpush.bf16.xpose.msra.mxu0 0
        %1337 = vmatpush.bf16.xpose.msra.mxu0 0
        %1338 = vmatpush.bf16.xpose.msra.mxu0 0
        %1339 = vmatpush.bf16.xpose.msra.mxu0 %v1330
        %1340 = vmatmul.bf16.gmra.mxu0 %v1327
        %v1341 = vpop.f32.mrf.mxu0
        %v1342 = vadd.f32 0.0, %v1341
        %v1343 = vpop.f32.mrf.mxu0
        %1344 = vdwg.mxu0
        %v1345 = vmul.f32 %v1342, 0.35355338
        %v1346 = vsel %vm814, %v1345, -inf
        %1347 = vmax.xlane.f32.xlu0 %v1346
        %v1348 = vpop.xlane.xlu0 %1347
        %v1349 = vsub.f32 %v1345, %v1348
        %v1350 = vmul.f32 %v1349, 1.442695
        %v1351 = vpow.pop %v1350
        %v1352 = vsel %vm814, %v1351, 0.0
        %1353 = vadd.xlane.f32.xlu0 %v1352
        %v1354 = vpop.xlane.xlu0 %1353
        %v1355 = vrcp.pop %v1354
        %v1356 = vmul.f32 %v1351, %v1355
        %v1357 = vpack.c.bf16 %v1356, %v1356
        %1358 = vrot.lane.b32.xlu0 %v1209, 80
        %v1359 = vpop.permute.xlu0 %1358
        %v1361 = vsel %vm814, %v1357, 0
        %v1364 = vsel %vm852, %v1359, 0
        %1366 = vmatpush.bf16.msra.mxu0 0
        %1367 = vmatpush.bf16.msra.mxu0 0
        %1368 = vmatpush.bf16.msra.mxu0 0
        %1369 = vmatpush.bf16.msra.mxu0 0
        %1370 = vmatpush.bf16.msra.mxu0 0
        %1371 = vmatpush.bf16.msra.mxu0 0
        %1372 = vmatpush.bf16.msra.mxu0 0
        %1373 = vmatpush.bf16.msra.mxu0 %v1364
        %1374 = vmatmul.bf16.gmra.mxu0 %v1361
        %v1375 = vpop.f32.mrf.mxu0
        %v1376 = vadd.f32 0.0, %v1375
        %v1377 = vpop.f32.mrf.mxu0
        %1378 = vdwg.mxu0
        %1379 = vrot.lane.b32.xlu0 %v1208, 104
        %v1380 = vpop.permute.xlu0 %1379
        %1381 = vrot.lane.b32.xlu0 %v1209, 104
        %v1382 = vpop.permute.xlu0 %1381
        %v1384 = vsel %vm814, %v1380, 0
        %v1387 = vsel %vm814, %v1382, 0
        %1389 = vmatpush.bf16.xpose.msra.mxu0 0
        %1390 = vmatpush.bf16.xpose.msra.mxu0 0
        %1391 = vmatpush.bf16.xpose.msra.mxu0 0
        %1392 = vmatpush.bf16.xpose.msra.mxu0 0
        %1393 = vmatpush.bf16.xpose.msra.mxu0 0
        %1394 = vmatpush.bf16.xpose.msra.mxu0 0
        %1395 = vmatpush.bf16.xpose.msra.mxu0 0
        %1396 = vmatpush.bf16.xpose.msra.mxu0 %v1387
        %1397 = vmatmul.bf16.gmra.mxu0 %v1384
        %v1398 = vpop.f32.mrf.mxu0
        %v1399 = vadd.f32 0.0, %v1398
        %v1400 = vpop.f32.mrf.mxu0
        %1401 = vdwg.mxu0
        %v1402 = vmul.f32 %v1399, 0.35355338
        %v1403 = vsel %vm814, %v1402, -inf
        %1404 = vmax.xlane.f32.xlu0 %v1403
        %v1405 = vpop.xlane.xlu0 %1404
        %v1406 = vsub.f32 %v1402, %v1405
        %v1407 = vmul.f32 %v1406, 1.442695
        %v1408 = vpow.pop %v1407
        %v1409 = vsel %vm814, %v1408, 0.0
        %1410 = vadd.xlane.f32.xlu0 %v1409
        %v1411 = vpop.xlane.xlu0 %1410
        %v1412 = vrcp.pop %v1411
        %v1413 = vmul.f32 %v1408, %v1412
        %v1414 = vpack.c.bf16 %v1413, %v1413
        %1415 = vrot.lane.b32.xlu0 %v1209, 72
        %v1416 = vpop.permute.xlu0 %1415
        %v1418 = vsel %vm814, %v1414, 0
        %v1421 = vsel %vm852, %v1416, 0
        %1423 = vmatpush.bf16.msra.mxu0 0
        %1424 = vmatpush.bf16.msra.mxu0 0
        %1425 = vmatpush.bf16.msra.mxu0 0
        %1426 = vmatpush.bf16.msra.mxu0 0
        %1427 = vmatpush.bf16.msra.mxu0 0
        %1428 = vmatpush.bf16.msra.mxu0 0
        %1429 = vmatpush.bf16.msra.mxu0 0
        %1430 = vmatpush.bf16.msra.mxu0 %v1421
        %1431 = vmatmul.bf16.gmra.mxu0 %v1418
        %v1432 = vpop.f32.mrf.mxu0
        %v1433 = vadd.f32 0.0, %v1432
        %v1434 = vpop.f32.mrf.mxu0
        %1435 = vdwg.mxu0
        %1437 = vrot.lane.b32.xlu0 %v1319, 8
        %v1438 = vpop.permute.xlu0 %1437
        %1441 = vrot.lane.b32.xlu0 %v1376, 16
        %v1442 = vpop.permute.xlu0 %1441
        %1445 = vrot.lane.b32.xlu0 %v1433, 24
        %v1446 = vpop.permute.xlu0 %1445
        %v1448 = vsel %vm814, %v1261, %v1438
        %v1449 = vsel %vm1053, %v1448, %v1442
        %v1450 = vsel %vm1055, %v1449, %v1446
        %v1451 = vld [vmem:[%s12] sm:$0xf]
        %v1452 = vld [vmem:[%s12 + $0x4] sm:$0xf]
        %v1453 = vld [vmem:[%s12 + $0x8] sm:$0xf]
        %v1454 = vld [vmem:[%s12 + $0xc] sm:$0xf]
        %v1455 = vpack.c.bf16 %v1450, %v1450
        %v1456 = vld [vmem:[%s13] sm:$0x1]
        %v1458 = vperm.slane %v1456, 0
        %v1464 = vunpack.c.l.b16 %v1451
        %v1465 = vunpack.c.l.b16 %v1452
        %v1466 = vunpack.c.l.b16 %v1453
        %v1467 = vunpack.c.l.b16 %v1454
        %v1468 = vpack.c.b16 %v1465, %v1464
        %v1469 = vpack.c.b16 %v1467, %v1466
        %v1473 = vsel %vm793, %v1455, 0
        %1475 = vmatpush.bf16.msra.mxu0 0
        %1476 = vmatpush.bf16.msra.mxu0 0
        %1477 = vmatpush.bf16.msra.mxu0 0
        %1478 = vmatpush.bf16.msra.mxu0 0
        %1479 = vmatpush.bf16.msra.mxu0 0
        %1480 = vmatpush.bf16.msra.mxu0 0
        %1481 = vmatpush.bf16.msra.mxu0 %v1469
        %1482 = vmatpush.bf16.msra.mxu0 %v1468
        %1483 = vmatmul.bf16.gmra.mxu0 %v1473
        %v1484 = vpop.f32.mrf.mxu0
        %v1485 = vadd.f32 %v1458, %v1484
        %v1486 = vpop.f32.mrf.mxu0
        %1487 = vdwg.mxu0
        %v1488 = vadd.f32 %v1485, %v1133
        %v1489 = vld [vmem:[%s14] sm:$0x1]
        %v1490 = vld [vmem:[#allocation2] sm:$0x1]
        %v1491 = vsel %vm793, %v1488, 0.0
        %1492 = vadd.xlane.f32.xlu0 %v1491
        %v1493 = vpop.xlane.xlu0 %1492
        %v1494 = vmul.f32 %v1493, %v1106
        %v1495 = vsub.f32 %v1488, %v1494
        %v1496 = vmul.f32 %v1495, %v1495
        %v1497 = vsel %vm793, %v1496, 0.0
        %1498 = vadd.xlane.f32.xlu0 %v1497
        %v1499 = vpop.xlane.xlu0 %1498
        %v1500 = vmul.f32 %v1499, %v1106
        %v1501 = vadd.f32 %v1500, 1e-05
        %v1502 = vrsqrt.pop %v1501
        %v1503 = vmul.f32 %v1502, %v1501
        %v1504 = vmul.f32 %v1503, %v1502
        %v1505 = vmul.f32 0.5, %v1504
        %v1506 = vsub.f32 1.5, %v1505
        %v1507 = vmul.f32 %v1502, %v1506
        %vm1508 = vweird.f32 %v1501
        %vm1509 = vweird.f32 %v1502
        %vm1510 = vmor %vm1508, %vm1509
        %v1511 = vsel %vm1510, %v1502, %v1507
        %v1512 = vmul.f32 %v1495, %v1511
        %v1514 = vperm.slane %v1489, 0
        %v1516 = vmul.f32 %v1512, %v1514
        %v1518 = vperm.slane %v1490, 0
        %v1520 = vadd.f32 %v1516, %v1518
        %v1521 = vld [vmem:[%s16] sm:$0xf]
        %v1522 = vld [vmem:[%s16 + $0x4] sm:$0xf]
        %v1523 = vld [vmem:[%s16 + $0x8] sm:$0xf]
        %v1524 = vld [vmem:[%s16 + $0xc] sm:$0xf]
        %v1525 = vpack.c.bf16 %v1520, %v1520
        %v1526 = vld [vmem:[#allocation4] sm:$0x1]
        %v1528 = vperm.slane %v1526, 0
        %v1534 = vunpack.c.l.b16 %v1521
        %v1535 = vunpack.c.l.b16 %v1522
        %v1536 = vunpack.c.l.b16 %v1523
        %v1537 = vunpack.c.l.b16 %v1524
        %v1538 = vpack.c.b16 %v1535, %v1534
        %v1539 = vpack.c.b16 %v1537, %v1536
        %v1543 = vsel %vm793, %v1525, 0
        %1545 = vmatpush.bf16.msra.mxu0 0
        %1546 = vmatpush.bf16.msra.mxu0 0
        %1547 = vmatpush.bf16.msra.mxu0 0
        %1548 = vmatpush.bf16.msra.mxu0 0
        %1549 = vmatpush.bf16.msra.mxu0 0
        %1550 = vmatpush.bf16.msra.mxu0 0
        %1551 = vmatpush.bf16.msra.mxu0 %v1539
        %1552 = vmatpush.bf16.msra.mxu0 %v1538
        %1553 = vmatmul.bf16.gmra.mxu0 %v1543
        %v1554 = vpop.f32.mrf.mxu0
        %v1555 = vadd.f32 %v1528, %v1554
        %v1556 = vpop.f32.mrf.mxu0
        %1557 = vdwg.mxu0
        %v1558 = vmax.f32 %v1555, 0.0
        %v1559 = vld [vmem:[%s18] sm:$0xf]
        %v1560 = vld [vmem:[%s18 + $0x4] sm:$0xf]
        %v1561 = vld [vmem:[%s18 + $0x8] sm:$0xf]
        %v1562 = vld [vmem:[%s18 + $0xc] sm:$0xf]
        %v1563 = vld [vmem:[%s18 + $0x10] sm:$0xf]
        %v1564 = vld [vmem:[%s18 + $0x14] sm:$0xf]
        %v1565 = vld [vmem:[%s18 + $0x18] sm:$0xf]
        %v1566 = vld [vmem:[%s18 + $0x1c] sm:$0xf]
        %v1567 = vpack.c.bf16 %v1558, %v1558
        %v1568 = vld [vmem:[#allocation6] sm:$0x1]
        %v1570 = vperm.slane %v1568, 0
        %v1580 = vunpack.c.l.b16 %v1559
        %v1581 = vunpack.c.l.b16 %v1560
        %v1582 = vunpack.c.l.b16 %v1561
        %v1583 = vunpack.c.l.b16 %v1562
        %v1584 = vunpack.c.l.b16 %v1563
        %v1585 = vunpack.c.l.b16 %v1564
        %v1586 = vunpack.c.l.b16 %v1565
        %v1587 = vunpack.c.l.b16 %v1566
        %v1588 = vpack.c.b16 %v1581, %v1580
        %v1589 = vpack.c.b16 %v1583, %v1582
        %v1590 = vpack.c.b16 %v1585, %v1584
        %v1591 = vpack.c.b16 %v1587, %v1586
        %vm1596 = vcmask 523264
        %v1598 = vsel %vm1596, %v1567, 0
        %1600 = vmatpush.bf16.msra.mxu0 0
        %1601 = vmatpush.bf16.msra.mxu0 0
        %1602 = vmatpush.bf16.msra.mxu0 0
        %1603 = vmatpush.bf16.msra.mxu0 0
        %1604 = vmatpush.bf16.msra.mxu0 %v1591
        %1605 = vmatpush.bf16.msra.mxu0 %v1590
        %1606 = vmatpush.bf16.msra.mxu0 %v1589
        %1607 = vmatpush.bf16.msra.mxu0 %v1588
        %1608 = vmatmul.bf16.gmra.mxu0 %v1598
        %v1609 = vpop.f32.mrf.mxu0
        %v1610 = vadd.f32 %v1570, %v1609
        %v1611 = vpop.f32.mrf.mxu0
        %1612 = vdwg.mxu0
        %v1613 = vadd.f32 %v1610, %v1520
        %v1614 = vld [vmem:[#allocation7] sm:$0x1]
        %v1615 = vld [vmem:[#allocation9] sm:$0x1]
        %v1616 = vsel %vm793, %v1613, 0.0
        %1617 = vadd.xlane.f32.xlu0 %v1616
        %v1618 = vpop.xlane.xlu0 %1617
        %v1619 = vmul.f32 %v1618, %v1106
        %v1620 = vsub.f32 %v1613, %v1619
        %v1621 = vmul.f32 %v1620, %v1620
        %v1622 = vsel %vm793, %v1621, 0.0
        %1623 = vadd.xlane.f32.xlu0 %v1622
        %v1624 = vpop.xlane.xlu0 %1623
        %v1625 = vmul.f32 %v1624, %v1106
        %v1626 = vadd.f32 %v1625, 1e-05
        %v1627 = vrsqrt.pop %v1626
        %v1628 = vmul.f32 %v1627, %v1626
        %v1629 = vmul.f32 %v1628, %v1627
        %v1630 = vmul.f32 0.5, %v1629
        %v1631 = vsub.f32 1.5, %v1630
        %v1632 = vmul.f32 %v1627, %v1631
        %vm1633 = vweird.f32 %v1626
        %vm1634 = vweird.f32 %v1627
        %vm1635 = vmor %vm1633, %vm1634
        %v1636 = vsel %vm1635, %v1627, %v1632
        %v1637 = vmul.f32 %v1620, %v1636
        %v1639 = vperm.slane %v1614, 0
        %v1641 = vmul.f32 %v1637, %v1639
        %v1643 = vperm.slane %v1615, 0
        %v1645 = vadd.f32 %v1641, %v1643
        %1646 = vst.msk [vmem:[%s768] sm:$0xff] %vm793, %v1645
        %p1647 = scmp.lt.s32.totalorder %s36, 1
        %s1648 = scalar_select %p1647, %s36, 1
        %s1649 = smul.addr %s1648, 8
        %s1650 = scalar_lea.vmem %s22, %s1649
        // Predicated region
        $region129: #{time_series_transformer_fwd.14} parent=107 // pred_check
          %p1651 = pneg %p526
        $region130: #{time_series_transformer_fwd.14} parent=107 // pred_check_branch
          %1653 = sbr.rel (%p1651) target = $region132
        $region131: #{time_series_transformer_fwd.14} parent=107 // pred_region
          _
        $region132: #{time_series_transformer_fwd.14} parent=107 // pred_fallthru
          _
      $region108: #{time_series_transformer_fwd.14} parent=5 // pred_fallthru
        _
      %p1654 = scmp.le.s32.totalorder 2, %s31
      // Predicated region
      $region133: #{time_series_transformer_fwd.14} parent=5 // pred_check
        %p1655 = pneg %p1654
      $region134: #{time_series_transformer_fwd.14} parent=5 // pred_check_branch
        %1657 = sbr.rel (%p1655) target = $region136
      $region135: #{time_series_transformer_fwd.14} parent=5 // pred_region
        %s1658 = ssub.s32 %s31, 2
        // Predicated region
        $region137: #{time_series_transformer_fwd.14} parent=135 // pred_check
          %p1659 = pneg %p532
        $region138: #{time_series_transformer_fwd.14} parent=135 // pred_check_branch
          %1661 = sbr.rel (%p1659) target = $region140
        $region139: #{time_series_transformer_fwd.14} parent=135 // pred_region
          %p1662 = scmp.lt.s32.totalorder %s37, 1
          %s1663 = scalar_select %p1662, %s37, 1
          %s1664 = smul.addr %s1663, 8
          %s1665 = scalar_lea.vmem %s22, %s1664
        $region140: #{time_series_transformer_fwd.14} parent=135 // pred_fallthru
          _
      $region136: #{time_series_transformer_fwd.14} parent=5 // pred_fallthru
        _
    $region6: #{time_series_transformer_fwd.14} parent=1 // loop_footer
      %s35 = sadd.s32 1, %s31
    $region7: #{time_series_transformer_fwd.14} parent=1 // loop_footer_branch
      %30 = sbr.rel target = $region3
    $region8: #{time_series_transformer_fwd.14} parent=1 // loop_exit
      _
    %1666 = vsyncpa [#allocation3], 1
    %s1667 = scalar_lea.sflag [#allocation3], 1
    %1668 = vsyncpa %s1667, 1
    %1669 = vsyncpa [#allocation5], 1
    %1670 = vsyncpa [#allocation8], 1

// kernel: time_series_transformer_fwd.13
$region0: #{time_series_transformer_fwd.13}
  #allocation0 [shape = 'u32[]', space=smem, size = 0x4, offset = 0x4, fixed_abs, tag = 'smem constant byte address 0x4 - core index']
  #allocation1 [shape = 'u32[72,128]{1,0:T(1,128)}', space=vmem, size = 0x9000, scoped, tag = 'internal scratch']
  %s0 = inlined_call_operand.vmem [shape: f32[2,8,32], index: 0, kind: input, shape index: {}]
  %s1 = inlined_call_operand.vmem [shape: f32[2,8,32], index: 1, kind: input, shape index: {}]
  %s2 = inlined_call_operand.vmem [shape: bf16[32,96], index: 2, kind: input, shape index: {}]
  %s3 = inlined_call_operand.hbm [shape: f32[1,96], index: 3, kind: input, shape index: {}]
  %s4 = inlined_call_operand.vmem [shape: bf16[32,32], index: 4, kind: input, shape index: {}]
  %s5 = inlined_call_operand.hbm [shape: f32[1,32], index: 5, kind: input, shape index: {}]
  %s6 = inlined_call_operand.hbm [shape: f32[1,32], index: 6, kind: input, shape index: {}]
  %s7 = inlined_call_operand.hbm [shape: f32[1,32], index: 7, kind: input, shape index: {}]
  %s8 = inlined_call_operand.vmem [shape: bf16[32,32], index: 8, kind: input, shape index: {}]
  %s9 = inlined_call_operand.hbm [shape: f32[1,32], index: 9, kind: input, shape index: {}]
  %s10 = inlined_call_operand.vmem [shape: bf16[32,64], index: 10, kind: input, shape index: {}]
  %s11 = inlined_call_operand.hbm [shape: f32[1,64], index: 11, kind: input, shape index: {}]
  %s12 = inlined_call_operand.vmem [shape: bf16[32,32], index: 12, kind: input, shape index: {}]
  %s13 = inlined_call_operand.hbm [shape: f32[1,32], index: 13, kind: input, shape index: {}]
  %s14 = inlined_call_operand.hbm [shape: f32[1,32], index: 14, kind: input, shape index: {}]
  %s15 = inlined_call_operand.hbm [shape: f32[1,32], index: 15, kind: input, shape index: {}]
  %s16 = inlined_call_operand.vmem [shape: bf16[32,64], index: 16, kind: input, shape index: {}]
  %s17 = inlined_call_operand.hbm [shape: f32[1,64], index: 17, kind: input, shape index: {}]
  %s18 = inlined_call_operand.vmem [shape: bf16[64,32], index: 18, kind: input, shape index: {}]
  %s19 = inlined_call_operand.hbm [shape: f32[1,32], index: 19, kind: input, shape index: {}]
  %s20 = inlined_call_operand.hbm [shape: f32[1,32], index: 20, kind: input, shape index: {}]
  %s21 = inlined_call_operand.hbm [shape: f32[1,32], index: 21, kind: input, shape index: {}]
  %s22 = inlined_call_operand.vmem [shape: f32[2,8,32], index: 22, kind: output, shape index: {}]
  %s23 = sld [smem:[#allocation0]]
  $region173: #{time_series_transformer_fwd.13} parent=0
    _
  %s25 = ssub.s32 1, %s23
  %s26 = scalar_select 0, %s25, %s23
  $region1: #{time_series_transformer_fwd.13} parent=0
    #allocation2 [shape = 'u8[512]{0}', space=vmem, size = 0x400, scoped, tag = 'input window, operand 3, single buffered']
    #allocation3 [shape = 's32[2]{0}', space=sflag, size = 0x8, scoped, tag = 'scoped memory for time_series_transformer_fwd.13']
    #allocation4 [shape = 'u8[512]{0}', space=vmem, size = 0x400, scoped, tag = 'input window, operand 5, single buffered']
    #allocation5 [shape = 's32[1]{0}', space=sflag, size = 0x4, scoped, tag = 'scoped memory for time_series_transformer_fwd.13']
    #allocation6 [shape = 'u8[512]{0}', space=vmem, size = 0x400, scoped, tag = 'input window, operand 6, single buffered']
    #allocation7 [shape = 'u8[512]{0}', space=vmem, size = 0x400, scoped, tag = 'input window, operand 7, single buffered']
    #allocation8 [shape = 's32[1]{0}', space=sflag, size = 0x4, scoped, tag = 'scoped memory for time_series_transformer_fwd.13']
    #allocation9 [shape = 'u8[512]{0}', space=vmem, size = 0x400, scoped, tag = 'input window, operand 9, single buffered']
    #allocation10 [shape = 'u8[512]{0}', space=vmem, size = 0x400, scoped, tag = 'input window, operand 11, single buffered']
    #allocation11 [shape = 's32[1]{0}', space=sflag, size = 0x4, scoped, tag = 'scoped memory for time_series_transformer_fwd.13']
    #allocation12 [shape = 'u8[512]{0}', space=vmem, size = 0x400, scoped, tag = 'input window, operand 13, single buffered']
    #allocation13 [shape = 'u8[512]{0}', space=vmem, size = 0x400, scoped, tag = 'input window, operand 14, single buffered']
    #allocation14 [shape = 's32[1]{0}', space=sflag, size = 0x4, scoped, tag = 'scoped memory for time_series_transformer_fwd.13']
    #allocation15 [shape = 'u8[512]{0}', space=vmem, size = 0x400, scoped, tag = 'input window, operand 15, single buffered']
    #allocation16 [shape = 'u8[512]{0}', space=vmem, size = 0x400, scoped, tag = 'input window, operand 17, single buffered']
    #allocation17 [shape = 's32[1]{0}', space=sflag, size = 0x4, scoped, tag = 'scoped memory for time_series_transformer_fwd.13']
    #allocation18 [shape = 'u8[512]{0}', space=vmem, size = 0x400, scoped, tag = 'input window, operand 19, single buffered']
    #allocation19 [shape = 'u8[512]{0}', space=vmem, size = 0x400, scoped, tag = 'input window, operand 20, single buffered']
    #allocation20 [shape = 's32[1]{0}', space=sflag, size = 0x4, scoped, tag = 'scoped memory for time_series_transformer_fwd.13']
    #allocation21 [shape = 'u8[512]{0}', space=vmem, size = 0x400, scoped, tag = 'input window, operand 21, single buffered']
    %27 = vsyncpa [#allocation3], 0
    %28 = vsyncpa [#allocation5], 0
    %29 = vsyncpa [#allocation8], 0
    %30 = vsyncpa [#allocation11], 0
    %31 = vsyncpa [#allocation14], 0
    %32 = vsyncpa [#allocation17], 0
    %33 = vsyncpa [#allocation20], 0
    loop: start=0, step=1, limit=4
    $region2: #{time_series_transformer_fwd.13} parent=1 // loop_pre_header
      _
    $region3: #{time_series_transformer_fwd.13} parent=1 // loop_header
      %s35 = sphi 0, %s39
      %p36 = scmp.ge.s32.totalorder %s35, 4
      %s45 = sphi 0, %s47
      %s48 = sphi 0, %s45
      %s49 = sphi 0, %s48
      %s65 = sphi 0, %s49
      %s71 = sphi 0, %s73
      %s74 = sphi 0, %s71
      %s75 = sphi 0, %s74
      %s91 = sphi 0, %s75
      %s95 = sphi 0, %s95
      %s97 = sphi 0, %s95
      %s98 = sphi 0, %s97
      %s112 = sphi 0, %s98
      %s116 = sphi 0, %s116
      %s118 = sphi 0, %s116
      %s119 = sphi 0, %s118
      %s133 = sphi 0, %s119
      %s137 = sphi 0, %s137
      %s139 = sphi 0, %s137
      %s140 = sphi 0, %s139
      %s154 = sphi 0, %s140
      %s158 = sphi 0, %s158
      %s160 = sphi 0, %s158
      %s161 = sphi 0, %s160
      %s175 = sphi 0, %s161
      %s179 = sphi 0, %s179
      %s181 = sphi 0, %s179
      %s182 = sphi 0, %s181
      %s196 = sphi 0, %s182
      %s200 = sphi 0, %s200
      %s202 = sphi 0, %s200
      %s203 = sphi 0, %s202
      %s217 = sphi 0, %s203
      %s221 = sphi 0, %s221
      %s223 = sphi 0, %s221
      %s224 = sphi 0, %s223
      %s238 = sphi 0, %s224
      %s242 = sphi 0, %s242
      %s244 = sphi 0, %s242
      %s245 = sphi 0, %s244
      %s259 = sphi 0, %s245
      %s263 = sphi 0, %s263
      %s265 = sphi 0, %s263
      %s266 = sphi 0, %s265
      %s280 = sphi 0, %s266
      %s284 = sphi 0, %s284
      %s286 = sphi 0, %s284
      %s287 = sphi 0, %s286
      %s301 = sphi 0, %s287
      %s305 = sphi 0, %s305
      %s307 = sphi 0, %s305
      %s308 = sphi 0, %s307
      %s322 = sphi 0, %s308
      %s326 = sphi 0, %s326
      %s328 = sphi 0, %s326
      %s329 = sphi 0, %s328
      %s343 = sphi 0, %s329
      %s347 = sphi 0, %s347
      %s349 = sphi 0, %s347
      %s350 = sphi 0, %s349
      %s364 = sphi 0, %s350
      %s368 = sphi 0, %s368
      %s370 = sphi 0, %s368
      %s371 = sphi 0, %s370
      %s385 = sphi 0, %s371
      %s389 = sphi 0, %s389
      %s391 = sphi 0, %s389
      %s392 = sphi 0, %s391
      %s406 = sphi 0, %s392
      %s410 = sphi 0, %s410
      %s412 = sphi 0, %s410
      %s413 = sphi 0, %s412
      %s427 = sphi 0, %s413
      %s431 = sphi 0, %s431
      %s433 = sphi 0, %s431
      %s434 = sphi 0, %s433
      %s448 = sphi 0, %s434
      %s452 = sphi 0, %s452
      %s454 = sphi 0, %s452
      %s455 = sphi 0, %s454
      %s469 = sphi 0, %s455
      %s473 = sphi 0, %s473
      %s475 = sphi 0, %s473
      %s476 = sphi 0, %s475
      %s490 = sphi 0, %s476
      %s494 = sphi 0, %s494
      %s496 = sphi 0, %s494
      %s497 = sphi 0, %s496
      %s511 = sphi 0, %s497
      %s517 = sphi 0, %s519
      %s520 = sphi 0, %s517
      %s521 = sphi 0, %s520
      %s537 = sphi 0, %s521
    $region4: #{time_series_transformer_fwd.13} parent=1 // loop_header_branch
      %38 = sbr.rel (%p36) target = $region8
    $region5: #{time_series_transformer_fwd.13} parent=1 // loop_body
      %s40 = ssub.s32 %s35, 1
      %s41 = ssub.s32 %s35, 2
      %s42 = sadd.s32 %s35, 1
      %s43 = ssub.s32 %s35, %s42
      %p44 = scmp.eq.s32.totalorder %s43, 0
      %s46 = sadd.s32 %s45, 1
      %s47 = scalar_select %p44, %s45, %s46
      %p50 = pneg %p44
      %p51 = scmp.eq.s32.totalorder %s35, 1
      %p52 = por %p50, %p51
      %p53 = scmp.ne.s32.totalorder %s45, %s48
      %p54 = scmp.eq.s32.totalorder %s35, 0
      %p55 = por %p53, %p54
      %p56 = scmp.ne.s32.totalorder %s45, %s48
      %p57 = scmp.eq.s32.totalorder %s40, 1
      %p58 = por %p56, %p57
      %p59 = scmp.ne.s32.totalorder %s48, %s49
      %p60 = scmp.eq.s32.totalorder %s40, 0
      %p61 = por %p59, %p60
      %p62 = scmp.ne.s32.totalorder %s48, %s49
      %p63 = scmp.eq.s32.totalorder %s41, 1
      %p64 = por %p62, %p63
      %p66 = scmp.ne.s32.totalorder %s49, %s65
      %p67 = scmp.eq.s32.totalorder %s41, 0
      %p68 = por %p66, %p67
      %s69 = ssub.s32 %s35, %s42
      %p70 = scmp.eq.s32.totalorder %s69, 0
      %s72 = sadd.s32 %s71, 1
      %s73 = scalar_select %p70, %s71, %s72
      %p76 = pneg %p70
      %p77 = scmp.eq.s32.totalorder %s35, 1
      %p78 = por %p76, %p77
      %p79 = scmp.ne.s32.totalorder %s71, %s74
      %p80 = scmp.eq.s32.totalorder %s35, 0
      %p81 = por %p79, %p80
      %p82 = scmp.ne.s32.totalorder %s71, %s74
      %p83 = scmp.eq.s32.totalorder %s40, 1
      %p84 = por %p82, %p83
      %p85 = scmp.ne.s32.totalorder %s74, %s75
      %p86 = scmp.eq.s32.totalorder %s40, 0
      %p87 = por %p85, %p86
      %p88 = scmp.ne.s32.totalorder %s74, %s75
      %p89 = scmp.eq.s32.totalorder %s41, 1
      %p90 = por %p88, %p89
      %p92 = scmp.ne.s32.totalorder %s75, %s91
      %p93 = scmp.eq.s32.totalorder %s41, 0
      %p94 = por %p92, %p93
      %s96 = sadd.s32 %s95, 1
      %p99 = scmp.eq.s32.totalorder %s35, 1
      %p100 = scmp.ne.s32.totalorder %s95, %s97
      %p101 = scmp.eq.s32.totalorder %s35, 0
      %p102 = por %p100, %p101
      %p103 = scmp.ne.s32.totalorder %s95, %s97
      %p104 = scmp.eq.s32.totalorder %s40, 1
      %p105 = por %p103, %p104
      %p106 = scmp.ne.s32.totalorder %s97, %s98
      %p107 = scmp.eq.s32.totalorder %s40, 0
      %p108 = por %p106, %p107
      %p109 = scmp.ne.s32.totalorder %s97, %s98
      %p110 = scmp.eq.s32.totalorder %s41, 1
      %p111 = por %p109, %p110
      %p113 = scmp.ne.s32.totalorder %s98, %s112
      %p114 = scmp.eq.s32.totalorder %s41, 0
      %p115 = por %p113, %p114
      %s117 = sadd.s32 %s116, 1
      %p120 = scmp.eq.s32.totalorder %s35, 1
      %p121 = scmp.ne.s32.totalorder %s116, %s118
      %p122 = scmp.eq.s32.totalorder %s35, 0
      %p123 = por %p121, %p122
      %p124 = scmp.ne.s32.totalorder %s116, %s118
      %p125 = scmp.eq.s32.totalorder %s40, 1
      %p126 = por %p124, %p125
      %p127 = scmp.ne.s32.totalorder %s118, %s119
      %p128 = scmp.eq.s32.totalorder %s40, 0
      %p129 = por %p127, %p128
      %p130 = scmp.ne.s32.totalorder %s118, %s119
      %p131 = scmp.eq.s32.totalorder %s41, 1
      %p132 = por %p130, %p131
      %p134 = scmp.ne.s32.totalorder %s119, %s133
      %p135 = scmp.eq.s32.totalorder %s41, 0
      %p136 = por %p134, %p135
      %s138 = sadd.s32 %s137, 1
      %p141 = scmp.eq.s32.totalorder %s35, 1
      %p142 = scmp.ne.s32.totalorder %s137, %s139
      %p143 = scmp.eq.s32.totalorder %s35, 0
      %p144 = por %p142, %p143
      %p145 = scmp.ne.s32.totalorder %s137, %s139
      %p146 = scmp.eq.s32.totalorder %s40, 1
      %p147 = por %p145, %p146
      %p148 = scmp.ne.s32.totalorder %s139, %s140
      %p149 = scmp.eq.s32.totalorder %s40, 0
      %p150 = por %p148, %p149
      %p151 = scmp.ne.s32.totalorder %s139, %s140
      %p152 = scmp.eq.s32.totalorder %s41, 1
      %p153 = por %p151, %p152
      %p155 = scmp.ne.s32.totalorder %s140, %s154
      %p156 = scmp.eq.s32.totalorder %s41, 0
      %p157 = por %p155, %p156
      %s159 = sadd.s32 %s158, 1
      %p162 = scmp.eq.s32.totalorder %s35, 1
      %p163 = scmp.ne.s32.totalorder %s158, %s160
      %p164 = scmp.eq.s32.totalorder %s35, 0
      %p165 = por %p163, %p164
      %p166 = scmp.ne.s32.totalorder %s158, %s160
      %p167 = scmp.eq.s32.totalorder %s40, 1
      %p168 = por %p166, %p167
      %p169 = scmp.ne.s32.totalorder %s160, %s161
      %p170 = scmp.eq.s32.totalorder %s40, 0
      %p171 = por %p169, %p170
      %p172 = scmp.ne.s32.totalorder %s160, %s161
      %p173 = scmp.eq.s32.totalorder %s41, 1
      %p174 = por %p172, %p173
      %p176 = scmp.ne.s32.totalorder %s161, %s175
      %p177 = scmp.eq.s32.totalorder %s41, 0
      %p178 = por %p176, %p177
      %s180 = sadd.s32 %s179, 1
      %p183 = scmp.eq.s32.totalorder %s35, 1
      %p184 = scmp.ne.s32.totalorder %s179, %s181
      %p185 = scmp.eq.s32.totalorder %s35, 0
      %p186 = por %p184, %p185
      %p187 = scmp.ne.s32.totalorder %s179, %s181
      %p188 = scmp.eq.s32.totalorder %s40, 1
      %p189 = por %p187, %p188
      %p190 = scmp.ne.s32.totalorder %s181, %s182
      %p191 = scmp.eq.s32.totalorder %s40, 0
      %p192 = por %p190, %p191
      %p193 = scmp.ne.s32.totalorder %s181, %s182
      %p194 = scmp.eq.s32.totalorder %s41, 1
      %p195 = por %p193, %p194
      %p197 = scmp.ne.s32.totalorder %s182, %s196
      %p198 = scmp.eq.s32.totalorder %s41, 0
      %p199 = por %p197, %p198
      %s201 = sadd.s32 %s200, 1
      %p204 = scmp.eq.s32.totalorder %s35, 1
      %p205 = scmp.ne.s32.totalorder %s200, %s202
      %p206 = scmp.eq.s32.totalorder %s35, 0
      %p207 = por %p205, %p206
      %p208 = scmp.ne.s32.totalorder %s200, %s202
      %p209 = scmp.eq.s32.totalorder %s40, 1
      %p210 = por %p208, %p209
      %p211 = scmp.ne.s32.totalorder %s202, %s203
      %p212 = scmp.eq.s32.totalorder %s40, 0
      %p213 = por %p211, %p212
      %p214 = scmp.ne.s32.totalorder %s202, %s203
      %p215 = scmp.eq.s32.totalorder %s41, 1
      %p216 = por %p214, %p215
      %p218 = scmp.ne.s32.totalorder %s203, %s217
      %p219 = scmp.eq.s32.totalorder %s41, 0
      %p220 = por %p218, %p219
      %s222 = sadd.s32 %s221, 1
      %p225 = scmp.eq.s32.totalorder %s35, 1
      %p226 = scmp.ne.s32.totalorder %s221, %s223
      %p227 = scmp.eq.s32.totalorder %s35, 0
      %p228 = por %p226, %p227
      %p229 = scmp.ne.s32.totalorder %s221, %s223
      %p230 = scmp.eq.s32.totalorder %s40, 1
      %p231 = por %p229, %p230
      %p232 = scmp.ne.s32.totalorder %s223, %s224
      %p233 = scmp.eq.s32.totalorder %s40, 0
      %p234 = por %p232, %p233
      %p235 = scmp.ne.s32.totalorder %s223, %s224
      %p236 = scmp.eq.s32.totalorder %s41, 1
      %p237 = por %p235, %p236
      %p239 = scmp.ne.s32.totalorder %s224, %s238
      %p240 = scmp.eq.s32.totalorder %s41, 0
      %p241 = por %p239, %p240
      %s243 = sadd.s32 %s242, 1
      %p246 = scmp.eq.s32.totalorder %s35, 1
      %p247 = scmp.ne.s32.totalorder %s242, %s244
      %p248 = scmp.eq.s32.totalorder %s35, 0
      %p249 = por %p247, %p248
      %p250 = scmp.ne.s32.totalorder %s242, %s244
      %p251 = scmp.eq.s32.totalorder %s40, 1
      %p252 = por %p250, %p251
      %p253 = scmp.ne.s32.totalorder %s244, %s245
      %p254 = scmp.eq.s32.totalorder %s40, 0
      %p255 = por %p253, %p254
      %p256 = scmp.ne.s32.totalorder %s244, %s245
      %p257 = scmp.eq.s32.totalorder %s41, 1
      %p258 = por %p256, %p257
      %p260 = scmp.ne.s32.totalorder %s245, %s259
      %p261 = scmp.eq.s32.totalorder %s41, 0
      %p262 = por %p260, %p261
      %s264 = sadd.s32 %s263, 1
      %p267 = scmp.eq.s32.totalorder %s35, 1
      %p268 = scmp.ne.s32.totalorder %s263, %s265
      %p269 = scmp.eq.s32.totalorder %s35, 0
      %p270 = por %p268, %p269
      %p271 = scmp.ne.s32.totalorder %s263, %s265
      %p272 = scmp.eq.s32.totalorder %s40, 1
      %p273 = por %p271, %p272
      %p274 = scmp.ne.s32.totalorder %s265, %s266
      %p275 = scmp.eq.s32.totalorder %s40, 0
      %p276 = por %p274, %p275
      %p277 = scmp.ne.s32.totalorder %s265, %s266
      %p278 = scmp.eq.s32.totalorder %s41, 1
      %p279 = por %p277, %p278
      %p281 = scmp.ne.s32.totalorder %s266, %s280
      %p282 = scmp.eq.s32.totalorder %s41, 0
      %p283 = por %p281, %p282
      %s285 = sadd.s32 %s284, 1
      %p288 = scmp.eq.s32.totalorder %s35, 1
      %p289 = scmp.ne.s32.totalorder %s284, %s286
      %p290 = scmp.eq.s32.totalorder %s35, 0
      %p291 = por %p289, %p290
      %p292 = scmp.ne.s32.totalorder %s284, %s286
      %p293 = scmp.eq.s32.totalorder %s40, 1
      %p294 = por %p292, %p293
      %p295 = scmp.ne.s32.totalorder %s286, %s287
      %p296 = scmp.eq.s32.totalorder %s40, 0
      %p297 = por %p295, %p296
      %p298 = scmp.ne.s32.totalorder %s286, %s287
      %p299 = scmp.eq.s32.totalorder %s41, 1
      %p300 = por %p298, %p299
      %p302 = scmp.ne.s32.totalorder %s287, %s301
      %p303 = scmp.eq.s32.totalorder %s41, 0
      %p304 = por %p302, %p303
      %s306 = sadd.s32 %s305, 1
      %p309 = scmp.eq.s32.totalorder %s35, 1
      %p310 = scmp.ne.s32.totalorder %s305, %s307
      %p311 = scmp.eq.s32.totalorder %s35, 0
      %p312 = por %p310, %p311
      %p313 = scmp.ne.s32.totalorder %s305, %s307
      %p314 = scmp.eq.s32.totalorder %s40, 1
      %p315 = por %p313, %p314
      %p316 = scmp.ne.s32.totalorder %s307, %s308
      %p317 = scmp.eq.s32.totalorder %s40, 0
      %p318 = por %p316, %p317
      %p319 = scmp.ne.s32.totalorder %s307, %s308
      %p320 = scmp.eq.s32.totalorder %s41, 1
      %p321 = por %p319, %p320
      %p323 = scmp.ne.s32.totalorder %s308, %s322
      %p324 = scmp.eq.s32.totalorder %s41, 0
      %p325 = por %p323, %p324
      %s327 = sadd.s32 %s326, 1
      %p330 = scmp.eq.s32.totalorder %s35, 1
      %p331 = scmp.ne.s32.totalorder %s326, %s328
      %p332 = scmp.eq.s32.totalorder %s35, 0
      %p333 = por %p331, %p332
      %p334 = scmp.ne.s32.totalorder %s326, %s328
      %p335 = scmp.eq.s32.totalorder %s40, 1
      %p336 = por %p334, %p335
      %p337 = scmp.ne.s32.totalorder %s328, %s329
      %p338 = scmp.eq.s32.totalorder %s40, 0
      %p339 = por %p337, %p338
      %p340 = scmp.ne.s32.totalorder %s328, %s329
      %p341 = scmp.eq.s32.totalorder %s41, 1
      %p342 = por %p340, %p341
      %p344 = scmp.ne.s32.totalorder %s329, %s343
      %p345 = scmp.eq.s32.totalorder %s41, 0
      %p346 = por %p344, %p345
      %s348 = sadd.s32 %s347, 1
      %p351 = scmp.eq.s32.totalorder %s35, 1
      %p352 = scmp.ne.s32.totalorder %s347, %s349
      %p353 = scmp.eq.s32.totalorder %s35, 0
      %p354 = por %p352, %p353
      %p355 = scmp.ne.s32.totalorder %s347, %s349
      %p356 = scmp.eq.s32.totalorder %s40, 1
      %p357 = por %p355, %p356
      %p358 = scmp.ne.s32.totalorder %s349, %s350
      %p359 = scmp.eq.s32.totalorder %s40, 0
      %p360 = por %p358, %p359
      %p361 = scmp.ne.s32.totalorder %s349, %s350
      %p362 = scmp.eq.s32.totalorder %s41, 1
      %p363 = por %p361, %p362
      %p365 = scmp.ne.s32.totalorder %s350, %s364
      %p366 = scmp.eq.s32.totalorder %s41, 0
      %p367 = por %p365, %p366
      %s369 = sadd.s32 %s368, 1
      %p372 = scmp.eq.s32.totalorder %s35, 1
      %p373 = scmp.ne.s32.totalorder %s368, %s370
      %p374 = scmp.eq.s32.totalorder %s35, 0
      %p375 = por %p373, %p374
      %p376 = scmp.ne.s32.totalorder %s368, %s370
      %p377 = scmp.eq.s32.totalorder %s40, 1
      %p378 = por %p376, %p377
      %p379 = scmp.ne.s32.totalorder %s370, %s371
      %p380 = scmp.eq.s32.totalorder %s40, 0
      %p381 = por %p379, %p380
      %p382 = scmp.ne.s32.totalorder %s370, %s371
      %p383 = scmp.eq.s32.totalorder %s41, 1
      %p384 = por %p382, %p383
      %p386 = scmp.ne.s32.totalorder %s371, %s385
      %p387 = scmp.eq.s32.totalorder %s41, 0
      %p388 = por %p386, %p387
      %s390 = sadd.s32 %s389, 1
      %p393 = scmp.eq.s32.totalorder %s35, 1
      %p394 = scmp.ne.s32.totalorder %s389, %s391
      %p395 = scmp.eq.s32.totalorder %s35, 0
      %p396 = por %p394, %p395
      %p397 = scmp.ne.s32.totalorder %s389, %s391
      %p398 = scmp.eq.s32.totalorder %s40, 1
      %p399 = por %p397, %p398
      %p400 = scmp.ne.s32.totalorder %s391, %s392
      %p401 = scmp.eq.s32.totalorder %s40, 0
      %p402 = por %p400, %p401
      %p403 = scmp.ne.s32.totalorder %s391, %s392
      %p404 = scmp.eq.s32.totalorder %s41, 1
      %p405 = por %p403, %p404
      %p407 = scmp.ne.s32.totalorder %s392, %s406
      %p408 = scmp.eq.s32.totalorder %s41, 0
      %p409 = por %p407, %p408
      %s411 = sadd.s32 %s410, 1
      %p414 = scmp.eq.s32.totalorder %s35, 1
      %p415 = scmp.ne.s32.totalorder %s410, %s412
      %p416 = scmp.eq.s32.totalorder %s35, 0
      %p417 = por %p415, %p416
      %p418 = scmp.ne.s32.totalorder %s410, %s412
      %p419 = scmp.eq.s32.totalorder %s40, 1
      %p420 = por %p418, %p419
      %p421 = scmp.ne.s32.totalorder %s412, %s413
      %p422 = scmp.eq.s32.totalorder %s40, 0
      %p423 = por %p421, %p422
      %p424 = scmp.ne.s32.totalorder %s412, %s413
      %p425 = scmp.eq.s32.totalorder %s41, 1
      %p426 = por %p424, %p425
      %p428 = scmp.ne.s32.totalorder %s413, %s427
      %p429 = scmp.eq.s32.totalorder %s41, 0
      %p430 = por %p428, %p429
      %s432 = sadd.s32 %s431, 1
      %p435 = scmp.eq.s32.totalorder %s35, 1
      %p436 = scmp.ne.s32.totalorder %s431, %s433
      %p437 = scmp.eq.s32.totalorder %s35, 0
      %p438 = por %p436, %p437
      %p439 = scmp.ne.s32.totalorder %s431, %s433
      %p440 = scmp.eq.s32.totalorder %s40, 1
      %p441 = por %p439, %p440
      %p442 = scmp.ne.s32.totalorder %s433, %s434
      %p443 = scmp.eq.s32.totalorder %s40, 0
      %p444 = por %p442, %p443
      %p445 = scmp.ne.s32.totalorder %s433, %s434
      %p446 = scmp.eq.s32.totalorder %s41, 1
      %p447 = por %p445, %p446
      %p449 = scmp.ne.s32.totalorder %s434, %s448
      %p450 = scmp.eq.s32.totalorder %s41, 0
      %p451 = por %p449, %p450
      %s453 = sadd.s32 %s452, 1
      %p456 = scmp.eq.s32.totalorder %s35, 1
      %p457 = scmp.ne.s32.totalorder %s452, %s454
      %p458 = scmp.eq.s32.totalorder %s35, 0
      %p459 = por %p457, %p458
      %p460 = scmp.ne.s32.totalorder %s452, %s454
      %p461 = scmp.eq.s32.totalorder %s40, 1
      %p462 = por %p460, %p461
      %p463 = scmp.ne.s32.totalorder %s454, %s455
      %p464 = scmp.eq.s32.totalorder %s40, 0
      %p465 = por %p463, %p464
      %p466 = scmp.ne.s32.totalorder %s454, %s455
      %p467 = scmp.eq.s32.totalorder %s41, 1
      %p468 = por %p466, %p467
      %p470 = scmp.ne.s32.totalorder %s455, %s469
      %p471 = scmp.eq.s32.totalorder %s41, 0
      %p472 = por %p470, %p471
      %s474 = sadd.s32 %s473, 1
      %p477 = scmp.eq.s32.totalorder %s35, 1
      %p478 = scmp.ne.s32.totalorder %s473, %s475
      %p479 = scmp.eq.s32.totalorder %s35, 0
      %p480 = por %p478, %p479
      %p481 = scmp.ne.s32.totalorder %s473, %s475
      %p482 = scmp.eq.s32.totalorder %s40, 1
      %p483 = por %p481, %p482
      %p484 = scmp.ne.s32.totalorder %s475, %s476
      %p485 = scmp.eq.s32.totalorder %s40, 0
      %p486 = por %p484, %p485
      %p487 = scmp.ne.s32.totalorder %s475, %s476
      %p488 = scmp.eq.s32.totalorder %s41, 1
      %p489 = por %p487, %p488
      %p491 = scmp.ne.s32.totalorder %s476, %s490
      %p492 = scmp.eq.s32.totalorder %s41, 0
      %p493 = por %p491, %p492
      %s495 = sadd.s32 %s494, 1
      %p498 = scmp.eq.s32.totalorder %s35, 1
      %p499 = scmp.ne.s32.totalorder %s494, %s496
      %p500 = scmp.eq.s32.totalorder %s35, 0
      %p501 = por %p499, %p500
      %p502 = scmp.ne.s32.totalorder %s494, %s496
      %p503 = scmp.eq.s32.totalorder %s40, 1
      %p504 = por %p502, %p503
      %p505 = scmp.ne.s32.totalorder %s496, %s497
      %p506 = scmp.eq.s32.totalorder %s40, 0
      %p507 = por %p505, %p506
      %p508 = scmp.ne.s32.totalorder %s496, %s497
      %p509 = scmp.eq.s32.totalorder %s41, 1
      %p510 = por %p508, %p509
      %p512 = scmp.ne.s32.totalorder %s497, %s511
      %p513 = scmp.eq.s32.totalorder %s41, 0
      %p514 = por %p512, %p513
      %s515 = ssub.s32 %s35, %s42
      %p516 = scmp.eq.s32.totalorder %s515, 0
      %s518 = sadd.s32 %s517, 1
      %s519 = scalar_select %p516, %s517, %s518
      %p522 = pneg %p516
      %p523 = scmp.eq.s32.totalorder %s35, 1
      %p524 = por %p522, %p523
      %p525 = scmp.ne.s32.totalorder %s517, %s520
      %p526 = scmp.eq.s32.totalorder %s35, 0
      %p527 = por %p525, %p526
      %p528 = scmp.ne.s32.totalorder %s517, %s520
      %p529 = scmp.eq.s32.totalorder %s40, 1
      %p530 = por %p528, %p529
      %p531 = scmp.ne.s32.totalorder %s520, %s521
      %p532 = scmp.eq.s32.totalorder %s40, 0
      %p533 = por %p531, %p532
      %p534 = scmp.ne.s32.totalorder %s520, %s521
      %p535 = scmp.eq.s32.totalorder %s41, 1
      %p536 = por %p534, %p535
      %p538 = scmp.ne.s32.totalorder %s521, %s537
      %p539 = scmp.eq.s32.totalorder %s41, 0
      %p540 = por %p538, %p539
      %p541 = scmp.le.s32.totalorder 1, %s35
      %p542 = scmp.lt.s32.totalorder %s35, 3
      %p543 = pnand %p541, %p542
      %p544 = pneg %p543
      // Predicated region
      $region9: #{time_series_transformer_fwd.13} parent=5 // pred_check
        _
      $region10: #{time_series_transformer_fwd.13} parent=5 // pred_check_branch
        %546 = sbr.rel (%p543) target = $region12
      $region11: #{time_series_transformer_fwd.13} parent=5 // pred_region
        %s547 = ssub.s32 %s35, 1
        // Predicated region
        $region13: #{time_series_transformer_fwd.13} parent=11 // pred_check
          %p548 = pneg %p108
        $region14: #{time_series_transformer_fwd.13} parent=11 // pred_check_branch
          %550 = sbr.rel (%p548) target = $region16
        $region15: #{time_series_transformer_fwd.13} parent=11 // pred_region
          _
        $region16: #{time_series_transformer_fwd.13} parent=11 // pred_fallthru
          _
        // Predicated region
        $region17: #{time_series_transformer_fwd.13} parent=11 // pred_check
          %p551 = pneg %p129
        $region18: #{time_series_transformer_fwd.13} parent=11 // pred_check_branch
          %553 = sbr.rel (%p551) target = $region20
        $region19: #{time_series_transformer_fwd.13} parent=11 // pred_region
          %555 = vsyncadd [#allocation3], 0
          %s557 = sshll.u32 %s3, 4
          %s558 = int_to_ptr.hbm [resolvable:$true] %s557
          %s559 = sshll.u32 [#allocation2], 4
          %s560 = int_to_ptr.vmem [resolvable:$true] %s559
          %562 = dma.hbm_to_vmem [thread:$0]  %s558, 16, %s560, [#allocation3]
        $region20: #{time_series_transformer_fwd.13} parent=11 // pred_fallthru
          _
        // Predicated region
        $region21: #{time_series_transformer_fwd.13} parent=11 // pred_check
          %p563 = pneg %p150
        $region22: #{time_series_transformer_fwd.13} parent=11 // pred_check_branch
          %565 = sbr.rel (%p563) target = $region24
        $region23: #{time_series_transformer_fwd.13} parent=11 // pred_region
          _
        $region24: #{time_series_transformer_fwd.13} parent=11 // pred_fallthru
          _
        // Predicated region
        $region25: #{time_series_transformer_fwd.13} parent=11 // pred_check
          %p566 = pneg %p171
        $region26: #{time_series_transformer_fwd.13} parent=11 // pred_check_branch
          %568 = sbr.rel (%p566) target = $region28
        $region27: #{time_series_transformer_fwd.13} parent=11 // pred_region
          %570 = vsyncadd [#allocation5], 0
          %s572 = sshll.u32 %s5, 4
          %s573 = int_to_ptr.hbm [resolvable:$true] %s572
          %s574 = sshll.u32 [#allocation4], 4
          %s575 = int_to_ptr.vmem [resolvable:$true] %s574
          %577 = dma.hbm_to_vmem [thread:$0]  %s573, 16, %s575, [#allocation5]
        $region28: #{time_series_transformer_fwd.13} parent=11 // pred_fallthru
          _
        // Predicated region
        $region29: #{time_series_transformer_fwd.13} parent=11 // pred_check
          %p578 = pneg %p192
        $region30: #{time_series_transformer_fwd.13} parent=11 // pred_check_branch
          %580 = sbr.rel (%p578) target = $region32
        $region31: #{time_series_transformer_fwd.13} parent=11 // pred_region
          %582 = vsyncadd [#allocation5], 0
          %s584 = sshll.u32 %s6, 4
          %s585 = int_to_ptr.hbm [resolvable:$true] %s584
          %s586 = sshll.u32 [#allocation6], 4
          %s587 = int_to_ptr.vmem [resolvable:$true] %s586
          %589 = dma.hbm_to_vmem [thread:$0]  %s585, 16, %s587, [#allocation5]
        $region32: #{time_series_transformer_fwd.13} parent=11 // pred_fallthru
          _
        // Predicated region
        $region33: #{time_series_transformer_fwd.13} parent=11 // pred_check
          %p590 = pneg %p213
        $region34: #{time_series_transformer_fwd.13} parent=11 // pred_check_branch
          %592 = sbr.rel (%p590) target = $region36
        $region35: #{time_series_transformer_fwd.13} parent=11 // pred_region
          %594 = vsyncadd [#allocation8], 0
          %s596 = sshll.u32 %s7, 4
          %s597 = int_to_ptr.hbm [resolvable:$true] %s596
          %s598 = sshll.u32 [#allocation7], 4
          %s599 = int_to_ptr.vmem [resolvable:$true] %s598
          %601 = dma.hbm_to_vmem [thread:$0]  %s597, 16, %s599, [#allocation8]
        $region36: #{time_series_transformer_fwd.13} parent=11 // pred_fallthru
          _
        // Predicated region
        $region37: #{time_series_transformer_fwd.13} parent=11 // pred_check
          %p602 = pneg %p234
        $region38: #{time_series_transformer_fwd.13} parent=11 // pred_check_branch
          %604 = sbr.rel (%p602) target = $region40
        $region39: #{time_series_transformer_fwd.13} parent=11 // pred_region
          _
        $region40: #{time_series_transformer_fwd.13} parent=11 // pred_fallthru
          _
        // Predicated region
        $region41: #{time_series_transformer_fwd.13} parent=11 // pred_check
          %p605 = pneg %p255
        $region42: #{time_series_transformer_fwd.13} parent=11 // pred_check_branch
          %607 = sbr.rel (%p605) target = $region44
        $region43: #{time_series_transformer_fwd.13} parent=11 // pred_region
          %609 = vsyncadd [#allocation8], 0
          %s611 = sshll.u32 %s9, 4
          %s612 = int_to_ptr.hbm [resolvable:$true] %s611
          %s613 = sshll.u32 [#allocation9], 4
          %s614 = int_to_ptr.vmem [resolvable:$true] %s613
          %616 = dma.hbm_to_vmem [thread:$0]  %s612, 16, %s614, [#allocation8]
        $region44: #{time_series_transformer_fwd.13} parent=11 // pred_fallthru
          _
        // Predicated region
        $region45: #{time_series_transformer_fwd.13} parent=11 // pred_check
          %p617 = pneg %p276
        $region46: #{time_series_transformer_fwd.13} parent=11 // pred_check_branch
          %619 = sbr.rel (%p617) target = $region48
        $region47: #{time_series_transformer_fwd.13} parent=11 // pred_region
          _
        $region48: #{time_series_transformer_fwd.13} parent=11 // pred_fallthru
          _
        // Predicated region
        $region49: #{time_series_transformer_fwd.13} parent=11 // pred_check
          %p620 = pneg %p297
        $region50: #{time_series_transformer_fwd.13} parent=11 // pred_check_branch
          %622 = sbr.rel (%p620) target = $region52
        $region51: #{time_series_transformer_fwd.13} parent=11 // pred_region
          %624 = vsyncadd [#allocation11], 0
          %s626 = sshll.u32 %s11, 4
          %s627 = int_to_ptr.hbm [resolvable:$true] %s626
          %s628 = sshll.u32 [#allocation10], 4
          %s629 = int_to_ptr.vmem [resolvable:$true] %s628
          %631 = dma.hbm_to_vmem [thread:$0]  %s627, 16, %s629, [#allocation11]
        $region52: #{time_series_transformer_fwd.13} parent=11 // pred_fallthru
          _
        // Predicated region
        $region53: #{time_series_transformer_fwd.13} parent=11 // pred_check
          %p632 = pneg %p318
        $region54: #{time_series_transformer_fwd.13} parent=11 // pred_check_branch
          %634 = sbr.rel (%p632) target = $region56
        $region55: #{time_series_transformer_fwd.13} parent=11 // pred_region
          _
        $region56: #{time_series_transformer_fwd.13} parent=11 // pred_fallthru
          _
        // Predicated region
        $region57: #{time_series_transformer_fwd.13} parent=11 // pred_check
          %p635 = pneg %p339
        $region58: #{time_series_transformer_fwd.13} parent=11 // pred_check_branch
          %637 = sbr.rel (%p635) target = $region60
        $region59: #{time_series_transformer_fwd.13} parent=11 // pred_region
          %639 = vsyncadd [#allocation11], 0
          %s641 = sshll.u32 %s13, 4
          %s642 = int_to_ptr.hbm [resolvable:$true] %s641
          %s643 = sshll.u32 [#allocation12], 4
          %s644 = int_to_ptr.vmem [resolvable:$true] %s643
          %646 = dma.hbm_to_vmem [thread:$0]  %s642, 16, %s644, [#allocation11]
        $region60: #{time_series_transformer_fwd.13} parent=11 // pred_fallthru
          _
        // Predicated region
        $region61: #{time_series_transformer_fwd.13} parent=11 // pred_check
          %p647 = pneg %p360
        $region62: #{time_series_transformer_fwd.13} parent=11 // pred_check_branch
          %649 = sbr.rel (%p647) target = $region64
        $region63: #{time_series_transformer_fwd.13} parent=11 // pred_region
          %651 = vsyncadd [#allocation14], 0
          %s653 = sshll.u32 %s14, 4
          %s654 = int_to_ptr.hbm [resolvable:$true] %s653
          %s655 = sshll.u32 [#allocation13], 4
          %s656 = int_to_ptr.vmem [resolvable:$true] %s655
          %658 = dma.hbm_to_vmem [thread:$0]  %s654, 16, %s656, [#allocation14]
        $region64: #{time_series_transformer_fwd.13} parent=11 // pred_fallthru
          _
        // Predicated region
        $region65: #{time_series_transformer_fwd.13} parent=11 // pred_check
          %p659 = pneg %p381
        $region66: #{time_series_transformer_fwd.13} parent=11 // pred_check_branch
          %661 = sbr.rel (%p659) target = $region68
        $region67: #{time_series_transformer_fwd.13} parent=11 // pred_region
          %663 = vsyncadd [#allocation14], 0
          %s665 = sshll.u32 %s15, 4
          %s666 = int_to_ptr.hbm [resolvable:$true] %s665
          %s667 = sshll.u32 [#allocation15], 4
          %s668 = int_to_ptr.vmem [resolvable:$true] %s667
          %670 = dma.hbm_to_vmem [thread:$0]  %s666, 16, %s668, [#allocation14]
        $region68: #{time_series_transformer_fwd.13} parent=11 // pred_fallthru
          _
        // Predicated region
        $region69: #{time_series_transformer_fwd.13} parent=11 // pred_check
          %p671 = pneg %p402
        $region70: #{time_series_transformer_fwd.13} parent=11 // pred_check_branch
          %673 = sbr.rel (%p671) target = $region72
        $region71: #{time_series_transformer_fwd.13} parent=11 // pred_region
          _
        $region72: #{time_series_transformer_fwd.13} parent=11 // pred_fallthru
          _
        // Predicated region
        $region73: #{time_series_transformer_fwd.13} parent=11 // pred_check
          %p674 = pneg %p423
        $region74: #{time_series_transformer_fwd.13} parent=11 // pred_check_branch
          %676 = sbr.rel (%p674) target = $region76
        $region75: #{time_series_transformer_fwd.13} parent=11 // pred_region
          %678 = vsyncadd [#allocation17], 0
          %s680 = sshll.u32 %s17, 4
          %s681 = int_to_ptr.hbm [resolvable:$true] %s680
          %s682 = sshll.u32 [#allocation16], 4
          %s683 = int_to_ptr.vmem [resolvable:$true] %s682
          %685 = dma.hbm_to_vmem [thread:$0]  %s681, 16, %s683, [#allocation17]
        $region76: #{time_series_transformer_fwd.13} parent=11 // pred_fallthru
          _
        // Predicated region
        $region77: #{time_series_transformer_fwd.13} parent=11 // pred_check
          %p686 = pneg %p444
        $region78: #{time_series_transformer_fwd.13} parent=11 // pred_check_branch
          %688 = sbr.rel (%p686) target = $region80
        $region79: #{time_series_transformer_fwd.13} parent=11 // pred_region
          _
        $region80: #{time_series_transformer_fwd.13} parent=11 // pred_fallthru
          _
        // Predicated region
        $region81: #{time_series_transformer_fwd.13} parent=11 // pred_check
          %p689 = pneg %p465
        $region82: #{time_series_transformer_fwd.13} parent=11 // pred_check_branch
          %691 = sbr.rel (%p689) target = $region84
        $region83: #{time_series_transformer_fwd.13} parent=11 // pred_region
          %693 = vsyncadd [#allocation17], 0
          %s695 = sshll.u32 %s19, 4
          %s696 = int_to_ptr.hbm [resolvable:$true] %s695
          %s697 = sshll.u32 [#allocation18], 4
          %s698 = int_to_ptr.vmem [resolvable:$true] %s697
          %700 = dma.hbm_to_vmem [thread:$0]  %s696, 16, %s698, [#allocation17]
        $region84: #{time_series_transformer_fwd.13} parent=11 // pred_fallthru
          _
        // Predicated region
        $region85: #{time_series_transformer_fwd.13} parent=11 // pred_check
          %p701 = pneg %p486
        $region86: #{time_series_transformer_fwd.13} parent=11 // pred_check_branch
          %703 = sbr.rel (%p701) target = $region88
        $region87: #{time_series_transformer_fwd.13} parent=11 // pred_region
          %705 = vsyncadd [#allocation20], 0
          %s707 = sshll.u32 %s20, 4
          %s708 = int_to_ptr.hbm [resolvable:$true] %s707
          %s709 = sshll.u32 [#allocation19], 4
          %s710 = int_to_ptr.vmem [resolvable:$true] %s709
          %712 = dma.hbm_to_vmem [thread:$0]  %s708, 16, %s710, [#allocation20]
        $region88: #{time_series_transformer_fwd.13} parent=11 // pred_fallthru
          _
        // Predicated region
        $region89: #{time_series_transformer_fwd.13} parent=11 // pred_check
          %p713 = pneg %p507
        $region90: #{time_series_transformer_fwd.13} parent=11 // pred_check_branch
          %715 = sbr.rel (%p713) target = $region92
        $region91: #{time_series_transformer_fwd.13} parent=11 // pred_region
          %717 = vsyncadd [#allocation20], 0
          %s719 = sshll.u32 %s21, 4
          %s720 = int_to_ptr.hbm [resolvable:$true] %s719
          %s721 = sshll.u32 [#allocation21], 4
          %s722 = int_to_ptr.vmem [resolvable:$true] %s721
          %724 = dma.hbm_to_vmem [thread:$0]  %s720, 16, %s722, [#allocation20]
        $region92: #{time_series_transformer_fwd.13} parent=11 // pred_fallthru
          _
      $region12: #{time_series_transformer_fwd.13} parent=5 // pred_fallthru
        _
      %p725 = scmp.lt.s32.totalorder %s35, 2
      // Predicated region
      $region93: #{time_series_transformer_fwd.13} parent=5 // pred_check
        %p726 = pneg %p725
      $region94: #{time_series_transformer_fwd.13} parent=5 // pred_check_branch
        %728 = sbr.rel (%p726) target = $region96
      $region95: #{time_series_transformer_fwd.13} parent=5 // pred_region
        // Predicated region
        $region97: #{time_series_transformer_fwd.13} parent=95 // pred_check
          %p729 = pneg %p55
        $region98: #{time_series_transformer_fwd.13} parent=95 // pred_check_branch
          %731 = sbr.rel (%p729) target = $region100
        $region99: #{time_series_transformer_fwd.13} parent=95 // pred_region
          %p732 = scmp.lt.s32.totalorder %s35, 1
          %s733 = scalar_select %p732, %s35, 1
          %s734 = smul.addr %s733, 8
          %s735 = scalar_lea.vmem %s0, %s734
        $region100: #{time_series_transformer_fwd.13} parent=95 // pred_fallthru
          _
        // Predicated region
        $region101: #{time_series_transformer_fwd.13} parent=95 // pred_check
          %p736 = pneg %p81
        $region102: #{time_series_transformer_fwd.13} parent=95 // pred_check_branch
          %738 = sbr.rel (%p736) target = $region104
        $region103: #{time_series_transformer_fwd.13} parent=95 // pred_region
          %p739 = scmp.lt.s32.totalorder %s35, 1
          %s740 = scalar_select %p739, %s35, 1
          %s741 = smul.addr %s740, 8
          %s742 = scalar_lea.vmem %s1, %s741
        $region104: #{time_series_transformer_fwd.13} parent=95 // pred_fallthru
          _
      $region96: #{time_series_transformer_fwd.13} parent=5 // pred_fallthru
        _
      %p743 = scmp.le.s32.totalorder 1, %s35
      %p744 = scmp.lt.s32.totalorder %s35, 3
      %p745 = pnand %p743, %p744
      %p746 = pneg %p745
      // Predicated region
      $region105: #{time_series_transformer_fwd.13} parent=5 // pred_check
        _
      $region106: #{time_series_transformer_fwd.13} parent=5 // pred_check_branch
        %748 = sbr.rel (%p745) target = $region108
      $region107: #{time_series_transformer_fwd.13} parent=5 // pred_region
        %s749 = ssub.s32 %s35, 1
        // Predicated region
        $region109: #{time_series_transformer_fwd.13} parent=107 // pred_check
          %p750 = pneg %p129
        $region110: #{time_series_transformer_fwd.13} parent=107 // pred_check_branch
          %752 = sbr.rel (%p750) target = $region112
        $region111: #{time_series_transformer_fwd.13} parent=107 // pred_region
          %754 = dma.done [#allocation3], 16
        $region112: #{time_series_transformer_fwd.13} parent=107 // pred_fallthru
          _
        // Predicated region
        $region113: #{time_series_transformer_fwd.13} parent=107 // pred_check
          %p755 = pneg %p171
        $region114: #{time_series_transformer_fwd.13} parent=107 // pred_check_branch
          %757 = sbr.rel (%p755) target = $region116
        $region115: #{time_series_transformer_fwd.13} parent=107 // pred_region
          %759 = dma.done [#allocation5], 16
        $region116: #{time_series_transformer_fwd.13} parent=107 // pred_fallthru
          _
        // Predicated region
        $region117: #{time_series_transformer_fwd.13} parent=107 // pred_check
          %p760 = pneg %p192
        $region118: #{time_series_transformer_fwd.13} parent=107 // pred_check_branch
          %762 = sbr.rel (%p760) target = $region120
        $region119: #{time_series_transformer_fwd.13} parent=107 // pred_region
          %764 = dma.done [#allocation5], 16
        $region120: #{time_series_transformer_fwd.13} parent=107 // pred_fallthru
          _
        // Predicated region
        $region121: #{time_series_transformer_fwd.13} parent=107 // pred_check
          %p765 = pneg %p213
        $region122: #{time_series_transformer_fwd.13} parent=107 // pred_check_branch
          %767 = sbr.rel (%p765) target = $region124
        $region123: #{time_series_transformer_fwd.13} parent=107 // pred_region
          %769 = dma.done [#allocation8], 16
        $region124: #{time_series_transformer_fwd.13} parent=107 // pred_fallthru
          _
        // Predicated region
        $region125: #{time_series_transformer_fwd.13} parent=107 // pred_check
          %p770 = pneg %p255
        $region126: #{time_series_transformer_fwd.13} parent=107 // pred_check_branch
          %772 = sbr.rel (%p770) target = $region128
        $region127: #{time_series_transformer_fwd.13} parent=107 // pred_region
          %774 = dma.done [#allocation8], 16
        $region128: #{time_series_transformer_fwd.13} parent=107 // pred_fallthru
          _
        // Predicated region
        $region129: #{time_series_transformer_fwd.13} parent=107 // pred_check
          %p775 = pneg %p297
        $region130: #{time_series_transformer_fwd.13} parent=107 // pred_check_branch
          %777 = sbr.rel (%p775) target = $region132
        $region131: #{time_series_transformer_fwd.13} parent=107 // pred_region
          %779 = dma.done [#allocation11], 16
        $region132: #{time_series_transformer_fwd.13} parent=107 // pred_fallthru
          _
        // Predicated region
        $region133: #{time_series_transformer_fwd.13} parent=107 // pred_check
          %p780 = pneg %p339
        $region134: #{time_series_transformer_fwd.13} parent=107 // pred_check_branch
          %782 = sbr.rel (%p780) target = $region136
        $region135: #{time_series_transformer_fwd.13} parent=107 // pred_region
          %784 = dma.done [#allocation11], 16
        $region136: #{time_series_transformer_fwd.13} parent=107 // pred_fallthru
          _
        // Predicated region
        $region137: #{time_series_transformer_fwd.13} parent=107 // pred_check
          %p785 = pneg %p360
        $region138: #{time_series_transformer_fwd.13} parent=107 // pred_check_branch
          %787 = sbr.rel (%p785) target = $region140
        $region139: #{time_series_transformer_fwd.13} parent=107 // pred_region
          %789 = dma.done [#allocation14], 16
        $region140: #{time_series_transformer_fwd.13} parent=107 // pred_fallthru
          _
        // Predicated region
        $region141: #{time_series_transformer_fwd.13} parent=107 // pred_check
          %p790 = pneg %p381
        $region142: #{time_series_transformer_fwd.13} parent=107 // pred_check_branch
          %792 = sbr.rel (%p790) target = $region144
        $region143: #{time_series_transformer_fwd.13} parent=107 // pred_region
          %794 = dma.done [#allocation14], 16
        $region144: #{time_series_transformer_fwd.13} parent=107 // pred_fallthru
          _
        // Predicated region
        $region145: #{time_series_transformer_fwd.13} parent=107 // pred_check
          %p795 = pneg %p423
        $region146: #{time_series_transformer_fwd.13} parent=107 // pred_check_branch
          %797 = sbr.rel (%p795) target = $region148
        $region147: #{time_series_transformer_fwd.13} parent=107 // pred_region
          %799 = dma.done [#allocation17], 16
        $region148: #{time_series_transformer_fwd.13} parent=107 // pred_fallthru
          _
        // Predicated region
        $region149: #{time_series_transformer_fwd.13} parent=107 // pred_check
          %p800 = pneg %p465
        $region150: #{time_series_transformer_fwd.13} parent=107 // pred_check_branch
          %802 = sbr.rel (%p800) target = $region152
        $region151: #{time_series_transformer_fwd.13} parent=107 // pred_region
          %804 = dma.done [#allocation17], 16
        $region152: #{time_series_transformer_fwd.13} parent=107 // pred_fallthru
          _
        // Predicated region
        $region153: #{time_series_transformer_fwd.13} parent=107 // pred_check
          %p805 = pneg %p486
        $region154: #{time_series_transformer_fwd.13} parent=107 // pred_check_branch
          %807 = sbr.rel (%p805) target = $region156
        $region155: #{time_series_transformer_fwd.13} parent=107 // pred_region
          %809 = dma.done [#allocation20], 16
        $region156: #{time_series_transformer_fwd.13} parent=107 // pred_fallthru
          _
        // Predicated region
        $region157: #{time_series_transformer_fwd.13} parent=107 // pred_check
          %p810 = pneg %p507
        $region158: #{time_series_transformer_fwd.13} parent=107 // pred_check_branch
          %812 = sbr.rel (%p810) target = $region160
        $region159: #{time_series_transformer_fwd.13} parent=107 // pred_region
          %814 = dma.done [#allocation20], 16
        $region160: #{time_series_transformer_fwd.13} parent=107 // pred_fallthru
          _
        %p815 = scmp.lt.s32.totalorder %s40, 1
        %s816 = scalar_select %p815, %s40, 1
        %s817 = smul.addr %s816, 8
        %s818 = scalar_lea.vmem %s0, %s817
        %p819 = pneg %p61
        %p820 = pneg %p58
        %p821 = scmp.lt.s32.totalorder %s40, 1
        %s822 = scalar_select %p821, %s40, 1
        %s823 = smul.addr %s822, 8
        %s824 = scalar_lea.vmem %s1, %s823
        %p825 = pneg %p87
        %p826 = pneg %p84
        %p827 = pneg %p108
        %p828 = pneg %p105
        %p829 = pneg %p129
        %p830 = pneg %p126
        %p831 = pneg %p150
        %p832 = pneg %p147
        %p833 = pneg %p171
        %p834 = pneg %p168
        %p835 = pneg %p192
        %p836 = pneg %p189
        %p837 = pneg %p213
        %p838 = pneg %p210
        %p839 = pneg %p234
        %p840 = pneg %p231
        %p841 = pneg %p255
        %p842 = pneg %p252
        %p843 = pneg %p276
        %p844 = pneg %p273
        %p845 = pneg %p297
        %p846 = pneg %p294
        %p847 = pneg %p318
        %p848 = pneg %p315
        %p849 = pneg %p339
        %p850 = pneg %p336
        %p851 = pneg %p360
        %p852 = pneg %p357
        %p853 = pneg %p381
        %p854 = pneg %p378
        %p855 = pneg %p402
        %p856 = pneg %p399
        %p857 = pneg %p423
        %p858 = pneg %p420
        %p859 = pneg %p444
        %p860 = pneg %p441
        %p861 = pneg %p465
        %p862 = pneg %p462
        %p863 = pneg %p486
        %p864 = pneg %p483
        %p865 = pneg %p507
        %p866 = pneg %p504
        %p867 = pneg %p533
        %p868 = pneg %p530
        %p869 = scmp.lt.s32.totalorder %s40, 1
        %s870 = scalar_select %p869, %s40, 1
        %s871 = smul.addr %s870, 8
        %s872 = scalar_lea.vmem %s22, %s871
        %p873 = scmp.lt.s32.totalorder %s40, 1
        %s874 = scalar_select %p873, %s40, 1
        %s875 = smul.addr %s874, 8
        %s876 = scalar_lea.vmem %s0, %s875
        %p877 = scmp.lt.s32.totalorder %s40, 1
        %s878 = scalar_select %p877, %s40, 1
        %s879 = smul.addr %s878, 8
        %s880 = scalar_lea.vmem %s1, %s879
        %p881 = scmp.lt.s32.totalorder %s40, 1
        %s882 = scalar_select %p881, %s40, 1
        %s883 = smul.addr %s882, 8
        %s884 = scalar_lea.vmem %s22, %s883
        %v886 = vld [vmem:[%s876] sm:$0xff]
        %v887 = vld [vmem:[%s880] sm:$0xff]
        %v888 = vld [vmem:[%s2] sm:$0xf]
        %v889 = vld [vmem:[%s2 + $0x4] sm:$0xf]
        %v890 = vld [vmem:[%s2 + $0x8] sm:$0xf]
        %v891 = vld [vmem:[%s2 + $0xc] sm:$0xf]
        %v892 = vpack.c.bf16 %v886, %v886
        %v893 = vld [vmem:[#allocation2] sm:$0x1]
        %v895 = vperm.slane %v893, 0
        %v901 = vunpack.c.l.b16 %v888
        %v902 = vunpack.c.l.b16 %v889
        %v903 = vunpack.c.l.b16 %v890
        %v904 = vunpack.c.l.b16 %v891
        %v905 = vpack.c.b16 %v902, %v901
        %v906 = vpack.c.b16 %v904, %v903
        %vm909 = vcmask 261120
        %v911 = vsel %vm909, %v892, 0
        %913 = vmatpush.bf16.msra.mxu0 0
        %914 = vmatpush.bf16.msra.mxu0 0
        %915 = vmatpush.bf16.msra.mxu0 0
        %916 = vmatpush.bf16.msra.mxu0 0
        %917 = vmatpush.bf16.msra.mxu0 0
        %918 = vmatpush.bf16.msra.mxu0 0
        %919 = vmatpush.bf16.msra.mxu0 %v906
        %920 = vmatpush.bf16.msra.mxu0 %v905
        %921 = vmatmul.bf16.gmra.mxu0 %v911
        %v922 = vpop.f32.mrf.mxu0
        %v923 = vadd.f32 %v895, %v922
        %v924 = vpop.f32.mrf.mxu0
        %925 = vdwg.mxu0
        %v926 = vpack.c.bf16 %v923, %v923
        %928 = vrot.lane.b32.xlu0 %v926, 96
        %v929 = vpop.permute.xlu0 %928
        %vm930 = vcmask 64512
        %v932 = vsel %vm930, %v926, 0
        %v935 = vsel %vm930, %v929, 0
        %937 = vmatpush.bf16.xpose.msra.mxu0 0
        %938 = vmatpush.bf16.xpose.msra.mxu0 0
        %939 = vmatpush.bf16.xpose.msra.mxu0 0
        %940 = vmatpush.bf16.xpose.msra.mxu0 0
        %941 = vmatpush.bf16.xpose.msra.mxu0 0
        %942 = vmatpush.bf16.xpose.msra.mxu0 0
        %943 = vmatpush.bf16.xpose.msra.mxu0 0
        %944 = vmatpush.bf16.xpose.msra.mxu0 %v935
        %945 = vmatmul.bf16.gmra.mxu0 %v932
        %v946 = vpop.f32.mrf.mxu0
        %v947 = vadd.f32 0.0, %v946
        %v948 = vpop.f32.mrf.mxu0
        %949 = vdwg.mxu0
        %v950 = vmul.f32 %v947, 0.35355338
        %v951 = vsel %vm930, %v950, -inf
        %952 = vmax.xlane.f32.xlu0 %v951
        %v953 = vpop.xlane.xlu0 %952
        %v954 = vsub.f32 %v950, %v953
        %v955 = vmul.f32 %v954, 1.442695
        %v956 = vpow.pop %v955
        %v957 = vsel %vm930, %v956, 0.0
        %958 = vadd.xlane.f32.xlu0 %v957
        %v959 = vpop.xlane.xlu0 %958
        %v960 = vrcp.pop %v959
        %v961 = vmul.f32 %v956, %v960
        %v962 = vpack.c.bf16 %v961, %v961
        %963 = vrot.lane.b32.xlu0 %v926, 64
        %v964 = vpop.permute.xlu0 %963
        %v966 = vsel %vm930, %v962, 0
        %vm968 = vcmask 1043456
        %v970 = vsel %vm968, %v964, 0
        %972 = vmatpush.bf16.msra.mxu0 0
        %973 = vmatpush.bf16.msra.mxu0 0
        %974 = vmatpush.bf16.msra.mxu0 0
        %975 = vmatpush.bf16.msra.mxu0 0
        %976 = vmatpush.bf16.msra.mxu0 0
        %977 = vmatpush.bf16.msra.mxu0 0
        %978 = vmatpush.bf16.msra.mxu0 0
        %979 = vmatpush.bf16.msra.mxu0 %v970
        %980 = vmatmul.bf16.gmra.mxu0 %v966
        %v981 = vpop.f32.mrf.mxu0
        %v982 = vadd.f32 0.0, %v981
        %v983 = vpop.f32.mrf.mxu0
        %984 = vdwg.mxu0
        %985 = vrot.lane.b32.xlu0 %v926, 120
        %v986 = vpop.permute.xlu0 %985
        %987 = vrot.lane.b32.xlu0 %v926, 88
        %v988 = vpop.permute.xlu0 %987
        %v990 = vsel %vm930, %v986, 0
        %v993 = vsel %vm930, %v988, 0
        %995 = vmatpush.bf16.xpose.msra.mxu0 0
        %996 = vmatpush.bf16.xpose.msra.mxu0 0
        %997 = vmatpush.bf16.xpose.msra.mxu0 0
        %998 = vmatpush.bf16.xpose.msra.mxu0 0
        %999 = vmatpush.bf16.xpose.msra.mxu0 0
        %1000 = vmatpush.bf16.xpose.msra.mxu0 0
        %1001 = vmatpush.bf16.xpose.msra.mxu0 0
        %1002 = vmatpush.bf16.xpose.msra.mxu0 %v993
        %1003 = vmatmul.bf16.gmra.mxu0 %v990
        %v1004 = vpop.f32.mrf.mxu0
        %v1005 = vadd.f32 0.0, %v1004
        %v1006 = vpop.f32.mrf.mxu0
        %1007 = vdwg.mxu0
        %v1008 = vmul.f32 %v1005, 0.35355338
        %v1009 = vsel %vm930, %v1008, -inf
        %1010 = vmax.xlane.f32.xlu0 %v1009
        %v1011 = vpop.xlane.xlu0 %1010
        %v1012 = vsub.f32 %v1008, %v1011
        %v1013 = vmul.f32 %v1012, 1.442695
        %v1014 = vpow.pop %v1013
        %v1015 = vsel %vm930, %v1014, 0.0
        %1016 = vadd.xlane.f32.xlu0 %v1015
        %v1017 = vpop.xlane.xlu0 %1016
        %v1018 = vrcp.pop %v1017
        %v1019 = vmul.f32 %v1014, %v1018
        %v1020 = vpack.c.bf16 %v1019, %v1019
        %1021 = vrot.lane.b32.xlu0 %v926, 56
        %v1022 = vpop.permute.xlu0 %1021
        %v1024 = vsel %vm930, %v1020, 0
        %v1027 = vsel %vm968, %v1022, 0
        %1029 = vmatpush.bf16.msra.mxu0 0
        %1030 = vmatpush.bf16.msra.mxu0 0
        %1031 = vmatpush.bf16.msra.mxu0 0
        %1032 = vmatpush.bf16.msra.mxu0 0
        %1033 = vmatpush.bf16.msra.mxu0 0
        %1034 = vmatpush.bf16.msra.mxu0 0
        %1035 = vmatpush.bf16.msra.mxu0 0
        %1036 = vmatpush.bf16.msra.mxu0 %v1027
        %1037 = vmatmul.bf16.gmra.mxu0 %v1024
        %v1038 = vpop.f32.mrf.mxu0
        %v1039 = vadd.f32 0.0, %v1038
        %v1040 = vpop.f32.mrf.mxu0
        %1041 = vdwg.mxu0
        %1042 = vrot.lane.b32.xlu0 %v926, 112
        %v1043 = vpop.permute.xlu0 %1042
        %1044 = vrot.lane.b32.xlu0 %v926, 80
        %v1045 = vpop.permute.xlu0 %1044
        %v1047 = vsel %vm930, %v1043, 0
        %v1050 = vsel %vm930, %v1045, 0
        %1052 = vmatpush.bf16.xpose.msra.mxu0 0
        %1053 = vmatpush.bf16.xpose.msra.mxu0 0
        %1054 = vmatpush.bf16.xpose.msra.mxu0 0
        %1055 = vmatpush.bf16.xpose.msra.mxu0 0
        %1056 = vmatpush.bf16.xpose.msra.mxu0 0
        %1057 = vmatpush.bf16.xpose.msra.mxu0 0
        %1058 = vmatpush.bf16.xpose.msra.mxu0 0
        %1059 = vmatpush.bf16.xpose.msra.mxu0 %v1050
        %1060 = vmatmul.bf16.gmra.mxu0 %v1047
        %v1061 = vpop.f32.mrf.mxu0
        %v1062 = vadd.f32 0.0, %v1061
        %v1063 = vpop.f32.mrf.mxu0
        %1064 = vdwg.mxu0
        %v1065 = vmul.f32 %v1062, 0.35355338
        %v1066 = vsel %vm930, %v1065, -inf
        %1067 = vmax.xlane.f32.xlu0 %v1066
        %v1068 = vpop.xlane.xlu0 %1067
        %v1069 = vsub.f32 %v1065, %v1068
        %v1070 = vmul.f32 %v1069, 1.442695
        %v1071 = vpow.pop %v1070
        %v1072 = vsel %vm930, %v1071, 0.0
        %1073 = vadd.xlane.f32.xlu0 %v1072
        %v1074 = vpop.xlane.xlu0 %1073
        %v1075 = vrcp.pop %v1074
        %v1076 = vmul.f32 %v1071, %v1075
        %v1077 = vpack.c.bf16 %v1076, %v1076
        %1078 = vrot.lane.b32.xlu0 %v926, 48
        %v1079 = vpop.permute.xlu0 %1078
        %v1081 = vsel %vm930, %v1077, 0
        %v1084 = vsel %vm968, %v1079, 0
        %1086 = vmatpush.bf16.msra.mxu0 0
        %1087 = vmatpush.bf16.msra.mxu0 0
        %1088 = vmatpush.bf16.msra.mxu0 0
        %1089 = vmatpush.bf16.msra.mxu0 0
        %1090 = vmatpush.bf16.msra.mxu0 0
        %1091 = vmatpush.bf16.msra.mxu0 0
        %1092 = vmatpush.bf16.msra.mxu0 0
        %1093 = vmatpush.bf16.msra.mxu0 %v1084
        %1094 = vmatmul.bf16.gmra.mxu0 %v1081
        %v1095 = vpop.f32.mrf.mxu0
        %v1096 = vadd.f32 0.0, %v1095
        %v1097 = vpop.f32.mrf.mxu0
        %1098 = vdwg.mxu0
        %1099 = vrot.lane.b32.xlu0 %v926, 104
        %v1100 = vpop.permute.xlu0 %1099
        %1101 = vrot.lane.b32.xlu0 %v926, 72
        %v1102 = vpop.permute.xlu0 %1101
        %v1104 = vsel %vm930, %v1100, 0
        %v1107 = vsel %vm930, %v1102, 0
        %1109 = vmatpush.bf16.xpose.msra.mxu0 0
        %1110 = vmatpush.bf16.xpose.msra.mxu0 0
        %1111 = vmatpush.bf16.xpose.msra.mxu0 0
        %1112 = vmatpush.bf16.xpose.msra.mxu0 0
        %1113 = vmatpush.bf16.xpose.msra.mxu0 0
        %1114 = vmatpush.bf16.xpose.msra.mxu0 0
        %1115 = vmatpush.bf16.xpose.msra.mxu0 0
        %1116 = vmatpush.bf16.xpose.msra.mxu0 %v1107
        %1117 = vmatmul.bf16.gmra.mxu0 %v1104
        %v1118 = vpop.f32.mrf.mxu0
        %v1119 = vadd.f32 0.0, %v1118
        %v1120 = vpop.f32.mrf.mxu0
        %1121 = vdwg.mxu0
        %v1122 = vmul.f32 %v1119, 0.35355338
        %v1123 = vsel %vm930, %v1122, -inf
        %1124 = vmax.xlane.f32.xlu0 %v1123
        %v1125 = vpop.xlane.xlu0 %1124
        %v1126 = vsub.f32 %v1122, %v1125
        %v1127 = vmul.f32 %v1126, 1.442695
        %v1128 = vpow.pop %v1127
        %v1129 = vsel %vm930, %v1128, 0.0
        %1130 = vadd.xlane.f32.xlu0 %v1129
        %v1131 = vpop.xlane.xlu0 %1130
        %v1132 = vrcp.pop %v1131
        %v1133 = vmul.f32 %v1128, %v1132
        %v1134 = vpack.c.bf16 %v1133, %v1133
        %1135 = vrot.lane.b32.xlu0 %v926, 40
        %v1136 = vpop.permute.xlu0 %1135
        %v1138 = vsel %vm930, %v1134, 0
        %v1141 = vsel %vm968, %v1136, 0
        %1143 = vmatpush.bf16.msra.mxu0 0
        %1144 = vmatpush.bf16.msra.mxu0 0
        %1145 = vmatpush.bf16.msra.mxu0 0
        %1146 = vmatpush.bf16.msra.mxu0 0
        %1147 = vmatpush.bf16.msra.mxu0 0
        %1148 = vmatpush.bf16.msra.mxu0 0
        %1149 = vmatpush.bf16.msra.mxu0 0
        %1150 = vmatpush.bf16.msra.mxu0 %v1141
        %1151 = vmatmul.bf16.gmra.mxu0 %v1138
        %v1152 = vpop.f32.mrf.mxu0
        %v1153 = vadd.f32 0.0, %v1152
        %v1154 = vpop.f32.mrf.mxu0
        %1155 = vdwg.mxu0
        %1157 = vrot.lane.b32.xlu0 %v1039, 8
        %v1158 = vpop.permute.xlu0 %1157
        %1161 = vrot.lane.b32.xlu0 %v1096, 16
        %v1162 = vpop.permute.xlu0 %1161
        %1165 = vrot.lane.b32.xlu0 %v1153, 24
        %v1166 = vpop.permute.xlu0 %1165
        %v1168 = vsel %vm930, %v982, %v1158
        %vm1169 = vcmask 130048
        %v1170 = vsel %vm1169, %v1168, %v1162
        %vm1171 = vcmask 195584
        %v1172 = vsel %vm1171, %v1170, %v1166
        %v1173 = vld [vmem:[%s4] sm:$0xf]
        %v1174 = vld [vmem:[%s4 + $0x4] sm:$0xf]
        %v1175 = vld [vmem:[%s4 + $0x8] sm:$0xf]
        %v1176 = vld [vmem:[%s4 + $0xc] sm:$0xf]
        %v1177 = vpack.c.bf16 %v1172, %v1172
        %v1178 = vld [vmem:[#allocation4] sm:$0x1]
        %v1180 = vperm.slane %v1178, 0
        %v1186 = vunpack.c.l.b16 %v1173
        %v1187 = vunpack.c.l.b16 %v1174
        %v1188 = vunpack.c.l.b16 %v1175
        %v1189 = vunpack.c.l.b16 %v1176
        %v1190 = vpack.c.b16 %v1187, %v1186
        %v1191 = vpack.c.b16 %v1189, %v1188
        %v1195 = vsel %vm909, %v1177, 0
        %1197 = vmatpush.bf16.msra.mxu0 0
        %1198 = vmatpush.bf16.msra.mxu0 0
        %1199 = vmatpush.bf16.msra.mxu0 0
        %1200 = vmatpush.bf16.msra.mxu0 0
        %1201 = vmatpush.bf16.msra.mxu0 0
        %1202 = vmatpush.bf16.msra.mxu0 0
        %1203 = vmatpush.bf16.msra.mxu0 %v1191
        %1204 = vmatpush.bf16.msra.mxu0 %v1190
        %1205 = vmatmul.bf16.gmra.mxu0 %v1195
        %v1206 = vpop.f32.mrf.mxu0
        %v1207 = vadd.f32 %v1180, %v1206
        %v1208 = vpop.f32.mrf.mxu0
        %1209 = vdwg.mxu0
        %v1210 = vadd.f32 %v1207, %v886
        %v1211 = vld [vmem:[#allocation6] sm:$0x1]
        %v1212 = vld [vmem:[#allocation7] sm:$0x1]
        %v1213 = vsel %vm909, %v1210, 0.0
        %1214 = vadd.xlane.f32.xlu0 %v1213
        %v1215 = vpop.xlane.xlu0 %1214
        %v1216 = vrcp.pop 32.0
        %v1217 = vmul.f32 32.0, %v1216
        %v1218 = vsub.f32 1.0, %v1217
        %v1219 = vmul.f32 %v1216, %v1218
        %v1220 = vadd.f32 %v1216, %v1219
        %vm1221 = vweird.f32 %v1216
        %v1222 = vsel %vm1221, %v1216, %v1220
        %v1223 = vmul.f32 %v1215, %v1222
        %v1224 = vsub.f32 %v1210, %v1223
        %v1225 = vmul.f32 %v1224, %v1224
        %v1226 = vsel %vm909, %v1225, 0.0
        %1227 = vadd.xlane.f32.xlu0 %v1226
        %v1228 = vpop.xlane.xlu0 %1227
        %v1229 = vmul.f32 %v1228, %v1222
        %v1230 = vadd.f32 %v1229, 1e-05
        %v1231 = vrsqrt.pop %v1230
        %v1232 = vmul.f32 %v1231, %v1230
        %v1233 = vmul.f32 %v1232, %v1231
        %v1234 = vmul.f32 0.5, %v1233
        %v1235 = vsub.f32 1.5, %v1234
        %v1236 = vmul.f32 %v1231, %v1235
        %vm1237 = vweird.f32 %v1230
        %vm1238 = vweird.f32 %v1231
        %vm1239 = vmor %vm1237, %vm1238
        %v1240 = vsel %vm1239, %v1231, %v1236
        %v1241 = vmul.f32 %v1224, %v1240
        %v1243 = vperm.slane %v1211, 0
        %v1245 = vmul.f32 %v1241, %v1243
        %v1247 = vperm.slane %v1212, 0
        %v1249 = vadd.f32 %v1245, %v1247
        %v1250 = vld [vmem:[%s8] sm:$0xf]
        %v1251 = vld [vmem:[%s8 + $0x4] sm:$0xf]
        %v1252 = vld [vmem:[%s8 + $0x8] sm:$0xf]
        %v1253 = vld [vmem:[%s8 + $0xc] sm:$0xf]
        %v1254 = vpack.c.bf16 %v1249, %v1249
        %v1255 = vld [vmem:[#allocation9] sm:$0x1]
        %v1257 = vperm.slane %v1255, 0
        %v1263 = vunpack.c.l.b16 %v1250
        %v1264 = vunpack.c.l.b16 %v1251
        %v1265 = vunpack.c.l.b16 %v1252
        %v1266 = vunpack.c.l.b16 %v1253
        %v1267 = vpack.c.b16 %v1264, %v1263
        %v1268 = vpack.c.b16 %v1266, %v1265
        %v1272 = vsel %vm909, %v1254, 0
        %1274 = vmatpush.bf16.msra.mxu0 0
        %1275 = vmatpush.bf16.msra.mxu0 0
        %1276 = vmatpush.bf16.msra.mxu0 0
        %1277 = vmatpush.bf16.msra.mxu0 0
        %1278 = vmatpush.bf16.msra.mxu0 0
        %1279 = vmatpush.bf16.msra.mxu0 0
        %1280 = vmatpush.bf16.msra.mxu0 %v1268
        %1281 = vmatpush.bf16.msra.mxu0 %v1267
        %1282 = vmatmul.bf16.gmra.mxu0 %v1272
        %v1283 = vpop.f32.mrf.mxu0
        %v1284 = vadd.f32 %v1257, %v1283
        %v1285 = vpop.f32.mrf.mxu0
        %1286 = vdwg.mxu0
        %v1287 = vld [vmem:[%s10] sm:$0xf]
        %v1288 = vld [vmem:[%s10 + $0x4] sm:$0xf]
        %v1289 = vld [vmem:[%s10 + $0x8] sm:$0xf]
        %v1290 = vld [vmem:[%s10 + $0xc] sm:$0xf]
        %v1291 = vpack.c.bf16 %v887, %v887
        %v1292 = vld [vmem:[#allocation10] sm:$0x1]
        %v1294 = vperm.slane %v1292, 0
        %v1300 = vunpack.c.l.b16 %v1287
        %v1301 = vunpack.c.l.b16 %v1288
        %v1302 = vunpack.c.l.b16 %v1289
        %v1303 = vunpack.c.l.b16 %v1290
        %v1304 = vpack.c.b16 %v1301, %v1300
        %v1305 = vpack.c.b16 %v1303, %v1302
        %v1309 = vsel %vm909, %v1291, 0
        %1311 = vmatpush.bf16.msra.mxu0 0
        %1312 = vmatpush.bf16.msra.mxu0 0
        %1313 = vmatpush.bf16.msra.mxu0 0
        %1314 = vmatpush.bf16.msra.mxu0 0
        %1315 = vmatpush.bf16.msra.mxu0 0
        %1316 = vmatpush.bf16.msra.mxu0 0
        %1317 = vmatpush.bf16.msra.mxu0 %v1305
        %1318 = vmatpush.bf16.msra.mxu0 %v1304
        %1319 = vmatmul.bf16.gmra.mxu0 %v1309
        %v1320 = vpop.f32.mrf.mxu0
        %v1321 = vadd.f32 %v1294, %v1320
        %v1322 = vpop.f32.mrf.mxu0
        %1323 = vdwg.mxu0
        %v1324 = vpack.c.bf16 %v1284, %v1284
        %v1325 = vpack.c.bf16 %v1321, %v1321
        %v1327 = vsel %vm930, %v1324, 0
        %v1330 = vsel %vm930, %v1325, 0
        %1332 = vmatpush.bf16.xpose.msra.mxu0 0
        %1333 = vmatpush.bf16.xpose.msra.mxu0 0
        %1334 = vmatpush.bf16.xpose.msra.mxu0 0
        %1335 = vmatpush.bf16.xpose.msra.mxu0 0
        %1336 = vmatpush.bf16.xpose.msra.mxu0 0
        %1337 = vmatpush.bf16.xpose.msra.mxu0 0
        %1338 = vmatpush.bf16.xpose.msra.mxu0 0
        %1339 = vmatpush.bf16.xpose.msra.mxu0 %v1330
        %1340 = vmatmul.bf16.gmra.mxu0 %v1327
        %v1341 = vpop.f32.mrf.mxu0
        %v1342 = vadd.f32 0.0, %v1341
        %v1343 = vpop.f32.mrf.mxu0
        %1344 = vdwg.mxu0
        %v1345 = vmul.f32 %v1342, 0.35355338
        %v1346 = vsel %vm930, %v1345, -inf
        %1347 = vmax.xlane.f32.xlu0 %v1346
        %v1348 = vpop.xlane.xlu0 %1347
        %v1349 = vsub.f32 %v1345, %v1348
        %v1350 = vmul.f32 %v1349, 1.442695
        %v1351 = vpow.pop %v1350
        %v1352 = vsel %vm930, %v1351, 0.0
        %1353 = vadd.xlane.f32.xlu0 %v1352
        %v1354 = vpop.xlane.xlu0 %1353
        %v1355 = vrcp.pop %v1354
        %v1356 = vmul.f32 %v1351, %v1355
        %v1357 = vpack.c.bf16 %v1356, %v1356
        %1359 = vrot.lane.b32.xlu0 %v1325, 96
        %v1360 = vpop.permute.xlu0 %1359
        %v1362 = vsel %vm930, %v1357, 0
        %v1365 = vsel %vm968, %v1360, 0
        %1367 = vmatpush.bf16.msra.mxu0 0
        %1368 = vmatpush.bf16.msra.mxu0 0
        %1369 = vmatpush.bf16.msra.mxu0 0
        %1370 = vmatpush.bf16.msra.mxu0 0
        %1371 = vmatpush.bf16.msra.mxu0 0
        %1372 = vmatpush.bf16.msra.mxu0 0
        %1373 = vmatpush.bf16.msra.mxu0 0
        %1374 = vmatpush.bf16.msra.mxu0 %v1365
        %1375 = vmatmul.bf16.gmra.mxu0 %v1362
        %v1376 = vpop.f32.mrf.mxu0
        %v1377 = vadd.f32 0.0, %v1376
        %v1378 = vpop.f32.mrf.mxu0
        %1379 = vdwg.mxu0
        %1381 = vrot.lane.b32.xlu0 %v1324, 120
        %v1382 = vpop.permute.xlu0 %1381
        %1383 = vrot.lane.b32.xlu0 %v1325, 120
        %v1384 = vpop.permute.xlu0 %1383
        %v1386 = vsel %vm930, %v1382, 0
        %v1389 = vsel %vm930, %v1384, 0
        %1391 = vmatpush.bf16.xpose.msra.mxu0 0
        %1392 = vmatpush.bf16.xpose.msra.mxu0 0
        %1393 = vmatpush.bf16.xpose.msra.mxu0 0
        %1394 = vmatpush.bf16.xpose.msra.mxu0 0
        %1395 = vmatpush.bf16.xpose.msra.mxu0 0
        %1396 = vmatpush.bf16.xpose.msra.mxu0 0
        %1397 = vmatpush.bf16.xpose.msra.mxu0 0
        %1398 = vmatpush.bf16.xpose.msra.mxu0 %v1389
        %1399 = vmatmul.bf16.gmra.mxu0 %v1386
        %v1400 = vpop.f32.mrf.mxu0
        %v1401 = vadd.f32 0.0, %v1400
        %v1402 = vpop.f32.mrf.mxu0
        %1403 = vdwg.mxu0
        %v1404 = vmul.f32 %v1401, 0.35355338
        %v1405 = vsel %vm930, %v1404, -inf
        %1406 = vmax.xlane.f32.xlu0 %v1405
        %v1407 = vpop.xlane.xlu0 %1406
        %v1408 = vsub.f32 %v1404, %v1407
        %v1409 = vmul.f32 %v1408, 1.442695
        %v1410 = vpow.pop %v1409
        %v1411 = vsel %vm930, %v1410, 0.0
        %1412 = vadd.xlane.f32.xlu0 %v1411
        %v1413 = vpop.xlane.xlu0 %1412
        %v1414 = vrcp.pop %v1413
        %v1415 = vmul.f32 %v1410, %v1414
        %v1416 = vpack.c.bf16 %v1415, %v1415
        %1417 = vrot.lane.b32.xlu0 %v1325, 88
        %v1418 = vpop.permute.xlu0 %1417
        %v1420 = vsel %vm930, %v1416, 0
        %v1423 = vsel %vm968, %v1418, 0
        %1425 = vmatpush.bf16.msra.mxu0 0
        %1426 = vmatpush.bf16.msra.mxu0 0
        %1427 = vmatpush.bf16.msra.mxu0 0
        %1428 = vmatpush.bf16.msra.mxu0 0
        %1429 = vmatpush.bf16.msra.mxu0 0
        %1430 = vmatpush.bf16.msra.mxu0 0
        %1431 = vmatpush.bf16.msra.mxu0 0
        %1432 = vmatpush.bf16.msra.mxu0 %v1423
        %1433 = vmatmul.bf16.gmra.mxu0 %v1420
        %v1434 = vpop.f32.mrf.mxu0
        %v1435 = vadd.f32 0.0, %v1434
        %v1436 = vpop.f32.mrf.mxu0
        %1437 = vdwg.mxu0
        %1438 = vrot.lane.b32.xlu0 %v1324, 112
        %v1439 = vpop.permute.xlu0 %1438
        %1440 = vrot.lane.b32.xlu0 %v1325, 112
        %v1441 = vpop.permute.xlu0 %1440
        %v1443 = vsel %vm930, %v1439, 0
        %v1446 = vsel %vm930, %v1441, 0
        %1448 = vmatpush.bf16.xpose.msra.mxu0 0
        %1449 = vmatpush.bf16.xpose.msra.mxu0 0
        %1450 = vmatpush.bf16.xpose.msra.mxu0 0
        %1451 = vmatpush.bf16.xpose.msra.mxu0 0
        %1452 = vmatpush.bf16.xpose.msra.mxu0 0
        %1453 = vmatpush.bf16.xpose.msra.mxu0 0
        %1454 = vmatpush.bf16.xpose.msra.mxu0 0
        %1455 = vmatpush.bf16.xpose.msra.mxu0 %v1446
        %1456 = vmatmul.bf16.gmra.mxu0 %v1443
        %v1457 = vpop.f32.mrf.mxu0
        %v1458 = vadd.f32 0.0, %v1457
        %v1459 = vpop.f32.mrf.mxu0
        %1460 = vdwg.mxu0
        %v1461 = vmul.f32 %v1458, 0.35355338
        %v1462 = vsel %vm930, %v1461, -inf
        %1463 = vmax.xlane.f32.xlu0 %v1462
        %v1464 = vpop.xlane.xlu0 %1463
        %v1465 = vsub.f32 %v1461, %v1464
        %v1466 = vmul.f32 %v1465, 1.442695
        %v1467 = vpow.pop %v1466
        %v1468 = vsel %vm930, %v1467, 0.0
        %1469 = vadd.xlane.f32.xlu0 %v1468
        %v1470 = vpop.xlane.xlu0 %1469
        %v1471 = vrcp.pop %v1470
        %v1472 = vmul.f32 %v1467, %v1471
        %v1473 = vpack.c.bf16 %v1472, %v1472
        %1474 = vrot.lane.b32.xlu0 %v1325, 80
        %v1475 = vpop.permute.xlu0 %1474
        %v1477 = vsel %vm930, %v1473, 0
        %v1480 = vsel %vm968, %v1475, 0
        %1482 = vmatpush.bf16.msra.mxu0 0
        %1483 = vmatpush.bf16.msra.mxu0 0
        %1484 = vmatpush.bf16.msra.mxu0 0
        %1485 = vmatpush.bf16.msra.mxu0 0
        %1486 = vmatpush.bf16.msra.mxu0 0
        %1487 = vmatpush.bf16.msra.mxu0 0
        %1488 = vmatpush.bf16.msra.mxu0 0
        %1489 = vmatpush.bf16.msra.mxu0 %v1480
        %1490 = vmatmul.bf16.gmra.mxu0 %v1477
        %v1491 = vpop.f32.mrf.mxu0
        %v1492 = vadd.f32 0.0, %v1491
        %v1493 = vpop.f32.mrf.mxu0
        %1494 = vdwg.mxu0
        %1495 = vrot.lane.b32.xlu0 %v1324, 104
        %v1496 = vpop.permute.xlu0 %1495
        %1497 = vrot.lane.b32.xlu0 %v1325, 104
        %v1498 = vpop.permute.xlu0 %1497
        %v1500 = vsel %vm930, %v1496, 0
        %v1503 = vsel %vm930, %v1498, 0
        %1505 = vmatpush.bf16.xpose.msra.mxu0 0
        %1506 = vmatpush.bf16.xpose.msra.mxu0 0
        %1507 = vmatpush.bf16.xpose.msra.mxu0 0
        %1508 = vmatpush.bf16.xpose.msra.mxu0 0
        %1509 = vmatpush.bf16.xpose.msra.mxu0 0
        %1510 = vmatpush.bf16.xpose.msra.mxu0 0
        %1511 = vmatpush.bf16.xpose.msra.mxu0 0
        %1512 = vmatpush.bf16.xpose.msra.mxu0 %v1503
        %1513 = vmatmul.bf16.gmra.mxu0 %v1500
        %v1514 = vpop.f32.mrf.mxu0
        %v1515 = vadd.f32 0.0, %v1514
        %v1516 = vpop.f32.mrf.mxu0
        %1517 = vdwg.mxu0
        %v1518 = vmul.f32 %v1515, 0.35355338
        %v1519 = vsel %vm930, %v1518, -inf
        %1520 = vmax.xlane.f32.xlu0 %v1519
        %v1521 = vpop.xlane.xlu0 %1520
        %v1522 = vsub.f32 %v1518, %v1521
        %v1523 = vmul.f32 %v1522, 1.442695
        %v1524 = vpow.pop %v1523
        %v1525 = vsel %vm930, %v1524, 0.0
        %1526 = vadd.xlane.f32.xlu0 %v1525
        %v1527 = vpop.xlane.xlu0 %1526
        %v1528 = vrcp.pop %v1527
        %v1529 = vmul.f32 %v1524, %v1528
        %v1530 = vpack.c.bf16 %v1529, %v1529
        %1531 = vrot.lane.b32.xlu0 %v1325, 72
        %v1532 = vpop.permute.xlu0 %1531
        %v1534 = vsel %vm930, %v1530, 0
        %v1537 = vsel %vm968, %v1532, 0
        %1539 = vmatpush.bf16.msra.mxu0 0
        %1540 = vmatpush.bf16.msra.mxu0 0
        %1541 = vmatpush.bf16.msra.mxu0 0
        %1542 = vmatpush.bf16.msra.mxu0 0
        %1543 = vmatpush.bf16.msra.mxu0 0
        %1544 = vmatpush.bf16.msra.mxu0 0
        %1545 = vmatpush.bf16.msra.mxu0 0
        %1546 = vmatpush.bf16.msra.mxu0 %v1537
        %1547 = vmatmul.bf16.gmra.mxu0 %v1534
        %v1548 = vpop.f32.mrf.mxu0
        %v1549 = vadd.f32 0.0, %v1548
        %v1550 = vpop.f32.mrf.mxu0
        %1551 = vdwg.mxu0
        %1553 = vrot.lane.b32.xlu0 %v1435, 8
        %v1554 = vpop.permute.xlu0 %1553
        %1557 = vrot.lane.b32.xlu0 %v1492, 16
        %v1558 = vpop.permute.xlu0 %1557
        %1561 = vrot.lane.b32.xlu0 %v1549, 24
        %v1562 = vpop.permute.xlu0 %1561
        %v1564 = vsel %vm930, %v1377, %v1554
        %v1565 = vsel %vm1169, %v1564, %v1558
        %v1566 = vsel %vm1171, %v1565, %v1562
        %v1567 = vld [vmem:[%s12] sm:$0xf]
        %v1568 = vld [vmem:[%s12 + $0x4] sm:$0xf]
        %v1569 = vld [vmem:[%s12 + $0x8] sm:$0xf]
        %v1570 = vld [vmem:[%s12 + $0xc] sm:$0xf]
        %v1571 = vpack.c.bf16 %v1566, %v1566
        %v1572 = vld [vmem:[#allocation12] sm:$0x1]
        %v1574 = vperm.slane %v1572, 0
        %v1580 = vunpack.c.l.b16 %v1567
        %v1581 = vunpack.c.l.b16 %v1568
        %v1582 = vunpack.c.l.b16 %v1569
        %v1583 = vunpack.c.l.b16 %v1570
        %v1584 = vpack.c.b16 %v1581, %v1580
        %v1585 = vpack.c.b16 %v1583, %v1582
        %v1589 = vsel %vm909, %v1571, 0
        %1591 = vmatpush.bf16.msra.mxu0 0
        %1592 = vmatpush.bf16.msra.mxu0 0
        %1593 = vmatpush.bf16.msra.mxu0 0
        %1594 = vmatpush.bf16.msra.mxu0 0
        %1595 = vmatpush.bf16.msra.mxu0 0
        %1596 = vmatpush.bf16.msra.mxu0 0
        %1597 = vmatpush.bf16.msra.mxu0 %v1585
        %1598 = vmatpush.bf16.msra.mxu0 %v1584
        %1599 = vmatmul.bf16.gmra.mxu0 %v1589
        %v1600 = vpop.f32.mrf.mxu0
        %v1601 = vadd.f32 %v1574, %v1600
        %v1602 = vpop.f32.mrf.mxu0
        %1603 = vdwg.mxu0
        %v1604 = vadd.f32 %v1601, %v1249
        %v1605 = vld [vmem:[#allocation13] sm:$0x1]
        %v1606 = vld [vmem:[#allocation15] sm:$0x1]
        %v1607 = vsel %vm909, %v1604, 0.0
        %1608 = vadd.xlane.f32.xlu0 %v1607
        %v1609 = vpop.xlane.xlu0 %1608
        %v1610 = vmul.f32 %v1609, %v1222
        %v1611 = vsub.f32 %v1604, %v1610
        %v1612 = vmul.f32 %v1611, %v1611
        %v1613 = vsel %vm909, %v1612, 0.0
        %1614 = vadd.xlane.f32.xlu0 %v1613
        %v1615 = vpop.xlane.xlu0 %1614
        %v1616 = vmul.f32 %v1615, %v1222
        %v1617 = vadd.f32 %v1616, 1e-05
        %v1618 = vrsqrt.pop %v1617
        %v1619 = vmul.f32 %v1618, %v1617
        %v1620 = vmul.f32 %v1619, %v1618
        %v1621 = vmul.f32 0.5, %v1620
        %v1622 = vsub.f32 1.5, %v1621
        %v1623 = vmul.f32 %v1618, %v1622
        %vm1624 = vweird.f32 %v1617
        %vm1625 = vweird.f32 %v1618
        %vm1626 = vmor %vm1624, %vm1625
        %v1627 = vsel %vm1626, %v1618, %v1623
        %v1628 = vmul.f32 %v1611, %v1627
        %v1630 = vperm.slane %v1605, 0
        %v1632 = vmul.f32 %v1628, %v1630
        %v1634 = vperm.slane %v1606, 0
        %v1636 = vadd.f32 %v1632, %v1634
        %v1637 = vld [vmem:[%s16] sm:$0xf]
        %v1638 = vld [vmem:[%s16 + $0x4] sm:$0xf]
        %v1639 = vld [vmem:[%s16 + $0x8] sm:$0xf]
        %v1640 = vld [vmem:[%s16 + $0xc] sm:$0xf]
        %v1641 = vpack.c.bf16 %v1636, %v1636
        %v1642 = vld [vmem:[#allocation16] sm:$0x1]
        %v1644 = vperm.slane %v1642, 0
        %v1650 = vunpack.c.l.b16 %v1637
        %v1651 = vunpack.c.l.b16 %v1638
        %v1652 = vunpack.c.l.b16 %v1639
        %v1653 = vunpack.c.l.b16 %v1640
        %v1654 = vpack.c.b16 %v1651, %v1650
        %v1655 = vpack.c.b16 %v1653, %v1652
        %v1659 = vsel %vm909, %v1641, 0
        %1661 = vmatpush.bf16.msra.mxu0 0
        %1662 = vmatpush.bf16.msra.mxu0 0
        %1663 = vmatpush.bf16.msra.mxu0 0
        %1664 = vmatpush.bf16.msra.mxu0 0
        %1665 = vmatpush.bf16.msra.mxu0 0
        %1666 = vmatpush.bf16.msra.mxu0 0
        %1667 = vmatpush.bf16.msra.mxu0 %v1655
        %1668 = vmatpush.bf16.msra.mxu0 %v1654
        %1669 = vmatmul.bf16.gmra.mxu0 %v1659
        %v1670 = vpop.f32.mrf.mxu0
        %v1671 = vadd.f32 %v1644, %v1670
        %v1672 = vpop.f32.mrf.mxu0
        %1673 = vdwg.mxu0
        %v1674 = vmax.f32 %v1671, 0.0
        %v1675 = vld [vmem:[%s18] sm:$0xf]
        %v1676 = vld [vmem:[%s18 + $0x4] sm:$0xf]
        %v1677 = vld [vmem:[%s18 + $0x8] sm:$0xf]
        %v1678 = vld [vmem:[%s18 + $0xc] sm:$0xf]
        %v1679 = vld [vmem:[%s18 + $0x10] sm:$0xf]
        %v1680 = vld [vmem:[%s18 + $0x14] sm:$0xf]
        %v1681 = vld [vmem:[%s18 + $0x18] sm:$0xf]
        %v1682 = vld [vmem:[%s18 + $0x1c] sm:$0xf]
        %v1683 = vpack.c.bf16 %v1674, %v1674
        %v1684 = vld [vmem:[#allocation18] sm:$0x1]
        %v1686 = vperm.slane %v1684, 0
        %v1696 = vunpack.c.l.b16 %v1675
        %v1697 = vunpack.c.l.b16 %v1676
        %v1698 = vunpack.c.l.b16 %v1677
        %v1699 = vunpack.c.l.b16 %v1678
        %v1700 = vunpack.c.l.b16 %v1679
        %v1701 = vunpack.c.l.b16 %v1680
        %v1702 = vunpack.c.l.b16 %v1681
        %v1703 = vunpack.c.l.b16 %v1682
        %v1704 = vpack.c.b16 %v1697, %v1696
        %v1705 = vpack.c.b16 %v1699, %v1698
        %v1706 = vpack.c.b16 %v1701, %v1700
        %v1707 = vpack.c.b16 %v1703, %v1702
        %vm1712 = vcmask 523264
        %v1714 = vsel %vm1712, %v1683, 0
        %1716 = vmatpush.bf16.msra.mxu0 0
        %1717 = vmatpush.bf16.msra.mxu0 0
        %1718 = vmatpush.bf16.msra.mxu0 0
        %1719 = vmatpush.bf16.msra.mxu0 0
        %1720 = vmatpush.bf16.msra.mxu0 %v1707
        %1721 = vmatpush.bf16.msra.mxu0 %v1706
        %1722 = vmatpush.bf16.msra.mxu0 %v1705
        %1723 = vmatpush.bf16.msra.mxu0 %v1704
        %1724 = vmatmul.bf16.gmra.mxu0 %v1714
        %v1725 = vpop.f32.mrf.mxu0
        %v1726 = vadd.f32 %v1686, %v1725
        %v1727 = vpop.f32.mrf.mxu0
        %1728 = vdwg.mxu0
        %v1729 = vadd.f32 %v1726, %v1636
        %v1730 = vld [vmem:[#allocation19] sm:$0x1]
        %v1731 = vld [vmem:[#allocation21] sm:$0x1]
        %v1732 = vsel %vm909, %v1729, 0.0
        %1733 = vadd.xlane.f32.xlu0 %v1732
        %v1734 = vpop.xlane.xlu0 %1733
        %v1735 = vmul.f32 %v1734, %v1222
        %v1736 = vsub.f32 %v1729, %v1735
        %v1737 = vmul.f32 %v1736, %v1736
        %v1738 = vsel %vm909, %v1737, 0.0
        %1739 = vadd.xlane.f32.xlu0 %v1738
        %v1740 = vpop.xlane.xlu0 %1739
        %v1741 = vmul.f32 %v1740, %v1222
        %v1742 = vadd.f32 %v1741, 1e-05
        %v1743 = vrsqrt.pop %v1742
        %v1744 = vmul.f32 %v1743, %v1742
        %v1745 = vmul.f32 %v1744, %v1743
        %v1746 = vmul.f32 0.5, %v1745
        %v1747 = vsub.f32 1.5, %v1746
        %v1748 = vmul.f32 %v1743, %v1747
        %vm1749 = vweird.f32 %v1742
        %vm1750 = vweird.f32 %v1743
        %vm1751 = vmor %vm1749, %vm1750
        %v1752 = vsel %vm1751, %v1743, %v1748
        %v1753 = vmul.f32 %v1736, %v1752
        %v1755 = vperm.slane %v1730, 0
        %v1757 = vmul.f32 %v1753, %v1755
        %v1759 = vperm.slane %v1731, 0
        %v1761 = vadd.f32 %v1757, %v1759
        %1762 = vst.msk [vmem:[%s884] sm:$0xff] %vm909, %v1761
        %p1763 = scmp.lt.s32.totalorder %s40, 1
        %s1764 = scalar_select %p1763, %s40, 1
        %s1765 = smul.addr %s1764, 8
        %s1766 = scalar_lea.vmem %s22, %s1765
        // Predicated region
        $region161: #{time_series_transformer_fwd.13} parent=107 // pred_check
          %p1767 = pneg %p530
        $region162: #{time_series_transformer_fwd.13} parent=107 // pred_check_branch
          %1769 = sbr.rel (%p1767) target = $region164
        $region163: #{time_series_transformer_fwd.13} parent=107 // pred_region
          _
        $region164: #{time_series_transformer_fwd.13} parent=107 // pred_fallthru
          _
      $region108: #{time_series_transformer_fwd.13} parent=5 // pred_fallthru
        _
      %p1770 = scmp.le.s32.totalorder 2, %s35
      // Predicated region
      $region165: #{time_series_transformer_fwd.13} parent=5 // pred_check
        %p1771 = pneg %p1770
      $region166: #{time_series_transformer_fwd.13} parent=5 // pred_check_branch
        %1773 = sbr.rel (%p1771) target = $region168
      $region167: #{time_series_transformer_fwd.13} parent=5 // pred_region
        %s1774 = ssub.s32 %s35, 2
        // Predicated region
        $region169: #{time_series_transformer_fwd.13} parent=167 // pred_check
          %p1775 = pneg %p536
        $region170: #{time_series_transformer_fwd.13} parent=167 // pred_check_branch
          %1777 = sbr.rel (%p1775) target = $region172
        $region171: #{time_series_transformer_fwd.13} parent=167 // pred_region
          %p1778 = scmp.lt.s32.totalorder %s41, 1
          %s1779 = scalar_select %p1778, %s41, 1
          %s1780 = smul.addr %s1779, 8
          %s1781 = scalar_lea.vmem %s22, %s1780
        $region172: #{time_series_transformer_fwd.13} parent=167 // pred_fallthru
          _
      $region168: #{time_series_transformer_fwd.13} parent=5 // pred_fallthru
        _
    $region6: #{time_series_transformer_fwd.13} parent=1 // loop_footer
      %s39 = sadd.s32 1, %s35
    $region7: #{time_series_transformer_fwd.13} parent=1 // loop_footer_branch
      %34 = sbr.rel target = $region3
    $region8: #{time_series_transformer_fwd.13} parent=1 // loop_exit
      _
    %1782 = vsyncpa [#allocation3], 1
    %s1783 = scalar_lea.sflag [#allocation3], 1
    %1784 = vsyncpa %s1783, 1
    %1785 = vsyncpa [#allocation5], 1
    %1786 = vsyncpa [#allocation8], 1
    %1787 = vsyncpa [#allocation11], 1
    %1788 = vsyncpa [#allocation14], 1
    %1789 = vsyncpa [#allocation17], 1
    %1790 = vsyncpa [#allocation20], 1

</llo_original>
